<compile_context>
chip_gen: v7x
topology: tpu7x:2x2x1
jax: 0.10.0
libtpu: 0.0.40
codegen_flags: <defaults>
</compile_context>

<pallas_src>
import functools

import numpy as np
import jax
import jax.numpy as jnp
from jax import lax
from jax.experimental import pallas as pl
from jax.experimental.pallas import tpu as pltpu

# ----------------------------- tiny synthetic config -----------------------------
IMG = 16          # input spatial size
PATCH = 4         # patch size   -> 4x4 = 16 tokens after patch embed
IN_CHANS = 3
EMBED = 32        # embed_dim
DEPTHS = (2, 2)   # two stages
HEADS = (2, 4)
WINDOW = 2
MLP_RATIO = 4
EPS = 1e-5
NUM_FEATURES = EMBED * 2 ** (len(DEPTHS) - 1)   # analogue of self.num_features


def _block_cfg():
    """Static (window, shift) per block per stage (kept OUT of the jitted params)."""
    cfgs = []
    res = IMG // PATCH
    for i, depth in enumerate(DEPTHS):
        window = min(WINDOW, res)
        blocks = []
        for bi in range(depth):
            shift = 0 if (bi % 2 == 0) else WINDOW // 2
            if res <= WINDOW:
                shift = 0
            blocks.append((window, shift))
        cfgs.append(blocks)
        if i < len(DEPTHS) - 1:
            res //= 2
    return cfgs


BLOCK_CFG = _block_cfg()

# ----------------------------- Pallas kernels -----------------------------


def _layernorm(x, g, b):
    mu = jnp.mean(x, axis=-1, keepdims=True)
    xc = x - mu
    var = jnp.mean(xc * xc, axis=-1, keepdims=True)
    return xc * lax.rsqrt(var + EPS) * g + b


def _patch_embed_kernel(p_ref, w_ref, b_ref, g_ref, beta_ref, pos_ref, o_ref):
    # conv-as-matmul + bias + LayerNorm + absolute position embedding, fused.
    t = jnp.dot(p_ref[...], w_ref[...], preferred_element_type=jnp.float32) + b_ref[...]
    t = _layernorm(t, g_ref[...], beta_ref[...])
    o_ref[...] = t + pos_ref[...]


def _patch_merge_kernel(x_ref, g_ref, b_ref, w_ref, o_ref):
    # LayerNorm fused into the 4C -> 2C reduction matmul (no bias).
    h = _layernorm(x_ref[...], g_ref[...], b_ref[...])
    o_ref[...] = jnp.dot(h, w_ref[...], preferred_element_type=jnp.float32)


def _final_norm_kernel(x_ref, g_ref, b_ref, o_ref):
    o_ref[...] = _layernorm(x_ref[...], g_ref[...], b_ref[...])


def _swin_block_kernel(*refs, heads, head_dim, scale, has_mask):
    """One whole Swin block for a group of G windows, fully fused in VMEM.

    Tensors inside the kernel are [G, N, *] with G = windows in this grid step,
    N = window*window tokens.  Dense matmuls use batched einsums with the 2-D
    weights broadcast over G (tiny at these sizes); attention is a batched
    einsum over windows, so there is no per-window/per-head grid step.
    """
    if has_mask:
        (xw_ref, g1_ref, b1_ref, qkvw_ref, qkvb_ref, rel_ref, mask_ref,
         projw_ref, projb_ref, g2_ref, b2_ref,
         fc1w_ref, fc1b_ref, fc2w_ref, fc2b_ref, o_ref) = refs
    else:
        (xw_ref, g1_ref, b1_ref, qkvw_ref, qkvb_ref, rel_ref,
         projw_ref, projb_ref, g2_ref, b2_ref,
         fc1w_ref, fc1b_ref, fc2w_ref, fc2b_ref, o_ref) = refs
        mask_ref = None

    xw = xw_ref[...]                              # [G, N, C]
    G, N, C = xw.shape
    hid = fc1w_ref.shape[-1]

    # ---------------- attention branch: LN1 folded into the QKV matmul -------------
    h = _layernorm(xw, g1_ref[...], b1_ref[...])
    qkv_w = jnp.broadcast_to(qkvw_ref[...], (G, C, 3 * C))
    qkv = jnp.einsum('gnc,gck->gnk', h, qkv_w,
                     preferred_element_type=jnp.float32) + qkvb_ref[...]   # [G, N, 3C]

    proj_w = jnp.broadcast_to(projw_ref[...], (G, C, C))
    rel = rel_ref[...]                            # [heads, N, N]
    mask = mask_ref[...] if has_mask else None    # [G, N, N]

    # per-head attention; the head-merge is folded into the proj matmul:
    #   concat_h(o_h) @ Wp  ==  sum_h  o_h @ Wp[h*d:(h+1)*d, :]
    attn = jnp.zeros((G, N, C), jnp.float32)
    for hd in range(heads):
        lo = hd * head_dim
        q = qkv[:, :, lo:lo + head_dim] * scale                  # [G, N, d]
        k = qkv[:, :, C + lo:C + lo + head_dim]                  # [G, N, d]
        v = qkv[:, :, 2 * C + lo:2 * C + lo + head_dim]          # [G, N, d]
        s = jnp.einsum('gnd,gmd->gnm', q, k,
                       preferred_element_type=jnp.float32)       # [G, N, N]
        s = s + rel[hd:hd + 1]                                   # rel-pos bias
        if has_mask:
            s = s + mask                                         # shifted-window mask
        s = s - jnp.max(s, axis=-1, keepdims=True)
        p = jnp.exp(s)
        p = p * pl.reciprocal(jnp.sum(p, axis=-1, keepdims=True), approx=True)
        o = jnp.einsum('gnm,gmd->gnd', p, v,
                       preferred_element_type=jnp.float32)       # [G, N, d]
        attn = attn + jnp.einsum('gnd,gdc->gnc', o, proj_w[:, lo:lo + head_dim, :],
                                 preferred_element_type=jnp.float32)
    x1 = xw + attn + projb_ref[...]               # residual add fused in the epilogue

    # ---------------- MLP branch: LN2 -> fc1 + GELU -> fc2 -> residual -------------
    h2 = _layernorm(x1, g2_ref[...], b2_ref[...])
    fc1_w = jnp.broadcast_to(fc1w_ref[...], (G, C, hid))
    y = jnp.einsum('gnc,gck->gnk', h2, fc1_w,
                   preferred_element_type=jnp.float32) + fc1b_ref[...]
    # TODO(synk): timm's nn.GELU is exact-erf GELU; tanh approximation used
    # here (erf lowering is not guaranteed in Mosaic), diff ~1e-3.
    y = jax.nn.gelu(y, approximate=True)
    fc2_w = jnp.broadcast_to(fc2w_ref[...], (G, hid, C))
    y = jnp.einsum('gnk,gkc->gnc', y, fc2_w,
                   preferred_element_type=jnp.float32) + fc2b_ref[...]
    o_ref[...] = x1 + y


# ----------------------------- static (glue) helpers -----------------------------


def relative_position_index(window):
    coords = np.stack(np.meshgrid(np.arange(window), np.arange(window), indexing="ij"))
    cf = coords.reshape(2, -1)
    rel = (cf[:, :, None] - cf[:, None, :]).transpose(1, 2, 0).copy()
    rel[:, :, 0] += window - 1
    rel[:, :, 1] += window - 1
    rel[:, :, 0] *= 2 * window - 1
    return rel.sum(-1)  # [N, N]


def relative_position_bias(table, window, num_heads):
    idx = relative_position_index(window)
    N = window * window
    bias = table[jnp.asarray(idx.reshape(-1))].reshape(N, N, num_heads)
    return bias.transpose(2, 0, 1)  # [num_heads, N, N]


def shifted_window_mask(H, W, window, shift):
    img_mask = np.zeros((1, H, W, 1), np.float32)
    cnt = 0
    for hs in (slice(0, -window), slice(-window, -shift), slice(-shift, None)):
        for ws in (slice(0, -window), slice(-window, -shift), slice(-shift, None)):
            img_mask[:, hs, ws, :] = cnt
            cnt += 1
    mw = img_mask.reshape(1, H // window, window, W // window, window, 1)
    mw = mw.transpose(0, 1, 3, 2, 4, 5).reshape(-1, window * window)
    diff = mw[:, None, :] - mw[:, :, None]
    mask = np.where(diff != 0, -100.0, 0.0).astype(np.float32)
    return jnp.asarray(mask)  # [nW, N, N]


def window_partition(x, window):
    B, H, W, C = x.shape
    xw = x.reshape(B, H // window, window, W // window, window, C)
    xw = xw.transpose(0, 1, 3, 2, 4, 5)
    return xw.reshape(B * (H // window) * (W // window), window * window, C)


def window_reverse(xw, window, B, H, W):
    C = xw.shape[-1]
    x = xw.reshape(B, H // window, W // window, window, window, C)
    x = x.transpose(0, 1, 3, 2, 4, 5)
    return x.reshape(B, H, W, C)


# ----------------------------- model pieces -----------------------------


def swin_block(p, cfg, x, H, W, num_heads):
    """Whole Swin block = one pallas_call (grid over window groups)."""
    B, L, C = x.shape
    window, shift = cfg
    N = window * window
    nW = (H // window) * (W // window)
    B_ = B * nW
    head_dim = C // num_heads
    hid = MLP_RATIO * C

    xs = x.reshape(B, H, W, C)
    if shift > 0:
        xs = jnp.roll(xs, (-shift, -shift), axis=(1, 2))
    xw = window_partition(xs, window)                                    # [B_, N, C]

    rel = relative_position_bias(p["rel_table"], window, num_heads)      # [heads, N, N]

    # 2 window-groups when possible -> both TensorCores on v7x get work;
    # still only 1-2 grid steps, so per-step overhead stays negligible.
    num_groups = 2 if (B_ % 2 == 0 and B_ >= 2) else 1
    G = B_ // num_groups
    has_mask = shift > 0

    def fixed(shape):
        return pl.BlockSpec(shape, lambda i: (0,) * len(shape))

    win_spec = pl.BlockSpec((G, N, C), lambda i: (i, 0, 0))

    inputs = [
        xw,
        p["norm1_g"].reshape(1, 1, C), p["norm1_b"].reshape(1, 1, C),
        p["qkv_w"].reshape(1, C, 3 * C), p["qkv_b"].reshape(1, 1, 3 * C),
        rel,
    ]
    in_specs = [
        win_spec,
        fixed((1, 1, C)), fixed((1, 1, C)),
        fixed((1, C, 3 * C)), fixed((1, 1, 3 * C)),
        fixed((num_heads, N, N)),
    ]
    if has_mask:
        mask = shifted_window_mask(H, W, window, shift)                  # [nW, N, N]
        inputs.append(jnp.tile(mask, (B, 1, 1)))                         # [B_, N, N]
        in_specs.append(pl.BlockSpec((G, N, N), lambda i: (i, 0, 0)))
    inputs += [
        p["proj_w"].reshape(1, C, C), p["proj_b"].reshape(1, 1, C),
        p["norm2_g"].reshape(1, 1, C), p["norm2_b"].reshape(1, 1, C),
        p["fc1_w"].reshape(1, C, hid), p["fc1_b"].reshape(1, 1, hid),
        p["fc2_w"].reshape(1, hid, C), p["fc2_b"].reshape(1, 1, C),
    ]
    in_specs += [
        fixed((1, C, C)), fixed((1, 1, C)),
        fixed((1, 1, C)), fixed((1, 1, C)),
        fixed((1, C, hid)), fixed((1, 1, hid)),
        fixed((1, hid, C)), fixed((1, 1, C)),
    ]

    kernel = functools.partial(_swin_block_kernel, heads=num_heads,
                               head_dim=head_dim, scale=head_dim ** -0.5,
                               has_mask=has_mask)
    out = pl.pallas_call(
        kernel,
        out_shape=jax.ShapeDtypeStruct((B_, N, C), jnp.float32),
        grid=(num_groups,),
        in_specs=in_specs,
        out_specs=pl.BlockSpec((G, N, C), lambda i: (i, 0, 0)),
        compiler_params=pltpu.CompilerParams(dimension_semantics=("parallel",)),
    )(*inputs)

    xs = window_reverse(out, window, B, H, W)
    if shift > 0:
        xs = jnp.roll(xs, (shift, shift), axis=(1, 2))
    return xs.reshape(B, L, C)


def patch_embed(pe, pos_embed, x):
    B = x.shape[0]
    nH = nW = IMG // PATCH
    L = nH * nW
    K = IN_CHANS * PATCH * PATCH

    # Conv2d(k=4, s=4) as patch-extract + matmul; LN and +abs_pos fused in kernel.
    patches = x.reshape(B, IN_CHANS, nH, PATCH, nW, PATCH)
    patches = patches.transpose(0, 2, 4, 1, 3, 5).reshape(B * L, K)
    w = pe["proj_w"].reshape(EMBED, -1).T                                # [K, EMBED]
    pos = jnp.broadcast_to(pos_embed, (B, L, EMBED)).reshape(B * L, EMBED)

    M = B * L
    num_tiles = 2 if M % 16 == 0 else 1       # parallel row tiles (v7x: 2 cores)
    tm = M // num_tiles
    out = pl.pallas_call(
        _patch_embed_kernel,
        out_shape=jax.ShapeDtypeStruct((M, EMBED), jnp.float32),
        grid=(num_tiles,),
        in_specs=[
            pl.BlockSpec((tm, K), lambda i: (i, 0)),
            pl.BlockSpec((K, EMBED), lambda i: (0, 0)),
            pl.BlockSpec((1, EMBED), lambda i: (0, 0)),
            pl.BlockSpec((1, EMBED), lambda i: (0, 0)),
            pl.BlockSpec((1, EMBED), lambda i: (0, 0)),
            pl.BlockSpec((tm, EMBED), lambda i: (i, 0)),
        ],
        out_specs=pl.BlockSpec((tm, EMBED), lambda i: (i, 0)),
        compiler_params=pltpu.CompilerParams(dimension_semantics=("parallel",)),
    )(patches, w, pe["proj_b"].reshape(1, EMBED),
      pe["norm_g"].reshape(1, EMBED), pe["norm_b"].reshape(1, EMBED), pos)
    return out.reshape(B, L, EMBED)


def patch_merging(p, x, H, W):
    B, L, C = x.shape
    xs = x.reshape(B, H, W, C)
    x0 = xs[:, 0::2, 0::2, :]
    x1 = xs[:, 1::2, 0::2, :]
    x2 = xs[:, 0::2, 1::2, :]
    x3 = xs[:, 1::2, 1::2, :]
    xc = jnp.concatenate([x0, x1, x2, x3], axis=-1)
    M = B * (H // 2) * (W // 2)
    xc = xc.reshape(M, 4 * C)
    out = pl.pallas_call(
        _patch_merge_kernel,
        out_shape=jax.ShapeDtypeStruct((M, 2 * C), jnp.float32),
        grid=(1,),
        in_specs=[
            pl.BlockSpec((M, 4 * C), lambda i: (0, 0)),
            pl.BlockSpec((1, 4 * C), lambda i: (0, 0)),
            pl.BlockSpec((1, 4 * C), lambda i: (0, 0)),
            pl.BlockSpec((4 * C, 2 * C), lambda i: (0, 0)),
        ],
        out_specs=pl.BlockSpec((M, 2 * C), lambda i: (0, 0)),
    )(xc, p["norm_g"].reshape(1, 4 * C), p["norm_b"].reshape(1, 4 * C), p["red_w"])
    return out.reshape(B, (H // 2) * (W // 2), 2 * C), H // 2, W // 2


def final_norm(g, b, x):
    B, L, C = x.shape
    out = pl.pallas_call(
        _final_norm_kernel,
        out_shape=jax.ShapeDtypeStruct((B * L, C), jnp.float32),
        grid=(1,),
        in_specs=[
            pl.BlockSpec((B * L, C), lambda i: (0, 0)),
            pl.BlockSpec((1, C), lambda i: (0, 0)),
            pl.BlockSpec((1, C), lambda i: (0, 0)),
        ],
        out_specs=pl.BlockSpec((B * L, C), lambda i: (0, 0)),
    )(x.reshape(B * L, C), g.reshape(1, C), b.reshape(1, C))
    return out.reshape(B, L, C)


def swin_forward(params, x):
    # patch_embed (+ absolute_pos_embed, pos_drop is identity at eval)
    t = patch_embed(params["patch_embed"], params["absolute_pos_embed"], x)

    H = W = IMG // PATCH
    for i, layer in enumerate(params["layers"]):
        for bi, blk in enumerate(layer["blocks"]):
            t = swin_block(blk, BLOCK_CFG[i][bi], t, H, W, HEADS[i])
        if layer["downsample"] is not None:
            t, H, W = patch_merging(layer["downsample"], t, H, W)

    t = final_norm(params["norm_g"], params["norm_b"], t)
    return t.transpose(0, 2, 1)                  # [B, C, L]


# ----------------------------- deterministic parameter init -----------------------------


def trunc_normal(key, shape, std=0.02):
    return std * jax.random.truncated_normal(key, -2.0, 2.0, shape, jnp.float32)


def init_params(key):
    keys = iter(jax.random.split(key, 256))
    params = {
        "patch_embed": {
            "proj_w": trunc_normal(next(keys), (EMBED, IN_CHANS, PATCH, PATCH)),
            "proj_b": jnp.zeros((EMBED,), jnp.float32),
            "norm_g": jnp.ones((EMBED,), jnp.float32),
            "norm_b": jnp.zeros((EMBED,), jnp.float32),
        },
        "absolute_pos_embed": trunc_normal(next(keys), (1, (IMG // PATCH) ** 2, EMBED)),
    }
    layers = []
    res = IMG // PATCH
    for i, depth in enumerate(DEPTHS):
        dim = EMBED * (2 ** i)
        heads = HEADS[i]
        window = min(WINDOW, res)
        blocks = []
        for _ in range(depth):
            blocks.append({
                "norm1_g": jnp.ones((dim,), jnp.float32),
                "norm1_b": jnp.zeros((dim,), jnp.float32),
                "qkv_w": trunc_normal(next(keys), (dim, 3 * dim)),
                "qkv_b": jnp.zeros((3 * dim,), jnp.float32),
                "proj_w": trunc_normal(next(keys), (dim, dim)),
                "proj_b": jnp.zeros((dim,), jnp.float32),
                "rel_table": trunc_normal(next(keys), ((2 * window - 1) ** 2, heads)),
                "norm2_g": jnp.ones((dim,), jnp.float32),
                "norm2_b": jnp.zeros((dim,), jnp.float32),
                "fc1_w": trunc_normal(next(keys), (dim, MLP_RATIO * dim)),
                "fc1_b": jnp.zeros((MLP_RATIO * dim,), jnp.float32),
                "fc2_w": trunc_normal(next(keys), (MLP_RATIO * dim, dim)),
                "fc2_b": jnp.zeros((dim,), jnp.float32),
            })
        layer = {"blocks": blocks, "downsample": None}
        if i < len(DEPTHS) - 1:
            layer["downsample"] = {
                "norm_g": jnp.ones((4 * dim,), jnp.float32),
                "norm_b": jnp.zeros((4 * dim,), jnp.float32),
                "red_w": trunc_normal(next(keys), (4 * dim, 2 * dim)),
            }
            res //= 2
        layers.append(layer)
    params["layers"] = layers
    params["norm_g"] = jnp.ones((NUM_FEATURES,), jnp.float32)
    params["norm_b"] = jnp.zeros((NUM_FEATURES,), jnp.float32)
    return params


# ----------------------------- main -----------------------------

if __name__ == "__main__":
    key = jax.random.PRNGKey(0)
    pkey, xkey = jax.random.split(key)
    params = init_params(pkey)
    x = jax.random.normal(xkey, (2, IN_CHANS, IMG, IMG), jnp.float32)

    fwd = jax.jit(swin_forward)
    out = fwd(params, x)
    out = jax.block_until_ready(out)

    final_L = (IMG // PATCH // 2 ** (len(DEPTHS) - 1)) ** 2
    assert out.shape == (2, NUM_FEATURES, final_L), out.shape
    assert bool(jnp.all(jnp.isfinite(out)))
    print("KERNEL_OK")
</pallas_src>

<mosaic_0001>
module attributes {stable_mosaic.version = 11 : i64} {
  func.func @_patch_embed_kernel(%arg0: i32, %arg1: memref<16x48xf32, #tpu.memory_space<vmem>>, %arg2: memref<48x32xf32, #tpu.memory_space<vmem>>, %arg3: memref<1x32xf32, #tpu.memory_space<vmem>>, %arg4: memref<1x32xf32, #tpu.memory_space<vmem>>, %arg5: memref<1x32xf32, #tpu.memory_space<vmem>>, %arg6: memref<16x32xf32, #tpu.memory_space<vmem>>, %arg7: memref<16x32xf32, #tpu.memory_space<vmem>>) attributes {dimension_semantics = [#tpu.dimension_semantics<parallel>], iteration_bounds = array<i64: 2>, scalar_prefetch = 0 : i64, scratch_operands = 0 : i64, tpu.core_type = #tpu.core_type<tc>, window_params = [{transform_indices = @transform_0, window_bounds = array<i64: 16, 48>}, {pipeline_mode = #tpu.pipeline_mode<synchronous>, transform_indices = @transform_1, window_bounds = array<i64: 48, 32>}, {pipeline_mode = #tpu.pipeline_mode<synchronous>, transform_indices = @transform_2, window_bounds = array<i64: 1, 32>}, {pipeline_mode = #tpu.pipeline_mode<synchronous>, transform_indices = @transform_3, window_bounds = array<i64: 1, 32>}, {pipeline_mode = #tpu.pipeline_mode<synchronous>, transform_indices = @transform_4, window_bounds = array<i64: 1, 32>}, {transform_indices = @transform_5, window_bounds = array<i64: 16, 32>}, {transform_indices = @transform_6, window_bounds = array<i64: 16, 32>}]} {
    %c0 = arith.constant 0 : index
    %c0_0 = arith.constant 0 : index
    %0 = vector.load %arg1[%c0, %c0_0] : memref<16x48xf32, #tpu.memory_space<vmem>>, vector<16x48xf32>
    %c0_1 = arith.constant 0 : index
    %c0_2 = arith.constant 0 : index
    %1 = vector.load %arg2[%c0_1, %c0_2] : memref<48x32xf32, #tpu.memory_space<vmem>>, vector<48x32xf32>
    %cst = arith.constant dense<0.000000e+00> : vector<16x32xf32>
    %2 = tpu.matmul %0, %1, %cst {dimension_numbers = #tpu.dot_dimension_numbers<[1], [0], [0], [1], [0, 0, 1, 1], [], []>} : vector<16x48xf32>, vector<48x32xf32>, vector<16x32xf32> -> vector<16x32xf32>
    %c0_3 = arith.constant 0 : index
    %c0_4 = arith.constant 0 : index
    %3 = vector.load %arg3[%c0_3, %c0_4] : memref<1x32xf32, #tpu.memory_space<vmem>>, vector<1x32xf32>
    %4 = vector.broadcast %3 : vector<1x32xf32> to vector<16x32xf32>
    %5 = arith.addf %2, %4 : vector<16x32xf32>
    %c0_5 = arith.constant 0 : index
    %c0_6 = arith.constant 0 : index
    %6 = vector.load %arg4[%c0_5, %c0_6] : memref<1x32xf32, #tpu.memory_space<vmem>>, vector<1x32xf32>
    %c0_7 = arith.constant 0 : index
    %c0_8 = arith.constant 0 : index
    %7 = vector.load %arg5[%c0_7, %c0_8] : memref<1x32xf32, #tpu.memory_space<vmem>>, vector<1x32xf32>
    %cst_9 = arith.constant dense<0.000000e+00> : vector<16xf32>
    %8 = vector.multi_reduction <add>, %5, %cst_9 [1] : vector<16x32xf32> to vector<16xf32>
    %9 = vector.shape_cast %8 : vector<16xf32> to vector<16x1xf32>
    %cst_10 = arith.constant 3.200000e+01 : f32
    %10 = vector.broadcast %cst_10 : f32 to vector<16x1xf32>
    %11 = arith.divf %9, %10 : vector<16x1xf32>
    %12 = vector.broadcast %11 : vector<16x1xf32> to vector<16x32xf32>
    %13 = arith.subf %5, %12 : vector<16x32xf32>
    %14 = arith.mulf %13, %13 : vector<16x32xf32>
    %cst_11 = arith.constant dense<0.000000e+00> : vector<16xf32>
    %15 = vector.multi_reduction <add>, %14, %cst_11 [1] : vector<16x32xf32> to vector<16xf32>
    %16 = vector.shape_cast %15 : vector<16xf32> to vector<16x1xf32>
    %cst_12 = arith.constant 3.200000e+01 : f32
    %17 = vector.broadcast %cst_12 : f32 to vector<16x1xf32>
    %18 = arith.divf %16, %17 : vector<16x1xf32>
    %cst_13 = arith.constant 9.99999974E-6 : f32
    %19 = vector.broadcast %cst_13 : f32 to vector<16x1xf32>
    %20 = arith.addf %18, %19 : vector<16x1xf32>
    %21 = math.rsqrt %20 : vector<16x1xf32>
    %22 = vector.broadcast %21 : vector<16x1xf32> to vector<16x32xf32>
    %23 = arith.mulf %13, %22 : vector<16x32xf32>
    %24 = vector.broadcast %6 : vector<1x32xf32> to vector<16x32xf32>
    %25 = arith.mulf %23, %24 : vector<16x32xf32>
    %26 = vector.broadcast %7 : vector<1x32xf32> to vector<16x32xf32>
    %27 = arith.addf %25, %26 : vector<16x32xf32>
    %c0_14 = arith.constant 0 : index
    %c0_15 = arith.constant 0 : index
    %28 = vector.load %arg6[%c0_14, %c0_15] : memref<16x32xf32, #tpu.memory_space<vmem>>, vector<16x32xf32>
    %29 = arith.addf %27, %28 : vector<16x32xf32>
    %c0_16 = arith.constant 0 : index
    %c0_17 = arith.constant 0 : index
    %30 = vector.load %arg7[%c0_16, %c0_17] : memref<16x32xf32, #tpu.memory_space<vmem>>, vector<16x32xf32>
    tpu.vector_store %arg7[%c0_16, %c0_17], %29 {strides = array<i32>} : memref<16x32xf32, #tpu.memory_space<vmem>>, vector<16x32xf32>,
    return
  }
  func.func @transform_0(%arg0: i32) -> (i32, i32) {
    %c0_i32 = arith.constant 0 : i32
    %c0_i32_0 = arith.constant 0 : i32
    return %arg0, %c0_i32 : i32, i32
  }
  func.func @transform_1(%arg0: i32) -> (i32, i32) {
    %c0_i32 = arith.constant 0 : i32
    %c0_i32_0 = arith.constant 0 : i32
    %c0_i32_1 = arith.constant 0 : i32
    return %c0_i32, %c0_i32_0 : i32, i32
  }
  func.func @transform_2(%arg0: i32) -> (i32, i32) {
    %c0_i32 = arith.constant 0 : i32
    %c0_i32_0 = arith.constant 0 : i32
    %c0_i32_1 = arith.constant 0 : i32
    return %c0_i32, %c0_i32_0 : i32, i32
  }
  func.func @transform_3(%arg0: i32) -> (i32, i32) {
    %c0_i32 = arith.constant 0 : i32
    %c0_i32_0 = arith.constant 0 : i32
    %c0_i32_1 = arith.constant 0 : i32
    return %c0_i32, %c0_i32_0 : i32, i32
  }
  func.func @transform_4(%arg0: i32) -> (i32, i32) {
    %c0_i32 = arith.constant 0 : i32
    %c0_i32_0 = arith.constant 0 : i32
    %c0_i32_1 = arith.constant 0 : i32
    return %c0_i32, %c0_i32_0 : i32, i32
  }
  func.func @transform_5(%arg0: i32) -> (i32, i32) {
    %c0_i32 = arith.constant 0 : i32
    %c0_i32_0 = arith.constant 0 : i32
    return %arg0, %c0_i32 : i32, i32
  }
  func.func @transform_6(%arg0: i32) -> (i32, i32) {
    %c0_i32 = arith.constant 0 : i32
    %c0_i32_0 = arith.constant 0 : i32
    return %arg0, %c0_i32 : i32, i32
  }
}

module attributes {stable_mosaic.version = 11 : i64} {
  func.func @_swin_block_kernel(%arg0: i32, %arg1: memref<4x4x32xf32, #tpu.memory_space<vmem>>, %arg2: memref<1x1x32xf32, #tpu.memory_space<vmem>>, %arg3: memref<1x1x32xf32, #tpu.memory_space<vmem>>, %arg4: memref<1x32x96xf32, #tpu.memory_space<vmem>>, %arg5: memref<1x1x96xf32, #tpu.memory_space<vmem>>, %arg6: memref<2x4x4xf32, #tpu.memory_space<vmem>>, %arg7: memref<1x32x32xf32, #tpu.memory_space<vmem>>, %arg8: memref<1x1x32xf32, #tpu.memory_space<vmem>>, %arg9: memref<1x1x32xf32, #tpu.memory_space<vmem>>, %arg10: memref<1x1x32xf32, #tpu.memory_space<vmem>>, %arg11: memref<1x32x128xf32, #tpu.memory_space<vmem>>, %arg12: memref<1x1x128xf32, #tpu.memory_space<vmem>>, %arg13: memref<1x128x32xf32, #tpu.memory_space<vmem>>, %arg14: memref<1x1x32xf32, #tpu.memory_space<vmem>>, %arg15: memref<4x4x32xf32, #tpu.memory_space<vmem>>) attributes {dimension_semantics = [#tpu.dimension_semantics<parallel>], iteration_bounds = array<i64: 2>, scalar_prefetch = 0 : i64, scratch_operands = 0 : i64, tpu.core_type = #tpu.core_type<tc>, window_params = [{transform_indices = @transform_0, window_bounds = array<i64: 4, 4, 32>}, {pipeline_mode = #tpu.pipeline_mode<synchronous>, transform_indices = @transform_1, window_bounds = array<i64: 1, 1, 32>}, {pipeline_mode = #tpu.pipeline_mode<synchronous>, transform_indices = @transform_2, window_bounds = array<i64: 1, 1, 32>}, {pipeline_mode = #tpu.pipeline_mode<synchronous>, transform_indices = @transform_3, window_bounds = array<i64: 1, 32, 96>}, {pipeline_mode = #tpu.pipeline_mode<synchronous>, transform_indices = @transform_4, window_bounds = array<i64: 1, 1, 96>}, {pipeline_mode = #tpu.pipeline_mode<synchronous>, transform_indices = @transform_5, window_bounds = array<i64: 2, 4, 4>}, {pipeline_mode = #tpu.pipeline_mode<synchronous>, transform_indices = @transform_6, window_bounds = array<i64: 1, 32, 32>}, {pipeline_mode = #tpu.pipeline_mode<synchronous>, transform_indices = @transform_7, window_bounds = array<i64: 1, 1, 32>}, {pipeline_mode = #tpu.pipeline_mode<synchronous>, transform_indices = @transform_8, window_bounds = array<i64: 1, 1, 32>}, {pipeline_mode = #tpu.pipeline_mode<synchronous>, transform_indices = @transform_9, window_bounds = array<i64: 1, 1, 32>}, {pipeline_mode = #tpu.pipeline_mode<synchronous>, transform_indices = @transform_10, window_bounds = array<i64: 1, 32, 128>}, {pipeline_mode = #tpu.pipeline_mode<synchronous>, transform_indices = @transform_11, window_bounds = array<i64: 1, 1, 128>}, {pipeline_mode = #tpu.pipeline_mode<synchronous>, transform_indices = @transform_12, window_bounds = array<i64: 1, 128, 32>}, {pipeline_mode = #tpu.pipeline_mode<synchronous>, transform_indices = @transform_13, window_bounds = array<i64: 1, 1, 32>}, {transform_indices = @transform_14, window_bounds = array<i64: 4, 4, 32>}]} {
    %c0 = arith.constant 0 : index
    %c0_0 = arith.constant 0 : index
    %c0_1 = arith.constant 0 : index
    %0 = vector.load %arg1[%c0, %c0_0, %c0_1] : memref<4x4x32xf32, #tpu.memory_space<vmem>>, vector<4x4x32xf32>
    %c0_2 = arith.constant 0 : index
    %c0_3 = arith.constant 0 : index
    %c0_4 = arith.constant 0 : index
    %1 = vector.load %arg2[%c0_2, %c0_3, %c0_4] : memref<1x1x32xf32, #tpu.memory_space<vmem>>, vector<1x1x32xf32>
    %c0_5 = arith.constant 0 : index
    %c0_6 = arith.constant 0 : index
    %c0_7 = arith.constant 0 : index
    %2 = vector.load %arg3[%c0_5, %c0_6, %c0_7] : memref<1x1x32xf32, #tpu.memory_space<vmem>>, vector<1x1x32xf32>
    %cst = arith.constant dense<0.000000e+00> : vector<4x4xf32>
    %3 = vector.multi_reduction <add>, %0, %cst [2] : vector<4x4x32xf32> to vector<4x4xf32>
    %4 = vector.shape_cast %3 : vector<4x4xf32> to vector<4x4x1xf32>
    %cst_8 = arith.constant 3.200000e+01 : f32
    %5 = vector.broadcast %cst_8 : f32 to vector<4x4x1xf32>
    %6 = arith.divf %4, %5 : vector<4x4x1xf32>
    %7 = vector.broadcast %6 : vector<4x4x1xf32> to vector<4x4x32xf32>
    %8 = arith.subf %0, %7 : vector<4x4x32xf32>
    %9 = arith.mulf %8, %8 : vector<4x4x32xf32>
    %cst_9 = arith.constant dense<0.000000e+00> : vector<4x4xf32>
    %10 = vector.multi_reduction <add>, %9, %cst_9 [2] : vector<4x4x32xf32> to vector<4x4xf32>
    %11 = vector.shape_cast %10 : vector<4x4xf32> to vector<4x4x1xf32>
    %cst_10 = arith.constant 3.200000e+01 : f32
    %12 = vector.broadcast %cst_10 : f32 to vector<4x4x1xf32>
    %13 = arith.divf %11, %12 : vector<4x4x1xf32>
    %cst_11 = arith.constant 9.99999974E-6 : f32
    %14 = vector.broadcast %cst_11 : f32 to vector<4x4x1xf32>
    %15 = arith.addf %13, %14 : vector<4x4x1xf32>
    %16 = math.rsqrt %15 : vector<4x4x1xf32>
    %17 = vector.broadcast %16 : vector<4x4x1xf32> to vector<4x4x32xf32>
    %18 = arith.mulf %8, %17 : vector<4x4x32xf32>
    %19 = vector.broadcast %1 : vector<1x1x32xf32> to vector<4x4x32xf32>
    %20 = arith.mulf %18, %19 : vector<4x4x32xf32>
    %21 = vector.broadcast %2 : vector<1x1x32xf32> to vector<4x4x32xf32>
    %22 = arith.addf %20, %21 : vector<4x4x32xf32>
    %c0_12 = arith.constant 0 : index
    %c0_13 = arith.constant 0 : index
    %c0_14 = arith.constant 0 : index
    %23 = vector.load %arg4[%c0_12, %c0_13, %c0_14] : memref<1x32x96xf32, #tpu.memory_space<vmem>>, vector<1x32x96xf32>
    %24 = vector.shape_cast %23 : vector<1x32x96xf32> to vector<1x32x96xf32>
    %25 = vector.broadcast %24 : vector<1x32x96xf32> to vector<4x32x96xf32>
    "tpu.trace_start"() <{level = 10 : i32, message = "gnc,gck->gnk"}> : () -> ()
    %cst_15 = arith.constant dense<0.000000e+00> : vector<4x4x96xf32>
    %26 = tpu.matmul %22, %25, %cst_15 {dimension_numbers = #tpu.dot_dimension_numbers<[2], [1], [1], [2], [0, 0, 0, 1, 1, 2], [0], [0]>} : vector<4x4x32xf32>, vector<4x32x96xf32>, vector<4x4x96xf32> -> vector<4x4x96xf32>
    "tpu.trace_stop"() : () -> ()
    %c0_16 = arith.constant 0 : index
    %c0_17 = arith.constant 0 : index
    %c0_18 = arith.constant 0 : index
    %27 = vector.load %arg5[%c0_16, %c0_17, %c0_18] : memref<1x1x96xf32, #tpu.memory_space<vmem>>, vector<1x1x96xf32>
    %28 = vector.broadcast %27 : vector<1x1x96xf32> to vector<4x4x96xf32>
    %29 = arith.addf %26, %28 : vector<4x4x96xf32>
    %c0_19 = arith.constant 0 : index
    %c0_20 = arith.constant 0 : index
    %c0_21 = arith.constant 0 : index
    %30 = vector.load %arg7[%c0_19, %c0_20, %c0_21] : memref<1x32x32xf32, #tpu.memory_space<vmem>>, vector<1x32x32xf32>
    %31 = vector.shape_cast %30 : vector<1x32x32xf32> to vector<1x32x32xf32>
    %32 = vector.broadcast %31 : vector<1x32x32xf32> to vector<4x32x32xf32>
    %c0_22 = arith.constant 0 : index
    %c0_23 = arith.constant 0 : index
    %c0_24 = arith.constant 0 : index
    %33 = vector.load %arg6[%c0_22, %c0_23, %c0_24] : memref<2x4x4xf32, #tpu.memory_space<vmem>>, vector<2x4x4xf32>
    %cst_25 = arith.constant 0.000000e+00 : f32
    %34 = vector.broadcast %cst_25 : f32 to vector<4x4x32xf32>
    %35 = vector.extract_strided_slice %29 {offsets = [0, 0, 0], sizes = [4, 4, 16], strides = [1, 1, 1]} : vector<4x4x96xf32> to vector<4x4x16xf32>
    %cst_26 = arith.constant 2.500000e-01 : f32
    %36 = vector.broadcast %cst_26 : f32 to vector<4x4x16xf32>
    %37 = arith.mulf %35, %36 : vector<4x4x16xf32>
    %38 = vector.extract_strided_slice %29 {offsets = [0, 0, 32], sizes = [4, 4, 16], strides = [1, 1, 1]} : vector<4x4x96xf32> to vector<4x4x16xf32>
    %39 = vector.extract_strided_slice %29 {offsets = [0, 0, 64], sizes = [4, 4, 16], strides = [1, 1, 1]} : vector<4x4x96xf32> to vector<4x4x16xf32>
    "tpu.trace_start"() <{level = 10 : i32, message = "gnd,gmd->gnm"}> : () -> ()
    %cst_27 = arith.constant dense<0.000000e+00> : vector<4x4x4xf32>
    %40 = tpu.matmul %37, %38, %cst_27 {dimension_numbers = #tpu.dot_dimension_numbers<[2], [2], [1], [1], [0, 0, 0, 1, 1, 1], [0], [0]>} : vector<4x4x16xf32>, vector<4x4x16xf32>, vector<4x4x4xf32> -> vector<4x4x4xf32>
    "tpu.trace_stop"() : () -> ()
    %41 = vector.extract_strided_slice %33 {offsets = [0, 0, 0], sizes = [1, 4, 4], strides = [1, 1, 1]} : vector<2x4x4xf32> to vector<1x4x4xf32>
    %42 = vector.broadcast %41 : vector<1x4x4xf32> to vector<4x4x4xf32>
    %43 = arith.addf %40, %42 : vector<4x4x4xf32>
    %cst_28 = arith.constant dense<0xFF800000> : vector<4x4xf32>
    %44 = vector.multi_reduction <maximumf>, %43, %cst_28 [2] : vector<4x4x4xf32> to vector<4x4xf32>
    %45 = vector.shape_cast %44 : vector<4x4xf32> to vector<4x4x1xf32>
    %46 = vector.broadcast %45 : vector<4x4x1xf32> to vector<4x4x4xf32>
    %47 = arith.subf %43, %46 : vector<4x4x4xf32>
    %48 = math.exp %47 : vector<4x4x4xf32>
    %cst_29 = arith.constant dense<0.000000e+00> : vector<4x4xf32>
    %49 = vector.multi_reduction <add>, %48, %cst_29 [2] : vector<4x4x4xf32> to vector<4x4xf32>
    %50 = vector.shape_cast %49 : vector<4x4xf32> to vector<4x4x1xf32>
    %51 = tpu.reciprocal %50 {approx = true} : vector<4x4x1xf32> -> vector<4x4x1xf32>
    %52 = vector.broadcast %51 : vector<4x4x1xf32> to vector<4x4x4xf32>
    %53 = arith.mulf %48, %52 : vector<4x4x4xf32>
    "tpu.trace_start"() <{level = 10 : i32, message = "gnm,gmd->gnd"}> : () -> ()
    %cst_30 = arith.constant dense<0.000000e+00> : vector<4x4x16xf32>
    %54 = tpu.matmul %53, %39, %cst_30 {dimension_numbers = #tpu.dot_dimension_numbers<[2], [1], [1], [2], [0, 0, 0, 1, 1, 2], [0], [0]>} : vector<4x4x4xf32>, vector<4x4x16xf32>, vector<4x4x16xf32> -> vector<4x4x16xf32>
    "tpu.trace_stop"() : () -> ()
    %55 = vector.extract_strided_slice %32 {offsets = [0, 0, 0], sizes = [4, 16, 32], strides = [1, 1, 1]} : vector<4x32x32xf32> to vector<4x16x32xf32>
    "tpu.trace_start"() <{level = 10 : i32, message = "gnd,gdc->gnc"}> : () -> ()
    %cst_31 = arith.constant dense<0.000000e+00> : vector<4x4x32xf32>
    %56 = tpu.matmul %54, %55, %cst_31 {dimension_numbers = #tpu.dot_dimension_numbers<[2], [1], [1], [2], [0, 0, 0, 1, 1, 2], [0], [0]>} : vector<4x4x16xf32>, vector<4x16x32xf32>, vector<4x4x32xf32> -> vector<4x4x32xf32>
    "tpu.trace_stop"() : () -> ()
    %57 = arith.addf %34, %56 : vector<4x4x32xf32>
    %58 = vector.extract_strided_slice %29 {offsets = [0, 0, 16], sizes = [4, 4, 16], strides = [1, 1, 1]} : vector<4x4x96xf32> to vector<4x4x16xf32>
    %cst_32 = arith.constant 2.500000e-01 : f32
    %59 = vector.broadcast %cst_32 : f32 to vector<4x4x16xf32>
    %60 = arith.mulf %58, %59 : vector<4x4x16xf32>
    %61 = vector.extract_strided_slice %29 {offsets = [0, 0, 48], sizes = [4, 4, 16], strides = [1, 1, 1]} : vector<4x4x96xf32> to vector<4x4x16xf32>
    %62 = vector.extract_strided_slice %29 {offsets = [0, 0, 80], sizes = [4, 4, 16], strides = [1, 1, 1]} : vector<4x4x96xf32> to vector<4x4x16xf32>
    "tpu.trace_start"() <{level = 10 : i32, message = "gnd,gmd->gnm"}> : () -> ()
    %cst_33 = arith.constant dense<0.000000e+00> : vector<4x4x4xf32>
    %63 = tpu.matmul %60, %61, %cst_33 {dimension_numbers = #tpu.dot_dimension_numbers<[2], [2], [1], [1], [0, 0, 0, 1, 1, 1], [0], [0]>} : vector<4x4x16xf32>, vector<4x4x16xf32>, vector<4x4x4xf32> -> vector<4x4x4xf32>
    "tpu.trace_stop"() : () -> ()
    %64 = vector.extract_strided_slice %33 {offsets = [1, 0, 0], sizes = [1, 4, 4], strides = [1, 1, 1]} : vector<2x4x4xf32> to vector<1x4x4xf32>
    %65 = vector.broadcast %64 : vector<1x4x4xf32> to vector<4x4x4xf32>
    %66 = arith.addf %63, %65 : vector<4x4x4xf32>
    %cst_34 = arith.constant dense<0xFF800000> : vector<4x4xf32>
    %67 = vector.multi_reduction <maximumf>, %66, %cst_34 [2] : vector<4x4x4xf32> to vector<4x4xf32>
    %68 = vector.shape_cast %67 : vector<4x4xf32> to vector<4x4x1xf32>
    %69 = vector.broadcast %68 : vector<4x4x1xf32> to vector<4x4x4xf32>
    %70 = arith.subf %66, %69 : vector<4x4x4xf32>
    %71 = math.exp %70 : vector<4x4x4xf32>
    %cst_35 = arith.constant dense<0.000000e+00> : vector<4x4xf32>
    %72 = vector.multi_reduction <add>, %71, %cst_35 [2] : vector<4x4x4xf32> to vector<4x4xf32>
    %73 = vector.shape_cast %72 : vector<4x4xf32> to vector<4x4x1xf32>
    %74 = tpu.reciprocal %73 {approx = true} : vector<4x4x1xf32> -> vector<4x4x1xf32>
    %75 = vector.broadcast %74 : vector<4x4x1xf32> to vector<4x4x4xf32>
    %76 = arith.mulf %71, %75 : vector<4x4x4xf32>
    "tpu.trace_start"() <{level = 10 : i32, message = "gnm,gmd->gnd"}> : () -> ()
    %cst_36 = arith.constant dense<0.000000e+00> : vector<4x4x16xf32>
    %77 = tpu.matmul %76, %62, %cst_36 {dimension_numbers = #tpu.dot_dimension_numbers<[2], [1], [1], [2], [0, 0, 0, 1, 1, 2], [0], [0]>} : vector<4x4x4xf32>, vector<4x4x16xf32>, vector<4x4x16xf32> -> vector<4x4x16xf32>
    "tpu.trace_stop"() : () -> ()
    %78 = vector.extract_strided_slice %32 {offsets = [0, 16, 0], sizes = [4, 16, 32], strides = [1, 1, 1]} : vector<4x32x32xf32> to vector<4x16x32xf32>
    "tpu.trace_start"() <{level = 10 : i32, message = "gnd,gdc->gnc"}> : () -> ()
    %cst_37 = arith.constant dense<0.000000e+00> : vector<4x4x32xf32>
    %79 = tpu.matmul %77, %78, %cst_37 {dimension_numbers = #tpu.dot_dimension_numbers<[2], [1], [1], [2], [0, 0, 0, 1, 1, 2], [0], [0]>} : vector<4x4x16xf32>, vector<4x16x32xf32>, vector<4x4x32xf32> -> vector<4x4x32xf32>
    "tpu.trace_stop"() : () -> ()
    %80 = arith.addf %57, %79 : vector<4x4x32xf32>
    %81 = arith.addf %0, %80 : vector<4x4x32xf32>
    %c0_38 = arith.constant 0 : index
    %c0_39 = arith.constant 0 : index
    %c0_40 = arith.constant 0 : index
    %82 = vector.load %arg8[%c0_38, %c0_39, %c0_40] : memref<1x1x32xf32, #tpu.memory_space<vmem>>, vector<1x1x32xf32>
    %83 = vector.broadcast %82 : vector<1x1x32xf32> to vector<4x4x32xf32>
    %84 = arith.addf %81, %83 : vector<4x4x32xf32>
    %c0_41 = arith.constant 0 : index
    %c0_42 = arith.constant 0 : index
    %c0_43 = arith.constant 0 : index
    %85 = vector.load %arg9[%c0_41, %c0_42, %c0_43] : memref<1x1x32xf32, #tpu.memory_space<vmem>>, vector<1x1x32xf32>
    %c0_44 = arith.constant 0 : index
    %c0_45 = arith.constant 0 : index
    %c0_46 = arith.constant 0 : index
    %86 = vector.load %arg10[%c0_44, %c0_45, %c0_46] : memref<1x1x32xf32, #tpu.memory_space<vmem>>, vector<1x1x32xf32>
    %cst_47 = arith.constant dense<0.000000e+00> : vector<4x4xf32>
    %87 = vector.multi_reduction <add>, %84, %cst_47 [2] : vector<4x4x32xf32> to vector<4x4xf32>
    %88 = vector.shape_cast %87 : vector<4x4xf32> to vector<4x4x1xf32>
    %cst_48 = arith.constant 3.200000e+01 : f32
    %89 = vector.broadcast %cst_48 : f32 to vector<4x4x1xf32>
    %90 = arith.divf %88, %89 : vector<4x4x1xf32>
    %91 = vector.broadcast %90 : vector<4x4x1xf32> to vector<4x4x32xf32>
    %92 = arith.subf %84, %91 : vector<4x4x32xf32>
    %93 = arith.mulf %92, %92 : vector<4x4x32xf32>
    %cst_49 = arith.constant dense<0.000000e+00> : vector<4x4xf32>
    %94 = vector.multi_reduction <add>, %93, %cst_49 [2] : vector<4x4x32xf32> to vector<4x4xf32>
    %95 = vector.shape_cast %94 : vector<4x4xf32> to vector<4x4x1xf32>
    %cst_50 = arith.constant 3.200000e+01 : f32
    %96 = vector.broadcast %cst_50 : f32 to vector<4x4x1xf32>
    %97 = arith.divf %95, %96 : vector<4x4x1xf32>
    %cst_51 = arith.constant 9.99999974E-6 : f32
    %98 = vector.broadcast %cst_51 : f32 to vector<4x4x1xf32>
    %99 = arith.addf %97, %98 : vector<4x4x1xf32>
    %100 = math.rsqrt %99 : vector<4x4x1xf32>
    %101 = vector.broadcast %100 : vector<4x4x1xf32> to vector<4x4x32xf32>
    %102 = arith.mulf %92, %101 : vector<4x4x32xf32>
    %103 = vector.broadcast %85 : vector<1x1x32xf32> to vector<4x4x32xf32>
    %104 = arith.mulf %102, %103 : vector<4x4x32xf32>
    %105 = vector.broadcast %86 : vector<1x1x32xf32> to vector<4x4x32xf32>
    %106 = arith.addf %104, %105 : vector<4x4x32xf32>
    %c0_52 = arith.constant 0 : index
    %c0_53 = arith.constant 0 : index
    %c0_54 = arith.constant 0 : index
    %107 = vector.load %arg11[%c0_52, %c0_53, %c0_54] : memref<1x32x128xf32, #tpu.memory_space<vmem>>, vector<1x32x128xf32>
    %108 = vector.shape_cast %107 : vector<1x32x128xf32> to vector<1x32x128xf32>
    %109 = vector.broadcast %108 : vector<1x32x128xf32> to vector<4x32x128xf32>
    "tpu.trace_start"() <{level = 10 : i32, message = "gnc,gck->gnk"}> : () -> ()
    %cst_55 = arith.constant dense<0.000000e+00> : vector<4x4x128xf32>
    %110 = tpu.matmul %106, %109, %cst_55 {dimension_numbers = #tpu.dot_dimension_numbers<[2], [1], [1], [2], [0, 0, 0, 1, 1, 2], [0], [0]>} : vector<4x4x32xf32>, vector<4x32x128xf32>, vector<4x4x128xf32> -> vector<4x4x128xf32>
    "tpu.trace_stop"() : () -> ()
    %c0_56 = arith.constant 0 : index
    %c0_57 = arith.constant 0 : index
    %c0_58 = arith.constant 0 : index
    %111 = vector.load %arg12[%c0_56, %c0_57, %c0_58] : memref<1x1x128xf32, #tpu.memory_space<vmem>>, vector<1x1x128xf32>
    %112 = vector.broadcast %111 : vector<1x1x128xf32> to vector<4x4x128xf32>
    %113 = arith.addf %110, %112 : vector<4x4x128xf32>
    %114 = arith.mulf %113, %113 : vector<4x4x128xf32>
    %115 = arith.mulf %113, %114 : vector<4x4x128xf32>
    %cst_59 = arith.constant 4.471500e-02 : f32
    %116 = vector.broadcast %cst_59 : f32 to vector<4x4x128xf32>
    %117 = arith.mulf %116, %115 : vector<4x4x128xf32>
    %118 = arith.addf %113, %117 : vector<4x4x128xf32>
    %cst_60 = arith.constant 0.797884583 : f32
    %119 = vector.broadcast %cst_60 : f32 to vector<4x4x128xf32>
    %120 = arith.mulf %119, %118 : vector<4x4x128xf32>
    %121 = math.tanh %120 : vector<4x4x128xf32>
    %cst_61 = arith.constant 1.000000e+00 : f32
    %122 = vector.broadcast %cst_61 : f32 to vector<4x4x128xf32>
    %123 = arith.addf %122, %121 : vector<4x4x128xf32>
    %cst_62 = arith.constant 5.000000e-01 : f32
    %124 = vector.broadcast %cst_62 : f32 to vector<4x4x128xf32>
    %125 = arith.mulf %124, %123 : vector<4x4x128xf32>
    %126 = arith.mulf %113, %125 : vector<4x4x128xf32>
    %c0_63 = arith.constant 0 : index
    %c0_64 = arith.constant 0 : index
    %c0_65 = arith.constant 0 : index
    %127 = vector.load %arg13[%c0_63, %c0_64, %c0_65] : memref<1x128x32xf32, #tpu.memory_space<vmem>>, vector<1x128x32xf32>
    %128 = vector.shape_cast %127 : vector<1x128x32xf32> to vector<1x128x32xf32>
    %129 = vector.broadcast %128 : vector<1x128x32xf32> to vector<4x128x32xf32>
    "tpu.trace_start"() <{level = 10 : i32, message = "gnk,gkc->gnc"}> : () -> ()
    %cst_66 = arith.constant dense<0.000000e+00> : vector<4x4x32xf32>
    %130 = tpu.matmul %126, %129, %cst_66 {dimension_numbers = #tpu.dot_dimension_numbers<[2], [1], [1], [2], [0, 0, 0, 1, 1, 2], [0], [0]>} : vector<4x4x128xf32>, vector<4x128x32xf32>, vector<4x4x32xf32> -> vector<4x4x32xf32>
    "tpu.trace_stop"() : () -> ()
    %c0_67 = arith.constant 0 : index
    %c0_68 = arith.constant 0 : index
    %c0_69 = arith.constant 0 : index
    %131 = vector.load %arg14[%c0_67, %c0_68, %c0_69] : memref<1x1x32xf32, #tpu.memory_space<vmem>>, vector<1x1x32xf32>
    %132 = vector.broadcast %131 : vector<1x1x32xf32> to vector<4x4x32xf32>
    %133 = arith.addf %130, %132 : vector<4x4x32xf32>
    %134 = arith.addf %84, %133 : vector<4x4x32xf32>
    %c0_70 = arith.constant 0 : index
    %c0_71 = arith.constant 0 : index
    %c0_72 = arith.constant 0 : index
    %135 = vector.load %arg15[%c0_70, %c0_71, %c0_72] : memref<4x4x32xf32, #tpu.memory_space<vmem>>, vector<4x4x32xf32>
    tpu.vector_store %arg15[%c0_70, %c0_71, %c0_72], %134 {strides = array<i32>} : memref<4x4x32xf32, #tpu.memory_space<vmem>>, vector<4x4x32xf32>,
    return
  }
  func.func @transform_0(%arg0: i32) -> (i32, i32, i32) {
    %c0_i32 = arith.constant 0 : i32
    %c0_i32_0 = arith.constant 0 : i32
    %c0_i32_1 = arith.constant 0 : i32
    return %arg0, %c0_i32, %c0_i32_0 : i32, i32, i32
  }
  func.func @transform_1(%arg0: i32) -> (i32, i32, i32) {
    %c0_i32 = arith.constant 0 : i32
    %c0_i32_0 = arith.constant 0 : i32
    %c0_i32_1 = arith.constant 0 : i32
    %c0_i32_2 = arith.constant 0 : i32
    return %c0_i32, %c0_i32_0, %c0_i32_1 : i32, i32, i32
  }
  func.func @transform_2(%arg0: i32) -> (i32, i32, i32) {
    %c0_i32 = arith.constant 0 : i32
    %c0_i32_0 = arith.constant 0 : i32
    %c0_i32_1 = arith.constant 0 : i32
    %c0_i32_2 = arith.constant 0 : i32
    return %c0_i32, %c0_i32_0, %c0_i32_1 : i32, i32, i32
  }
  func.func @transform_3(%arg0: i32) -> (i32, i32, i32) {
    %c0_i32 = arith.constant 0 : i32
    %c0_i32_0 = arith.constant 0 : i32
    %c0_i32_1 = arith.constant 0 : i32
    %c0_i32_2 = arith.constant 0 : i32
    return %c0_i32, %c0_i32_0, %c0_i32_1 : i32, i32, i32
  }
  func.func @transform_4(%arg0: i32) -> (i32, i32, i32) {
    %c0_i32 = arith.constant 0 : i32
    %c0_i32_0 = arith.constant 0 : i32
    %c0_i32_1 = arith.constant 0 : i32
    %c0_i32_2 = arith.constant 0 : i32
    return %c0_i32, %c0_i32_0, %c0_i32_1 : i32, i32, i32
  }
  func.func @transform_5(%arg0: i32) -> (i32, i32, i32) {
    %c0_i32 = arith.constant 0 : i32
    %c0_i32_0 = arith.constant 0 : i32
    %c0_i32_1 = arith.constant 0 : i32
    %c0_i32_2 = arith.constant 0 : i32
    return %c0_i32, %c0_i32_0, %c0_i32_1 : i32, i32, i32
  }
  func.func @transform_6(%arg0: i32) -> (i32, i32, i32) {
    %c0_i32 = arith.constant 0 : i32
    %c0_i32_0 = arith.constant 0 : i32
    %c0_i32_1 = arith.constant 0 : i32
    %c0_i32_2 = arith.constant 0 : i32
    return %c0_i32, %c0_i32_0, %c0_i32_1 : i32, i32, i32
  }
  func.func @transform_7(%arg0: i32) -> (i32, i32, i32) {
    %c0_i32 = arith.constant 0 : i32
    %c0_i32_0 = arith.constant 0 : i32
    %c0_i32_1 = arith.constant 0 : i32
    %c0_i32_2 = arith.constant 0 : i32
    return %c0_i32, %c0_i32_0, %c0_i32_1 : i32, i32, i32
  }
  func.func @transform_8(%arg0: i32) -> (i32, i32, i32) {
    %c0_i32 = arith.constant 0 : i32
    %c0_i32_0 = arith.constant 0 : i32
    %c0_i32_1 = arith.constant 0 : i32
    %c0_i32_2 = arith.constant 0 : i32
    return %c0_i32, %c0_i32_0, %c0_i32_1 : i32, i32, i32
  }
  func.func @transform_9(%arg0: i32) -> (i32, i32, i32) {
    %c0_i32 = arith.constant 0 : i32
    %c0_i32_0 = arith.constant 0 : i32
    %c0_i32_1 = arith.constant 0 : i32
    %c0_i32_2 = arith.constant 0 : i32
    return %c0_i32, %c0_i32_0, %c0_i32_1 : i32, i32, i32
  }
  func.func @transform_10(%arg0: i32) -> (i32, i32, i32) {
    %c0_i32 = arith.constant 0 : i32
    %c0_i32_0 = arith.constant 0 : i32
    %c0_i32_1 = arith.constant 0 : i32
    %c0_i32_2 = arith.constant 0 : i32
    return %c0_i32, %c0_i32_0, %c0_i32_1 : i32, i32, i32
  }
  func.func @transform_11(%arg0: i32) -> (i32, i32, i32) {
    %c0_i32 = arith.constant 0 : i32
    %c0_i32_0 = arith.constant 0 : i32
    %c0_i32_1 = arith.constant 0 : i32
    %c0_i32_2 = arith.constant 0 : i32
    return %c0_i32, %c0_i32_0, %c0_i32_1 : i32, i32, i32
  }
  func.func @transform_12(%arg0: i32) -> (i32, i32, i32) {
    %c0_i32 = arith.constant 0 : i32
    %c0_i32_0 = arith.constant 0 : i32
    %c0_i32_1 = arith.constant 0 : i32
    %c0_i32_2 = arith.constant 0 : i32
    return %c0_i32, %c0_i32_0, %c0_i32_1 : i32, i32, i32
  }
  func.func @transform_13(%arg0: i32) -> (i32, i32, i32) {
    %c0_i32 = arith.constant 0 : i32
    %c0_i32_0 = arith.constant 0 : i32
    %c0_i32_1 = arith.constant 0 : i32
    %c0_i32_2 = arith.constant 0 : i32
    return %c0_i32, %c0_i32_0, %c0_i32_1 : i32, i32, i32
  }
  func.func @transform_14(%arg0: i32) -> (i32, i32, i32) {
    %c0_i32 = arith.constant 0 : i32
    %c0_i32_0 = arith.constant 0 : i32
    %c0_i32_1 = arith.constant 0 : i32
    return %arg0, %c0_i32, %c0_i32_0 : i32, i32, i32
  }
}

module attributes {stable_mosaic.version = 11 : i64} {
  func.func @_swin_block_kernel(%arg0: i32, %arg1: memref<4x4x32xf32, #tpu.memory_space<vmem>>, %arg2: memref<1x1x32xf32, #tpu.memory_space<vmem>>, %arg3: memref<1x1x32xf32, #tpu.memory_space<vmem>>, %arg4: memref<1x32x96xf32, #tpu.memory_space<vmem>>, %arg5: memref<1x1x96xf32, #tpu.memory_space<vmem>>, %arg6: memref<2x4x4xf32, #tpu.memory_space<vmem>>, %arg7: memref<4x4x4xf32, #tpu.memory_space<vmem>>, %arg8: memref<1x32x32xf32, #tpu.memory_space<vmem>>, %arg9: memref<1x1x32xf32, #tpu.memory_space<vmem>>, %arg10: memref<1x1x32xf32, #tpu.memory_space<vmem>>, %arg11: memref<1x1x32xf32, #tpu.memory_space<vmem>>, %arg12: memref<1x32x128xf32, #tpu.memory_space<vmem>>, %arg13: memref<1x1x128xf32, #tpu.memory_space<vmem>>, %arg14: memref<1x128x32xf32, #tpu.memory_space<vmem>>, %arg15: memref<1x1x32xf32, #tpu.memory_space<vmem>>, %arg16: memref<4x4x32xf32, #tpu.memory_space<vmem>>) attributes {dimension_semantics = [#tpu.dimension_semantics<parallel>], iteration_bounds = array<i64: 2>, scalar_prefetch = 0 : i64, scratch_operands = 0 : i64, tpu.core_type = #tpu.core_type<tc>, window_params = [{transform_indices = @transform_0, window_bounds = array<i64: 4, 4, 32>}, {pipeline_mode = #tpu.pipeline_mode<synchronous>, transform_indices = @transform_1, window_bounds = array<i64: 1, 1, 32>}, {pipeline_mode = #tpu.pipeline_mode<synchronous>, transform_indices = @transform_2, window_bounds = array<i64: 1, 1, 32>}, {pipeline_mode = #tpu.pipeline_mode<synchronous>, transform_indices = @transform_3, window_bounds = array<i64: 1, 32, 96>}, {pipeline_mode = #tpu.pipeline_mode<synchronous>, transform_indices = @transform_4, window_bounds = array<i64: 1, 1, 96>}, {pipeline_mode = #tpu.pipeline_mode<synchronous>, transform_indices = @transform_5, window_bounds = array<i64: 2, 4, 4>}, {transform_indices = @transform_6, window_bounds = array<i64: 4, 4, 4>}, {pipeline_mode = #tpu.pipeline_mode<synchronous>, transform_indices = @transform_7, window_bounds = array<i64: 1, 32, 32>}, {pipeline_mode = #tpu.pipeline_mode<synchronous>, transform_indices = @transform_8, window_bounds = array<i64: 1, 1, 32>}, {pipeline_mode = #tpu.pipeline_mode<synchronous>, transform_indices = @transform_9, window_bounds = array<i64: 1, 1, 32>}, {pipeline_mode = #tpu.pipeline_mode<synchronous>, transform_indices = @transform_10, window_bounds = array<i64: 1, 1, 32>}, {pipeline_mode = #tpu.pipeline_mode<synchronous>, transform_indices = @transform_11, window_bounds = array<i64: 1, 32, 128>}, {pipeline_mode = #tpu.pipeline_mode<synchronous>, transform_indices = @transform_12, window_bounds = array<i64: 1, 1, 128>}, {pipeline_mode = #tpu.pipeline_mode<synchronous>, transform_indices = @transform_13, window_bounds = array<i64: 1, 128, 32>}, {pipeline_mode = #tpu.pipeline_mode<synchronous>, transform_indices = @transform_14, window_bounds = array<i64: 1, 1, 32>}, {transform_indices = @transform_15, window_bounds = array<i64: 4, 4, 32>}]} {
    %c0 = arith.constant 0 : index
    %c0_0 = arith.constant 0 : index
    %c0_1 = arith.constant 0 : index
    %0 = vector.load %arg1[%c0, %c0_0, %c0_1] : memref<4x4x32xf32, #tpu.memory_space<vmem>>, vector<4x4x32xf32>
    %c0_2 = arith.constant 0 : index
    %c0_3 = arith.constant 0 : index
    %c0_4 = arith.constant 0 : index
    %1 = vector.load %arg2[%c0_2, %c0_3, %c0_4] : memref<1x1x32xf32, #tpu.memory_space<vmem>>, vector<1x1x32xf32>
    %c0_5 = arith.constant 0 : index
    %c0_6 = arith.constant 0 : index
    %c0_7 = arith.constant 0 : index
    %2 = vector.load %arg3[%c0_5, %c0_6, %c0_7] : memref<1x1x32xf32, #tpu.memory_space<vmem>>, vector<1x1x32xf32>
    %cst = arith.constant dense<0.000000e+00> : vector<4x4xf32>
    %3 = vector.multi_reduction <add>, %0, %cst [2] : vector<4x4x32xf32> to vector<4x4xf32>
    %4 = vector.shape_cast %3 : vector<4x4xf32> to vector<4x4x1xf32>
    %cst_8 = arith.constant 3.200000e+01 : f32
    %5 = vector.broadcast %cst_8 : f32 to vector<4x4x1xf32>
    %6 = arith.divf %4, %5 : vector<4x4x1xf32>
    %7 = vector.broadcast %6 : vector<4x4x1xf32> to vector<4x4x32xf32>
    %8 = arith.subf %0, %7 : vector<4x4x32xf32>
    %9 = arith.mulf %8, %8 : vector<4x4x32xf32>
    %cst_9 = arith.constant dense<0.000000e+00> : vector<4x4xf32>
    %10 = vector.multi_reduction <add>, %9, %cst_9 [2] : vector<4x4x32xf32> to vector<4x4xf32>
    %11 = vector.shape_cast %10 : vector<4x4xf32> to vector<4x4x1xf32>
    %cst_10 = arith.constant 3.200000e+01 : f32
    %12 = vector.broadcast %cst_10 : f32 to vector<4x4x1xf32>
    %13 = arith.divf %11, %12 : vector<4x4x1xf32>
    %cst_11 = arith.constant 9.99999974E-6 : f32
    %14 = vector.broadcast %cst_11 : f32 to vector<4x4x1xf32>
    %15 = arith.addf %13, %14 : vector<4x4x1xf32>
    %16 = math.rsqrt %15 : vector<4x4x1xf32>
    %17 = vector.broadcast %16 : vector<4x4x1xf32> to vector<4x4x32xf32>
    %18 = arith.mulf %8, %17 : vector<4x4x32xf32>
    %19 = vector.broadcast %1 : vector<1x1x32xf32> to vector<4x4x32xf32>
    %20 = arith.mulf %18, %19 : vector<4x4x32xf32>
    %21 = vector.broadcast %2 : vector<1x1x32xf32> to vector<4x4x32xf32>
    %22 = arith.addf %20, %21 : vector<4x4x32xf32>
    %c0_12 = arith.constant 0 : index
    %c0_13 = arith.constant 0 : index
    %c0_14 = arith.constant 0 : index
    %23 = vector.load %arg4[%c0_12, %c0_13, %c0_14] : memref<1x32x96xf32, #tpu.memory_space<vmem>>, vector<1x32x96xf32>
    %24 = vector.shape_cast %23 : vector<1x32x96xf32> to vector<1x32x96xf32>
    %25 = vector.broadcast %24 : vector<1x32x96xf32> to vector<4x32x96xf32>
    "tpu.trace_start"() <{level = 10 : i32, message = "gnc,gck->gnk"}> : () -> ()
    %cst_15 = arith.constant dense<0.000000e+00> : vector<4x4x96xf32>
    %26 = tpu.matmul %22, %25, %cst_15 {dimension_numbers = #tpu.dot_dimension_numbers<[2], [1], [1], [2], [0, 0, 0, 1, 1, 2], [0], [0]>} : vector<4x4x32xf32>, vector<4x32x96xf32>, vector<4x4x96xf32> -> vector<4x4x96xf32>
    "tpu.trace_stop"() : () -> ()
    %c0_16 = arith.constant 0 : index
    %c0_17 = arith.constant 0 : index
    %c0_18 = arith.constant 0 : index
    %27 = vector.load %arg5[%c0_16, %c0_17, %c0_18] : memref<1x1x96xf32, #tpu.memory_space<vmem>>, vector<1x1x96xf32>
    %28 = vector.broadcast %27 : vector<1x1x96xf32> to vector<4x4x96xf32>
    %29 = arith.addf %26, %28 : vector<4x4x96xf32>
    %c0_19 = arith.constant 0 : index
    %c0_20 = arith.constant 0 : index
    %c0_21 = arith.constant 0 : index
    %30 = vector.load %arg8[%c0_19, %c0_20, %c0_21] : memref<1x32x32xf32, #tpu.memory_space<vmem>>, vector<1x32x32xf32>
    %31 = vector.shape_cast %30 : vector<1x32x32xf32> to vector<1x32x32xf32>
    %32 = vector.broadcast %31 : vector<1x32x32xf32> to vector<4x32x32xf32>
    %c0_22 = arith.constant 0 : index
    %c0_23 = arith.constant 0 : index
    %c0_24 = arith.constant 0 : index
    %33 = vector.load %arg6[%c0_22, %c0_23, %c0_24] : memref<2x4x4xf32, #tpu.memory_space<vmem>>, vector<2x4x4xf32>
    %c0_25 = arith.constant 0 : index
    %c0_26 = arith.constant 0 : index
    %c0_27 = arith.constant 0 : index
    %34 = vector.load %arg7[%c0_25, %c0_26, %c0_27] : memref<4x4x4xf32, #tpu.memory_space<vmem>>, vector<4x4x4xf32>
    %cst_28 = arith.constant 0.000000e+00 : f32
    %35 = vector.broadcast %cst_28 : f32 to vector<4x4x32xf32>
    %36 = vector.extract_strided_slice %29 {offsets = [0, 0, 0], sizes = [4, 4, 16], strides = [1, 1, 1]} : vector<4x4x96xf32> to vector<4x4x16xf32>
    %cst_29 = arith.constant 2.500000e-01 : f32
    %37 = vector.broadcast %cst_29 : f32 to vector<4x4x16xf32>
    %38 = arith.mulf %36, %37 : vector<4x4x16xf32>
    %39 = vector.extract_strided_slice %29 {offsets = [0, 0, 32], sizes = [4, 4, 16], strides = [1, 1, 1]} : vector<4x4x96xf32> to vector<4x4x16xf32>
    %40 = vector.extract_strided_slice %29 {offsets = [0, 0, 64], sizes = [4, 4, 16], strides = [1, 1, 1]} : vector<4x4x96xf32> to vector<4x4x16xf32>
    "tpu.trace_start"() <{level = 10 : i32, message = "gnd,gmd->gnm"}> : () -> ()
    %cst_30 = arith.constant dense<0.000000e+00> : vector<4x4x4xf32>
    %41 = tpu.matmul %38, %39, %cst_30 {dimension_numbers = #tpu.dot_dimension_numbers<[2], [2], [1], [1], [0, 0, 0, 1, 1, 1], [0], [0]>} : vector<4x4x16xf32>, vector<4x4x16xf32>, vector<4x4x4xf32> -> vector<4x4x4xf32>
    "tpu.trace_stop"() : () -> ()
    %42 = vector.extract_strided_slice %33 {offsets = [0, 0, 0], sizes = [1, 4, 4], strides = [1, 1, 1]} : vector<2x4x4xf32> to vector<1x4x4xf32>
    %43 = vector.broadcast %42 : vector<1x4x4xf32> to vector<4x4x4xf32>
    %44 = arith.addf %41, %43 : vector<4x4x4xf32>
    %45 = arith.addf %44, %34 : vector<4x4x4xf32>
    %cst_31 = arith.constant dense<0xFF800000> : vector<4x4xf32>
    %46 = vector.multi_reduction <maximumf>, %45, %cst_31 [2] : vector<4x4x4xf32> to vector<4x4xf32>
    %47 = vector.shape_cast %46 : vector<4x4xf32> to vector<4x4x1xf32>
    %48 = vector.broadcast %47 : vector<4x4x1xf32> to vector<4x4x4xf32>
    %49 = arith.subf %45, %48 : vector<4x4x4xf32>
    %50 = math.exp %49 : vector<4x4x4xf32>
    %cst_32 = arith.constant dense<0.000000e+00> : vector<4x4xf32>
    %51 = vector.multi_reduction <add>, %50, %cst_32 [2] : vector<4x4x4xf32> to vector<4x4xf32>
    %52 = vector.shape_cast %51 : vector<4x4xf32> to vector<4x4x1xf32>
    %53 = tpu.reciprocal %52 {approx = true} : vector<4x4x1xf32> -> vector<4x4x1xf32>
    %54 = vector.broadcast %53 : vector<4x4x1xf32> to vector<4x4x4xf32>
    %55 = arith.mulf %50, %54 : vector<4x4x4xf32>
    "tpu.trace_start"() <{level = 10 : i32, message = "gnm,gmd->gnd"}> : () -> ()
    %cst_33 = arith.constant dense<0.000000e+00> : vector<4x4x16xf32>
    %56 = tpu.matmul %55, %40, %cst_33 {dimension_numbers = #tpu.dot_dimension_numbers<[2], [1], [1], [2], [0, 0, 0, 1, 1, 2], [0], [0]>} : vector<4x4x4xf32>, vector<4x4x16xf32>, vector<4x4x16xf32> -> vector<4x4x16xf32>
    "tpu.trace_stop"() : () -> ()
    %57 = vector.extract_strided_slice %32 {offsets = [0, 0, 0], sizes = [4, 16, 32], strides = [1, 1, 1]} : vector<4x32x32xf32> to vector<4x16x32xf32>
    "tpu.trace_start"() <{level = 10 : i32, message = "gnd,gdc->gnc"}> : () -> ()
    %cst_34 = arith.constant dense<0.000000e+00> : vector<4x4x32xf32>
    %58 = tpu.matmul %56, %57, %cst_34 {dimension_numbers = #tpu.dot_dimension_numbers<[2], [1], [1], [2], [0, 0, 0, 1, 1, 2], [0], [0]>} : vector<4x4x16xf32>, vector<4x16x32xf32>, vector<4x4x32xf32> -> vector<4x4x32xf32>
    "tpu.trace_stop"() : () -> ()
    %59 = arith.addf %35, %58 : vector<4x4x32xf32>
    %60 = vector.extract_strided_slice %29 {offsets = [0, 0, 16], sizes = [4, 4, 16], strides = [1, 1, 1]} : vector<4x4x96xf32> to vector<4x4x16xf32>
    %cst_35 = arith.constant 2.500000e-01 : f32
    %61 = vector.broadcast %cst_35 : f32 to vector<4x4x16xf32>
    %62 = arith.mulf %60, %61 : vector<4x4x16xf32>
    %63 = vector.extract_strided_slice %29 {offsets = [0, 0, 48], sizes = [4, 4, 16], strides = [1, 1, 1]} : vector<4x4x96xf32> to vector<4x4x16xf32>
    %64 = vector.extract_strided_slice %29 {offsets = [0, 0, 80], sizes = [4, 4, 16], strides = [1, 1, 1]} : vector<4x4x96xf32> to vector<4x4x16xf32>
    "tpu.trace_start"() <{level = 10 : i32, message = "gnd,gmd->gnm"}> : () -> ()
    %cst_36 = arith.constant dense<0.000000e+00> : vector<4x4x4xf32>
    %65 = tpu.matmul %62, %63, %cst_36 {dimension_numbers = #tpu.dot_dimension_numbers<[2], [2], [1], [1], [0, 0, 0, 1, 1, 1], [0], [0]>} : vector<4x4x16xf32>, vector<4x4x16xf32>, vector<4x4x4xf32> -> vector<4x4x4xf32>
    "tpu.trace_stop"() : () -> ()
    %66 = vector.extract_strided_slice %33 {offsets = [1, 0, 0], sizes = [1, 4, 4], strides = [1, 1, 1]} : vector<2x4x4xf32> to vector<1x4x4xf32>
    %67 = vector.broadcast %66 : vector<1x4x4xf32> to vector<4x4x4xf32>
    %68 = arith.addf %65, %67 : vector<4x4x4xf32>
    %69 = arith.addf %68, %34 : vector<4x4x4xf32>
    %cst_37 = arith.constant dense<0xFF800000> : vector<4x4xf32>
    %70 = vector.multi_reduction <maximumf>, %69, %cst_37 [2] : vector<4x4x4xf32> to vector<4x4xf32>
    %71 = vector.shape_cast %70 : vector<4x4xf32> to vector<4x4x1xf32>
    %72 = vector.broadcast %71 : vector<4x4x1xf32> to vector<4x4x4xf32>
    %73 = arith.subf %69, %72 : vector<4x4x4xf32>
    %74 = math.exp %73 : vector<4x4x4xf32>
    %cst_38 = arith.constant dense<0.000000e+00> : vector<4x4xf32>
    %75 = vector.multi_reduction <add>, %74, %cst_38 [2] : vector<4x4x4xf32> to vector<4x4xf32>
    %76 = vector.shape_cast %75 : vector<4x4xf32> to vector<4x4x1xf32>
    %77 = tpu.reciprocal %76 {approx = true} : vector<4x4x1xf32> -> vector<4x4x1xf32>
    %78 = vector.broadcast %77 : vector<4x4x1xf32> to vector<4x4x4xf32>
    %79 = arith.mulf %74, %78 : vector<4x4x4xf32>
    "tpu.trace_start"() <{level = 10 : i32, message = "gnm,gmd->gnd"}> : () -> ()
    %cst_39 = arith.constant dense<0.000000e+00> : vector<4x4x16xf32>
    %80 = tpu.matmul %79, %64, %cst_39 {dimension_numbers = #tpu.dot_dimension_numbers<[2], [1], [1], [2], [0, 0, 0, 1, 1, 2], [0], [0]>} : vector<4x4x4xf32>, vector<4x4x16xf32>, vector<4x4x16xf32> -> vector<4x4x16xf32>
    "tpu.trace_stop"() : () -> ()
    %81 = vector.extract_strided_slice %32 {offsets = [0, 16, 0], sizes = [4, 16, 32], strides = [1, 1, 1]} : vector<4x32x32xf32> to vector<4x16x32xf32>
    "tpu.trace_start"() <{level = 10 : i32, message = "gnd,gdc->gnc"}> : () -> ()
    %cst_40 = arith.constant dense<0.000000e+00> : vector<4x4x32xf32>
    %82 = tpu.matmul %80, %81, %cst_40 {dimension_numbers = #tpu.dot_dimension_numbers<[2], [1], [1], [2], [0, 0, 0, 1, 1, 2], [0], [0]>} : vector<4x4x16xf32>, vector<4x16x32xf32>, vector<4x4x32xf32> -> vector<4x4x32xf32>
    "tpu.trace_stop"() : () -> ()
    %83 = arith.addf %59, %82 : vector<4x4x32xf32>
    %84 = arith.addf %0, %83 : vector<4x4x32xf32>
    %c0_41 = arith.constant 0 : index
    %c0_42 = arith.constant 0 : index
    %c0_43 = arith.constant 0 : index
    %85 = vector.load %arg9[%c0_41, %c0_42, %c0_43] : memref<1x1x32xf32, #tpu.memory_space<vmem>>, vector<1x1x32xf32>
    %86 = vector.broadcast %85 : vector<1x1x32xf32> to vector<4x4x32xf32>
    %87 = arith.addf %84, %86 : vector<4x4x32xf32>
    %c0_44 = arith.constant 0 : index
    %c0_45 = arith.constant 0 : index
    %c0_46 = arith.constant 0 : index
    %88 = vector.load %arg10[%c0_44, %c0_45, %c0_46] : memref<1x1x32xf32, #tpu.memory_space<vmem>>, vector<1x1x32xf32>
    %c0_47 = arith.constant 0 : index
    %c0_48 = arith.constant 0 : index
    %c0_49 = arith.constant 0 : index
    %89 = vector.load %arg11[%c0_47, %c0_48, %c0_49] : memref<1x1x32xf32, #tpu.memory_space<vmem>>, vector<1x1x32xf32>
    %cst_50 = arith.constant dense<0.000000e+00> : vector<4x4xf32>
    %90 = vector.multi_reduction <add>, %87, %cst_50 [2] : vector<4x4x32xf32> to vector<4x4xf32>
    %91 = vector.shape_cast %90 : vector<4x4xf32> to vector<4x4x1xf32>
    %cst_51 = arith.constant 3.200000e+01 : f32
    %92 = vector.broadcast %cst_51 : f32 to vector<4x4x1xf32>
    %93 = arith.divf %91, %92 : vector<4x4x1xf32>
    %94 = vector.broadcast %93 : vector<4x4x1xf32> to vector<4x4x32xf32>
    %95 = arith.subf %87, %94 : vector<4x4x32xf32>
    %96 = arith.mulf %95, %95 : vector<4x4x32xf32>
    %cst_52 = arith.constant dense<0.000000e+00> : vector<4x4xf32>
    %97 = vector.multi_reduction <add>, %96, %cst_52 [2] : vector<4x4x32xf32> to vector<4x4xf32>
    %98 = vector.shape_cast %97 : vector<4x4xf32> to vector<4x4x1xf32>
    %cst_53 = arith.constant 3.200000e+01 : f32
    %99 = vector.broadcast %cst_53 : f32 to vector<4x4x1xf32>
    %100 = arith.divf %98, %99 : vector<4x4x1xf32>
    %cst_54 = arith.constant 9.99999974E-6 : f32
    %101 = vector.broadcast %cst_54 : f32 to vector<4x4x1xf32>
    %102 = arith.addf %100, %101 : vector<4x4x1xf32>
    %103 = math.rsqrt %102 : vector<4x4x1xf32>
    %104 = vector.broadcast %103 : vector<4x4x1xf32> to vector<4x4x32xf32>
    %105 = arith.mulf %95, %104 : vector<4x4x32xf32>
    %106 = vector.broadcast %88 : vector<1x1x32xf32> to vector<4x4x32xf32>
    %107 = arith.mulf %105, %106 : vector<4x4x32xf32>
    %108 = vector.broadcast %89 : vector<1x1x32xf32> to vector<4x4x32xf32>
    %109 = arith.addf %107, %108 : vector<4x4x32xf32>
    %c0_55 = arith.constant 0 : index
    %c0_56 = arith.constant 0 : index
    %c0_57 = arith.constant 0 : index
    %110 = vector.load %arg12[%c0_55, %c0_56, %c0_57] : memref<1x32x128xf32, #tpu.memory_space<vmem>>, vector<1x32x128xf32>
    %111 = vector.shape_cast %110 : vector<1x32x128xf32> to vector<1x32x128xf32>
    %112 = vector.broadcast %111 : vector<1x32x128xf32> to vector<4x32x128xf32>
    "tpu.trace_start"() <{level = 10 : i32, message = "gnc,gck->gnk"}> : () -> ()
    %cst_58 = arith.constant dense<0.000000e+00> : vector<4x4x128xf32>
    %113 = tpu.matmul %109, %112, %cst_58 {dimension_numbers = #tpu.dot_dimension_numbers<[2], [1], [1], [2], [0, 0, 0, 1, 1, 2], [0], [0]>} : vector<4x4x32xf32>, vector<4x32x128xf32>, vector<4x4x128xf32> -> vector<4x4x128xf32>
    "tpu.trace_stop"() : () -> ()
    %c0_59 = arith.constant 0 : index
    %c0_60 = arith.constant 0 : index
    %c0_61 = arith.constant 0 : index
    %114 = vector.load %arg13[%c0_59, %c0_60, %c0_61] : memref<1x1x128xf32, #tpu.memory_space<vmem>>, vector<1x1x128xf32>
    %115 = vector.broadcast %114 : vector<1x1x128xf32> to vector<4x4x128xf32>
    %116 = arith.addf %113, %115 : vector<4x4x128xf32>
    %117 = arith.mulf %116, %116 : vector<4x4x128xf32>
    %118 = arith.mulf %116, %117 : vector<4x4x128xf32>
    %cst_62 = arith.constant 4.471500e-02 : f32
    %119 = vector.broadcast %cst_62 : f32 to vector<4x4x128xf32>
    %120 = arith.mulf %119, %118 : vector<4x4x128xf32>
    %121 = arith.addf %116, %120 : vector<4x4x128xf32>
    %cst_63 = arith.constant 0.797884583 : f32
    %122 = vector.broadcast %cst_63 : f32 to vector<4x4x128xf32>
    %123 = arith.mulf %122, %121 : vector<4x4x128xf32>
    %124 = math.tanh %123 : vector<4x4x128xf32>
    %cst_64 = arith.constant 1.000000e+00 : f32
    %125 = vector.broadcast %cst_64 : f32 to vector<4x4x128xf32>
    %126 = arith.addf %125, %124 : vector<4x4x128xf32>
    %cst_65 = arith.constant 5.000000e-01 : f32
    %127 = vector.broadcast %cst_65 : f32 to vector<4x4x128xf32>
    %128 = arith.mulf %127, %126 : vector<4x4x128xf32>
    %129 = arith.mulf %116, %128 : vector<4x4x128xf32>
    %c0_66 = arith.constant 0 : index
    %c0_67 = arith.constant 0 : index
    %c0_68 = arith.constant 0 : index
    %130 = vector.load %arg14[%c0_66, %c0_67, %c0_68] : memref<1x128x32xf32, #tpu.memory_space<vmem>>, vector<1x128x32xf32>
    %131 = vector.shape_cast %130 : vector<1x128x32xf32> to vector<1x128x32xf32>
    %132 = vector.broadcast %131 : vector<1x128x32xf32> to vector<4x128x32xf32>
    "tpu.trace_start"() <{level = 10 : i32, message = "gnk,gkc->gnc"}> : () -> ()
    %cst_69 = arith.constant dense<0.000000e+00> : vector<4x4x32xf32>
    %133 = tpu.matmul %129, %132, %cst_69 {dimension_numbers = #tpu.dot_dimension_numbers<[2], [1], [1], [2], [0, 0, 0, 1, 1, 2], [0], [0]>} : vector<4x4x128xf32>, vector<4x128x32xf32>, vector<4x4x32xf32> -> vector<4x4x32xf32>
    "tpu.trace_stop"() : () -> ()
    %c0_70 = arith.constant 0 : index
    %c0_71 = arith.constant 0 : index
    %c0_72 = arith.constant 0 : index
    %134 = vector.load %arg15[%c0_70, %c0_71, %c0_72] : memref<1x1x32xf32, #tpu.memory_space<vmem>>, vector<1x1x32xf32>
    %135 = vector.broadcast %134 : vector<1x1x32xf32> to vector<4x4x32xf32>
    %136 = arith.addf %133, %135 : vector<4x4x32xf32>
    %137 = arith.addf %87, %136 : vector<4x4x32xf32>
    %c0_73 = arith.constant 0 : index
    %c0_74 = arith.constant 0 : index
    %c0_75 = arith.constant 0 : index
    %138 = vector.load %arg16[%c0_73, %c0_74, %c0_75] : memref<4x4x32xf32, #tpu.memory_space<vmem>>, vector<4x4x32xf32>
    tpu.vector_store %arg16[%c0_73, %c0_74, %c0_75], %137 {strides = array<i32>} : memref<4x4x32xf32, #tpu.memory_space<vmem>>, vector<4x4x32xf32>,
    return
  }
  func.func @transform_0(%arg0: i32) -> (i32, i32, i32) {
    %c0_i32 = arith.constant 0 : i32
    %c0_i32_0 = arith.constant 0 : i32
    %c0_i32_1 = arith.constant 0 : i32
    return %arg0, %c0_i32, %c0_i32_0 : i32, i32, i32
  }
  func.func @transform_1(%arg0: i32) -> (i32, i32, i32) {
    %c0_i32 = arith.constant 0 : i32
    %c0_i32_0 = arith.constant 0 : i32
    %c0_i32_1 = arith.constant 0 : i32
    %c0_i32_2 = arith.constant 0 : i32
    return %c0_i32, %c0_i32_0, %c0_i32_1 : i32, i32, i32
  }
  func.func @transform_2(%arg0: i32) -> (i32, i32, i32) {
    %c0_i32 = arith.constant 0 : i32
    %c0_i32_0 = arith.constant 0 : i32
    %c0_i32_1 = arith.constant 0 : i32
    %c0_i32_2 = arith.constant 0 : i32
    return %c0_i32, %c0_i32_0, %c0_i32_1 : i32, i32, i32
  }
  func.func @transform_3(%arg0: i32) -> (i32, i32, i32) {
    %c0_i32 = arith.constant 0 : i32
    %c0_i32_0 = arith.constant 0 : i32
    %c0_i32_1 = arith.constant 0 : i32
    %c0_i32_2 = arith.constant 0 : i32
    return %c0_i32, %c0_i32_0, %c0_i32_1 : i32, i32, i32
  }
  func.func @transform_4(%arg0: i32) -> (i32, i32, i32) {
    %c0_i32 = arith.constant 0 : i32
    %c0_i32_0 = arith.constant 0 : i32
    %c0_i32_1 = arith.constant 0 : i32
    %c0_i32_2 = arith.constant 0 : i32
    return %c0_i32, %c0_i32_0, %c0_i32_1 : i32, i32, i32
  }
  func.func @transform_5(%arg0: i32) -> (i32, i32, i32) {
    %c0_i32 = arith.constant 0 : i32
    %c0_i32_0 = arith.constant 0 : i32
    %c0_i32_1 = arith.constant 0 : i32
    %c0_i32_2 = arith.constant 0 : i32
    return %c0_i32, %c0_i32_0, %c0_i32_1 : i32, i32, i32
  }
  func.func @transform_6(%arg0: i32) -> (i32, i32, i32) {
    %c0_i32 = arith.constant 0 : i32
    %c0_i32_0 = arith.constant 0 : i32
    %c0_i32_1 = arith.constant 0 : i32
    return %arg0, %c0_i32, %c0_i32_0 : i32, i32, i32
  }
  func.func @transform_7(%arg0: i32) -> (i32, i32, i32) {
    %c0_i32 = arith.constant 0 : i32
    %c0_i32_0 = arith.constant 0 : i32
    %c0_i32_1 = arith.constant 0 : i32
    %c0_i32_2 = arith.constant 0 : i32
    return %c0_i32, %c0_i32_0, %c0_i32_1 : i32, i32, i32
  }
  func.func @transform_8(%arg0: i32) -> (i32, i32, i32) {
    %c0_i32 = arith.constant 0 : i32
    %c0_i32_0 = arith.constant 0 : i32
    %c0_i32_1 = arith.constant 0 : i32
    %c0_i32_2 = arith.constant 0 : i32
    return %c0_i32, %c0_i32_0, %c0_i32_1 : i32, i32, i32
  }
  func.func @transform_9(%arg0: i32) -> (i32, i32, i32) {
    %c0_i32 = arith.constant 0 : i32
    %c0_i32_0 = arith.constant 0 : i32
    %c0_i32_1 = arith.constant 0 : i32
    %c0_i32_2 = arith.constant 0 : i32
    return %c0_i32, %c0_i32_0, %c0_i32_1 : i32, i32, i32
  }
  func.func @transform_10(%arg0: i32) -> (i32, i32, i32) {
    %c0_i32 = arith.constant 0 : i32
    %c0_i32_0 = arith.constant 0 : i32
    %c0_i32_1 = arith.constant 0 : i32
    %c0_i32_2 = arith.constant 0 : i32
    return %c0_i32, %c0_i32_0, %c0_i32_1 : i32, i32, i32
  }
  func.func @transform_11(%arg0: i32) -> (i32, i32, i32) {
    %c0_i32 = arith.constant 0 : i32
    %c0_i32_0 = arith.constant 0 : i32
    %c0_i32_1 = arith.constant 0 : i32
    %c0_i32_2 = arith.constant 0 : i32
    return %c0_i32, %c0_i32_0, %c0_i32_1 : i32, i32, i32
  }
  func.func @transform_12(%arg0: i32) -> (i32, i32, i32) {
    %c0_i32 = arith.constant 0 : i32
    %c0_i32_0 = arith.constant 0 : i32
    %c0_i32_1 = arith.constant 0 : i32
    %c0_i32_2 = arith.constant 0 : i32
    return %c0_i32, %c0_i32_0, %c0_i32_1 : i32, i32, i32
  }
  func.func @transform_13(%arg0: i32) -> (i32, i32, i32) {
    %c0_i32 = arith.constant 0 : i32
    %c0_i32_0 = arith.constant 0 : i32
    %c0_i32_1 = arith.constant 0 : i32
    %c0_i32_2 = arith.constant 0 : i32
    return %c0_i32, %c0_i32_0, %c0_i32_1 : i32, i32, i32
  }
  func.func @transform_14(%arg0: i32) -> (i32, i32, i32) {
    %c0_i32 = arith.constant 0 : i32
    %c0_i32_0 = arith.constant 0 : i32
    %c0_i32_1 = arith.constant 0 : i32
    %c0_i32_2 = arith.constant 0 : i32
    return %c0_i32, %c0_i32_0, %c0_i32_1 : i32, i32, i32
  }
  func.func @transform_15(%arg0: i32) -> (i32, i32, i32) {
    %c0_i32 = arith.constant 0 : i32
    %c0_i32_0 = arith.constant 0 : i32
    %c0_i32_1 = arith.constant 0 : i32
    return %arg0, %c0_i32, %c0_i32_0 : i32, i32, i32
  }
}

module attributes {stable_mosaic.version = 11 : i64} {
  func.func @_patch_merge_kernel(%arg0: i32, %arg1: memref<8x128xf32, #tpu.memory_space<vmem>>, %arg2: memref<1x128xf32, #tpu.memory_space<vmem>>, %arg3: memref<1x128xf32, #tpu.memory_space<vmem>>, %arg4: memref<128x64xf32, #tpu.memory_space<vmem>>, %arg5: memref<8x64xf32, #tpu.memory_space<vmem>>) attributes {dimension_semantics = [#tpu.dimension_semantics<arbitrary>], iteration_bounds = array<i64: 1>, scalar_prefetch = 0 : i64, scratch_operands = 0 : i64, tpu.core_type = #tpu.core_type<tc>, window_params = [{pipeline_mode = #tpu.pipeline_mode<synchronous>, transform_indices = @transform_0, window_bounds = array<i64: 8, 128>}, {pipeline_mode = #tpu.pipeline_mode<synchronous>, transform_indices = @transform_1, window_bounds = array<i64: 1, 128>}, {pipeline_mode = #tpu.pipeline_mode<synchronous>, transform_indices = @transform_2, window_bounds = array<i64: 1, 128>}, {pipeline_mode = #tpu.pipeline_mode<synchronous>, transform_indices = @transform_3, window_bounds = array<i64: 128, 64>}, {pipeline_mode = #tpu.pipeline_mode<synchronous>, transform_indices = @transform_4, window_bounds = array<i64: 8, 64>}]} {
    %c0 = arith.constant 0 : index
    %c0_0 = arith.constant 0 : index
    %0 = vector.load %arg1[%c0, %c0_0] : memref<8x128xf32, #tpu.memory_space<vmem>>, vector<8x128xf32>
    %c0_1 = arith.constant 0 : index
    %c0_2 = arith.constant 0 : index
    %1 = vector.load %arg2[%c0_1, %c0_2] : memref<1x128xf32, #tpu.memory_space<vmem>>, vector<1x128xf32>
    %c0_3 = arith.constant 0 : index
    %c0_4 = arith.constant 0 : index
    %2 = vector.load %arg3[%c0_3, %c0_4] : memref<1x128xf32, #tpu.memory_space<vmem>>, vector<1x128xf32>
    %cst = arith.constant dense<0.000000e+00> : vector<8xf32>
    %3 = vector.multi_reduction <add>, %0, %cst [1] : vector<8x128xf32> to vector<8xf32>
    %4 = vector.shape_cast %3 : vector<8xf32> to vector<8x1xf32>
    %cst_5 = arith.constant 1.280000e+02 : f32
    %5 = vector.broadcast %cst_5 : f32 to vector<8x1xf32>
    %6 = arith.divf %4, %5 : vector<8x1xf32>
    %7 = vector.broadcast %6 : vector<8x1xf32> to vector<8x128xf32>
    %8 = arith.subf %0, %7 : vector<8x128xf32>
    %9 = arith.mulf %8, %8 : vector<8x128xf32>
    %cst_6 = arith.constant dense<0.000000e+00> : vector<8xf32>
    %10 = vector.multi_reduction <add>, %9, %cst_6 [1] : vector<8x128xf32> to vector<8xf32>
    %11 = vector.shape_cast %10 : vector<8xf32> to vector<8x1xf32>
    %cst_7 = arith.constant 1.280000e+02 : f32
    %12 = vector.broadcast %cst_7 : f32 to vector<8x1xf32>
    %13 = arith.divf %11, %12 : vector<8x1xf32>
    %cst_8 = arith.constant 9.99999974E-6 : f32
    %14 = vector.broadcast %cst_8 : f32 to vector<8x1xf32>
    %15 = arith.addf %13, %14 : vector<8x1xf32>
    %16 = math.rsqrt %15 : vector<8x1xf32>
    %17 = vector.broadcast %16 : vector<8x1xf32> to vector<8x128xf32>
    %18 = arith.mulf %8, %17 : vector<8x128xf32>
    %19 = vector.broadcast %1 : vector<1x128xf32> to vector<8x128xf32>
    %20 = arith.mulf %18, %19 : vector<8x128xf32>
    %21 = vector.broadcast %2 : vector<1x128xf32> to vector<8x128xf32>
    %22 = arith.addf %20, %21 : vector<8x128xf32>
    %c0_9 = arith.constant 0 : index
    %c0_10 = arith.constant 0 : index
    %23 = vector.load %arg4[%c0_9, %c0_10] : memref<128x64xf32, #tpu.memory_space<vmem>>, vector<128x64xf32>
    %cst_11 = arith.constant dense<0.000000e+00> : vector<8x64xf32>
    %24 = tpu.matmul %22, %23, %cst_11 {dimension_numbers = #tpu.dot_dimension_numbers<[1], [0], [0], [1], [0, 0, 1, 1], [], []>} : vector<8x128xf32>, vector<128x64xf32>, vector<8x64xf32> -> vector<8x64xf32>
    %c0_12 = arith.constant 0 : index
    %c0_13 = arith.constant 0 : index
    %25 = vector.load %arg5[%c0_12, %c0_13] : memref<8x64xf32, #tpu.memory_space<vmem>>, vector<8x64xf32>
    tpu.vector_store %arg5[%c0_12, %c0_13], %24 {strides = array<i32>} : memref<8x64xf32, #tpu.memory_space<vmem>>, vector<8x64xf32>,
    return
  }
  func.func @transform_0(%arg0: i32) -> (i32, i32) {
    %c0_i32 = arith.constant 0 : i32
    %c0_i32_0 = arith.constant 0 : i32
    %c0_i32_1 = arith.constant 0 : i32
    return %c0_i32, %c0_i32_0 : i32, i32
  }
  func.func @transform_1(%arg0: i32) -> (i32, i32) {
    %c0_i32 = arith.constant 0 : i32
    %c0_i32_0 = arith.constant 0 : i32
    %c0_i32_1 = arith.constant 0 : i32
    return %c0_i32, %c0_i32_0 : i32, i32
  }
  func.func @transform_2(%arg0: i32) -> (i32, i32) {
    %c0_i32 = arith.constant 0 : i32
    %c0_i32_0 = arith.constant 0 : i32
    %c0_i32_1 = arith.constant 0 : i32
    return %c0_i32, %c0_i32_0 : i32, i32
  }
  func.func @transform_3(%arg0: i32) -> (i32, i32) {
    %c0_i32 = arith.constant 0 : i32
    %c0_i32_0 = arith.constant 0 : i32
    %c0_i32_1 = arith.constant 0 : i32
    return %c0_i32, %c0_i32_0 : i32, i32
  }
  func.func @transform_4(%arg0: i32) -> (i32, i32) {
    %c0_i32 = arith.constant 0 : i32
    %c0_i32_0 = arith.constant 0 : i32
    %c0_i32_1 = arith.constant 0 : i32
    return %c0_i32, %c0_i32_0 : i32, i32
  }
}

module attributes {stable_mosaic.version = 11 : i64} {
  func.func @_swin_block_kernel(%arg0: i32, %arg1: memref<1x4x64xf32, #tpu.memory_space<vmem>>, %arg2: memref<1x1x64xf32, #tpu.memory_space<vmem>>, %arg3: memref<1x1x64xf32, #tpu.memory_space<vmem>>, %arg4: memref<1x64x192xf32, #tpu.memory_space<vmem>>, %arg5: memref<1x1x192xf32, #tpu.memory_space<vmem>>, %arg6: memref<4x4x4xf32, #tpu.memory_space<vmem>>, %arg7: memref<1x64x64xf32, #tpu.memory_space<vmem>>, %arg8: memref<1x1x64xf32, #tpu.memory_space<vmem>>, %arg9: memref<1x1x64xf32, #tpu.memory_space<vmem>>, %arg10: memref<1x1x64xf32, #tpu.memory_space<vmem>>, %arg11: memref<1x64x256xf32, #tpu.memory_space<vmem>>, %arg12: memref<1x1x256xf32, #tpu.memory_space<vmem>>, %arg13: memref<1x256x64xf32, #tpu.memory_space<vmem>>, %arg14: memref<1x1x64xf32, #tpu.memory_space<vmem>>, %arg15: memref<1x4x64xf32, #tpu.memory_space<vmem>>) attributes {dimension_semantics = [#tpu.dimension_semantics<parallel>], iteration_bounds = array<i64: 2>, scalar_prefetch = 0 : i64, scratch_operands = 0 : i64, tpu.core_type = #tpu.core_type<tc>, window_params = [{transform_indices = @transform_0, window_bounds = array<i64: 1, 4, 64>}, {pipeline_mode = #tpu.pipeline_mode<synchronous>, transform_indices = @transform_1, window_bounds = array<i64: 1, 1, 64>}, {pipeline_mode = #tpu.pipeline_mode<synchronous>, transform_indices = @transform_2, window_bounds = array<i64: 1, 1, 64>}, {pipeline_mode = #tpu.pipeline_mode<synchronous>, transform_indices = @transform_3, window_bounds = array<i64: 1, 64, 192>}, {pipeline_mode = #tpu.pipeline_mode<synchronous>, transform_indices = @transform_4, window_bounds = array<i64: 1, 1, 192>}, {pipeline_mode = #tpu.pipeline_mode<synchronous>, transform_indices = @transform_5, window_bounds = array<i64: 4, 4, 4>}, {pipeline_mode = #tpu.pipeline_mode<synchronous>, transform_indices = @transform_6, window_bounds = array<i64: 1, 64, 64>}, {pipeline_mode = #tpu.pipeline_mode<synchronous>, transform_indices = @transform_7, window_bounds = array<i64: 1, 1, 64>}, {pipeline_mode = #tpu.pipeline_mode<synchronous>, transform_indices = @transform_8, window_bounds = array<i64: 1, 1, 64>}, {pipeline_mode = #tpu.pipeline_mode<synchronous>, transform_indices = @transform_9, window_bounds = array<i64: 1, 1, 64>}, {pipeline_mode = #tpu.pipeline_mode<synchronous>, transform_indices = @transform_10, window_bounds = array<i64: 1, 64, 256>}, {pipeline_mode = #tpu.pipeline_mode<synchronous>, transform_indices = @transform_11, window_bounds = array<i64: 1, 1, 256>}, {pipeline_mode = #tpu.pipeline_mode<synchronous>, transform_indices = @transform_12, window_bounds = array<i64: 1, 256, 64>}, {pipeline_mode = #tpu.pipeline_mode<synchronous>, transform_indices = @transform_13, window_bounds = array<i64: 1, 1, 64>}, {transform_indices = @transform_14, window_bounds = array<i64: 1, 4, 64>}]} {
    %c0 = arith.constant 0 : index
    %c0_0 = arith.constant 0 : index
    %c0_1 = arith.constant 0 : index
    %0 = vector.load %arg1[%c0, %c0_0, %c0_1] : memref<1x4x64xf32, #tpu.memory_space<vmem>>, vector<1x4x64xf32>
    %c0_2 = arith.constant 0 : index
    %c0_3 = arith.constant 0 : index
    %c0_4 = arith.constant 0 : index
    %1 = vector.load %arg2[%c0_2, %c0_3, %c0_4] : memref<1x1x64xf32, #tpu.memory_space<vmem>>, vector<1x1x64xf32>
    %c0_5 = arith.constant 0 : index
    %c0_6 = arith.constant 0 : index
    %c0_7 = arith.constant 0 : index
    %2 = vector.load %arg3[%c0_5, %c0_6, %c0_7] : memref<1x1x64xf32, #tpu.memory_space<vmem>>, vector<1x1x64xf32>
    %cst = arith.constant dense<0.000000e+00> : vector<1x4xf32>
    %3 = vector.multi_reduction <add>, %0, %cst [2] : vector<1x4x64xf32> to vector<1x4xf32>
    %4 = vector.shape_cast %3 : vector<1x4xf32> to vector<1x4x1xf32>
    %cst_8 = arith.constant 6.400000e+01 : f32
    %5 = vector.broadcast %cst_8 : f32 to vector<1x4x1xf32>
    %6 = arith.divf %4, %5 : vector<1x4x1xf32>
    %7 = vector.broadcast %6 : vector<1x4x1xf32> to vector<1x4x64xf32>
    %8 = arith.subf %0, %7 : vector<1x4x64xf32>
    %9 = arith.mulf %8, %8 : vector<1x4x64xf32>
    %cst_9 = arith.constant dense<0.000000e+00> : vector<1x4xf32>
    %10 = vector.multi_reduction <add>, %9, %cst_9 [2] : vector<1x4x64xf32> to vector<1x4xf32>
    %11 = vector.shape_cast %10 : vector<1x4xf32> to vector<1x4x1xf32>
    %cst_10 = arith.constant 6.400000e+01 : f32
    %12 = vector.broadcast %cst_10 : f32 to vector<1x4x1xf32>
    %13 = arith.divf %11, %12 : vector<1x4x1xf32>
    %cst_11 = arith.constant 9.99999974E-6 : f32
    %14 = vector.broadcast %cst_11 : f32 to vector<1x4x1xf32>
    %15 = arith.addf %13, %14 : vector<1x4x1xf32>
    %16 = math.rsqrt %15 : vector<1x4x1xf32>
    %17 = vector.broadcast %16 : vector<1x4x1xf32> to vector<1x4x64xf32>
    %18 = arith.mulf %8, %17 : vector<1x4x64xf32>
    %19 = vector.broadcast %1 : vector<1x1x64xf32> to vector<1x4x64xf32>
    %20 = arith.mulf %18, %19 : vector<1x4x64xf32>
    %21 = vector.broadcast %2 : vector<1x1x64xf32> to vector<1x4x64xf32>
    %22 = arith.addf %20, %21 : vector<1x4x64xf32>
    %c0_12 = arith.constant 0 : index
    %c0_13 = arith.constant 0 : index
    %c0_14 = arith.constant 0 : index
    %23 = vector.load %arg4[%c0_12, %c0_13, %c0_14] : memref<1x64x192xf32, #tpu.memory_space<vmem>>, vector<1x64x192xf32>
    "tpu.trace_start"() <{level = 10 : i32, message = "gnc,gck->gnk"}> : () -> ()
    %cst_15 = arith.constant dense<0.000000e+00> : vector<1x4x192xf32>
    %24 = tpu.matmul %22, %23, %cst_15 {dimension_numbers = #tpu.dot_dimension_numbers<[2], [1], [1], [2], [0, 0, 0, 1, 1, 2], [0], [0]>} : vector<1x4x64xf32>, vector<1x64x192xf32>, vector<1x4x192xf32> -> vector<1x4x192xf32>
    "tpu.trace_stop"() : () -> ()
    %c0_16 = arith.constant 0 : index
    %c0_17 = arith.constant 0 : index
    %c0_18 = arith.constant 0 : index
    %25 = vector.load %arg5[%c0_16, %c0_17, %c0_18] : memref<1x1x192xf32, #tpu.memory_space<vmem>>, vector<1x1x192xf32>
    %26 = vector.broadcast %25 : vector<1x1x192xf32> to vector<1x4x192xf32>
    %27 = arith.addf %24, %26 : vector<1x4x192xf32>
    %c0_19 = arith.constant 0 : index
    %c0_20 = arith.constant 0 : index
    %c0_21 = arith.constant 0 : index
    %28 = vector.load %arg7[%c0_19, %c0_20, %c0_21] : memref<1x64x64xf32, #tpu.memory_space<vmem>>, vector<1x64x64xf32>
    %c0_22 = arith.constant 0 : index
    %c0_23 = arith.constant 0 : index
    %c0_24 = arith.constant 0 : index
    %29 = vector.load %arg6[%c0_22, %c0_23, %c0_24] : memref<4x4x4xf32, #tpu.memory_space<vmem>>, vector<4x4x4xf32>
    %cst_25 = arith.constant 0.000000e+00 : f32
    %30 = vector.broadcast %cst_25 : f32 to vector<1x4x64xf32>
    %31 = vector.extract_strided_slice %27 {offsets = [0, 0, 0], sizes = [1, 4, 16], strides = [1, 1, 1]} : vector<1x4x192xf32> to vector<1x4x16xf32>
    %cst_26 = arith.constant 2.500000e-01 : f32
    %32 = vector.broadcast %cst_26 : f32 to vector<1x4x16xf32>
    %33 = arith.mulf %31, %32 : vector<1x4x16xf32>
    %34 = vector.extract_strided_slice %27 {offsets = [0, 0, 64], sizes = [1, 4, 16], strides = [1, 1, 1]} : vector<1x4x192xf32> to vector<1x4x16xf32>
    %35 = vector.extract_strided_slice %27 {offsets = [0, 0, 128], sizes = [1, 4, 16], strides = [1, 1, 1]} : vector<1x4x192xf32> to vector<1x4x16xf32>
    "tpu.trace_start"() <{level = 10 : i32, message = "gnd,gmd->gnm"}> : () -> ()
    %cst_27 = arith.constant dense<0.000000e+00> : vector<1x4x4xf32>
    %36 = tpu.matmul %33, %34, %cst_27 {dimension_numbers = #tpu.dot_dimension_numbers<[2], [2], [1], [1], [0, 0, 0, 1, 1, 1], [0], [0]>} : vector<1x4x16xf32>, vector<1x4x16xf32>, vector<1x4x4xf32> -> vector<1x4x4xf32>
    "tpu.trace_stop"() : () -> ()
    %37 = vector.extract_strided_slice %29 {offsets = [0, 0, 0], sizes = [1, 4, 4], strides = [1, 1, 1]} : vector<4x4x4xf32> to vector<1x4x4xf32>
    %38 = arith.addf %36, %37 : vector<1x4x4xf32>
    %cst_28 = arith.constant dense<0xFF800000> : vector<1x4xf32>
    %39 = vector.multi_reduction <maximumf>, %38, %cst_28 [2] : vector<1x4x4xf32> to vector<1x4xf32>
    %40 = vector.shape_cast %39 : vector<1x4xf32> to vector<1x4x1xf32>
    %41 = vector.broadcast %40 : vector<1x4x1xf32> to vector<1x4x4xf32>
    %42 = arith.subf %38, %41 : vector<1x4x4xf32>
    %43 = math.exp %42 : vector<1x4x4xf32>
    %cst_29 = arith.constant dense<0.000000e+00> : vector<1x4xf32>
    %44 = vector.multi_reduction <add>, %43, %cst_29 [2] : vector<1x4x4xf32> to vector<1x4xf32>
    %45 = vector.shape_cast %44 : vector<1x4xf32> to vector<1x4x1xf32>
    %46 = tpu.reciprocal %45 {approx = true} : vector<1x4x1xf32> -> vector<1x4x1xf32>
    %47 = vector.broadcast %46 : vector<1x4x1xf32> to vector<1x4x4xf32>
    %48 = arith.mulf %43, %47 : vector<1x4x4xf32>
    "tpu.trace_start"() <{level = 10 : i32, message = "gnm,gmd->gnd"}> : () -> ()
    %cst_30 = arith.constant dense<0.000000e+00> : vector<1x4x16xf32>
    %49 = tpu.matmul %48, %35, %cst_30 {dimension_numbers = #tpu.dot_dimension_numbers<[2], [1], [1], [2], [0, 0, 0, 1, 1, 2], [0], [0]>} : vector<1x4x4xf32>, vector<1x4x16xf32>, vector<1x4x16xf32> -> vector<1x4x16xf32>
    "tpu.trace_stop"() : () -> ()
    %50 = vector.extract_strided_slice %28 {offsets = [0, 0, 0], sizes = [1, 16, 64], strides = [1, 1, 1]} : vector<1x64x64xf32> to vector<1x16x64xf32>
    "tpu.trace_start"() <{level = 10 : i32, message = "gnd,gdc->gnc"}> : () -> ()
    %cst_31 = arith.constant dense<0.000000e+00> : vector<1x4x64xf32>
    %51 = tpu.matmul %49, %50, %cst_31 {dimension_numbers = #tpu.dot_dimension_numbers<[2], [1], [1], [2], [0, 0, 0, 1, 1, 2], [0], [0]>} : vector<1x4x16xf32>, vector<1x16x64xf32>, vector<1x4x64xf32> -> vector<1x4x64xf32>
    "tpu.trace_stop"() : () -> ()
    %52 = arith.addf %30, %51 : vector<1x4x64xf32>
    %53 = vector.extract_strided_slice %27 {offsets = [0, 0, 16], sizes = [1, 4, 16], strides = [1, 1, 1]} : vector<1x4x192xf32> to vector<1x4x16xf32>
    %cst_32 = arith.constant 2.500000e-01 : f32
    %54 = vector.broadcast %cst_32 : f32 to vector<1x4x16xf32>
    %55 = arith.mulf %53, %54 : vector<1x4x16xf32>
    %56 = vector.extract_strided_slice %27 {offsets = [0, 0, 80], sizes = [1, 4, 16], strides = [1, 1, 1]} : vector<1x4x192xf32> to vector<1x4x16xf32>
    %57 = vector.extract_strided_slice %27 {offsets = [0, 0, 144], sizes = [1, 4, 16], strides = [1, 1, 1]} : vector<1x4x192xf32> to vector<1x4x16xf32>
    "tpu.trace_start"() <{level = 10 : i32, message = "gnd,gmd->gnm"}> : () -> ()
    %cst_33 = arith.constant dense<0.000000e+00> : vector<1x4x4xf32>
    %58 = tpu.matmul %55, %56, %cst_33 {dimension_numbers = #tpu.dot_dimension_numbers<[2], [2], [1], [1], [0, 0, 0, 1, 1, 1], [0], [0]>} : vector<1x4x16xf32>, vector<1x4x16xf32>, vector<1x4x4xf32> -> vector<1x4x4xf32>
    "tpu.trace_stop"() : () -> ()
    %59 = vector.extract_strided_slice %29 {offsets = [1, 0, 0], sizes = [1, 4, 4], strides = [1, 1, 1]} : vector<4x4x4xf32> to vector<1x4x4xf32>
    %60 = arith.addf %58, %59 : vector<1x4x4xf32>
    %cst_34 = arith.constant dense<0xFF800000> : vector<1x4xf32>
    %61 = vector.multi_reduction <maximumf>, %60, %cst_34 [2] : vector<1x4x4xf32> to vector<1x4xf32>
    %62 = vector.shape_cast %61 : vector<1x4xf32> to vector<1x4x1xf32>
    %63 = vector.broadcast %62 : vector<1x4x1xf32> to vector<1x4x4xf32>
    %64 = arith.subf %60, %63 : vector<1x4x4xf32>
    %65 = math.exp %64 : vector<1x4x4xf32>
    %cst_35 = arith.constant dense<0.000000e+00> : vector<1x4xf32>
    %66 = vector.multi_reduction <add>, %65, %cst_35 [2] : vector<1x4x4xf32> to vector<1x4xf32>
    %67 = vector.shape_cast %66 : vector<1x4xf32> to vector<1x4x1xf32>
    %68 = tpu.reciprocal %67 {approx = true} : vector<1x4x1xf32> -> vector<1x4x1xf32>
    %69 = vector.broadcast %68 : vector<1x4x1xf32> to vector<1x4x4xf32>
    %70 = arith.mulf %65, %69 : vector<1x4x4xf32>
    "tpu.trace_start"() <{level = 10 : i32, message = "gnm,gmd->gnd"}> : () -> ()
    %cst_36 = arith.constant dense<0.000000e+00> : vector<1x4x16xf32>
    %71 = tpu.matmul %70, %57, %cst_36 {dimension_numbers = #tpu.dot_dimension_numbers<[2], [1], [1], [2], [0, 0, 0, 1, 1, 2], [0], [0]>} : vector<1x4x4xf32>, vector<1x4x16xf32>, vector<1x4x16xf32> -> vector<1x4x16xf32>
    "tpu.trace_stop"() : () -> ()
    %72 = vector.extract_strided_slice %28 {offsets = [0, 16, 0], sizes = [1, 16, 64], strides = [1, 1, 1]} : vector<1x64x64xf32> to vector<1x16x64xf32>
    "tpu.trace_start"() <{level = 10 : i32, message = "gnd,gdc->gnc"}> : () -> ()
    %cst_37 = arith.constant dense<0.000000e+00> : vector<1x4x64xf32>
    %73 = tpu.matmul %71, %72, %cst_37 {dimension_numbers = #tpu.dot_dimension_numbers<[2], [1], [1], [2], [0, 0, 0, 1, 1, 2], [0], [0]>} : vector<1x4x16xf32>, vector<1x16x64xf32>, vector<1x4x64xf32> -> vector<1x4x64xf32>
    "tpu.trace_stop"() : () -> ()
    %74 = arith.addf %52, %73 : vector<1x4x64xf32>
    %75 = vector.extract_strided_slice %27 {offsets = [0, 0, 32], sizes = [1, 4, 16], strides = [1, 1, 1]} : vector<1x4x192xf32> to vector<1x4x16xf32>
    %cst_38 = arith.constant 2.500000e-01 : f32
    %76 = vector.broadcast %cst_38 : f32 to vector<1x4x16xf32>
    %77 = arith.mulf %75, %76 : vector<1x4x16xf32>
    %78 = vector.extract_strided_slice %27 {offsets = [0, 0, 96], sizes = [1, 4, 16], strides = [1, 1, 1]} : vector<1x4x192xf32> to vector<1x4x16xf32>
    %79 = vector.extract_strided_slice %27 {offsets = [0, 0, 160], sizes = [1, 4, 16], strides = [1, 1, 1]} : vector<1x4x192xf32> to vector<1x4x16xf32>
    "tpu.trace_start"() <{level = 10 : i32, message = "gnd,gmd->gnm"}> : () -> ()
    %cst_39 = arith.constant dense<0.000000e+00> : vector<1x4x4xf32>
    %80 = tpu.matmul %77, %78, %cst_39 {dimension_numbers = #tpu.dot_dimension_numbers<[2], [2], [1], [1], [0, 0, 0, 1, 1, 1], [0], [0]>} : vector<1x4x16xf32>, vector<1x4x16xf32>, vector<1x4x4xf32> -> vector<1x4x4xf32>
    "tpu.trace_stop"() : () -> ()
    %81 = vector.extract_strided_slice %29 {offsets = [2, 0, 0], sizes = [1, 4, 4], strides = [1, 1, 1]} : vector<4x4x4xf32> to vector<1x4x4xf32>
    %82 = arith.addf %80, %81 : vector<1x4x4xf32>
    %cst_40 = arith.constant dense<0xFF800000> : vector<1x4xf32>
    %83 = vector.multi_reduction <maximumf>, %82, %cst_40 [2] : vector<1x4x4xf32> to vector<1x4xf32>
    %84 = vector.shape_cast %83 : vector<1x4xf32> to vector<1x4x1xf32>
    %85 = vector.broadcast %84 : vector<1x4x1xf32> to vector<1x4x4xf32>
    %86 = arith.subf %82, %85 : vector<1x4x4xf32>
    %87 = math.exp %86 : vector<1x4x4xf32>
    %cst_41 = arith.constant dense<0.000000e+00> : vector<1x4xf32>
    %88 = vector.multi_reduction <add>, %87, %cst_41 [2] : vector<1x4x4xf32> to vector<1x4xf32>
    %89 = vector.shape_cast %88 : vector<1x4xf32> to vector<1x4x1xf32>
    %90 = tpu.reciprocal %89 {approx = true} : vector<1x4x1xf32> -> vector<1x4x1xf32>
    %91 = vector.broadcast %90 : vector<1x4x1xf32> to vector<1x4x4xf32>
    %92 = arith.mulf %87, %91 : vector<1x4x4xf32>
    "tpu.trace_start"() <{level = 10 : i32, message = "gnm,gmd->gnd"}> : () -> ()
    %cst_42 = arith.constant dense<0.000000e+00> : vector<1x4x16xf32>
    %93 = tpu.matmul %92, %79, %cst_42 {dimension_numbers = #tpu.dot_dimension_numbers<[2], [1], [1], [2], [0, 0, 0, 1, 1, 2], [0], [0]>} : vector<1x4x4xf32>, vector<1x4x16xf32>, vector<1x4x16xf32> -> vector<1x4x16xf32>
    "tpu.trace_stop"() : () -> ()
    %94 = vector.extract_strided_slice %28 {offsets = [0, 32, 0], sizes = [1, 16, 64], strides = [1, 1, 1]} : vector<1x64x64xf32> to vector<1x16x64xf32>
    "tpu.trace_start"() <{level = 10 : i32, message = "gnd,gdc->gnc"}> : () -> ()
    %cst_43 = arith.constant dense<0.000000e+00> : vector<1x4x64xf32>
    %95 = tpu.matmul %93, %94, %cst_43 {dimension_numbers = #tpu.dot_dimension_numbers<[2], [1], [1], [2], [0, 0, 0, 1, 1, 2], [0], [0]>} : vector<1x4x16xf32>, vector<1x16x64xf32>, vector<1x4x64xf32> -> vector<1x4x64xf32>
    "tpu.trace_stop"() : () -> ()
    %96 = arith.addf %74, %95 : vector<1x4x64xf32>
    %97 = vector.extract_strided_slice %27 {offsets = [0, 0, 48], sizes = [1, 4, 16], strides = [1, 1, 1]} : vector<1x4x192xf32> to vector<1x4x16xf32>
    %cst_44 = arith.constant 2.500000e-01 : f32
    %98 = vector.broadcast %cst_44 : f32 to vector<1x4x16xf32>
    %99 = arith.mulf %97, %98 : vector<1x4x16xf32>
    %100 = vector.extract_strided_slice %27 {offsets = [0, 0, 112], sizes = [1, 4, 16], strides = [1, 1, 1]} : vector<1x4x192xf32> to vector<1x4x16xf32>
    %101 = vector.extract_strided_slice %27 {offsets = [0, 0, 176], sizes = [1, 4, 16], strides = [1, 1, 1]} : vector<1x4x192xf32> to vector<1x4x16xf32>
    "tpu.trace_start"() <{level = 10 : i32, message = "gnd,gmd->gnm"}> : () -> ()
    %cst_45 = arith.constant dense<0.000000e+00> : vector<1x4x4xf32>
    %102 = tpu.matmul %99, %100, %cst_45 {dimension_numbers = #tpu.dot_dimension_numbers<[2], [2], [1], [1], [0, 0, 0, 1, 1, 1], [0], [0]>} : vector<1x4x16xf32>, vector<1x4x16xf32>, vector<1x4x4xf32> -> vector<1x4x4xf32>
    "tpu.trace_stop"() : () -> ()
    %103 = vector.extract_strided_slice %29 {offsets = [3, 0, 0], sizes = [1, 4, 4], strides = [1, 1, 1]} : vector<4x4x4xf32> to vector<1x4x4xf32>
    %104 = arith.addf %102, %103 : vector<1x4x4xf32>
    %cst_46 = arith.constant dense<0xFF800000> : vector<1x4xf32>
    %105 = vector.multi_reduction <maximumf>, %104, %cst_46 [2] : vector<1x4x4xf32> to vector<1x4xf32>
    %106 = vector.shape_cast %105 : vector<1x4xf32> to vector<1x4x1xf32>
    %107 = vector.broadcast %106 : vector<1x4x1xf32> to vector<1x4x4xf32>
    %108 = arith.subf %104, %107 : vector<1x4x4xf32>
    %109 = math.exp %108 : vector<1x4x4xf32>
    %cst_47 = arith.constant dense<0.000000e+00> : vector<1x4xf32>
    %110 = vector.multi_reduction <add>, %109, %cst_47 [2] : vector<1x4x4xf32> to vector<1x4xf32>
    %111 = vector.shape_cast %110 : vector<1x4xf32> to vector<1x4x1xf32>
    %112 = tpu.reciprocal %111 {approx = true} : vector<1x4x1xf32> -> vector<1x4x1xf32>
    %113 = vector.broadcast %112 : vector<1x4x1xf32> to vector<1x4x4xf32>
    %114 = arith.mulf %109, %113 : vector<1x4x4xf32>
    "tpu.trace_start"() <{level = 10 : i32, message = "gnm,gmd->gnd"}> : () -> ()
    %cst_48 = arith.constant dense<0.000000e+00> : vector<1x4x16xf32>
    %115 = tpu.matmul %114, %101, %cst_48 {dimension_numbers = #tpu.dot_dimension_numbers<[2], [1], [1], [2], [0, 0, 0, 1, 1, 2], [0], [0]>} : vector<1x4x4xf32>, vector<1x4x16xf32>, vector<1x4x16xf32> -> vector<1x4x16xf32>
    "tpu.trace_stop"() : () -> ()
    %116 = vector.extract_strided_slice %28 {offsets = [0, 48, 0], sizes = [1, 16, 64], strides = [1, 1, 1]} : vector<1x64x64xf32> to vector<1x16x64xf32>
    "tpu.trace_start"() <{level = 10 : i32, message = "gnd,gdc->gnc"}> : () -> ()
    %cst_49 = arith.constant dense<0.000000e+00> : vector<1x4x64xf32>
    %117 = tpu.matmul %115, %116, %cst_49 {dimension_numbers = #tpu.dot_dimension_numbers<[2], [1], [1], [2], [0, 0, 0, 1, 1, 2], [0], [0]>} : vector<1x4x16xf32>, vector<1x16x64xf32>, vector<1x4x64xf32> -> vector<1x4x64xf32>
    "tpu.trace_stop"() : () -> ()
    %118 = arith.addf %96, %117 : vector<1x4x64xf32>
    %119 = arith.addf %0, %118 : vector<1x4x64xf32>
    %c0_50 = arith.constant 0 : index
    %c0_51 = arith.constant 0 : index
    %c0_52 = arith.constant 0 : index
    %120 = vector.load %arg8[%c0_50, %c0_51, %c0_52] : memref<1x1x64xf32, #tpu.memory_space<vmem>>, vector<1x1x64xf32>
    %121 = vector.broadcast %120 : vector<1x1x64xf32> to vector<1x4x64xf32>
    %122 = arith.addf %119, %121 : vector<1x4x64xf32>
    %c0_53 = arith.constant 0 : index
    %c0_54 = arith.constant 0 : index
    %c0_55 = arith.constant 0 : index
    %123 = vector.load %arg9[%c0_53, %c0_54, %c0_55] : memref<1x1x64xf32, #tpu.memory_space<vmem>>, vector<1x1x64xf32>
    %c0_56 = arith.constant 0 : index
    %c0_57 = arith.constant 0 : index
    %c0_58 = arith.constant 0 : index
    %124 = vector.load %arg10[%c0_56, %c0_57, %c0_58] : memref<1x1x64xf32, #tpu.memory_space<vmem>>, vector<1x1x64xf32>
    %cst_59 = arith.constant dense<0.000000e+00> : vector<1x4xf32>
    %125 = vector.multi_reduction <add>, %122, %cst_59 [2] : vector<1x4x64xf32> to vector<1x4xf32>
    %126 = vector.shape_cast %125 : vector<1x4xf32> to vector<1x4x1xf32>
    %cst_60 = arith.constant 6.400000e+01 : f32
    %127 = vector.broadcast %cst_60 : f32 to vector<1x4x1xf32>
    %128 = arith.divf %126, %127 : vector<1x4x1xf32>
    %129 = vector.broadcast %128 : vector<1x4x1xf32> to vector<1x4x64xf32>
    %130 = arith.subf %122, %129 : vector<1x4x64xf32>
    %131 = arith.mulf %130, %130 : vector<1x4x64xf32>
    %cst_61 = arith.constant dense<0.000000e+00> : vector<1x4xf32>
    %132 = vector.multi_reduction <add>, %131, %cst_61 [2] : vector<1x4x64xf32> to vector<1x4xf32>
    %133 = vector.shape_cast %132 : vector<1x4xf32> to vector<1x4x1xf32>
    %cst_62 = arith.constant 6.400000e+01 : f32
    %134 = vector.broadcast %cst_62 : f32 to vector<1x4x1xf32>
    %135 = arith.divf %133, %134 : vector<1x4x1xf32>
    %cst_63 = arith.constant 9.99999974E-6 : f32
    %136 = vector.broadcast %cst_63 : f32 to vector<1x4x1xf32>
    %137 = arith.addf %135, %136 : vector<1x4x1xf32>
    %138 = math.rsqrt %137 : vector<1x4x1xf32>
    %139 = vector.broadcast %138 : vector<1x4x1xf32> to vector<1x4x64xf32>
    %140 = arith.mulf %130, %139 : vector<1x4x64xf32>
    %141 = vector.broadcast %123 : vector<1x1x64xf32> to vector<1x4x64xf32>
    %142 = arith.mulf %140, %141 : vector<1x4x64xf32>
    %143 = vector.broadcast %124 : vector<1x1x64xf32> to vector<1x4x64xf32>
    %144 = arith.addf %142, %143 : vector<1x4x64xf32>
    %c0_64 = arith.constant 0 : index
    %c0_65 = arith.constant 0 : index
    %c0_66 = arith.constant 0 : index
    %145 = vector.load %arg11[%c0_64, %c0_65, %c0_66] : memref<1x64x256xf32, #tpu.memory_space<vmem>>, vector<1x64x256xf32>
    "tpu.trace_start"() <{level = 10 : i32, message = "gnc,gck->gnk"}> : () -> ()
    %cst_67 = arith.constant dense<0.000000e+00> : vector<1x4x256xf32>
    %146 = tpu.matmul %144, %145, %cst_67 {dimension_numbers = #tpu.dot_dimension_numbers<[2], [1], [1], [2], [0, 0, 0, 1, 1, 2], [0], [0]>} : vector<1x4x64xf32>, vector<1x64x256xf32>, vector<1x4x256xf32> -> vector<1x4x256xf32>
    "tpu.trace_stop"() : () -> ()
    %c0_68 = arith.constant 0 : index
    %c0_69 = arith.constant 0 : index
    %c0_70 = arith.constant 0 : index
    %147 = vector.load %arg12[%c0_68, %c0_69, %c0_70] : memref<1x1x256xf32, #tpu.memory_space<vmem>>, vector<1x1x256xf32>
    %148 = vector.broadcast %147 : vector<1x1x256xf32> to vector<1x4x256xf32>
    %149 = arith.addf %146, %148 : vector<1x4x256xf32>
    %150 = arith.mulf %149, %149 : vector<1x4x256xf32>
    %151 = arith.mulf %149, %150 : vector<1x4x256xf32>
    %cst_71 = arith.constant 4.471500e-02 : f32
    %152 = vector.broadcast %cst_71 : f32 to vector<1x4x256xf32>
    %153 = arith.mulf %152, %151 : vector<1x4x256xf32>
    %154 = arith.addf %149, %153 : vector<1x4x256xf32>
    %cst_72 = arith.constant 0.797884583 : f32
    %155 = vector.broadcast %cst_72 : f32 to vector<1x4x256xf32>
    %156 = arith.mulf %155, %154 : vector<1x4x256xf32>
    %157 = math.tanh %156 : vector<1x4x256xf32>
    %cst_73 = arith.constant 1.000000e+00 : f32
    %158 = vector.broadcast %cst_73 : f32 to vector<1x4x256xf32>
    %159 = arith.addf %158, %157 : vector<1x4x256xf32>
    %cst_74 = arith.constant 5.000000e-01 : f32
    %160 = vector.broadcast %cst_74 : f32 to vector<1x4x256xf32>
    %161 = arith.mulf %160, %159 : vector<1x4x256xf32>
    %162 = arith.mulf %149, %161 : vector<1x4x256xf32>
    %c0_75 = arith.constant 0 : index
    %c0_76 = arith.constant 0 : index
    %c0_77 = arith.constant 0 : index
    %163 = vector.load %arg13[%c0_75, %c0_76, %c0_77] : memref<1x256x64xf32, #tpu.memory_space<vmem>>, vector<1x256x64xf32>
    "tpu.trace_start"() <{level = 10 : i32, message = "gnk,gkc->gnc"}> : () -> ()
    %cst_78 = arith.constant dense<0.000000e+00> : vector<1x4x64xf32>
    %164 = tpu.matmul %162, %163, %cst_78 {dimension_numbers = #tpu.dot_dimension_numbers<[2], [1], [1], [2], [0, 0, 0, 1, 1, 2], [0], [0]>} : vector<1x4x256xf32>, vector<1x256x64xf32>, vector<1x4x64xf32> -> vector<1x4x64xf32>
    "tpu.trace_stop"() : () -> ()
    %c0_79 = arith.constant 0 : index
    %c0_80 = arith.constant 0 : index
    %c0_81 = arith.constant 0 : index
    %165 = vector.load %arg14[%c0_79, %c0_80, %c0_81] : memref<1x1x64xf32, #tpu.memory_space<vmem>>, vector<1x1x64xf32>
    %166 = vector.broadcast %165 : vector<1x1x64xf32> to vector<1x4x64xf32>
    %167 = arith.addf %164, %166 : vector<1x4x64xf32>
    %168 = arith.addf %122, %167 : vector<1x4x64xf32>
    %c0_82 = arith.constant 0 : index
    %c0_83 = arith.constant 0 : index
    %c0_84 = arith.constant 0 : index
    %169 = vector.load %arg15[%c0_82, %c0_83, %c0_84] : memref<1x4x64xf32, #tpu.memory_space<vmem>>, vector<1x4x64xf32>
    tpu.vector_store %arg15[%c0_82, %c0_83, %c0_84], %168 {strides = array<i32>} : memref<1x4x64xf32, #tpu.memory_space<vmem>>, vector<1x4x64xf32>,
    return
  }
  func.func @transform_0(%arg0: i32) -> (i32, i32, i32) {
    %c0_i32 = arith.constant 0 : i32
    %c0_i32_0 = arith.constant 0 : i32
    %c0_i32_1 = arith.constant 0 : i32
    return %arg0, %c0_i32, %c0_i32_0 : i32, i32, i32
  }
  func.func @transform_1(%arg0: i32) -> (i32, i32, i32) {
    %c0_i32 = arith.constant 0 : i32
    %c0_i32_0 = arith.constant 0 : i32
    %c0_i32_1 = arith.constant 0 : i32
    %c0_i32_2 = arith.constant 0 : i32
    return %c0_i32, %c0_i32_0, %c0_i32_1 : i32, i32, i32
  }
  func.func @transform_2(%arg0: i32) -> (i32, i32, i32) {
    %c0_i32 = arith.constant 0 : i32
    %c0_i32_0 = arith.constant 0 : i32
    %c0_i32_1 = arith.constant 0 : i32
    %c0_i32_2 = arith.constant 0 : i32
    return %c0_i32, %c0_i32_0, %c0_i32_1 : i32, i32, i32
  }
  func.func @transform_3(%arg0: i32) -> (i32, i32, i32) {
    %c0_i32 = arith.constant 0 : i32
    %c0_i32_0 = arith.constant 0 : i32
    %c0_i32_1 = arith.constant 0 : i32
    %c0_i32_2 = arith.constant 0 : i32
    return %c0_i32, %c0_i32_0, %c0_i32_1 : i32, i32, i32
  }
  func.func @transform_4(%arg0: i32) -> (i32, i32, i32) {
    %c0_i32 = arith.constant 0 : i32
    %c0_i32_0 = arith.constant 0 : i32
    %c0_i32_1 = arith.constant 0 : i32
    %c0_i32_2 = arith.constant 0 : i32
    return %c0_i32, %c0_i32_0, %c0_i32_1 : i32, i32, i32
  }
  func.func @transform_5(%arg0: i32) -> (i32, i32, i32) {
    %c0_i32 = arith.constant 0 : i32
    %c0_i32_0 = arith.constant 0 : i32
    %c0_i32_1 = arith.constant 0 : i32
    %c0_i32_2 = arith.constant 0 : i32
    return %c0_i32, %c0_i32_0, %c0_i32_1 : i32, i32, i32
  }
  func.func @transform_6(%arg0: i32) -> (i32, i32, i32) {
    %c0_i32 = arith.constant 0 : i32
    %c0_i32_0 = arith.constant 0 : i32
    %c0_i32_1 = arith.constant 0 : i32
    %c0_i32_2 = arith.constant 0 : i32
    return %c0_i32, %c0_i32_0, %c0_i32_1 : i32, i32, i32
  }
  func.func @transform_7(%arg0: i32) -> (i32, i32, i32) {
    %c0_i32 = arith.constant 0 : i32
    %c0_i32_0 = arith.constant 0 : i32
    %c0_i32_1 = arith.constant 0 : i32
    %c0_i32_2 = arith.constant 0 : i32
    return %c0_i32, %c0_i32_0, %c0_i32_1 : i32, i32, i32
  }
  func.func @transform_8(%arg0: i32) -> (i32, i32, i32) {
    %c0_i32 = arith.constant 0 : i32
    %c0_i32_0 = arith.constant 0 : i32
    %c0_i32_1 = arith.constant 0 : i32
    %c0_i32_2 = arith.constant 0 : i32
    return %c0_i32, %c0_i32_0, %c0_i32_1 : i32, i32, i32
  }
  func.func @transform_9(%arg0: i32) -> (i32, i32, i32) {
    %c0_i32 = arith.constant 0 : i32
    %c0_i32_0 = arith.constant 0 : i32
    %c0_i32_1 = arith.constant 0 : i32
    %c0_i32_2 = arith.constant 0 : i32
    return %c0_i32, %c0_i32_0, %c0_i32_1 : i32, i32, i32
  }
  func.func @transform_10(%arg0: i32) -> (i32, i32, i32) {
    %c0_i32 = arith.constant 0 : i32
    %c0_i32_0 = arith.constant 0 : i32
    %c0_i32_1 = arith.constant 0 : i32
    %c0_i32_2 = arith.constant 0 : i32
    return %c0_i32, %c0_i32_0, %c0_i32_1 : i32, i32, i32
  }
  func.func @transform_11(%arg0: i32) -> (i32, i32, i32) {
    %c0_i32 = arith.constant 0 : i32
    %c0_i32_0 = arith.constant 0 : i32
    %c0_i32_1 = arith.constant 0 : i32
    %c0_i32_2 = arith.constant 0 : i32
    return %c0_i32, %c0_i32_0, %c0_i32_1 : i32, i32, i32
  }
  func.func @transform_12(%arg0: i32) -> (i32, i32, i32) {
    %c0_i32 = arith.constant 0 : i32
    %c0_i32_0 = arith.constant 0 : i32
    %c0_i32_1 = arith.constant 0 : i32
    %c0_i32_2 = arith.constant 0 : i32
    return %c0_i32, %c0_i32_0, %c0_i32_1 : i32, i32, i32
  }
  func.func @transform_13(%arg0: i32) -> (i32, i32, i32) {
    %c0_i32 = arith.constant 0 : i32
    %c0_i32_0 = arith.constant 0 : i32
    %c0_i32_1 = arith.constant 0 : i32
    %c0_i32_2 = arith.constant 0 : i32
    return %c0_i32, %c0_i32_0, %c0_i32_1 : i32, i32, i32
  }
  func.func @transform_14(%arg0: i32) -> (i32, i32, i32) {
    %c0_i32 = arith.constant 0 : i32
    %c0_i32_0 = arith.constant 0 : i32
    %c0_i32_1 = arith.constant 0 : i32
    return %arg0, %c0_i32, %c0_i32_0 : i32, i32, i32
  }
}

module attributes {stable_mosaic.version = 11 : i64} {
  func.func @_final_norm_kernel(%arg0: i32, %arg1: memref<8x64xf32, #tpu.memory_space<vmem>>, %arg2: memref<1x64xf32, #tpu.memory_space<vmem>>, %arg3: memref<1x64xf32, #tpu.memory_space<vmem>>, %arg4: memref<8x64xf32, #tpu.memory_space<vmem>>) attributes {dimension_semantics = [#tpu.dimension_semantics<arbitrary>], iteration_bounds = array<i64: 1>, scalar_prefetch = 0 : i64, scratch_operands = 0 : i64, tpu.core_type = #tpu.core_type<tc>, window_params = [{pipeline_mode = #tpu.pipeline_mode<synchronous>, transform_indices = @transform_0, window_bounds = array<i64: 8, 64>}, {pipeline_mode = #tpu.pipeline_mode<synchronous>, transform_indices = @transform_1, window_bounds = array<i64: 1, 64>}, {pipeline_mode = #tpu.pipeline_mode<synchronous>, transform_indices = @transform_2, window_bounds = array<i64: 1, 64>}, {pipeline_mode = #tpu.pipeline_mode<synchronous>, transform_indices = @transform_3, window_bounds = array<i64: 8, 64>}]} {
    %c0 = arith.constant 0 : index
    %c0_0 = arith.constant 0 : index
    %0 = vector.load %arg1[%c0, %c0_0] : memref<8x64xf32, #tpu.memory_space<vmem>>, vector<8x64xf32>
    %c0_1 = arith.constant 0 : index
    %c0_2 = arith.constant 0 : index
    %1 = vector.load %arg2[%c0_1, %c0_2] : memref<1x64xf32, #tpu.memory_space<vmem>>, vector<1x64xf32>
    %c0_3 = arith.constant 0 : index
    %c0_4 = arith.constant 0 : index
    %2 = vector.load %arg3[%c0_3, %c0_4] : memref<1x64xf32, #tpu.memory_space<vmem>>, vector<1x64xf32>
    %cst = arith.constant dense<0.000000e+00> : vector<8xf32>
    %3 = vector.multi_reduction <add>, %0, %cst [1] : vector<8x64xf32> to vector<8xf32>
    %4 = vector.shape_cast %3 : vector<8xf32> to vector<8x1xf32>
    %cst_5 = arith.constant 6.400000e+01 : f32
    %5 = vector.broadcast %cst_5 : f32 to vector<8x1xf32>
    %6 = arith.divf %4, %5 : vector<8x1xf32>
    %7 = vector.broadcast %6 : vector<8x1xf32> to vector<8x64xf32>
    %8 = arith.subf %0, %7 : vector<8x64xf32>
    %9 = arith.mulf %8, %8 : vector<8x64xf32>
    %cst_6 = arith.constant dense<0.000000e+00> : vector<8xf32>
    %10 = vector.multi_reduction <add>, %9, %cst_6 [1] : vector<8x64xf32> to vector<8xf32>
    %11 = vector.shape_cast %10 : vector<8xf32> to vector<8x1xf32>
    %cst_7 = arith.constant 6.400000e+01 : f32
    %12 = vector.broadcast %cst_7 : f32 to vector<8x1xf32>
    %13 = arith.divf %11, %12 : vector<8x1xf32>
    %cst_8 = arith.constant 9.99999974E-6 : f32
    %14 = vector.broadcast %cst_8 : f32 to vector<8x1xf32>
    %15 = arith.addf %13, %14 : vector<8x1xf32>
    %16 = math.rsqrt %15 : vector<8x1xf32>
    %17 = vector.broadcast %16 : vector<8x1xf32> to vector<8x64xf32>
    %18 = arith.mulf %8, %17 : vector<8x64xf32>
    %19 = vector.broadcast %1 : vector<1x64xf32> to vector<8x64xf32>
    %20 = arith.mulf %18, %19 : vector<8x64xf32>
    %21 = vector.broadcast %2 : vector<1x64xf32> to vector<8x64xf32>
    %22 = arith.addf %20, %21 : vector<8x64xf32>
    %c0_9 = arith.constant 0 : index
    %c0_10 = arith.constant 0 : index
    %23 = vector.load %arg4[%c0_9, %c0_10] : memref<8x64xf32, #tpu.memory_space<vmem>>, vector<8x64xf32>
    tpu.vector_store %arg4[%c0_9, %c0_10], %22 {strides = array<i32>} : memref<8x64xf32, #tpu.memory_space<vmem>>, vector<8x64xf32>,
    return
  }
  func.func @transform_0(%arg0: i32) -> (i32, i32) {
    %c0_i32 = arith.constant 0 : i32
    %c0_i32_0 = arith.constant 0 : i32
    %c0_i32_1 = arith.constant 0 : i32
    return %c0_i32, %c0_i32_0 : i32, i32
  }
  func.func @transform_1(%arg0: i32) -> (i32, i32) {
    %c0_i32 = arith.constant 0 : i32
    %c0_i32_0 = arith.constant 0 : i32
    %c0_i32_1 = arith.constant 0 : i32
    return %c0_i32, %c0_i32_0 : i32, i32
  }
  func.func @transform_2(%arg0: i32) -> (i32, i32) {
    %c0_i32 = arith.constant 0 : i32
    %c0_i32_0 = arith.constant 0 : i32
    %c0_i32_1 = arith.constant 0 : i32
    return %c0_i32, %c0_i32_0 : i32, i32
  }
  func.func @transform_3(%arg0: i32) -> (i32, i32) {
    %c0_i32 = arith.constant 0 : i32
    %c0_i32_0 = arith.constant 0 : i32
    %c0_i32_1 = arith.constant 0 : i32
    return %c0_i32, %c0_i32_0 : i32, i32
  }
}

</mosaic_0001>

<llo_original>
// kernel: swin_forward.7
$region0: #{swin_forward.7}
  #allocation0 [shape = 'u32[]', space=smem, size = 0x4, offset = 0x4, fixed_abs, tag = 'smem constant byte address 0x4 - core index']
  #allocation1 [shape = 'u32[144,128]{1,0:T(1,128)}', space=vmem, size = 0x12000, scoped, tag = 'internal scratch']
  %s0 = inlined_call_operand.vmem [shape: f32[32,48], index: 0, kind: input, shape index: {}]
  %s1 = inlined_call_operand.vmem [shape: f32[48,32], index: 1, kind: input, shape index: {}]
  %s2 = inlined_call_operand.vmem [shape: f32[1,32], index: 2, kind: input, shape index: {}]
  %s3 = inlined_call_operand.vmem [shape: f32[1,32], index: 3, kind: input, shape index: {}]
  %s4 = inlined_call_operand.vmem [shape: f32[1,32], index: 4, kind: input, shape index: {}]
  %s5 = inlined_call_operand.vmem [shape: f32[32,32], index: 5, kind: input, shape index: {}]
  %s6 = inlined_call_operand.vmem [shape: f32[32,32], index: 6, kind: output, shape index: {}]
  %s7 = sld [smem:[#allocation0]]
  $region57: #{swin_forward.7} parent=0
    _
  %s9 = ssub.s32 1, %s7
  %s10 = scalar_select 0, %s9, %s7
  loop: start=0, step=1, limit=4
  $region2: #{swin_forward.7} parent=0 // loop_pre_header
    _
  $region3: #{swin_forward.7} parent=0 // loop_header
    %s12 = sphi 0, %s16
    %p13 = scmp.ge.s32.totalorder %s12, 4
    %s22 = sphi 0, %s24
    %s25 = sphi 0, %s22
    %s26 = sphi 0, %s25
    %s42 = sphi 0, %s26
    %s46 = sphi 0, %s46
    %s48 = sphi 0, %s46
    %s49 = sphi 0, %s48
    %s63 = sphi 0, %s49
    %s67 = sphi 0, %s67
    %s69 = sphi 0, %s67
    %s70 = sphi 0, %s69
    %s84 = sphi 0, %s70
    %s88 = sphi 0, %s88
    %s90 = sphi 0, %s88
    %s91 = sphi 0, %s90
    %s105 = sphi 0, %s91
    %s109 = sphi 0, %s109
    %s111 = sphi 0, %s109
    %s112 = sphi 0, %s111
    %s126 = sphi 0, %s112
    %s132 = sphi 0, %s134
    %s135 = sphi 0, %s132
    %s136 = sphi 0, %s135
    %s152 = sphi 0, %s136
    %s158 = sphi 0, %s160
    %s161 = sphi 0, %s158
    %s162 = sphi 0, %s161
    %s178 = sphi 0, %s162
  $region4: #{swin_forward.7} parent=0 // loop_header_branch
    %15 = sbr.rel (%p13) target = $region8
  $region5: #{swin_forward.7} parent=0 // loop_body
    %s17 = ssub.s32 %s12, 1
    %s18 = ssub.s32 %s12, 2
    %s19 = sadd.s32 %s12, 1
    %s20 = ssub.s32 %s12, %s19
    %p21 = scmp.eq.s32.totalorder %s20, 0
    %s23 = sadd.s32 %s22, 1
    %s24 = scalar_select %p21, %s22, %s23
    %p27 = pneg %p21
    %p28 = scmp.eq.s32.totalorder %s12, 1
    %p29 = por %p27, %p28
    %p30 = scmp.ne.s32.totalorder %s22, %s25
    %p31 = scmp.eq.s32.totalorder %s12, 0
    %p32 = por %p30, %p31
    %p33 = scmp.ne.s32.totalorder %s22, %s25
    %p34 = scmp.eq.s32.totalorder %s17, 1
    %p35 = por %p33, %p34
    %p36 = scmp.ne.s32.totalorder %s25, %s26
    %p37 = scmp.eq.s32.totalorder %s17, 0
    %p38 = por %p36, %p37
    %p39 = scmp.ne.s32.totalorder %s25, %s26
    %p40 = scmp.eq.s32.totalorder %s18, 1
    %p41 = por %p39, %p40
    %p43 = scmp.ne.s32.totalorder %s26, %s42
    %p44 = scmp.eq.s32.totalorder %s18, 0
    %p45 = por %p43, %p44
    %s47 = sadd.s32 %s46, 1
    %p50 = scmp.eq.s32.totalorder %s12, 1
    %p51 = scmp.ne.s32.totalorder %s46, %s48
    %p52 = scmp.eq.s32.totalorder %s12, 0
    %p53 = por %p51, %p52
    %p54 = scmp.ne.s32.totalorder %s46, %s48
    %p55 = scmp.eq.s32.totalorder %s17, 1
    %p56 = por %p54, %p55
    %p57 = scmp.ne.s32.totalorder %s48, %s49
    %p58 = scmp.eq.s32.totalorder %s17, 0
    %p59 = por %p57, %p58
    %p60 = scmp.ne.s32.totalorder %s48, %s49
    %p61 = scmp.eq.s32.totalorder %s18, 1
    %p62 = por %p60, %p61
    %p64 = scmp.ne.s32.totalorder %s49, %s63
    %p65 = scmp.eq.s32.totalorder %s18, 0
    %p66 = por %p64, %p65
    %s68 = sadd.s32 %s67, 1
    %p71 = scmp.eq.s32.totalorder %s12, 1
    %p72 = scmp.ne.s32.totalorder %s67, %s69
    %p73 = scmp.eq.s32.totalorder %s12, 0
    %p74 = por %p72, %p73
    %p75 = scmp.ne.s32.totalorder %s67, %s69
    %p76 = scmp.eq.s32.totalorder %s17, 1
    %p77 = por %p75, %p76
    %p78 = scmp.ne.s32.totalorder %s69, %s70
    %p79 = scmp.eq.s32.totalorder %s17, 0
    %p80 = por %p78, %p79
    %p81 = scmp.ne.s32.totalorder %s69, %s70
    %p82 = scmp.eq.s32.totalorder %s18, 1
    %p83 = por %p81, %p82
    %p85 = scmp.ne.s32.totalorder %s70, %s84
    %p86 = scmp.eq.s32.totalorder %s18, 0
    %p87 = por %p85, %p86
    %s89 = sadd.s32 %s88, 1
    %p92 = scmp.eq.s32.totalorder %s12, 1
    %p93 = scmp.ne.s32.totalorder %s88, %s90
    %p94 = scmp.eq.s32.totalorder %s12, 0
    %p95 = por %p93, %p94
    %p96 = scmp.ne.s32.totalorder %s88, %s90
    %p97 = scmp.eq.s32.totalorder %s17, 1
    %p98 = por %p96, %p97
    %p99 = scmp.ne.s32.totalorder %s90, %s91
    %p100 = scmp.eq.s32.totalorder %s17, 0
    %p101 = por %p99, %p100
    %p102 = scmp.ne.s32.totalorder %s90, %s91
    %p103 = scmp.eq.s32.totalorder %s18, 1
    %p104 = por %p102, %p103
    %p106 = scmp.ne.s32.totalorder %s91, %s105
    %p107 = scmp.eq.s32.totalorder %s18, 0
    %p108 = por %p106, %p107
    %s110 = sadd.s32 %s109, 1
    %p113 = scmp.eq.s32.totalorder %s12, 1
    %p114 = scmp.ne.s32.totalorder %s109, %s111
    %p115 = scmp.eq.s32.totalorder %s12, 0
    %p116 = por %p114, %p115
    %p117 = scmp.ne.s32.totalorder %s109, %s111
    %p118 = scmp.eq.s32.totalorder %s17, 1
    %p119 = por %p117, %p118
    %p120 = scmp.ne.s32.totalorder %s111, %s112
    %p121 = scmp.eq.s32.totalorder %s17, 0
    %p122 = por %p120, %p121
    %p123 = scmp.ne.s32.totalorder %s111, %s112
    %p124 = scmp.eq.s32.totalorder %s18, 1
    %p125 = por %p123, %p124
    %p127 = scmp.ne.s32.totalorder %s112, %s126
    %p128 = scmp.eq.s32.totalorder %s18, 0
    %p129 = por %p127, %p128
    %s130 = ssub.s32 %s12, %s19
    %p131 = scmp.eq.s32.totalorder %s130, 0
    %s133 = sadd.s32 %s132, 1
    %s134 = scalar_select %p131, %s132, %s133
    %p137 = pneg %p131
    %p138 = scmp.eq.s32.totalorder %s12, 1
    %p139 = por %p137, %p138
    %p140 = scmp.ne.s32.totalorder %s132, %s135
    %p141 = scmp.eq.s32.totalorder %s12, 0
    %p142 = por %p140, %p141
    %p143 = scmp.ne.s32.totalorder %s132, %s135
    %p144 = scmp.eq.s32.totalorder %s17, 1
    %p145 = por %p143, %p144
    %p146 = scmp.ne.s32.totalorder %s135, %s136
    %p147 = scmp.eq.s32.totalorder %s17, 0
    %p148 = por %p146, %p147
    %p149 = scmp.ne.s32.totalorder %s135, %s136
    %p150 = scmp.eq.s32.totalorder %s18, 1
    %p151 = por %p149, %p150
    %p153 = scmp.ne.s32.totalorder %s136, %s152
    %p154 = scmp.eq.s32.totalorder %s18, 0
    %p155 = por %p153, %p154
    %s156 = ssub.s32 %s12, %s19
    %p157 = scmp.eq.s32.totalorder %s156, 0
    %s159 = sadd.s32 %s158, 1
    %s160 = scalar_select %p157, %s158, %s159
    %p163 = pneg %p157
    %p164 = scmp.eq.s32.totalorder %s12, 1
    %p165 = por %p163, %p164
    %p166 = scmp.ne.s32.totalorder %s158, %s161
    %p167 = scmp.eq.s32.totalorder %s12, 0
    %p168 = por %p166, %p167
    %p169 = scmp.ne.s32.totalorder %s158, %s161
    %p170 = scmp.eq.s32.totalorder %s17, 1
    %p171 = por %p169, %p170
    %p172 = scmp.ne.s32.totalorder %s161, %s162
    %p173 = scmp.eq.s32.totalorder %s17, 0
    %p174 = por %p172, %p173
    %p175 = scmp.ne.s32.totalorder %s161, %s162
    %p176 = scmp.eq.s32.totalorder %s18, 1
    %p177 = por %p175, %p176
    %p179 = scmp.ne.s32.totalorder %s162, %s178
    %p180 = scmp.eq.s32.totalorder %s18, 0
    %p181 = por %p179, %p180
    %p182 = scmp.le.s32.totalorder 1, %s12
    %p183 = scmp.lt.s32.totalorder %s12, 3
    %p184 = pnand %p182, %p183
    %p185 = pneg %p184
    // Predicated region
    $region9: #{swin_forward.7} parent=5 // pred_check
      _
    $region10: #{swin_forward.7} parent=5 // pred_check_branch
      %187 = sbr.rel (%p184) target = $region12
    $region11: #{swin_forward.7} parent=5 // pred_region
      %s188 = ssub.s32 %s12, 1
      // Predicated region
      $region13: #{swin_forward.7} parent=11 // pred_check
        %p189 = pneg %p59
      $region14: #{swin_forward.7} parent=11 // pred_check_branch
        %191 = sbr.rel (%p189) target = $region16
      $region15: #{swin_forward.7} parent=11 // pred_region
        _
      $region16: #{swin_forward.7} parent=11 // pred_fallthru
        _
      // Predicated region
      $region17: #{swin_forward.7} parent=11 // pred_check
        %p192 = pneg %p80
      $region18: #{swin_forward.7} parent=11 // pred_check_branch
        %194 = sbr.rel (%p192) target = $region20
      $region19: #{swin_forward.7} parent=11 // pred_region
        _
      $region20: #{swin_forward.7} parent=11 // pred_fallthru
        _
      // Predicated region
      $region21: #{swin_forward.7} parent=11 // pred_check
        %p195 = pneg %p101
      $region22: #{swin_forward.7} parent=11 // pred_check_branch
        %197 = sbr.rel (%p195) target = $region24
      $region23: #{swin_forward.7} parent=11 // pred_region
        _
      $region24: #{swin_forward.7} parent=11 // pred_fallthru
        _
      // Predicated region
      $region25: #{swin_forward.7} parent=11 // pred_check
        %p198 = pneg %p122
      $region26: #{swin_forward.7} parent=11 // pred_check_branch
        %200 = sbr.rel (%p198) target = $region28
      $region27: #{swin_forward.7} parent=11 // pred_region
        _
      $region28: #{swin_forward.7} parent=11 // pred_fallthru
        _
    $region12: #{swin_forward.7} parent=5 // pred_fallthru
      _
    %p201 = scmp.lt.s32.totalorder %s12, 2
    // Predicated region
    $region29: #{swin_forward.7} parent=5 // pred_check
      %p202 = pneg %p201
    $region30: #{swin_forward.7} parent=5 // pred_check_branch
      %204 = sbr.rel (%p202) target = $region32
    $region31: #{swin_forward.7} parent=5 // pred_region
      // Predicated region
      $region33: #{swin_forward.7} parent=31 // pred_check
        %p205 = pneg %p32
      $region34: #{swin_forward.7} parent=31 // pred_check_branch
        %207 = sbr.rel (%p205) target = $region36
      $region35: #{swin_forward.7} parent=31 // pred_region
        %s208 = smul.u32 2, %s12
        %p209 = scmp.lt.s32.totalorder %s208, 3
        %s210 = scalar_select %p209, %s208, 3
        %s211 = smul.addr %s210, 8
        %s212 = scalar_lea.vmem %s0, %s211
        %s213 = smul.u32 2, %s12
      $region36: #{swin_forward.7} parent=31 // pred_fallthru
        _
      // Predicated region
      $region37: #{swin_forward.7} parent=31 // pred_check
        %p214 = pneg %p142
      $region38: #{swin_forward.7} parent=31 // pred_check_branch
        %216 = sbr.rel (%p214) target = $region40
      $region39: #{swin_forward.7} parent=31 // pred_region
        %s217 = smul.u32 2, %s12
        %p218 = scmp.lt.s32.totalorder %s217, 3
        %s219 = scalar_select %p218, %s217, 3
        %s220 = smul.addr %s219, 8
        %s221 = scalar_lea.vmem %s5, %s220
        %s222 = smul.u32 2, %s12
      $region40: #{swin_forward.7} parent=31 // pred_fallthru
        _
    $region32: #{swin_forward.7} parent=5 // pred_fallthru
      _
    %p223 = scmp.le.s32.totalorder 1, %s12
    %p224 = scmp.lt.s32.totalorder %s12, 3
    %p225 = pnand %p223, %p224
    %p226 = pneg %p225
    // Predicated region
    $region41: #{swin_forward.7} parent=5 // pred_check
      _
    $region42: #{swin_forward.7} parent=5 // pred_check_branch
      %228 = sbr.rel (%p225) target = $region44
    $region43: #{swin_forward.7} parent=5 // pred_region
      %s229 = ssub.s32 %s12, 1
      %s230 = smul.u32 2, %s17
      %p231 = scmp.lt.s32.totalorder %s230, 3
      %s232 = scalar_select %p231, %s230, 3
      %s233 = smul.addr %s232, 8
      %s234 = scalar_lea.vmem %s0, %s233
      %p235 = pneg %p38
      %p236 = pneg %p35
      %p237 = pneg %p59
      %p238 = pneg %p56
      %p239 = pneg %p80
      %p240 = pneg %p77
      %p241 = pneg %p101
      %p242 = pneg %p98
      %p243 = pneg %p122
      %p244 = pneg %p119
      %s245 = smul.u32 2, %s17
      %p246 = scmp.lt.s32.totalorder %s245, 3
      %s247 = scalar_select %p246, %s245, 3
      %s248 = smul.addr %s247, 8
      %s249 = scalar_lea.vmem %s5, %s248
      %p250 = pneg %p148
      %p251 = pneg %p145
      %p252 = pneg %p174
      %p253 = pneg %p171
      %s254 = smul.u32 2, %s17
      %p255 = scmp.lt.s32.totalorder %s254, 3
      %s256 = scalar_select %p255, %s254, 3
      %s257 = smul.addr %s256, 8
      %s258 = scalar_lea.vmem %s6, %s257
      %s259 = smul.u32 2, %s17
      %p260 = scmp.lt.s32.totalorder %s259, 3
      %s261 = scalar_select %p260, %s259, 3
      %s262 = smul.addr %s261, 8
      %s263 = scalar_lea.vmem %s0, %s262
      %s264 = smul.u32 2, %s17
      %s265 = smul.u32 2, %s17
      %p266 = scmp.lt.s32.totalorder %s265, 3
      %s267 = scalar_select %p266, %s265, 3
      %s268 = smul.addr %s267, 8
      %s269 = scalar_lea.vmem %s5, %s268
      %s270 = smul.u32 2, %s17
      %s271 = smul.u32 2, %s17
      %p272 = scmp.lt.s32.totalorder %s271, 3
      %s273 = scalar_select %p272, %s271, 3
      %s274 = smul.addr %s273, 8
      %s275 = scalar_lea.vmem %s6, %s274
      %s276 = smul.u32 2, %s17
      %v277 = vld [vmem:[%s263] sm:$0xff]
      %v278 = vld [vmem:[%s263 + $0x8] sm:$0xff]
      %v279 = vld [vmem:[%s1] sm:$0xff]
      %v280 = vld [vmem:[%s1 + $0x8] sm:$0xff]
      %v281 = vld [vmem:[%s1 + $0x10] sm:$0xff]
      %v282 = vld [vmem:[%s1 + $0x18] sm:$0xff]
      %v283 = vld [vmem:[%s1 + $0x20] sm:$0xff]
      %v284 = vld [vmem:[%s1 + $0x28] sm:$0xff]
      %v285 = vld [vmem:[%s2] sm:$0x1]
      %v287 = vlaneseq
      %v288 = vshrl.u32 %v287, 7
      %v289 = vsub.s32 0, %v288
      %v290 = vrot.slane %v285, %v289
      %vm292 = vcmask 392192
      %v294 = vsel %vm292, %v277, 0
      %v297 = vsel %vm292, %v278, 0
      %299 = vmatprep.subr.mxu0 0.0
      %300 = vmatpush1.msra.mxu0 %v279
      %301 = vmatprep.subr.mxu0 0.0
      %302 = vmatpush1.msra.mxu0 %v280
      %303 = vmatprep.subr.mxu0 0.0
      %304 = vmatpush1.msra.mxu0 %v281
      %305 = vmatprep.subr.mxu0 0.0
      %306 = vmatpush1.msra.mxu0 %v282
      %307 = vmatprep.subr.mxu0 0.0
      %308 = vmatpush1.msra.mxu0 %v283
      %309 = vmatprep.subr.mxu0 0.0
      %310 = vmatpush1.msra.mxu0 %v284
      %311 = vmatprep.subr.mxu0 0.0
      %312 = vmatpush1.msra.mxu0 0.0
      %313 = vmatprep.subr.mxu0 0.0
      %314 = vmatpush1.msra.mxu0 0.0
      %315 = vmatprep.subr.mxu0 0.0
      %316 = vmatpush1.msra.mxu0 0.0
      %317 = vmatprep.subr.mxu0 0.0
      %318 = vmatpush1.msra.mxu0 0.0
      %319 = vmatprep.subr.mxu0 0.0
      %320 = vmatpush1.msra.mxu0 0.0
      %321 = vmatprep.subr.mxu0 0.0
      %322 = vmatpush1.msra.mxu0 0.0
      %323 = vmatprep.subr.mxu0 0.0
      %324 = vmatpush1.msra.mxu0 0.0
      %325 = vmatprep.subr.mxu0 0.0
      %326 = vmatpush1.msra.mxu0 0.0
      %327 = vmatprep.subr.mxu0 0.0
      %328 = vmatpush1.msra.mxu0 0.0
      %329 = vmatprep.subr.mxu0 0.0
      %330 = vmatpush1.msra.mxu0 0.0
      %331 = vmatprep.subr.mxu0 0.0
      %332 = vmatpush1.msra.mxu0 0.0
      %333 = vmatprep.subr.mxu0 0.0
      %334 = vmatpush1.msra.mxu0 0.0
      %335 = vmatprep.subr.mxu0 0.0
      %336 = vmatpush1.msra.mxu0 0.0
      %337 = vmatprep.subr.mxu0 0.0
      %338 = vmatpush1.msra.mxu0 0.0
      %339 = vmatprep.subr.mxu0 0.0
      %340 = vmatpush1.msra.mxu0 0.0
      %341 = vmatprep.subr.mxu0 0.0
      %342 = vmatpush1.msra.mxu0 0.0
      %343 = vmatprep.subr.mxu0 0.0
      %344 = vmatpush1.msra.mxu0 0.0
      %345 = vmatprep.subr.mxu0 0.0
      %346 = vmatpush1.msra.mxu0 0.0
      %347 = vmatprep.subr.mxu0 0.0
      %348 = vmatpush1.msra.mxu0 0.0
      %349 = vmatprep.subr.mxu0 0.0
      %350 = vmatpush1.msra.mxu0 0.0
      %351 = vmatprep.subr.mxu0 0.0
      %352 = vmatpush1.msra.mxu0 0.0
      %353 = vmatprep.subr.mxu0 0.0
      %354 = vmatpush1.msra.mxu0 0.0
      %355 = vmatprep.subr.mxu0 0.0
      %356 = vmatpush1.msra.mxu0 0.0
      %357 = vmatprep.subr.mxu0 0.0
      %358 = vmatpush1.msra.mxu0 0.0
      %359 = vmatprep.subr.mxu0 0.0
      %360 = vmatpush1.msra.mxu0 0.0
      %361 = vmatprep.subr.mxu0 0.0
      %362 = vmatpush1.msra.mxu0 0.0
      %363 = vmatprep.mubr.f32.mxu0 0.0
      %364 = vmatmul.mubr.f32.gmra.mrb[0].mxu0 %v294
      %v365 = vpop.f32.mrb[0].mxu0
      %v366 = vadd.f32 %v290, %v365
      %v367 = vpop.f32.mrb[0].mxu0
      %368 = vmatprep.mubr.f32.mxu0 0.0
      %369 = vmatmul.mubr.f32.gmra.mrb[0].mxu0 %v297
      %v370 = vpop.f32.mrb[0].mxu0
      %v371 = vadd.f32 %v290, %v370
      %v372 = vpop.f32.mrb[0].mxu0
      %373 = vdwg.mxu0
      %v374 = vld [vmem:[%s3] sm:$0x1]
      %v375 = vld [vmem:[%s4] sm:$0x1]
      %vm376 = vcmask 261120
      %v377 = vsel %vm376, %v366, 0.0
      %378 = vadd.xlane.f32.xlu0 %v377
      %v379 = vpop.xlane.xlu0 %378
      %v380 = vsel %vm376, %v371, 0.0
      %381 = vadd.xlane.f32.xlu0 %v380
      %v382 = vpop.xlane.xlu0 %381
      %v383 = vrcp.pop 32.0
      %v384 = vmul.f32 %v379, %v383
      %v385 = vmul.f32 %v382, %v383
      %v386 = vsub.f32 %v366, %v384
      %v387 = vsub.f32 %v371, %v385
      %v388 = vmul.f32 %v386, %v386
      %v389 = vmul.f32 %v387, %v387
      %v390 = vsel %vm376, %v388, 0.0
      %391 = vadd.xlane.f32.xlu0 %v390
      %v392 = vpop.xlane.xlu0 %391
      %v393 = vsel %vm376, %v389, 0.0
      %394 = vadd.xlane.f32.xlu0 %v393
      %v395 = vpop.xlane.xlu0 %394
      %v396 = vmul.f32 %v392, %v383
      %v397 = vmul.f32 %v395, %v383
      %v398 = vadd.f32 %v396, 1e-05
      %v399 = vadd.f32 %v397, 1e-05
      %v400 = vrsqrt.pop %v398
      %v401 = vrsqrt.pop %v399
      %v402 = vmul.f32 %v386, %v400
      %v403 = vmul.f32 %v387, %v401
      %v405 = vlaneseq
      %v406 = vshrl.u32 %v405, 7
      %v407 = vsub.s32 0, %v406
      %v408 = vrot.slane %v374, %v407
      %v410 = vmul.f32 %v402, %v408
      %v411 = vmul.f32 %v403, %v408
      %v413 = vlaneseq
      %v414 = vshrl.u32 %v413, 7
      %v415 = vsub.s32 0, %v414
      %v416 = vrot.slane %v375, %v415
      %v418 = vadd.f32 %v410, %v416
      %v419 = vadd.f32 %v411, %v416
      %v420 = vld [vmem:[%s269] sm:$0xff]
      %v421 = vld [vmem:[%s269 + $0x8] sm:$0xff]
      %v422 = vadd.f32 %v418, %v420
      %v423 = vadd.f32 %v419, %v421
      %424 = vst.msk [vmem:[%s275] sm:$0xff] %vm376, %v422
      %425 = vst.msk [vmem:[%s275 + $0x8] sm:$0xff] %vm376, %v423
      %s426 = smul.u32 2, %s17
      %p427 = scmp.lt.s32.totalorder %s426, 3
      %s428 = scalar_select %p427, %s426, 3
      %s429 = smul.addr %s428, 8
      %s430 = scalar_lea.vmem %s6, %s429
      // Predicated region
      $region45: #{swin_forward.7} parent=43 // pred_check
        %p431 = pneg %p171
      $region46: #{swin_forward.7} parent=43 // pred_check_branch
        %433 = sbr.rel (%p431) target = $region48
      $region47: #{swin_forward.7} parent=43 // pred_region
        %s434 = smul.u32 2, %s17
      $region48: #{swin_forward.7} parent=43 // pred_fallthru
        _
    $region44: #{swin_forward.7} parent=5 // pred_fallthru
      _
    %p435 = scmp.le.s32.totalorder 2, %s12
    // Predicated region
    $region49: #{swin_forward.7} parent=5 // pred_check
      %p436 = pneg %p435
    $region50: #{swin_forward.7} parent=5 // pred_check_branch
      %438 = sbr.rel (%p436) target = $region52
    $region51: #{swin_forward.7} parent=5 // pred_region
      %s439 = ssub.s32 %s12, 2
      // Predicated region
      $region53: #{swin_forward.7} parent=51 // pred_check
        %p440 = pneg %p177
      $region54: #{swin_forward.7} parent=51 // pred_check_branch
        %442 = sbr.rel (%p440) target = $region56
      $region55: #{swin_forward.7} parent=51 // pred_region
        %s443 = smul.u32 2, %s18
        %p444 = scmp.lt.s32.totalorder %s443, 3
        %s445 = scalar_select %p444, %s443, 3
        %s446 = smul.addr %s445, 8
        %s447 = scalar_lea.vmem %s6, %s446
      $region56: #{swin_forward.7} parent=51 // pred_fallthru
        _
    $region52: #{swin_forward.7} parent=5 // pred_fallthru
      _
  $region6: #{swin_forward.7} parent=0 // loop_footer
    %s16 = sadd.s32 1, %s12
  $region7: #{swin_forward.7} parent=0 // loop_footer_branch
    %11 = sbr.rel target = $region3
  $region8: #{swin_forward.7} parent=0 // loop_exit
    _

// kernel: swin_forward.10
$region0: #{swin_forward.10}
  #allocation0 [shape = 'u32[]', space=smem, size = 0x4, offset = 0x4, fixed_abs, tag = 'smem constant byte address 0x4 - core index']
  #allocation1 [shape = 'u32[144,128]{1,0:T(1,128)}', space=vmem, size = 0x12000, scoped, tag = 'internal scratch']
  %s0 = inlined_call_operand.vmem [shape: f32[8,128], index: 0, kind: input, shape index: {}]
  %s1 = inlined_call_operand.vmem [shape: f32[1,128], index: 1, kind: input, shape index: {}]
  %s2 = inlined_call_operand.vmem [shape: f32[1,128], index: 2, kind: input, shape index: {}]
  %s3 = inlined_call_operand.vmem [shape: f32[128,64], index: 3, kind: input, shape index: {}]
  %s4 = inlined_call_operand.vmem [shape: f32[8,64], index: 4, kind: output, shape index: {}]
  %s5 = sld [smem:[#allocation0]]
  $region26: #{swin_forward.10} parent=0
    _
  %s7 = ssub.s32 1, %s5
  %s8 = scalar_select 0, %s7, %s5
  // Predicated region
  $region2: #{swin_forward.10} parent=0 // pred_check
    _
  $region3: #{swin_forward.10} parent=0 // pred_check_branch
    %10 = sbr.rel (0) target = $region5
  $region4: #{swin_forward.10} parent=0 // pred_region
    _
  $region5: #{swin_forward.10} parent=0 // pred_fallthru
    _
  // Predicated region
  $region6: #{swin_forward.10} parent=0 // pred_check
    _
  $region7: #{swin_forward.10} parent=0 // pred_check_branch
    %12 = sbr.rel (0) target = $region9
  $region8: #{swin_forward.10} parent=0 // pred_region
    _
  $region9: #{swin_forward.10} parent=0 // pred_fallthru
    _
  // Predicated region
  $region10: #{swin_forward.10} parent=0 // pred_check
    _
  $region11: #{swin_forward.10} parent=0 // pred_check_branch
    %14 = sbr.rel (0) target = $region13
  $region12: #{swin_forward.10} parent=0 // pred_region
    _
  $region13: #{swin_forward.10} parent=0 // pred_fallthru
    _
  // Predicated region
  $region14: #{swin_forward.10} parent=0 // pred_check
    _
  $region15: #{swin_forward.10} parent=0 // pred_check_branch
    %16 = sbr.rel (0) target = $region17
  $region16: #{swin_forward.10} parent=0 // pred_region
    _
  $region17: #{swin_forward.10} parent=0 // pred_fallthru
    _
  %v17 = vld [vmem:[%s0] sm:$0xff]
  %v18 = vld [vmem:[%s1] sm:$0x1]
  %v19 = vld [vmem:[%s2] sm:$0x1]
  %20 = vadd.xlane.f32.xlu0 %v17
  %v21 = vpop.xlane.xlu0 %20
  %v22 = vrcp.pop 128.0
  %v23 = vmul.f32 %v21, %v22
  %v24 = vsub.f32 %v17, %v23
  %v25 = vmul.f32 %v24, %v24
  %26 = vadd.xlane.f32.xlu0 %v25
  %v27 = vpop.xlane.xlu0 %26
  %v28 = vmul.f32 %v27, %v22
  %v29 = vadd.f32 %v28, 1e-05
  %v30 = vrsqrt.pop %v29
  %v31 = vmul.f32 %v24, %v30
  %v33 = vlaneseq
  %v34 = vshrl.u32 %v33, 7
  %v35 = vsub.s32 0, %v34
  %v36 = vrot.slane %v18, %v35
  %v38 = vmul.f32 %v31, %v36
  %v40 = vlaneseq
  %v41 = vshrl.u32 %v40, 7
  %v42 = vsub.s32 0, %v41
  %v43 = vrot.slane %v19, %v42
  %v45 = vadd.f32 %v38, %v43
  %v46 = vld [vmem:[%s3] sm:$0xff]
  %v47 = vld [vmem:[%s3 + $0x8] sm:$0xff]
  %v48 = vld [vmem:[%s3 + $0x10] sm:$0xff]
  %v49 = vld [vmem:[%s3 + $0x18] sm:$0xff]
  %v50 = vld [vmem:[%s3 + $0x20] sm:$0xff]
  %v51 = vld [vmem:[%s3 + $0x28] sm:$0xff]
  %v52 = vld [vmem:[%s3 + $0x30] sm:$0xff]
  %v53 = vld [vmem:[%s3 + $0x38] sm:$0xff]
  %v54 = vld [vmem:[%s3 + $0x40] sm:$0xff]
  %v55 = vld [vmem:[%s3 + $0x48] sm:$0xff]
  %v56 = vld [vmem:[%s3 + $0x50] sm:$0xff]
  %v57 = vld [vmem:[%s3 + $0x58] sm:$0xff]
  %v58 = vld [vmem:[%s3 + $0x60] sm:$0xff]
  %v59 = vld [vmem:[%s3 + $0x68] sm:$0xff]
  %v60 = vld [vmem:[%s3 + $0x70] sm:$0xff]
  %v61 = vld [vmem:[%s3 + $0x78] sm:$0xff]
  %62 = vmatprep.subr.mxu0 0.0
  %63 = vmatpush1.msra.mxu0 %v46
  %64 = vmatprep.subr.mxu0 0.0
  %65 = vmatpush1.msra.mxu0 %v47
  %66 = vmatprep.subr.mxu0 0.0
  %67 = vmatpush1.msra.mxu0 %v48
  %68 = vmatprep.subr.mxu0 0.0
  %69 = vmatpush1.msra.mxu0 %v49
  %70 = vmatprep.subr.mxu0 0.0
  %71 = vmatpush1.msra.mxu0 %v50
  %72 = vmatprep.subr.mxu0 0.0
  %73 = vmatpush1.msra.mxu0 %v51
  %74 = vmatprep.subr.mxu0 0.0
  %75 = vmatpush1.msra.mxu0 %v52
  %76 = vmatprep.subr.mxu0 0.0
  %77 = vmatpush1.msra.mxu0 %v53
  %78 = vmatprep.subr.mxu0 0.0
  %79 = vmatpush1.msra.mxu0 %v54
  %80 = vmatprep.subr.mxu0 0.0
  %81 = vmatpush1.msra.mxu0 %v55
  %82 = vmatprep.subr.mxu0 0.0
  %83 = vmatpush1.msra.mxu0 %v56
  %84 = vmatprep.subr.mxu0 0.0
  %85 = vmatpush1.msra.mxu0 %v57
  %86 = vmatprep.subr.mxu0 0.0
  %87 = vmatpush1.msra.mxu0 %v58
  %88 = vmatprep.subr.mxu0 0.0
  %89 = vmatpush1.msra.mxu0 %v59
  %90 = vmatprep.subr.mxu0 0.0
  %91 = vmatpush1.msra.mxu0 %v60
  %92 = vmatprep.subr.mxu0 0.0
  %93 = vmatpush1.msra.mxu0 %v61
  %94 = vmatprep.subr.mxu0 0.0
  %95 = vmatpush1.msra.mxu0 0.0
  %96 = vmatprep.subr.mxu0 0.0
  %97 = vmatpush1.msra.mxu0 0.0
  %98 = vmatprep.subr.mxu0 0.0
  %99 = vmatpush1.msra.mxu0 0.0
  %100 = vmatprep.subr.mxu0 0.0
  %101 = vmatpush1.msra.mxu0 0.0
  %102 = vmatprep.subr.mxu0 0.0
  %103 = vmatpush1.msra.mxu0 0.0
  %104 = vmatprep.subr.mxu0 0.0
  %105 = vmatpush1.msra.mxu0 0.0
  %106 = vmatprep.subr.mxu0 0.0
  %107 = vmatpush1.msra.mxu0 0.0
  %108 = vmatprep.subr.mxu0 0.0
  %109 = vmatpush1.msra.mxu0 0.0
  %110 = vmatprep.subr.mxu0 0.0
  %111 = vmatpush1.msra.mxu0 0.0
  %112 = vmatprep.subr.mxu0 0.0
  %113 = vmatpush1.msra.mxu0 0.0
  %114 = vmatprep.subr.mxu0 0.0
  %115 = vmatpush1.msra.mxu0 0.0
  %116 = vmatprep.subr.mxu0 0.0
  %117 = vmatpush1.msra.mxu0 0.0
  %118 = vmatprep.subr.mxu0 0.0
  %119 = vmatpush1.msra.mxu0 0.0
  %120 = vmatprep.subr.mxu0 0.0
  %121 = vmatpush1.msra.mxu0 0.0
  %122 = vmatprep.subr.mxu0 0.0
  %123 = vmatpush1.msra.mxu0 0.0
  %124 = vmatprep.subr.mxu0 0.0
  %125 = vmatpush1.msra.mxu0 0.0
  %126 = vmatprep.mubr.f32.mxu0 0.0
  %127 = vmatmul.mubr.f32.gmra.mrb[0].mxu0 %v45
  %v128 = vpop.f32.mrb[0].mxu0
  %v129 = vadd.f32 0.0, %v128
  %v130 = vpop.f32.mrb[0].mxu0
  %131 = vdwg.mxu0
  %vm132 = vcmask 523264
  %133 = vst.msk [vmem:[%s4] sm:$0xff] %vm132, %v129
  // Predicated region
  $region18: #{swin_forward.10} parent=0 // pred_check
    _
  $region19: #{swin_forward.10} parent=0 // pred_check_branch
    %135 = sbr.rel (0) target = $region21
  $region20: #{swin_forward.10} parent=0 // pred_region
    _
  $region21: #{swin_forward.10} parent=0 // pred_fallthru
    _
  // Predicated region
  $region22: #{swin_forward.10} parent=0 // pred_check
    _
  $region23: #{swin_forward.10} parent=0 // pred_check_branch
    %137 = sbr.rel (0) target = $region25
  $region24: #{swin_forward.10} parent=0 // pred_region
    _
  $region25: #{swin_forward.10} parent=0 // pred_fallthru
    _

// kernel: swin_forward.9
$region0: #{swin_forward.9}
  #allocation0 [shape = 'u32[]', space=smem, size = 0x4, offset = 0x4, fixed_abs, tag = 'smem constant byte address 0x4 - core index']
  #allocation1 [shape = 'u32[144,128]{1,0:T(1,128)}', space=vmem, size = 0x12000, scoped, tag = 'internal scratch']
  %s0 = inlined_call_operand.vmem [shape: f32[8,4,32], index: 0, kind: input, shape index: {}]
  %s1 = inlined_call_operand.vmem [shape: f32[1,1,32], index: 1, kind: input, shape index: {}]
  %s2 = inlined_call_operand.vmem [shape: f32[1,1,32], index: 2, kind: input, shape index: {}]
  %s3 = inlined_call_operand.vmem [shape: f32[1,32,96], index: 3, kind: input, shape index: {}]
  %s4 = inlined_call_operand.vmem [shape: f32[1,1,96], index: 4, kind: input, shape index: {}]
  %s5 = inlined_call_operand.vmem [shape: f32[2,4,4], index: 5, kind: input, shape index: {}]
  %s6 = inlined_call_operand.vmem [shape: f32[8,4,4], index: 6, kind: input, shape index: {}]
  %s7 = inlined_call_operand.vmem [shape: f32[1,32,32], index: 7, kind: input, shape index: {}]
  %s8 = inlined_call_operand.vmem [shape: f32[1,1,32], index: 8, kind: input, shape index: {}]
  %s9 = inlined_call_operand.vmem [shape: f32[1,1,32], index: 9, kind: input, shape index: {}]
  %s10 = inlined_call_operand.vmem [shape: f32[1,1,32], index: 10, kind: input, shape index: {}]
  %s11 = inlined_call_operand.vmem [shape: f32[1,32,128], index: 11, kind: input, shape index: {}]
  %s12 = inlined_call_operand.vmem [shape: f32[1,1,128], index: 12, kind: input, shape index: {}]
  %s13 = inlined_call_operand.vmem [shape: f32[1,128,32], index: 13, kind: input, shape index: {}]
  %s14 = inlined_call_operand.vmem [shape: f32[1,1,32], index: 14, kind: input, shape index: {}]
  %s15 = inlined_call_operand.vmem [shape: f32[8,4,32], index: 15, kind: output, shape index: {}]
  %s16 = sld [smem:[#allocation0]]
  $region93: #{swin_forward.9} parent=0
    _
  %s18 = ssub.s32 1, %s16
  %s19 = scalar_select 0, %s18, %s16
  loop: start=0, step=1, limit=4
  $region2: #{swin_forward.9} parent=0 // loop_pre_header
    _
  $region3: #{swin_forward.9} parent=0 // loop_header
    %s21 = sphi 0, %s25
    %p22 = scmp.ge.s32.totalorder %s21, 4
    %s31 = sphi 0, %s33
    %s34 = sphi 0, %s31
    %s35 = sphi 0, %s34
    %s51 = sphi 0, %s35
    %s55 = sphi 0, %s55
    %s57 = sphi 0, %s55
    %s58 = sphi 0, %s57
    %s72 = sphi 0, %s58
    %s76 = sphi 0, %s76
    %s78 = sphi 0, %s76
    %s79 = sphi 0, %s78
    %s93 = sphi 0, %s79
    %s97 = sphi 0, %s97
    %s99 = sphi 0, %s97
    %s100 = sphi 0, %s99
    %s114 = sphi 0, %s100
    %s118 = sphi 0, %s118
    %s120 = sphi 0, %s118
    %s121 = sphi 0, %s120
    %s135 = sphi 0, %s121
    %s139 = sphi 0, %s139
    %s141 = sphi 0, %s139
    %s142 = sphi 0, %s141
    %s156 = sphi 0, %s142
    %s162 = sphi 0, %s164
    %s165 = sphi 0, %s162
    %s166 = sphi 0, %s165
    %s182 = sphi 0, %s166
    %s186 = sphi 0, %s186
    %s188 = sphi 0, %s186
    %s189 = sphi 0, %s188
    %s203 = sphi 0, %s189
    %s207 = sphi 0, %s207
    %s209 = sphi 0, %s207
    %s210 = sphi 0, %s209
    %s224 = sphi 0, %s210
    %s228 = sphi 0, %s228
    %s230 = sphi 0, %s228
    %s231 = sphi 0, %s230
    %s245 = sphi 0, %s231
    %s249 = sphi 0, %s249
    %s251 = sphi 0, %s249
    %s252 = sphi 0, %s251
    %s266 = sphi 0, %s252
    %s270 = sphi 0, %s270
    %s272 = sphi 0, %s270
    %s273 = sphi 0, %s272
    %s287 = sphi 0, %s273
    %s291 = sphi 0, %s291
    %s293 = sphi 0, %s291
    %s294 = sphi 0, %s293
    %s308 = sphi 0, %s294
    %s312 = sphi 0, %s312
    %s314 = sphi 0, %s312
    %s315 = sphi 0, %s314
    %s329 = sphi 0, %s315
    %s333 = sphi 0, %s333
    %s335 = sphi 0, %s333
    %s336 = sphi 0, %s335
    %s350 = sphi 0, %s336
    %s356 = sphi 0, %s358
    %s359 = sphi 0, %s356
    %s360 = sphi 0, %s359
    %s376 = sphi 0, %s360
  $region4: #{swin_forward.9} parent=0 // loop_header_branch
    %24 = sbr.rel (%p22) target = $region8
  $region5: #{swin_forward.9} parent=0 // loop_body
    %s26 = ssub.s32 %s21, 1
    %s27 = ssub.s32 %s21, 2
    %s28 = sadd.s32 %s21, 1
    %s29 = ssub.s32 %s21, %s28
    %p30 = scmp.eq.s32.totalorder %s29, 0
    %s32 = sadd.s32 %s31, 1
    %s33 = scalar_select %p30, %s31, %s32
    %p36 = pneg %p30
    %p37 = scmp.eq.s32.totalorder %s21, 1
    %p38 = por %p36, %p37
    %p39 = scmp.ne.s32.totalorder %s31, %s34
    %p40 = scmp.eq.s32.totalorder %s21, 0
    %p41 = por %p39, %p40
    %p42 = scmp.ne.s32.totalorder %s31, %s34
    %p43 = scmp.eq.s32.totalorder %s26, 1
    %p44 = por %p42, %p43
    %p45 = scmp.ne.s32.totalorder %s34, %s35
    %p46 = scmp.eq.s32.totalorder %s26, 0
    %p47 = por %p45, %p46
    %p48 = scmp.ne.s32.totalorder %s34, %s35
    %p49 = scmp.eq.s32.totalorder %s27, 1
    %p50 = por %p48, %p49
    %p52 = scmp.ne.s32.totalorder %s35, %s51
    %p53 = scmp.eq.s32.totalorder %s27, 0
    %p54 = por %p52, %p53
    %s56 = sadd.s32 %s55, 1
    %p59 = scmp.eq.s32.totalorder %s21, 1
    %p60 = scmp.ne.s32.totalorder %s55, %s57
    %p61 = scmp.eq.s32.totalorder %s21, 0
    %p62 = por %p60, %p61
    %p63 = scmp.ne.s32.totalorder %s55, %s57
    %p64 = scmp.eq.s32.totalorder %s26, 1
    %p65 = por %p63, %p64
    %p66 = scmp.ne.s32.totalorder %s57, %s58
    %p67 = scmp.eq.s32.totalorder %s26, 0
    %p68 = por %p66, %p67
    %p69 = scmp.ne.s32.totalorder %s57, %s58
    %p70 = scmp.eq.s32.totalorder %s27, 1
    %p71 = por %p69, %p70
    %p73 = scmp.ne.s32.totalorder %s58, %s72
    %p74 = scmp.eq.s32.totalorder %s27, 0
    %p75 = por %p73, %p74
    %s77 = sadd.s32 %s76, 1
    %p80 = scmp.eq.s32.totalorder %s21, 1
    %p81 = scmp.ne.s32.totalorder %s76, %s78
    %p82 = scmp.eq.s32.totalorder %s21, 0
    %p83 = por %p81, %p82
    %p84 = scmp.ne.s32.totalorder %s76, %s78
    %p85 = scmp.eq.s32.totalorder %s26, 1
    %p86 = por %p84, %p85
    %p87 = scmp.ne.s32.totalorder %s78, %s79
    %p88 = scmp.eq.s32.totalorder %s26, 0
    %p89 = por %p87, %p88
    %p90 = scmp.ne.s32.totalorder %s78, %s79
    %p91 = scmp.eq.s32.totalorder %s27, 1
    %p92 = por %p90, %p91
    %p94 = scmp.ne.s32.totalorder %s79, %s93
    %p95 = scmp.eq.s32.totalorder %s27, 0
    %p96 = por %p94, %p95
    %s98 = sadd.s32 %s97, 1
    %p101 = scmp.eq.s32.totalorder %s21, 1
    %p102 = scmp.ne.s32.totalorder %s97, %s99
    %p103 = scmp.eq.s32.totalorder %s21, 0
    %p104 = por %p102, %p103
    %p105 = scmp.ne.s32.totalorder %s97, %s99
    %p106 = scmp.eq.s32.totalorder %s26, 1
    %p107 = por %p105, %p106
    %p108 = scmp.ne.s32.totalorder %s99, %s100
    %p109 = scmp.eq.s32.totalorder %s26, 0
    %p110 = por %p108, %p109
    %p111 = scmp.ne.s32.totalorder %s99, %s100
    %p112 = scmp.eq.s32.totalorder %s27, 1
    %p113 = por %p111, %p112
    %p115 = scmp.ne.s32.totalorder %s100, %s114
    %p116 = scmp.eq.s32.totalorder %s27, 0
    %p117 = por %p115, %p116
    %s119 = sadd.s32 %s118, 1
    %p122 = scmp.eq.s32.totalorder %s21, 1
    %p123 = scmp.ne.s32.totalorder %s118, %s120
    %p124 = scmp.eq.s32.totalorder %s21, 0
    %p125 = por %p123, %p124
    %p126 = scmp.ne.s32.totalorder %s118, %s120
    %p127 = scmp.eq.s32.totalorder %s26, 1
    %p128 = por %p126, %p127
    %p129 = scmp.ne.s32.totalorder %s120, %s121
    %p130 = scmp.eq.s32.totalorder %s26, 0
    %p131 = por %p129, %p130
    %p132 = scmp.ne.s32.totalorder %s120, %s121
    %p133 = scmp.eq.s32.totalorder %s27, 1
    %p134 = por %p132, %p133
    %p136 = scmp.ne.s32.totalorder %s121, %s135
    %p137 = scmp.eq.s32.totalorder %s27, 0
    %p138 = por %p136, %p137
    %s140 = sadd.s32 %s139, 1
    %p143 = scmp.eq.s32.totalorder %s21, 1
    %p144 = scmp.ne.s32.totalorder %s139, %s141
    %p145 = scmp.eq.s32.totalorder %s21, 0
    %p146 = por %p144, %p145
    %p147 = scmp.ne.s32.totalorder %s139, %s141
    %p148 = scmp.eq.s32.totalorder %s26, 1
    %p149 = por %p147, %p148
    %p150 = scmp.ne.s32.totalorder %s141, %s142
    %p151 = scmp.eq.s32.totalorder %s26, 0
    %p152 = por %p150, %p151
    %p153 = scmp.ne.s32.totalorder %s141, %s142
    %p154 = scmp.eq.s32.totalorder %s27, 1
    %p155 = por %p153, %p154
    %p157 = scmp.ne.s32.totalorder %s142, %s156
    %p158 = scmp.eq.s32.totalorder %s27, 0
    %p159 = por %p157, %p158
    %s160 = ssub.s32 %s21, %s28
    %p161 = scmp.eq.s32.totalorder %s160, 0
    %s163 = sadd.s32 %s162, 1
    %s164 = scalar_select %p161, %s162, %s163
    %p167 = pneg %p161
    %p168 = scmp.eq.s32.totalorder %s21, 1
    %p169 = por %p167, %p168
    %p170 = scmp.ne.s32.totalorder %s162, %s165
    %p171 = scmp.eq.s32.totalorder %s21, 0
    %p172 = por %p170, %p171
    %p173 = scmp.ne.s32.totalorder %s162, %s165
    %p174 = scmp.eq.s32.totalorder %s26, 1
    %p175 = por %p173, %p174
    %p176 = scmp.ne.s32.totalorder %s165, %s166
    %p177 = scmp.eq.s32.totalorder %s26, 0
    %p178 = por %p176, %p177
    %p179 = scmp.ne.s32.totalorder %s165, %s166
    %p180 = scmp.eq.s32.totalorder %s27, 1
    %p181 = por %p179, %p180
    %p183 = scmp.ne.s32.totalorder %s166, %s182
    %p184 = scmp.eq.s32.totalorder %s27, 0
    %p185 = por %p183, %p184
    %s187 = sadd.s32 %s186, 1
    %p190 = scmp.eq.s32.totalorder %s21, 1
    %p191 = scmp.ne.s32.totalorder %s186, %s188
    %p192 = scmp.eq.s32.totalorder %s21, 0
    %p193 = por %p191, %p192
    %p194 = scmp.ne.s32.totalorder %s186, %s188
    %p195 = scmp.eq.s32.totalorder %s26, 1
    %p196 = por %p194, %p195
    %p197 = scmp.ne.s32.totalorder %s188, %s189
    %p198 = scmp.eq.s32.totalorder %s26, 0
    %p199 = por %p197, %p198
    %p200 = scmp.ne.s32.totalorder %s188, %s189
    %p201 = scmp.eq.s32.totalorder %s27, 1
    %p202 = por %p200, %p201
    %p204 = scmp.ne.s32.totalorder %s189, %s203
    %p205 = scmp.eq.s32.totalorder %s27, 0
    %p206 = por %p204, %p205
    %s208 = sadd.s32 %s207, 1
    %p211 = scmp.eq.s32.totalorder %s21, 1
    %p212 = scmp.ne.s32.totalorder %s207, %s209
    %p213 = scmp.eq.s32.totalorder %s21, 0
    %p214 = por %p212, %p213
    %p215 = scmp.ne.s32.totalorder %s207, %s209
    %p216 = scmp.eq.s32.totalorder %s26, 1
    %p217 = por %p215, %p216
    %p218 = scmp.ne.s32.totalorder %s209, %s210
    %p219 = scmp.eq.s32.totalorder %s26, 0
    %p220 = por %p218, %p219
    %p221 = scmp.ne.s32.totalorder %s209, %s210
    %p222 = scmp.eq.s32.totalorder %s27, 1
    %p223 = por %p221, %p222
    %p225 = scmp.ne.s32.totalorder %s210, %s224
    %p226 = scmp.eq.s32.totalorder %s27, 0
    %p227 = por %p225, %p226
    %s229 = sadd.s32 %s228, 1
    %p232 = scmp.eq.s32.totalorder %s21, 1
    %p233 = scmp.ne.s32.totalorder %s228, %s230
    %p234 = scmp.eq.s32.totalorder %s21, 0
    %p235 = por %p233, %p234
    %p236 = scmp.ne.s32.totalorder %s228, %s230
    %p237 = scmp.eq.s32.totalorder %s26, 1
    %p238 = por %p236, %p237
    %p239 = scmp.ne.s32.totalorder %s230, %s231
    %p240 = scmp.eq.s32.totalorder %s26, 0
    %p241 = por %p239, %p240
    %p242 = scmp.ne.s32.totalorder %s230, %s231
    %p243 = scmp.eq.s32.totalorder %s27, 1
    %p244 = por %p242, %p243
    %p246 = scmp.ne.s32.totalorder %s231, %s245
    %p247 = scmp.eq.s32.totalorder %s27, 0
    %p248 = por %p246, %p247
    %s250 = sadd.s32 %s249, 1
    %p253 = scmp.eq.s32.totalorder %s21, 1
    %p254 = scmp.ne.s32.totalorder %s249, %s251
    %p255 = scmp.eq.s32.totalorder %s21, 0
    %p256 = por %p254, %p255
    %p257 = scmp.ne.s32.totalorder %s249, %s251
    %p258 = scmp.eq.s32.totalorder %s26, 1
    %p259 = por %p257, %p258
    %p260 = scmp.ne.s32.totalorder %s251, %s252
    %p261 = scmp.eq.s32.totalorder %s26, 0
    %p262 = por %p260, %p261
    %p263 = scmp.ne.s32.totalorder %s251, %s252
    %p264 = scmp.eq.s32.totalorder %s27, 1
    %p265 = por %p263, %p264
    %p267 = scmp.ne.s32.totalorder %s252, %s266
    %p268 = scmp.eq.s32.totalorder %s27, 0
    %p269 = por %p267, %p268
    %s271 = sadd.s32 %s270, 1
    %p274 = scmp.eq.s32.totalorder %s21, 1
    %p275 = scmp.ne.s32.totalorder %s270, %s272
    %p276 = scmp.eq.s32.totalorder %s21, 0
    %p277 = por %p275, %p276
    %p278 = scmp.ne.s32.totalorder %s270, %s272
    %p279 = scmp.eq.s32.totalorder %s26, 1
    %p280 = por %p278, %p279
    %p281 = scmp.ne.s32.totalorder %s272, %s273
    %p282 = scmp.eq.s32.totalorder %s26, 0
    %p283 = por %p281, %p282
    %p284 = scmp.ne.s32.totalorder %s272, %s273
    %p285 = scmp.eq.s32.totalorder %s27, 1
    %p286 = por %p284, %p285
    %p288 = scmp.ne.s32.totalorder %s273, %s287
    %p289 = scmp.eq.s32.totalorder %s27, 0
    %p290 = por %p288, %p289
    %s292 = sadd.s32 %s291, 1
    %p295 = scmp.eq.s32.totalorder %s21, 1
    %p296 = scmp.ne.s32.totalorder %s291, %s293
    %p297 = scmp.eq.s32.totalorder %s21, 0
    %p298 = por %p296, %p297
    %p299 = scmp.ne.s32.totalorder %s291, %s293
    %p300 = scmp.eq.s32.totalorder %s26, 1
    %p301 = por %p299, %p300
    %p302 = scmp.ne.s32.totalorder %s293, %s294
    %p303 = scmp.eq.s32.totalorder %s26, 0
    %p304 = por %p302, %p303
    %p305 = scmp.ne.s32.totalorder %s293, %s294
    %p306 = scmp.eq.s32.totalorder %s27, 1
    %p307 = por %p305, %p306
    %p309 = scmp.ne.s32.totalorder %s294, %s308
    %p310 = scmp.eq.s32.totalorder %s27, 0
    %p311 = por %p309, %p310
    %s313 = sadd.s32 %s312, 1
    %p316 = scmp.eq.s32.totalorder %s21, 1
    %p317 = scmp.ne.s32.totalorder %s312, %s314
    %p318 = scmp.eq.s32.totalorder %s21, 0
    %p319 = por %p317, %p318
    %p320 = scmp.ne.s32.totalorder %s312, %s314
    %p321 = scmp.eq.s32.totalorder %s26, 1
    %p322 = por %p320, %p321
    %p323 = scmp.ne.s32.totalorder %s314, %s315
    %p324 = scmp.eq.s32.totalorder %s26, 0
    %p325 = por %p323, %p324
    %p326 = scmp.ne.s32.totalorder %s314, %s315
    %p327 = scmp.eq.s32.totalorder %s27, 1
    %p328 = por %p326, %p327
    %p330 = scmp.ne.s32.totalorder %s315, %s329
    %p331 = scmp.eq.s32.totalorder %s27, 0
    %p332 = por %p330, %p331
    %s334 = sadd.s32 %s333, 1
    %p337 = scmp.eq.s32.totalorder %s21, 1
    %p338 = scmp.ne.s32.totalorder %s333, %s335
    %p339 = scmp.eq.s32.totalorder %s21, 0
    %p340 = por %p338, %p339
    %p341 = scmp.ne.s32.totalorder %s333, %s335
    %p342 = scmp.eq.s32.totalorder %s26, 1
    %p343 = por %p341, %p342
    %p344 = scmp.ne.s32.totalorder %s335, %s336
    %p345 = scmp.eq.s32.totalorder %s26, 0
    %p346 = por %p344, %p345
    %p347 = scmp.ne.s32.totalorder %s335, %s336
    %p348 = scmp.eq.s32.totalorder %s27, 1
    %p349 = por %p347, %p348
    %p351 = scmp.ne.s32.totalorder %s336, %s350
    %p352 = scmp.eq.s32.totalorder %s27, 0
    %p353 = por %p351, %p352
    %s354 = ssub.s32 %s21, %s28
    %p355 = scmp.eq.s32.totalorder %s354, 0
    %s357 = sadd.s32 %s356, 1
    %s358 = scalar_select %p355, %s356, %s357
    %p361 = pneg %p355
    %p362 = scmp.eq.s32.totalorder %s21, 1
    %p363 = por %p361, %p362
    %p364 = scmp.ne.s32.totalorder %s356, %s359
    %p365 = scmp.eq.s32.totalorder %s21, 0
    %p366 = por %p364, %p365
    %p367 = scmp.ne.s32.totalorder %s356, %s359
    %p368 = scmp.eq.s32.totalorder %s26, 1
    %p369 = por %p367, %p368
    %p370 = scmp.ne.s32.totalorder %s359, %s360
    %p371 = scmp.eq.s32.totalorder %s26, 0
    %p372 = por %p370, %p371
    %p373 = scmp.ne.s32.totalorder %s359, %s360
    %p374 = scmp.eq.s32.totalorder %s27, 1
    %p375 = por %p373, %p374
    %p377 = scmp.ne.s32.totalorder %s360, %s376
    %p378 = scmp.eq.s32.totalorder %s27, 0
    %p379 = por %p377, %p378
    %p380 = scmp.le.s32.totalorder 1, %s21
    %p381 = scmp.lt.s32.totalorder %s21, 3
    %p382 = pnand %p380, %p381
    %p383 = pneg %p382
    // Predicated region
    $region9: #{swin_forward.9} parent=5 // pred_check
      _
    $region10: #{swin_forward.9} parent=5 // pred_check_branch
      %385 = sbr.rel (%p382) target = $region12
    $region11: #{swin_forward.9} parent=5 // pred_region
      %s386 = ssub.s32 %s21, 1
      // Predicated region
      $region13: #{swin_forward.9} parent=11 // pred_check
        %p387 = pneg %p68
      $region14: #{swin_forward.9} parent=11 // pred_check_branch
        %389 = sbr.rel (%p387) target = $region16
      $region15: #{swin_forward.9} parent=11 // pred_region
        _
      $region16: #{swin_forward.9} parent=11 // pred_fallthru
        _
      // Predicated region
      $region17: #{swin_forward.9} parent=11 // pred_check
        %p390 = pneg %p89
      $region18: #{swin_forward.9} parent=11 // pred_check_branch
        %392 = sbr.rel (%p390) target = $region20
      $region19: #{swin_forward.9} parent=11 // pred_region
        _
      $region20: #{swin_forward.9} parent=11 // pred_fallthru
        _
      // Predicated region
      $region21: #{swin_forward.9} parent=11 // pred_check
        %p393 = pneg %p110
      $region22: #{swin_forward.9} parent=11 // pred_check_branch
        %395 = sbr.rel (%p393) target = $region24
      $region23: #{swin_forward.9} parent=11 // pred_region
        _
      $region24: #{swin_forward.9} parent=11 // pred_fallthru
        _
      // Predicated region
      $region25: #{swin_forward.9} parent=11 // pred_check
        %p396 = pneg %p131
      $region26: #{swin_forward.9} parent=11 // pred_check_branch
        %398 = sbr.rel (%p396) target = $region28
      $region27: #{swin_forward.9} parent=11 // pred_region
        _
      $region28: #{swin_forward.9} parent=11 // pred_fallthru
        _
      // Predicated region
      $region29: #{swin_forward.9} parent=11 // pred_check
        %p399 = pneg %p152
      $region30: #{swin_forward.9} parent=11 // pred_check_branch
        %401 = sbr.rel (%p399) target = $region32
      $region31: #{swin_forward.9} parent=11 // pred_region
        _
      $region32: #{swin_forward.9} parent=11 // pred_fallthru
        _
      // Predicated region
      $region33: #{swin_forward.9} parent=11 // pred_check
        %p402 = pneg %p199
      $region34: #{swin_forward.9} parent=11 // pred_check_branch
        %404 = sbr.rel (%p402) target = $region36
      $region35: #{swin_forward.9} parent=11 // pred_region
        _
      $region36: #{swin_forward.9} parent=11 // pred_fallthru
        _
      // Predicated region
      $region37: #{swin_forward.9} parent=11 // pred_check
        %p405 = pneg %p220
      $region38: #{swin_forward.9} parent=11 // pred_check_branch
        %407 = sbr.rel (%p405) target = $region40
      $region39: #{swin_forward.9} parent=11 // pred_region
        _
      $region40: #{swin_forward.9} parent=11 // pred_fallthru
        _
      // Predicated region
      $region41: #{swin_forward.9} parent=11 // pred_check
        %p408 = pneg %p241
      $region42: #{swin_forward.9} parent=11 // pred_check_branch
        %410 = sbr.rel (%p408) target = $region44
      $region43: #{swin_forward.9} parent=11 // pred_region
        _
      $region44: #{swin_forward.9} parent=11 // pred_fallthru
        _
      // Predicated region
      $region45: #{swin_forward.9} parent=11 // pred_check
        %p411 = pneg %p262
      $region46: #{swin_forward.9} parent=11 // pred_check_branch
        %413 = sbr.rel (%p411) target = $region48
      $region47: #{swin_forward.9} parent=11 // pred_region
        _
      $region48: #{swin_forward.9} parent=11 // pred_fallthru
        _
      // Predicated region
      $region49: #{swin_forward.9} parent=11 // pred_check
        %p414 = pneg %p283
      $region50: #{swin_forward.9} parent=11 // pred_check_branch
        %416 = sbr.rel (%p414) target = $region52
      $region51: #{swin_forward.9} parent=11 // pred_region
        _
      $region52: #{swin_forward.9} parent=11 // pred_fallthru
        _
      // Predicated region
      $region53: #{swin_forward.9} parent=11 // pred_check
        %p417 = pneg %p304
      $region54: #{swin_forward.9} parent=11 // pred_check_branch
        %419 = sbr.rel (%p417) target = $region56
      $region55: #{swin_forward.9} parent=11 // pred_region
        _
      $region56: #{swin_forward.9} parent=11 // pred_fallthru
        _
      // Predicated region
      $region57: #{swin_forward.9} parent=11 // pred_check
        %p420 = pneg %p325
      $region58: #{swin_forward.9} parent=11 // pred_check_branch
        %422 = sbr.rel (%p420) target = $region60
      $region59: #{swin_forward.9} parent=11 // pred_region
        _
      $region60: #{swin_forward.9} parent=11 // pred_fallthru
        _
      // Predicated region
      $region61: #{swin_forward.9} parent=11 // pred_check
        %p423 = pneg %p346
      $region62: #{swin_forward.9} parent=11 // pred_check_branch
        %425 = sbr.rel (%p423) target = $region64
      $region63: #{swin_forward.9} parent=11 // pred_region
        _
      $region64: #{swin_forward.9} parent=11 // pred_fallthru
        _
    $region12: #{swin_forward.9} parent=5 // pred_fallthru
      _
    %p426 = scmp.lt.s32.totalorder %s21, 2
    // Predicated region
    $region65: #{swin_forward.9} parent=5 // pred_check
      %p427 = pneg %p426
    $region66: #{swin_forward.9} parent=5 // pred_check_branch
      %429 = sbr.rel (%p427) target = $region68
    $region67: #{swin_forward.9} parent=5 // pred_region
      // Predicated region
      $region69: #{swin_forward.9} parent=67 // pred_check
        %p430 = pneg %p41
      $region70: #{swin_forward.9} parent=67 // pred_check_branch
        %432 = sbr.rel (%p430) target = $region72
      $region71: #{swin_forward.9} parent=67 // pred_region
        %s433 = smul.u32 4, %s21
        %p434 = scmp.lt.s32.totalorder %s433, 7
        %s435 = scalar_select %p434, %s433, 7
        %s436 = smul.addr %s435, 4
        %s437 = scalar_lea.vmem %s0, %s436
        %s438 = smul.u32 4, %s21
      $region72: #{swin_forward.9} parent=67 // pred_fallthru
        _
      // Predicated region
      $region73: #{swin_forward.9} parent=67 // pred_check
        %p439 = pneg %p172
      $region74: #{swin_forward.9} parent=67 // pred_check_branch
        %441 = sbr.rel (%p439) target = $region76
      $region75: #{swin_forward.9} parent=67 // pred_region
        %s442 = smul.u32 4, %s21
        %p443 = scmp.lt.s32.totalorder %s442, 7
        %s444 = scalar_select %p443, %s442, 7
        %s445 = smul.addr %s444, 4
        %s446 = scalar_lea.vmem %s6, %s445
        %s447 = smul.u32 4, %s21
      $region76: #{swin_forward.9} parent=67 // pred_fallthru
        _
    $region68: #{swin_forward.9} parent=5 // pred_fallthru
      _
    %p448 = scmp.le.s32.totalorder 1, %s21
    %p449 = scmp.lt.s32.totalorder %s21, 3
    %p450 = pnand %p448, %p449
    %p451 = pneg %p450
    // Predicated region
    $region77: #{swin_forward.9} parent=5 // pred_check
      _
    $region78: #{swin_forward.9} parent=5 // pred_check_branch
      %453 = sbr.rel (%p450) target = $region80
    $region79: #{swin_forward.9} parent=5 // pred_region
      %s454 = ssub.s32 %s21, 1
      %s455 = smul.u32 4, %s26
      %p456 = scmp.lt.s32.totalorder %s455, 7
      %s457 = scalar_select %p456, %s455, 7
      %s458 = smul.addr %s457, 4
      %s459 = scalar_lea.vmem %s0, %s458
      %p460 = pneg %p47
      %p461 = pneg %p44
      %p462 = pneg %p68
      %p463 = pneg %p65
      %p464 = pneg %p89
      %p465 = pneg %p86
      %p466 = pneg %p110
      %p467 = pneg %p107
      %p468 = pneg %p131
      %p469 = pneg %p128
      %p470 = pneg %p152
      %p471 = pneg %p149
      %s472 = smul.u32 4, %s26
      %p473 = scmp.lt.s32.totalorder %s472, 7
      %s474 = scalar_select %p473, %s472, 7
      %s475 = smul.addr %s474, 4
      %s476 = scalar_lea.vmem %s6, %s475
      %p477 = pneg %p178
      %p478 = pneg %p175
      %p479 = pneg %p199
      %p480 = pneg %p196
      %p481 = pneg %p220
      %p482 = pneg %p217
      %p483 = pneg %p241
      %p484 = pneg %p238
      %p485 = pneg %p262
      %p486 = pneg %p259
      %p487 = pneg %p283
      %p488 = pneg %p280
      %p489 = pneg %p304
      %p490 = pneg %p301
      %p491 = pneg %p325
      %p492 = pneg %p322
      %p493 = pneg %p346
      %p494 = pneg %p343
      %p495 = pneg %p372
      %p496 = pneg %p369
      %s497 = smul.u32 4, %s26
      %p498 = scmp.lt.s32.totalorder %s497, 7
      %s499 = scalar_select %p498, %s497, 7
      %s500 = smul.addr %s499, 4
      %s501 = scalar_lea.vmem %s15, %s500
      %s502 = smul.u32 4, %s26
      %p503 = scmp.lt.s32.totalorder %s502, 7
      %s504 = scalar_select %p503, %s502, 7
      %s505 = smul.addr %s504, 4
      %s506 = scalar_lea.vmem %s0, %s505
      %s507 = smul.u32 4, %s26
      %s508 = smul.u32 4, %s26
      %p509 = scmp.lt.s32.totalorder %s508, 7
      %s510 = scalar_select %p509, %s508, 7
      %s511 = smul.addr %s510, 4
      %s512 = scalar_lea.vmem %s6, %s511
      %s513 = smul.u32 4, %s26
      %s514 = smul.u32 4, %s26
      %p515 = scmp.lt.s32.totalorder %s514, 7
      %s516 = scalar_select %p515, %s514, 7
      %s517 = smul.addr %s516, 4
      %s518 = scalar_lea.vmem %s15, %s517
      %s519 = smul.u32 4, %s26
      %v520 = vld [vmem:[%s506] sm:$0xf]
      %v521 = vld [vmem:[%s506 + $0x4] sm:$0xf]
      %v522 = vld [vmem:[%s506 + $0x8] sm:$0xf]
      %v523 = vld [vmem:[%s506 + $0xc] sm:$0xf]
      %v524 = vld [vmem:[%s1] sm:$0x1]
      %v525 = vld [vmem:[%s2] sm:$0x1]
      %vm526 = vcmask 257024
      %v527 = vsel %vm526, %v520, 0.0
      %528 = vadd.xlane.f32.xlu0 %v527
      %v529 = vpop.xlane.xlu0 %528
      %v530 = vsel %vm526, %v521, 0.0
      %531 = vadd.xlane.f32.xlu0 %v530
      %v532 = vpop.xlane.xlu0 %531
      %v533 = vsel %vm526, %v522, 0.0
      %534 = vadd.xlane.f32.xlu0 %v533
      %v535 = vpop.xlane.xlu0 %534
      %v536 = vsel %vm526, %v523, 0.0
      %537 = vadd.xlane.f32.xlu0 %v536
      %v538 = vpop.xlane.xlu0 %537
      %v539 = vrcp.pop 32.0
      %v540 = vmul.f32 %v529, %v539
      %v541 = vmul.f32 %v532, %v539
      %v542 = vmul.f32 %v535, %v539
      %v543 = vmul.f32 %v538, %v539
      %v544 = vsub.f32 %v520, %v540
      %v545 = vsub.f32 %v521, %v541
      %v546 = vsub.f32 %v522, %v542
      %v547 = vsub.f32 %v523, %v543
      %v548 = vmul.f32 %v544, %v544
      %v549 = vmul.f32 %v545, %v545
      %v550 = vmul.f32 %v546, %v546
      %v551 = vmul.f32 %v547, %v547
      %v552 = vsel %vm526, %v548, 0.0
      %553 = vadd.xlane.f32.xlu0 %v552
      %v554 = vpop.xlane.xlu0 %553
      %v555 = vsel %vm526, %v549, 0.0
      %556 = vadd.xlane.f32.xlu0 %v555
      %v557 = vpop.xlane.xlu0 %556
      %v558 = vsel %vm526, %v550, 0.0
      %559 = vadd.xlane.f32.xlu0 %v558
      %v560 = vpop.xlane.xlu0 %559
      %v561 = vsel %vm526, %v551, 0.0
      %562 = vadd.xlane.f32.xlu0 %v561
      %v563 = vpop.xlane.xlu0 %562
      %v564 = vmul.f32 %v554, %v539
      %v565 = vmul.f32 %v557, %v539
      %v566 = vmul.f32 %v560, %v539
      %v567 = vmul.f32 %v563, %v539
      %v568 = vadd.f32 %v564, 1e-05
      %v569 = vadd.f32 %v565, 1e-05
      %v570 = vadd.f32 %v566, 1e-05
      %v571 = vadd.f32 %v567, 1e-05
      %v572 = vrsqrt.pop %v568
      %v573 = vrsqrt.pop %v569
      %v574 = vrsqrt.pop %v570
      %v575 = vrsqrt.pop %v571
      %v576 = vmul.f32 %v544, %v572
      %v577 = vmul.f32 %v545, %v573
      %v578 = vmul.f32 %v546, %v574
      %v579 = vmul.f32 %v547, %v575
      %v581 = vlaneseq
      %v582 = vshrl.u32 %v581, 7
      %v583 = vsub.s32 0, %v582
      %v584 = vrot.slane %v524, %v583
      %v586 = vmul.f32 %v576, %v584
      %v587 = vmul.f32 %v577, %v584
      %v588 = vmul.f32 %v578, %v584
      %v589 = vmul.f32 %v579, %v584
      %v591 = vlaneseq
      %v592 = vshrl.u32 %v591, 7
      %v593 = vsub.s32 0, %v592
      %v594 = vrot.slane %v525, %v593
      %v596 = vadd.f32 %v586, %v594
      %v597 = vadd.f32 %v587, %v594
      %v598 = vadd.f32 %v588, %v594
      %v599 = vadd.f32 %v589, %v594
      %v600 = vld [vmem:[%s3] sm:$0xff]
      %v601 = vld [vmem:[%s3 + $0x8] sm:$0xff]
      %v602 = vld [vmem:[%s3 + $0x10] sm:$0xff]
      %v603 = vld [vmem:[%s3 + $0x18] sm:$0xff]
      %v604 = vld [vmem:[%s4] sm:$0x1]
      %v606 = vlaneseq
      %v607 = vshrl.u32 %v606, 7
      %v608 = vsub.s32 0, %v607
      %v609 = vrot.slane %v604, %v608
      %vm611 = vcmask 261120
      %v613 = vsel %vm611, %v596, 0
      %615 = vmatprep.subr.mxu0 0.0
      %616 = vmatpush1.msra.mxu0 %v600
      %617 = vmatprep.subr.mxu0 0.0
      %618 = vmatpush1.msra.mxu0 %v601
      %619 = vmatprep.subr.mxu0 0.0
      %620 = vmatpush1.msra.mxu0 %v602
      %621 = vmatprep.subr.mxu0 0.0
      %622 = vmatpush1.msra.mxu0 %v603
      %623 = vmatprep.subr.mxu0 0.0
      %624 = vmatpush1.msra.mxu0 0.0
      %625 = vmatprep.subr.mxu0 0.0
      %626 = vmatpush1.msra.mxu0 0.0
      %627 = vmatprep.subr.mxu0 0.0
      %628 = vmatpush1.msra.mxu0 0.0
      %629 = vmatprep.subr.mxu0 0.0
      %630 = vmatpush1.msra.mxu0 0.0
      %631 = vmatprep.subr.mxu0 0.0
      %632 = vmatpush1.msra.mxu0 0.0
      %633 = vmatprep.subr.mxu0 0.0
      %634 = vmatpush1.msra.mxu0 0.0
      %635 = vmatprep.subr.mxu0 0.0
      %636 = vmatpush1.msra.mxu0 0.0
      %637 = vmatprep.subr.mxu0 0.0
      %638 = vmatpush1.msra.mxu0 0.0
      %639 = vmatprep.subr.mxu0 0.0
      %640 = vmatpush1.msra.mxu0 0.0
      %641 = vmatprep.subr.mxu0 0.0
      %642 = vmatpush1.msra.mxu0 0.0
      %643 = vmatprep.subr.mxu0 0.0
      %644 = vmatpush1.msra.mxu0 0.0
      %645 = vmatprep.subr.mxu0 0.0
      %646 = vmatpush1.msra.mxu0 0.0
      %647 = vmatprep.subr.mxu0 0.0
      %648 = vmatpush1.msra.mxu0 0.0
      %649 = vmatprep.subr.mxu0 0.0
      %650 = vmatpush1.msra.mxu0 0.0
      %651 = vmatprep.subr.mxu0 0.0
      %652 = vmatpush1.msra.mxu0 0.0
      %653 = vmatprep.subr.mxu0 0.0
      %654 = vmatpush1.msra.mxu0 0.0
      %655 = vmatprep.subr.mxu0 0.0
      %656 = vmatpush1.msra.mxu0 0.0
      %657 = vmatprep.subr.mxu0 0.0
      %658 = vmatpush1.msra.mxu0 0.0
      %659 = vmatprep.subr.mxu0 0.0
      %660 = vmatpush1.msra.mxu0 0.0
      %661 = vmatprep.subr.mxu0 0.0
      %662 = vmatpush1.msra.mxu0 0.0
      %663 = vmatprep.subr.mxu0 0.0
      %664 = vmatpush1.msra.mxu0 0.0
      %665 = vmatprep.subr.mxu0 0.0
      %666 = vmatpush1.msra.mxu0 0.0
      %667 = vmatprep.subr.mxu0 0.0
      %668 = vmatpush1.msra.mxu0 0.0
      %669 = vmatprep.subr.mxu0 0.0
      %670 = vmatpush1.msra.mxu0 0.0
      %671 = vmatprep.subr.mxu0 0.0
      %672 = vmatpush1.msra.mxu0 0.0
      %673 = vmatprep.subr.mxu0 0.0
      %674 = vmatpush1.msra.mxu0 0.0
      %675 = vmatprep.subr.mxu0 0.0
      %676 = vmatpush1.msra.mxu0 0.0
      %677 = vmatprep.subr.mxu0 0.0
      %678 = vmatpush1.msra.mxu0 0.0
      %679 = vmatprep.mubr.f32.mxu0 0.0
      %680 = vmatmul.mubr.f32.gmra.mrb[0].mxu0 %v613
      %v681 = vpop.f32.mrb[0].mxu0
      %v682 = vadd.f32 %v609, %v681
      %v683 = vpop.f32.mrb[0].mxu0
      %684 = vdwg.mxu0
      %v686 = vsel %vm611, %v597, 0
      %688 = vmatprep.subr.mxu0 0.0
      %689 = vmatpush1.msra.mxu0 %v600
      %690 = vmatprep.subr.mxu0 0.0
      %691 = vmatpush1.msra.mxu0 %v601
      %692 = vmatprep.subr.mxu0 0.0
      %693 = vmatpush1.msra.mxu0 %v602
      %694 = vmatprep.subr.mxu0 0.0
      %695 = vmatpush1.msra.mxu0 %v603
      %696 = vmatprep.subr.mxu0 0.0
      %697 = vmatpush1.msra.mxu0 0.0
      %698 = vmatprep.subr.mxu0 0.0
      %699 = vmatpush1.msra.mxu0 0.0
      %700 = vmatprep.subr.mxu0 0.0
      %701 = vmatpush1.msra.mxu0 0.0
      %702 = vmatprep.subr.mxu0 0.0
      %703 = vmatpush1.msra.mxu0 0.0
      %704 = vmatprep.subr.mxu0 0.0
      %705 = vmatpush1.msra.mxu0 0.0
      %706 = vmatprep.subr.mxu0 0.0
      %707 = vmatpush1.msra.mxu0 0.0
      %708 = vmatprep.subr.mxu0 0.0
      %709 = vmatpush1.msra.mxu0 0.0
      %710 = vmatprep.subr.mxu0 0.0
      %711 = vmatpush1.msra.mxu0 0.0
      %712 = vmatprep.subr.mxu0 0.0
      %713 = vmatpush1.msra.mxu0 0.0
      %714 = vmatprep.subr.mxu0 0.0
      %715 = vmatpush1.msra.mxu0 0.0
      %716 = vmatprep.subr.mxu0 0.0
      %717 = vmatpush1.msra.mxu0 0.0
      %718 = vmatprep.subr.mxu0 0.0
      %719 = vmatpush1.msra.mxu0 0.0
      %720 = vmatprep.subr.mxu0 0.0
      %721 = vmatpush1.msra.mxu0 0.0
      %722 = vmatprep.subr.mxu0 0.0
      %723 = vmatpush1.msra.mxu0 0.0
      %724 = vmatprep.subr.mxu0 0.0
      %725 = vmatpush1.msra.mxu0 0.0
      %726 = vmatprep.subr.mxu0 0.0
      %727 = vmatpush1.msra.mxu0 0.0
      %728 = vmatprep.subr.mxu0 0.0
      %729 = vmatpush1.msra.mxu0 0.0
      %730 = vmatprep.subr.mxu0 0.0
      %731 = vmatpush1.msra.mxu0 0.0
      %732 = vmatprep.subr.mxu0 0.0
      %733 = vmatpush1.msra.mxu0 0.0
      %734 = vmatprep.subr.mxu0 0.0
      %735 = vmatpush1.msra.mxu0 0.0
      %736 = vmatprep.subr.mxu0 0.0
      %737 = vmatpush1.msra.mxu0 0.0
      %738 = vmatprep.subr.mxu0 0.0
      %739 = vmatpush1.msra.mxu0 0.0
      %740 = vmatprep.subr.mxu0 0.0
      %741 = vmatpush1.msra.mxu0 0.0
      %742 = vmatprep.subr.mxu0 0.0
      %743 = vmatpush1.msra.mxu0 0.0
      %744 = vmatprep.subr.mxu0 0.0
      %745 = vmatpush1.msra.mxu0 0.0
      %746 = vmatprep.subr.mxu0 0.0
      %747 = vmatpush1.msra.mxu0 0.0
      %748 = vmatprep.subr.mxu0 0.0
      %749 = vmatpush1.msra.mxu0 0.0
      %750 = vmatprep.subr.mxu0 0.0
      %751 = vmatpush1.msra.mxu0 0.0
      %752 = vmatprep.mubr.f32.mxu0 0.0
      %753 = vmatmul.mubr.f32.gmra.mrb[0].mxu0 %v686
      %v754 = vpop.f32.mrb[0].mxu0
      %v755 = vadd.f32 %v609, %v754
      %v756 = vpop.f32.mrb[0].mxu0
      %757 = vdwg.mxu0
      %v759 = vsel %vm611, %v598, 0
      %761 = vmatprep.subr.mxu0 0.0
      %762 = vmatpush1.msra.mxu0 %v600
      %763 = vmatprep.subr.mxu0 0.0
      %764 = vmatpush1.msra.mxu0 %v601
      %765 = vmatprep.subr.mxu0 0.0
      %766 = vmatpush1.msra.mxu0 %v602
      %767 = vmatprep.subr.mxu0 0.0
      %768 = vmatpush1.msra.mxu0 %v603
      %769 = vmatprep.subr.mxu0 0.0
      %770 = vmatpush1.msra.mxu0 0.0
      %771 = vmatprep.subr.mxu0 0.0
      %772 = vmatpush1.msra.mxu0 0.0
      %773 = vmatprep.subr.mxu0 0.0
      %774 = vmatpush1.msra.mxu0 0.0
      %775 = vmatprep.subr.mxu0 0.0
      %776 = vmatpush1.msra.mxu0 0.0
      %777 = vmatprep.subr.mxu0 0.0
      %778 = vmatpush1.msra.mxu0 0.0
      %779 = vmatprep.subr.mxu0 0.0
      %780 = vmatpush1.msra.mxu0 0.0
      %781 = vmatprep.subr.mxu0 0.0
      %782 = vmatpush1.msra.mxu0 0.0
      %783 = vmatprep.subr.mxu0 0.0
      %784 = vmatpush1.msra.mxu0 0.0
      %785 = vmatprep.subr.mxu0 0.0
      %786 = vmatpush1.msra.mxu0 0.0
      %787 = vmatprep.subr.mxu0 0.0
      %788 = vmatpush1.msra.mxu0 0.0
      %789 = vmatprep.subr.mxu0 0.0
      %790 = vmatpush1.msra.mxu0 0.0
      %791 = vmatprep.subr.mxu0 0.0
      %792 = vmatpush1.msra.mxu0 0.0
      %793 = vmatprep.subr.mxu0 0.0
      %794 = vmatpush1.msra.mxu0 0.0
      %795 = vmatprep.subr.mxu0 0.0
      %796 = vmatpush1.msra.mxu0 0.0
      %797 = vmatprep.subr.mxu0 0.0
      %798 = vmatpush1.msra.mxu0 0.0
      %799 = vmatprep.subr.mxu0 0.0
      %800 = vmatpush1.msra.mxu0 0.0
      %801 = vmatprep.subr.mxu0 0.0
      %802 = vmatpush1.msra.mxu0 0.0
      %803 = vmatprep.subr.mxu0 0.0
      %804 = vmatpush1.msra.mxu0 0.0
      %805 = vmatprep.subr.mxu0 0.0
      %806 = vmatpush1.msra.mxu0 0.0
      %807 = vmatprep.subr.mxu0 0.0
      %808 = vmatpush1.msra.mxu0 0.0
      %809 = vmatprep.subr.mxu0 0.0
      %810 = vmatpush1.msra.mxu0 0.0
      %811 = vmatprep.subr.mxu0 0.0
      %812 = vmatpush1.msra.mxu0 0.0
      %813 = vmatprep.subr.mxu0 0.0
      %814 = vmatpush1.msra.mxu0 0.0
      %815 = vmatprep.subr.mxu0 0.0
      %816 = vmatpush1.msra.mxu0 0.0
      %817 = vmatprep.subr.mxu0 0.0
      %818 = vmatpush1.msra.mxu0 0.0
      %819 = vmatprep.subr.mxu0 0.0
      %820 = vmatpush1.msra.mxu0 0.0
      %821 = vmatprep.subr.mxu0 0.0
      %822 = vmatpush1.msra.mxu0 0.0
      %823 = vmatprep.subr.mxu0 0.0
      %824 = vmatpush1.msra.mxu0 0.0
      %825 = vmatprep.mubr.f32.mxu0 0.0
      %826 = vmatmul.mubr.f32.gmra.mrb[0].mxu0 %v759
      %v827 = vpop.f32.mrb[0].mxu0
      %v828 = vadd.f32 %v609, %v827
      %v829 = vpop.f32.mrb[0].mxu0
      %830 = vdwg.mxu0
      %v832 = vsel %vm611, %v599, 0
      %834 = vmatprep.subr.mxu0 0.0
      %835 = vmatpush1.msra.mxu0 %v600
      %836 = vmatprep.subr.mxu0 0.0
      %837 = vmatpush1.msra.mxu0 %v601
      %838 = vmatprep.subr.mxu0 0.0
      %839 = vmatpush1.msra.mxu0 %v602
      %840 = vmatprep.subr.mxu0 0.0
      %841 = vmatpush1.msra.mxu0 %v603
      %842 = vmatprep.subr.mxu0 0.0
      %843 = vmatpush1.msra.mxu0 0.0
      %844 = vmatprep.subr.mxu0 0.0
      %845 = vmatpush1.msra.mxu0 0.0
      %846 = vmatprep.subr.mxu0 0.0
      %847 = vmatpush1.msra.mxu0 0.0
      %848 = vmatprep.subr.mxu0 0.0
      %849 = vmatpush1.msra.mxu0 0.0
      %850 = vmatprep.subr.mxu0 0.0
      %851 = vmatpush1.msra.mxu0 0.0
      %852 = vmatprep.subr.mxu0 0.0
      %853 = vmatpush1.msra.mxu0 0.0
      %854 = vmatprep.subr.mxu0 0.0
      %855 = vmatpush1.msra.mxu0 0.0
      %856 = vmatprep.subr.mxu0 0.0
      %857 = vmatpush1.msra.mxu0 0.0
      %858 = vmatprep.subr.mxu0 0.0
      %859 = vmatpush1.msra.mxu0 0.0
      %860 = vmatprep.subr.mxu0 0.0
      %861 = vmatpush1.msra.mxu0 0.0
      %862 = vmatprep.subr.mxu0 0.0
      %863 = vmatpush1.msra.mxu0 0.0
      %864 = vmatprep.subr.mxu0 0.0
      %865 = vmatpush1.msra.mxu0 0.0
      %866 = vmatprep.subr.mxu0 0.0
      %867 = vmatpush1.msra.mxu0 0.0
      %868 = vmatprep.subr.mxu0 0.0
      %869 = vmatpush1.msra.mxu0 0.0
      %870 = vmatprep.subr.mxu0 0.0
      %871 = vmatpush1.msra.mxu0 0.0
      %872 = vmatprep.subr.mxu0 0.0
      %873 = vmatpush1.msra.mxu0 0.0
      %874 = vmatprep.subr.mxu0 0.0
      %875 = vmatpush1.msra.mxu0 0.0
      %876 = vmatprep.subr.mxu0 0.0
      %877 = vmatpush1.msra.mxu0 0.0
      %878 = vmatprep.subr.mxu0 0.0
      %879 = vmatpush1.msra.mxu0 0.0
      %880 = vmatprep.subr.mxu0 0.0
      %881 = vmatpush1.msra.mxu0 0.0
      %882 = vmatprep.subr.mxu0 0.0
      %883 = vmatpush1.msra.mxu0 0.0
      %884 = vmatprep.subr.mxu0 0.0
      %885 = vmatpush1.msra.mxu0 0.0
      %886 = vmatprep.subr.mxu0 0.0
      %887 = vmatpush1.msra.mxu0 0.0
      %888 = vmatprep.subr.mxu0 0.0
      %889 = vmatpush1.msra.mxu0 0.0
      %890 = vmatprep.subr.mxu0 0.0
      %891 = vmatpush1.msra.mxu0 0.0
      %892 = vmatprep.subr.mxu0 0.0
      %893 = vmatpush1.msra.mxu0 0.0
      %894 = vmatprep.subr.mxu0 0.0
      %895 = vmatpush1.msra.mxu0 0.0
      %896 = vmatprep.subr.mxu0 0.0
      %897 = vmatpush1.msra.mxu0 0.0
      %898 = vmatprep.mubr.f32.mxu0 0.0
      %899 = vmatmul.mubr.f32.gmra.mrb[0].mxu0 %v832
      %v900 = vpop.f32.mrb[0].mxu0
      %v901 = vadd.f32 %v609, %v900
      %v902 = vpop.f32.mrb[0].mxu0
      %903 = vdwg.mxu0
      %v904 = vld [vmem:[%s7] sm:$0xff]
      %v905 = vld [vmem:[%s7 + $0x8] sm:$0xff]
      %v906 = vld [vmem:[%s7 + $0x10] sm:$0xff]
      %v907 = vld [vmem:[%s7 + $0x18] sm:$0xff]
      %v908 = vld [vmem:[%s5] sm:$0xf]
      %v909 = vld [vmem:[%s5 + $0x4] sm:$0xf]
      %v910 = vld [vmem:[%s512] sm:$0xf]
      %v911 = vld [vmem:[%s512 + $0x4] sm:$0xf]
      %v912 = vld [vmem:[%s512 + $0x8] sm:$0xf]
      %v913 = vld [vmem:[%s512 + $0xc] sm:$0xf]
      %v914 = vmul.f32 %v682, 0.25
      %v915 = vmul.f32 %v755, 0.25
      %v916 = vmul.f32 %v828, 0.25
      %v917 = vmul.f32 %v901, 0.25
      %919 = vrot.lane.b32.xlu0 %v682, 96
      %v920 = vpop.permute.xlu0 %919
      %vm921 = vcmask 130048
      %v923 = vsel %vm921, %v914, 0
      %v925 = vsel %vm921, %v920, 0
      %927 = vmatprep.subr.mxu0 0.0
      %928 = vmatpush1.xpose.msra.mxu0 %v925
      %929 = vmatprep.subr.mxu0 0.0
      %930 = vmatpush1.xpose.msra.mxu0 0.0
      %931 = vmatprep.subr.mxu0 0.0
      %932 = vmatpush1.xpose.msra.mxu0 0.0
      %933 = vmatprep.subr.mxu0 0.0
      %934 = vmatpush1.xpose.msra.mxu0 0.0
      %935 = vmatprep.subr.mxu0 0.0
      %936 = vmatpush1.xpose.msra.mxu0 0.0
      %937 = vmatprep.subr.mxu0 0.0
      %938 = vmatpush1.xpose.msra.mxu0 0.0
      %939 = vmatprep.subr.mxu0 0.0
      %940 = vmatpush1.xpose.msra.mxu0 0.0
      %941 = vmatprep.subr.mxu0 0.0
      %942 = vmatpush1.xpose.msra.mxu0 0.0
      %943 = vmatprep.subr.mxu0 0.0
      %944 = vmatpush1.xpose.msra.mxu0 0.0
      %945 = vmatprep.subr.mxu0 0.0
      %946 = vmatpush1.xpose.msra.mxu0 0.0
      %947 = vmatprep.subr.mxu0 0.0
      %948 = vmatpush1.xpose.msra.mxu0 0.0
      %949 = vmatprep.subr.mxu0 0.0
      %950 = vmatpush1.xpose.msra.mxu0 0.0
      %951 = vmatprep.subr.mxu0 0.0
      %952 = vmatpush1.xpose.msra.mxu0 0.0
      %953 = vmatprep.subr.mxu0 0.0
      %954 = vmatpush1.xpose.msra.mxu0 0.0
      %955 = vmatprep.subr.mxu0 0.0
      %956 = vmatpush1.xpose.msra.mxu0 0.0
      %957 = vmatprep.subr.mxu0 0.0
      %958 = vmatpush1.xpose.msra.mxu0 0.0
      %959 = vmatprep.subr.mxu0 0.0
      %960 = vmatpush1.xpose.msra.mxu0 0.0
      %961 = vmatprep.subr.mxu0 0.0
      %962 = vmatpush1.xpose.msra.mxu0 0.0
      %963 = vmatprep.subr.mxu0 0.0
      %964 = vmatpush1.xpose.msra.mxu0 0.0
      %965 = vmatprep.subr.mxu0 0.0
      %966 = vmatpush1.xpose.msra.mxu0 0.0
      %967 = vmatprep.subr.mxu0 0.0
      %968 = vmatpush1.xpose.msra.mxu0 0.0
      %969 = vmatprep.subr.mxu0 0.0
      %970 = vmatpush1.xpose.msra.mxu0 0.0
      %971 = vmatprep.subr.mxu0 0.0
      %972 = vmatpush1.xpose.msra.mxu0 0.0
      %973 = vmatprep.subr.mxu0 0.0
      %974 = vmatpush1.xpose.msra.mxu0 0.0
      %975 = vmatprep.subr.mxu0 0.0
      %976 = vmatpush1.xpose.msra.mxu0 0.0
      %977 = vmatprep.subr.mxu0 0.0
      %978 = vmatpush1.xpose.msra.mxu0 0.0
      %979 = vmatprep.subr.mxu0 0.0
      %980 = vmatpush1.xpose.msra.mxu0 0.0
      %981 = vmatprep.subr.mxu0 0.0
      %982 = vmatpush1.xpose.msra.mxu0 0.0
      %983 = vmatprep.subr.mxu0 0.0
      %984 = vmatpush1.xpose.msra.mxu0 0.0
      %985 = vmatprep.subr.mxu0 0.0
      %986 = vmatpush1.xpose.msra.mxu0 0.0
      %987 = vmatprep.subr.mxu0 0.0
      %988 = vmatpush1.xpose.msra.mxu0 0.0
      %989 = vmatprep.subr.mxu0 0.0
      %990 = vmatpush1.xpose.msra.mxu0 0.0
      %991 = vmatprep.mubr.f32.mxu0 0.0
      %992 = vmatmul.mubr.f32.gmra.mrb[0].mxu0 %v923
      %v993 = vpop.f32.mrb[0].mxu0
      %v994 = vadd.f32 %v908, %v993
      %v995 = vpop.f32.mrb[0].mxu0
      %996 = vdwg.mxu0
      %998 = vrot.lane.b32.xlu0 %v755, 96
      %v999 = vpop.permute.xlu0 %998
      %v1001 = vsel %vm921, %v915, 0
      %v1003 = vsel %vm921, %v999, 0
      %1005 = vmatprep.subr.mxu0 0.0
      %1006 = vmatpush1.xpose.msra.mxu0 %v1003
      %1007 = vmatprep.subr.mxu0 0.0
      %1008 = vmatpush1.xpose.msra.mxu0 0.0
      %1009 = vmatprep.subr.mxu0 0.0
      %1010 = vmatpush1.xpose.msra.mxu0 0.0
      %1011 = vmatprep.subr.mxu0 0.0
      %1012 = vmatpush1.xpose.msra.mxu0 0.0
      %1013 = vmatprep.subr.mxu0 0.0
      %1014 = vmatpush1.xpose.msra.mxu0 0.0
      %1015 = vmatprep.subr.mxu0 0.0
      %1016 = vmatpush1.xpose.msra.mxu0 0.0
      %1017 = vmatprep.subr.mxu0 0.0
      %1018 = vmatpush1.xpose.msra.mxu0 0.0
      %1019 = vmatprep.subr.mxu0 0.0
      %1020 = vmatpush1.xpose.msra.mxu0 0.0
      %1021 = vmatprep.subr.mxu0 0.0
      %1022 = vmatpush1.xpose.msra.mxu0 0.0
      %1023 = vmatprep.subr.mxu0 0.0
      %1024 = vmatpush1.xpose.msra.mxu0 0.0
      %1025 = vmatprep.subr.mxu0 0.0
      %1026 = vmatpush1.xpose.msra.mxu0 0.0
      %1027 = vmatprep.subr.mxu0 0.0
      %1028 = vmatpush1.xpose.msra.mxu0 0.0
      %1029 = vmatprep.subr.mxu0 0.0
      %1030 = vmatpush1.xpose.msra.mxu0 0.0
      %1031 = vmatprep.subr.mxu0 0.0
      %1032 = vmatpush1.xpose.msra.mxu0 0.0
      %1033 = vmatprep.subr.mxu0 0.0
      %1034 = vmatpush1.xpose.msra.mxu0 0.0
      %1035 = vmatprep.subr.mxu0 0.0
      %1036 = vmatpush1.xpose.msra.mxu0 0.0
      %1037 = vmatprep.subr.mxu0 0.0
      %1038 = vmatpush1.xpose.msra.mxu0 0.0
      %1039 = vmatprep.subr.mxu0 0.0
      %1040 = vmatpush1.xpose.msra.mxu0 0.0
      %1041 = vmatprep.subr.mxu0 0.0
      %1042 = vmatpush1.xpose.msra.mxu0 0.0
      %1043 = vmatprep.subr.mxu0 0.0
      %1044 = vmatpush1.xpose.msra.mxu0 0.0
      %1045 = vmatprep.subr.mxu0 0.0
      %1046 = vmatpush1.xpose.msra.mxu0 0.0
      %1047 = vmatprep.subr.mxu0 0.0
      %1048 = vmatpush1.xpose.msra.mxu0 0.0
      %1049 = vmatprep.subr.mxu0 0.0
      %1050 = vmatpush1.xpose.msra.mxu0 0.0
      %1051 = vmatprep.subr.mxu0 0.0
      %1052 = vmatpush1.xpose.msra.mxu0 0.0
      %1053 = vmatprep.subr.mxu0 0.0
      %1054 = vmatpush1.xpose.msra.mxu0 0.0
      %1055 = vmatprep.subr.mxu0 0.0
      %1056 = vmatpush1.xpose.msra.mxu0 0.0
      %1057 = vmatprep.subr.mxu0 0.0
      %1058 = vmatpush1.xpose.msra.mxu0 0.0
      %1059 = vmatprep.subr.mxu0 0.0
      %1060 = vmatpush1.xpose.msra.mxu0 0.0
      %1061 = vmatprep.subr.mxu0 0.0
      %1062 = vmatpush1.xpose.msra.mxu0 0.0
      %1063 = vmatprep.subr.mxu0 0.0
      %1064 = vmatpush1.xpose.msra.mxu0 0.0
      %1065 = vmatprep.subr.mxu0 0.0
      %1066 = vmatpush1.xpose.msra.mxu0 0.0
      %1067 = vmatprep.subr.mxu0 0.0
      %1068 = vmatpush1.xpose.msra.mxu0 0.0
      %1069 = vmatprep.mubr.f32.mxu0 0.0
      %1070 = vmatmul.mubr.f32.gmra.mrb[0].mxu0 %v1001
      %v1071 = vpop.f32.mrb[0].mxu0
      %v1072 = vadd.f32 %v908, %v1071
      %v1073 = vpop.f32.mrb[0].mxu0
      %1074 = vdwg.mxu0
      %1076 = vrot.lane.b32.xlu0 %v828, 96
      %v1077 = vpop.permute.xlu0 %1076
      %v1079 = vsel %vm921, %v916, 0
      %v1081 = vsel %vm921, %v1077, 0
      %1083 = vmatprep.subr.mxu0 0.0
      %1084 = vmatpush1.xpose.msra.mxu0 %v1081
      %1085 = vmatprep.subr.mxu0 0.0
      %1086 = vmatpush1.xpose.msra.mxu0 0.0
      %1087 = vmatprep.subr.mxu0 0.0
      %1088 = vmatpush1.xpose.msra.mxu0 0.0
      %1089 = vmatprep.subr.mxu0 0.0
      %1090 = vmatpush1.xpose.msra.mxu0 0.0
      %1091 = vmatprep.subr.mxu0 0.0
      %1092 = vmatpush1.xpose.msra.mxu0 0.0
      %1093 = vmatprep.subr.mxu0 0.0
      %1094 = vmatpush1.xpose.msra.mxu0 0.0
      %1095 = vmatprep.subr.mxu0 0.0
      %1096 = vmatpush1.xpose.msra.mxu0 0.0
      %1097 = vmatprep.subr.mxu0 0.0
      %1098 = vmatpush1.xpose.msra.mxu0 0.0
      %1099 = vmatprep.subr.mxu0 0.0
      %1100 = vmatpush1.xpose.msra.mxu0 0.0
      %1101 = vmatprep.subr.mxu0 0.0
      %1102 = vmatpush1.xpose.msra.mxu0 0.0
      %1103 = vmatprep.subr.mxu0 0.0
      %1104 = vmatpush1.xpose.msra.mxu0 0.0
      %1105 = vmatprep.subr.mxu0 0.0
      %1106 = vmatpush1.xpose.msra.mxu0 0.0
      %1107 = vmatprep.subr.mxu0 0.0
      %1108 = vmatpush1.xpose.msra.mxu0 0.0
      %1109 = vmatprep.subr.mxu0 0.0
      %1110 = vmatpush1.xpose.msra.mxu0 0.0
      %1111 = vmatprep.subr.mxu0 0.0
      %1112 = vmatpush1.xpose.msra.mxu0 0.0
      %1113 = vmatprep.subr.mxu0 0.0
      %1114 = vmatpush1.xpose.msra.mxu0 0.0
      %1115 = vmatprep.subr.mxu0 0.0
      %1116 = vmatpush1.xpose.msra.mxu0 0.0
      %1117 = vmatprep.subr.mxu0 0.0
      %1118 = vmatpush1.xpose.msra.mxu0 0.0
      %1119 = vmatprep.subr.mxu0 0.0
      %1120 = vmatpush1.xpose.msra.mxu0 0.0
      %1121 = vmatprep.subr.mxu0 0.0
      %1122 = vmatpush1.xpose.msra.mxu0 0.0
      %1123 = vmatprep.subr.mxu0 0.0
      %1124 = vmatpush1.xpose.msra.mxu0 0.0
      %1125 = vmatprep.subr.mxu0 0.0
      %1126 = vmatpush1.xpose.msra.mxu0 0.0
      %1127 = vmatprep.subr.mxu0 0.0
      %1128 = vmatpush1.xpose.msra.mxu0 0.0
      %1129 = vmatprep.subr.mxu0 0.0
      %1130 = vmatpush1.xpose.msra.mxu0 0.0
      %1131 = vmatprep.subr.mxu0 0.0
      %1132 = vmatpush1.xpose.msra.mxu0 0.0
      %1133 = vmatprep.subr.mxu0 0.0
      %1134 = vmatpush1.xpose.msra.mxu0 0.0
      %1135 = vmatprep.subr.mxu0 0.0
      %1136 = vmatpush1.xpose.msra.mxu0 0.0
      %1137 = vmatprep.subr.mxu0 0.0
      %1138 = vmatpush1.xpose.msra.mxu0 0.0
      %1139 = vmatprep.subr.mxu0 0.0
      %1140 = vmatpush1.xpose.msra.mxu0 0.0
      %1141 = vmatprep.subr.mxu0 0.0
      %1142 = vmatpush1.xpose.msra.mxu0 0.0
      %1143 = vmatprep.subr.mxu0 0.0
      %1144 = vmatpush1.xpose.msra.mxu0 0.0
      %1145 = vmatprep.subr.mxu0 0.0
      %1146 = vmatpush1.xpose.msra.mxu0 0.0
      %1147 = vmatprep.mubr.f32.mxu0 0.0
      %1148 = vmatmul.mubr.f32.gmra.mrb[0].mxu0 %v1079
      %v1149 = vpop.f32.mrb[0].mxu0
      %v1150 = vadd.f32 %v908, %v1149
      %v1151 = vpop.f32.mrb[0].mxu0
      %1152 = vdwg.mxu0
      %1154 = vrot.lane.b32.xlu0 %v901, 96
      %v1155 = vpop.permute.xlu0 %1154
      %v1157 = vsel %vm921, %v917, 0
      %v1159 = vsel %vm921, %v1155, 0
      %1161 = vmatprep.subr.mxu0 0.0
      %1162 = vmatpush1.xpose.msra.mxu0 %v1159
      %1163 = vmatprep.subr.mxu0 0.0
      %1164 = vmatpush1.xpose.msra.mxu0 0.0
      %1165 = vmatprep.subr.mxu0 0.0
      %1166 = vmatpush1.xpose.msra.mxu0 0.0
      %1167 = vmatprep.subr.mxu0 0.0
      %1168 = vmatpush1.xpose.msra.mxu0 0.0
      %1169 = vmatprep.subr.mxu0 0.0
      %1170 = vmatpush1.xpose.msra.mxu0 0.0
      %1171 = vmatprep.subr.mxu0 0.0
      %1172 = vmatpush1.xpose.msra.mxu0 0.0
      %1173 = vmatprep.subr.mxu0 0.0
      %1174 = vmatpush1.xpose.msra.mxu0 0.0
      %1175 = vmatprep.subr.mxu0 0.0
      %1176 = vmatpush1.xpose.msra.mxu0 0.0
      %1177 = vmatprep.subr.mxu0 0.0
      %1178 = vmatpush1.xpose.msra.mxu0 0.0
      %1179 = vmatprep.subr.mxu0 0.0
      %1180 = vmatpush1.xpose.msra.mxu0 0.0
      %1181 = vmatprep.subr.mxu0 0.0
      %1182 = vmatpush1.xpose.msra.mxu0 0.0
      %1183 = vmatprep.subr.mxu0 0.0
      %1184 = vmatpush1.xpose.msra.mxu0 0.0
      %1185 = vmatprep.subr.mxu0 0.0
      %1186 = vmatpush1.xpose.msra.mxu0 0.0
      %1187 = vmatprep.subr.mxu0 0.0
      %1188 = vmatpush1.xpose.msra.mxu0 0.0
      %1189 = vmatprep.subr.mxu0 0.0
      %1190 = vmatpush1.xpose.msra.mxu0 0.0
      %1191 = vmatprep.subr.mxu0 0.0
      %1192 = vmatpush1.xpose.msra.mxu0 0.0
      %1193 = vmatprep.subr.mxu0 0.0
      %1194 = vmatpush1.xpose.msra.mxu0 0.0
      %1195 = vmatprep.subr.mxu0 0.0
      %1196 = vmatpush1.xpose.msra.mxu0 0.0
      %1197 = vmatprep.subr.mxu0 0.0
      %1198 = vmatpush1.xpose.msra.mxu0 0.0
      %1199 = vmatprep.subr.mxu0 0.0
      %1200 = vmatpush1.xpose.msra.mxu0 0.0
      %1201 = vmatprep.subr.mxu0 0.0
      %1202 = vmatpush1.xpose.msra.mxu0 0.0
      %1203 = vmatprep.subr.mxu0 0.0
      %1204 = vmatpush1.xpose.msra.mxu0 0.0
      %1205 = vmatprep.subr.mxu0 0.0
      %1206 = vmatpush1.xpose.msra.mxu0 0.0
      %1207 = vmatprep.subr.mxu0 0.0
      %1208 = vmatpush1.xpose.msra.mxu0 0.0
      %1209 = vmatprep.subr.mxu0 0.0
      %1210 = vmatpush1.xpose.msra.mxu0 0.0
      %1211 = vmatprep.subr.mxu0 0.0
      %1212 = vmatpush1.xpose.msra.mxu0 0.0
      %1213 = vmatprep.subr.mxu0 0.0
      %1214 = vmatpush1.xpose.msra.mxu0 0.0
      %1215 = vmatprep.subr.mxu0 0.0
      %1216 = vmatpush1.xpose.msra.mxu0 0.0
      %1217 = vmatprep.subr.mxu0 0.0
      %1218 = vmatpush1.xpose.msra.mxu0 0.0
      %1219 = vmatprep.subr.mxu0 0.0
      %1220 = vmatpush1.xpose.msra.mxu0 0.0
      %1221 = vmatprep.subr.mxu0 0.0
      %1222 = vmatpush1.xpose.msra.mxu0 0.0
      %1223 = vmatprep.subr.mxu0 0.0
      %1224 = vmatpush1.xpose.msra.mxu0 0.0
      %1225 = vmatprep.mubr.f32.mxu0 0.0
      %1226 = vmatmul.mubr.f32.gmra.mrb[0].mxu0 %v1157
      %v1227 = vpop.f32.mrb[0].mxu0
      %v1228 = vadd.f32 %v908, %v1227
      %v1229 = vpop.f32.mrb[0].mxu0
      %1230 = vdwg.mxu0
      %v1231 = vadd.f32 %v994, %v910
      %v1232 = vadd.f32 %v1072, %v911
      %v1233 = vadd.f32 %v1150, %v912
      %v1234 = vadd.f32 %v1228, %v913
      %vm1235 = vcmask 27648
      %v1236 = vsel %vm1235, %v1231, -inf
      %1237 = vmax.xlane.f32.xlu0 %v1236
      %v1238 = vpop.xlane.xlu0 %1237
      %v1239 = vsel %vm1235, %v1232, -inf
      %1240 = vmax.xlane.f32.xlu0 %v1239
      %v1241 = vpop.xlane.xlu0 %1240
      %v1242 = vsel %vm1235, %v1233, -inf
      %1243 = vmax.xlane.f32.xlu0 %v1242
      %v1244 = vpop.xlane.xlu0 %1243
      %v1245 = vsel %vm1235, %v1234, -inf
      %1246 = vmax.xlane.f32.xlu0 %v1245
      %v1247 = vpop.xlane.xlu0 %1246
      %v1248 = vsub.f32 %v1231, %v1238
      %v1249 = vsub.f32 %v1232, %v1241
      %v1250 = vsub.f32 %v1233, %v1244
      %v1251 = vsub.f32 %v1234, %v1247
      %v1252 = vmul.f32 %v1248, 1.442695
      %v1253 = vpow.pop %v1252
      %v1254 = vmul.f32 %v1249, 1.442695
      %v1255 = vpow.pop %v1254
      %v1256 = vmul.f32 %v1250, 1.442695
      %v1257 = vpow.pop %v1256
      %v1258 = vmul.f32 %v1251, 1.442695
      %v1259 = vpow.pop %v1258
      %v1260 = vsel %vm1235, %v1253, 0.0
      %1261 = vadd.xlane.f32.xlu0 %v1260
      %v1262 = vpop.xlane.xlu0 %1261
      %v1263 = vsel %vm1235, %v1255, 0.0
      %1264 = vadd.xlane.f32.xlu0 %v1263
      %v1265 = vpop.xlane.xlu0 %1264
      %v1266 = vsel %vm1235, %v1257, 0.0
      %1267 = vadd.xlane.f32.xlu0 %v1266
      %v1268 = vpop.xlane.xlu0 %1267
      %v1269 = vsel %vm1235, %v1259, 0.0
      %1270 = vadd.xlane.f32.xlu0 %v1269
      %v1271 = vpop.xlane.xlu0 %1270
      %v1272 = vrcp.pop %v1262
      %v1273 = vrcp.pop %v1265
      %v1274 = vrcp.pop %v1268
      %v1275 = vrcp.pop %v1271
      %v1276 = vmul.f32 %v1253, %v1272
      %v1277 = vmul.f32 %v1255, %v1273
      %v1278 = vmul.f32 %v1257, %v1274
      %v1279 = vmul.f32 %v1259, %v1275
      %1280 = vrot.lane.b32.xlu0 %v682, 64
      %v1281 = vpop.permute.xlu0 %1280
      %vm1282 = vcmask 31744
      %v1284 = vsel %vm1282, %v1276, 0
      %vm1286 = vcmask 1043456
      %v1287 = vsel %vm1286, %v1281, 0
      %1289 = vmatprep.subr.mxu0 0.0
      %1290 = vmatpush1.msra.mxu0 %v1287
      %1291 = vmatprep.subr.mxu0 0.0
      %1292 = vmatpush1.msra.mxu0 0.0
      %1293 = vmatprep.subr.mxu0 0.0
      %1294 = vmatpush1.msra.mxu0 0.0
      %1295 = vmatprep.subr.mxu0 0.0
      %1296 = vmatpush1.msra.mxu0 0.0
      %1297 = vmatprep.subr.mxu0 0.0
      %1298 = vmatpush1.msra.mxu0 0.0
      %1299 = vmatprep.subr.mxu0 0.0
      %1300 = vmatpush1.msra.mxu0 0.0
      %1301 = vmatprep.subr.mxu0 0.0
      %1302 = vmatpush1.msra.mxu0 0.0
      %1303 = vmatprep.subr.mxu0 0.0
      %1304 = vmatpush1.msra.mxu0 0.0
      %1305 = vmatprep.subr.mxu0 0.0
      %1306 = vmatpush1.msra.mxu0 0.0
      %1307 = vmatprep.subr.mxu0 0.0
      %1308 = vmatpush1.msra.mxu0 0.0
      %1309 = vmatprep.subr.mxu0 0.0
      %1310 = vmatpush1.msra.mxu0 0.0
      %1311 = vmatprep.subr.mxu0 0.0
      %1312 = vmatpush1.msra.mxu0 0.0
      %1313 = vmatprep.subr.mxu0 0.0
      %1314 = vmatpush1.msra.mxu0 0.0
      %1315 = vmatprep.subr.mxu0 0.0
      %1316 = vmatpush1.msra.mxu0 0.0
      %1317 = vmatprep.subr.mxu0 0.0
      %1318 = vmatpush1.msra.mxu0 0.0
      %1319 = vmatprep.subr.mxu0 0.0
      %1320 = vmatpush1.msra.mxu0 0.0
      %1321 = vmatprep.subr.mxu0 0.0
      %1322 = vmatpush1.msra.mxu0 0.0
      %1323 = vmatprep.subr.mxu0 0.0
      %1324 = vmatpush1.msra.mxu0 0.0
      %1325 = vmatprep.subr.mxu0 0.0
      %1326 = vmatpush1.msra.mxu0 0.0
      %1327 = vmatprep.subr.mxu0 0.0
      %1328 = vmatpush1.msra.mxu0 0.0
      %1329 = vmatprep.subr.mxu0 0.0
      %1330 = vmatpush1.msra.mxu0 0.0
      %1331 = vmatprep.subr.mxu0 0.0
      %1332 = vmatpush1.msra.mxu0 0.0
      %1333 = vmatprep.subr.mxu0 0.0
      %1334 = vmatpush1.msra.mxu0 0.0
      %1335 = vmatprep.subr.mxu0 0.0
      %1336 = vmatpush1.msra.mxu0 0.0
      %1337 = vmatprep.subr.mxu0 0.0
      %1338 = vmatpush1.msra.mxu0 0.0
      %1339 = vmatprep.subr.mxu0 0.0
      %1340 = vmatpush1.msra.mxu0 0.0
      %1341 = vmatprep.subr.mxu0 0.0
      %1342 = vmatpush1.msra.mxu0 0.0
      %1343 = vmatprep.subr.mxu0 0.0
      %1344 = vmatpush1.msra.mxu0 0.0
      %1345 = vmatprep.subr.mxu0 0.0
      %1346 = vmatpush1.msra.mxu0 0.0
      %1347 = vmatprep.subr.mxu0 0.0
      %1348 = vmatpush1.msra.mxu0 0.0
      %1349 = vmatprep.subr.mxu0 0.0
      %1350 = vmatpush1.msra.mxu0 0.0
      %1351 = vmatprep.subr.mxu0 0.0
      %1352 = vmatpush1.msra.mxu0 0.0
      %1353 = vmatprep.mubr.f32.mxu0 0.0
      %1354 = vmatmul.mubr.f32.gmra.mrb[0].mxu0 %v1284
      %v1355 = vpop.f32.mrb[0].mxu0
      %v1356 = vadd.f32 0.0, %v1355
      %v1357 = vpop.f32.mrb[0].mxu0
      %1358 = vdwg.mxu0
      %1359 = vrot.lane.b32.xlu0 %v755, 64
      %v1360 = vpop.permute.xlu0 %1359
      %v1362 = vsel %vm1282, %v1277, 0
      %v1364 = vsel %vm1286, %v1360, 0
      %1366 = vmatprep.subr.mxu0 0.0
      %1367 = vmatpush1.msra.mxu0 %v1364
      %1368 = vmatprep.subr.mxu0 0.0
      %1369 = vmatpush1.msra.mxu0 0.0
      %1370 = vmatprep.subr.mxu0 0.0
      %1371 = vmatpush1.msra.mxu0 0.0
      %1372 = vmatprep.subr.mxu0 0.0
      %1373 = vmatpush1.msra.mxu0 0.0
      %1374 = vmatprep.subr.mxu0 0.0
      %1375 = vmatpush1.msra.mxu0 0.0
      %1376 = vmatprep.subr.mxu0 0.0
      %1377 = vmatpush1.msra.mxu0 0.0
      %1378 = vmatprep.subr.mxu0 0.0
      %1379 = vmatpush1.msra.mxu0 0.0
      %1380 = vmatprep.subr.mxu0 0.0
      %1381 = vmatpush1.msra.mxu0 0.0
      %1382 = vmatprep.subr.mxu0 0.0
      %1383 = vmatpush1.msra.mxu0 0.0
      %1384 = vmatprep.subr.mxu0 0.0
      %1385 = vmatpush1.msra.mxu0 0.0
      %1386 = vmatprep.subr.mxu0 0.0
      %1387 = vmatpush1.msra.mxu0 0.0
      %1388 = vmatprep.subr.mxu0 0.0
      %1389 = vmatpush1.msra.mxu0 0.0
      %1390 = vmatprep.subr.mxu0 0.0
      %1391 = vmatpush1.msra.mxu0 0.0
      %1392 = vmatprep.subr.mxu0 0.0
      %1393 = vmatpush1.msra.mxu0 0.0
      %1394 = vmatprep.subr.mxu0 0.0
      %1395 = vmatpush1.msra.mxu0 0.0
      %1396 = vmatprep.subr.mxu0 0.0
      %1397 = vmatpush1.msra.mxu0 0.0
      %1398 = vmatprep.subr.mxu0 0.0
      %1399 = vmatpush1.msra.mxu0 0.0
      %1400 = vmatprep.subr.mxu0 0.0
      %1401 = vmatpush1.msra.mxu0 0.0
      %1402 = vmatprep.subr.mxu0 0.0
      %1403 = vmatpush1.msra.mxu0 0.0
      %1404 = vmatprep.subr.mxu0 0.0
      %1405 = vmatpush1.msra.mxu0 0.0
      %1406 = vmatprep.subr.mxu0 0.0
      %1407 = vmatpush1.msra.mxu0 0.0
      %1408 = vmatprep.subr.mxu0 0.0
      %1409 = vmatpush1.msra.mxu0 0.0
      %1410 = vmatprep.subr.mxu0 0.0
      %1411 = vmatpush1.msra.mxu0 0.0
      %1412 = vmatprep.subr.mxu0 0.0
      %1413 = vmatpush1.msra.mxu0 0.0
      %1414 = vmatprep.subr.mxu0 0.0
      %1415 = vmatpush1.msra.mxu0 0.0
      %1416 = vmatprep.subr.mxu0 0.0
      %1417 = vmatpush1.msra.mxu0 0.0
      %1418 = vmatprep.subr.mxu0 0.0
      %1419 = vmatpush1.msra.mxu0 0.0
      %1420 = vmatprep.subr.mxu0 0.0
      %1421 = vmatpush1.msra.mxu0 0.0
      %1422 = vmatprep.subr.mxu0 0.0
      %1423 = vmatpush1.msra.mxu0 0.0
      %1424 = vmatprep.subr.mxu0 0.0
      %1425 = vmatpush1.msra.mxu0 0.0
      %1426 = vmatprep.subr.mxu0 0.0
      %1427 = vmatpush1.msra.mxu0 0.0
      %1428 = vmatprep.subr.mxu0 0.0
      %1429 = vmatpush1.msra.mxu0 0.0
      %1430 = vmatprep.mubr.f32.mxu0 0.0
      %1431 = vmatmul.mubr.f32.gmra.mrb[0].mxu0 %v1362
      %v1432 = vpop.f32.mrb[0].mxu0
      %v1433 = vadd.f32 0.0, %v1432
      %v1434 = vpop.f32.mrb[0].mxu0
      %1435 = vdwg.mxu0
      %1436 = vrot.lane.b32.xlu0 %v828, 64
      %v1437 = vpop.permute.xlu0 %1436
      %v1439 = vsel %vm1282, %v1278, 0
      %v1441 = vsel %vm1286, %v1437, 0
      %1443 = vmatprep.subr.mxu0 0.0
      %1444 = vmatpush1.msra.mxu0 %v1441
      %1445 = vmatprep.subr.mxu0 0.0
      %1446 = vmatpush1.msra.mxu0 0.0
      %1447 = vmatprep.subr.mxu0 0.0
      %1448 = vmatpush1.msra.mxu0 0.0
      %1449 = vmatprep.subr.mxu0 0.0
      %1450 = vmatpush1.msra.mxu0 0.0
      %1451 = vmatprep.subr.mxu0 0.0
      %1452 = vmatpush1.msra.mxu0 0.0
      %1453 = vmatprep.subr.mxu0 0.0
      %1454 = vmatpush1.msra.mxu0 0.0
      %1455 = vmatprep.subr.mxu0 0.0
      %1456 = vmatpush1.msra.mxu0 0.0
      %1457 = vmatprep.subr.mxu0 0.0
      %1458 = vmatpush1.msra.mxu0 0.0
      %1459 = vmatprep.subr.mxu0 0.0
      %1460 = vmatpush1.msra.mxu0 0.0
      %1461 = vmatprep.subr.mxu0 0.0
      %1462 = vmatpush1.msra.mxu0 0.0
      %1463 = vmatprep.subr.mxu0 0.0
      %1464 = vmatpush1.msra.mxu0 0.0
      %1465 = vmatprep.subr.mxu0 0.0
      %1466 = vmatpush1.msra.mxu0 0.0
      %1467 = vmatprep.subr.mxu0 0.0
      %1468 = vmatpush1.msra.mxu0 0.0
      %1469 = vmatprep.subr.mxu0 0.0
      %1470 = vmatpush1.msra.mxu0 0.0
      %1471 = vmatprep.subr.mxu0 0.0
      %1472 = vmatpush1.msra.mxu0 0.0
      %1473 = vmatprep.subr.mxu0 0.0
      %1474 = vmatpush1.msra.mxu0 0.0
      %1475 = vmatprep.subr.mxu0 0.0
      %1476 = vmatpush1.msra.mxu0 0.0
      %1477 = vmatprep.subr.mxu0 0.0
      %1478 = vmatpush1.msra.mxu0 0.0
      %1479 = vmatprep.subr.mxu0 0.0
      %1480 = vmatpush1.msra.mxu0 0.0
      %1481 = vmatprep.subr.mxu0 0.0
      %1482 = vmatpush1.msra.mxu0 0.0
      %1483 = vmatprep.subr.mxu0 0.0
      %1484 = vmatpush1.msra.mxu0 0.0
      %1485 = vmatprep.subr.mxu0 0.0
      %1486 = vmatpush1.msra.mxu0 0.0
      %1487 = vmatprep.subr.mxu0 0.0
      %1488 = vmatpush1.msra.mxu0 0.0
      %1489 = vmatprep.subr.mxu0 0.0
      %1490 = vmatpush1.msra.mxu0 0.0
      %1491 = vmatprep.subr.mxu0 0.0
      %1492 = vmatpush1.msra.mxu0 0.0
      %1493 = vmatprep.subr.mxu0 0.0
      %1494 = vmatpush1.msra.mxu0 0.0
      %1495 = vmatprep.subr.mxu0 0.0
      %1496 = vmatpush1.msra.mxu0 0.0
      %1497 = vmatprep.subr.mxu0 0.0
      %1498 = vmatpush1.msra.mxu0 0.0
      %1499 = vmatprep.subr.mxu0 0.0
      %1500 = vmatpush1.msra.mxu0 0.0
      %1501 = vmatprep.subr.mxu0 0.0
      %1502 = vmatpush1.msra.mxu0 0.0
      %1503 = vmatprep.subr.mxu0 0.0
      %1504 = vmatpush1.msra.mxu0 0.0
      %1505 = vmatprep.subr.mxu0 0.0
      %1506 = vmatpush1.msra.mxu0 0.0
      %1507 = vmatprep.mubr.f32.mxu0 0.0
      %1508 = vmatmul.mubr.f32.gmra.mrb[0].mxu0 %v1439
      %v1509 = vpop.f32.mrb[0].mxu0
      %v1510 = vadd.f32 0.0, %v1509
      %v1511 = vpop.f32.mrb[0].mxu0
      %1512 = vdwg.mxu0
      %1513 = vrot.lane.b32.xlu0 %v901, 64
      %v1514 = vpop.permute.xlu0 %1513
      %v1516 = vsel %vm1282, %v1279, 0
      %v1518 = vsel %vm1286, %v1514, 0
      %1520 = vmatprep.subr.mxu0 0.0
      %1521 = vmatpush1.msra.mxu0 %v1518
      %1522 = vmatprep.subr.mxu0 0.0
      %1523 = vmatpush1.msra.mxu0 0.0
      %1524 = vmatprep.subr.mxu0 0.0
      %1525 = vmatpush1.msra.mxu0 0.0
      %1526 = vmatprep.subr.mxu0 0.0
      %1527 = vmatpush1.msra.mxu0 0.0
      %1528 = vmatprep.subr.mxu0 0.0
      %1529 = vmatpush1.msra.mxu0 0.0
      %1530 = vmatprep.subr.mxu0 0.0
      %1531 = vmatpush1.msra.mxu0 0.0
      %1532 = vmatprep.subr.mxu0 0.0
      %1533 = vmatpush1.msra.mxu0 0.0
      %1534 = vmatprep.subr.mxu0 0.0
      %1535 = vmatpush1.msra.mxu0 0.0
      %1536 = vmatprep.subr.mxu0 0.0
      %1537 = vmatpush1.msra.mxu0 0.0
      %1538 = vmatprep.subr.mxu0 0.0
      %1539 = vmatpush1.msra.mxu0 0.0
      %1540 = vmatprep.subr.mxu0 0.0
      %1541 = vmatpush1.msra.mxu0 0.0
      %1542 = vmatprep.subr.mxu0 0.0
      %1543 = vmatpush1.msra.mxu0 0.0
      %1544 = vmatprep.subr.mxu0 0.0
      %1545 = vmatpush1.msra.mxu0 0.0
      %1546 = vmatprep.subr.mxu0 0.0
      %1547 = vmatpush1.msra.mxu0 0.0
      %1548 = vmatprep.subr.mxu0 0.0
      %1549 = vmatpush1.msra.mxu0 0.0
      %1550 = vmatprep.subr.mxu0 0.0
      %1551 = vmatpush1.msra.mxu0 0.0
      %1552 = vmatprep.subr.mxu0 0.0
      %1553 = vmatpush1.msra.mxu0 0.0
      %1554 = vmatprep.subr.mxu0 0.0
      %1555 = vmatpush1.msra.mxu0 0.0
      %1556 = vmatprep.subr.mxu0 0.0
      %1557 = vmatpush1.msra.mxu0 0.0
      %1558 = vmatprep.subr.mxu0 0.0
      %1559 = vmatpush1.msra.mxu0 0.0
      %1560 = vmatprep.subr.mxu0 0.0
      %1561 = vmatpush1.msra.mxu0 0.0
      %1562 = vmatprep.subr.mxu0 0.0
      %1563 = vmatpush1.msra.mxu0 0.0
      %1564 = vmatprep.subr.mxu0 0.0
      %1565 = vmatpush1.msra.mxu0 0.0
      %1566 = vmatprep.subr.mxu0 0.0
      %1567 = vmatpush1.msra.mxu0 0.0
      %1568 = vmatprep.subr.mxu0 0.0
      %1569 = vmatpush1.msra.mxu0 0.0
      %1570 = vmatprep.subr.mxu0 0.0
      %1571 = vmatpush1.msra.mxu0 0.0
      %1572 = vmatprep.subr.mxu0 0.0
      %1573 = vmatpush1.msra.mxu0 0.0
      %1574 = vmatprep.subr.mxu0 0.0
      %1575 = vmatpush1.msra.mxu0 0.0
      %1576 = vmatprep.subr.mxu0 0.0
      %1577 = vmatpush1.msra.mxu0 0.0
      %1578 = vmatprep.subr.mxu0 0.0
      %1579 = vmatpush1.msra.mxu0 0.0
      %1580 = vmatprep.subr.mxu0 0.0
      %1581 = vmatpush1.msra.mxu0 0.0
      %1582 = vmatprep.subr.mxu0 0.0
      %1583 = vmatpush1.msra.mxu0 0.0
      %1584 = vmatprep.mubr.f32.mxu0 0.0
      %1585 = vmatmul.mubr.f32.gmra.mrb[0].mxu0 %v1516
      %v1586 = vpop.f32.mrb[0].mxu0
      %v1587 = vadd.f32 0.0, %v1586
      %v1588 = vpop.f32.mrb[0].mxu0
      %1589 = vdwg.mxu0
      %1590 = vrot.lane.b32.xlu0 %v914, 112
      %v1591 = vpop.permute.xlu0 %1590
      %1592 = vrot.lane.b32.xlu0 %v682, 80
      %v1593 = vpop.permute.xlu0 %1592
      %v1594 = vsel %vm921, %v1591, 0
      %v1596 = vsel %vm921, %v1593, 0
      %1598 = vmatprep.subr.mxu0 0.0
      %1599 = vmatpush1.xpose.msra.mxu0 %v1596
      %1600 = vmatprep.subr.mxu0 0.0
      %1601 = vmatpush1.xpose.msra.mxu0 0.0
      %1602 = vmatprep.subr.mxu0 0.0
      %1603 = vmatpush1.xpose.msra.mxu0 0.0
      %1604 = vmatprep.subr.mxu0 0.0
      %1605 = vmatpush1.xpose.msra.mxu0 0.0
      %1606 = vmatprep.subr.mxu0 0.0
      %1607 = vmatpush1.xpose.msra.mxu0 0.0
      %1608 = vmatprep.subr.mxu0 0.0
      %1609 = vmatpush1.xpose.msra.mxu0 0.0
      %1610 = vmatprep.subr.mxu0 0.0
      %1611 = vmatpush1.xpose.msra.mxu0 0.0
      %1612 = vmatprep.subr.mxu0 0.0
      %1613 = vmatpush1.xpose.msra.mxu0 0.0
      %1614 = vmatprep.subr.mxu0 0.0
      %1615 = vmatpush1.xpose.msra.mxu0 0.0
      %1616 = vmatprep.subr.mxu0 0.0
      %1617 = vmatpush1.xpose.msra.mxu0 0.0
      %1618 = vmatprep.subr.mxu0 0.0
      %1619 = vmatpush1.xpose.msra.mxu0 0.0
      %1620 = vmatprep.subr.mxu0 0.0
      %1621 = vmatpush1.xpose.msra.mxu0 0.0
      %1622 = vmatprep.subr.mxu0 0.0
      %1623 = vmatpush1.xpose.msra.mxu0 0.0
      %1624 = vmatprep.subr.mxu0 0.0
      %1625 = vmatpush1.xpose.msra.mxu0 0.0
      %1626 = vmatprep.subr.mxu0 0.0
      %1627 = vmatpush1.xpose.msra.mxu0 0.0
      %1628 = vmatprep.subr.mxu0 0.0
      %1629 = vmatpush1.xpose.msra.mxu0 0.0
      %1630 = vmatprep.subr.mxu0 0.0
      %1631 = vmatpush1.xpose.msra.mxu0 0.0
      %1632 = vmatprep.subr.mxu0 0.0
      %1633 = vmatpush1.xpose.msra.mxu0 0.0
      %1634 = vmatprep.subr.mxu0 0.0
      %1635 = vmatpush1.xpose.msra.mxu0 0.0
      %1636 = vmatprep.subr.mxu0 0.0
      %1637 = vmatpush1.xpose.msra.mxu0 0.0
      %1638 = vmatprep.subr.mxu0 0.0
      %1639 = vmatpush1.xpose.msra.mxu0 0.0
      %1640 = vmatprep.subr.mxu0 0.0
      %1641 = vmatpush1.xpose.msra.mxu0 0.0
      %1642 = vmatprep.subr.mxu0 0.0
      %1643 = vmatpush1.xpose.msra.mxu0 0.0
      %1644 = vmatprep.subr.mxu0 0.0
      %1645 = vmatpush1.xpose.msra.mxu0 0.0
      %1646 = vmatprep.subr.mxu0 0.0
      %1647 = vmatpush1.xpose.msra.mxu0 0.0
      %1648 = vmatprep.subr.mxu0 0.0
      %1649 = vmatpush1.xpose.msra.mxu0 0.0
      %1650 = vmatprep.subr.mxu0 0.0
      %1651 = vmatpush1.xpose.msra.mxu0 0.0
      %1652 = vmatprep.subr.mxu0 0.0
      %1653 = vmatpush1.xpose.msra.mxu0 0.0
      %1654 = vmatprep.subr.mxu0 0.0
      %1655 = vmatpush1.xpose.msra.mxu0 0.0
      %1656 = vmatprep.subr.mxu0 0.0
      %1657 = vmatpush1.xpose.msra.mxu0 0.0
      %1658 = vmatprep.subr.mxu0 0.0
      %1659 = vmatpush1.xpose.msra.mxu0 0.0
      %1660 = vmatprep.subr.mxu0 0.0
      %1661 = vmatpush1.xpose.msra.mxu0 0.0
      %1662 = vmatprep.mubr.f32.mxu0 0.0
      %1663 = vmatmul.mubr.f32.gmra.mrb[0].mxu0 %v1594
      %v1664 = vpop.f32.mrb[0].mxu0
      %v1665 = vadd.f32 %v909, %v1664
      %v1666 = vpop.f32.mrb[0].mxu0
      %1667 = vdwg.mxu0
      %1668 = vrot.lane.b32.xlu0 %v915, 112
      %v1669 = vpop.permute.xlu0 %1668
      %1670 = vrot.lane.b32.xlu0 %v755, 80
      %v1671 = vpop.permute.xlu0 %1670
      %v1672 = vsel %vm921, %v1669, 0
      %v1674 = vsel %vm921, %v1671, 0
      %1676 = vmatprep.subr.mxu0 0.0
      %1677 = vmatpush1.xpose.msra.mxu0 %v1674
      %1678 = vmatprep.subr.mxu0 0.0
      %1679 = vmatpush1.xpose.msra.mxu0 0.0
      %1680 = vmatprep.subr.mxu0 0.0
      %1681 = vmatpush1.xpose.msra.mxu0 0.0
      %1682 = vmatprep.subr.mxu0 0.0
      %1683 = vmatpush1.xpose.msra.mxu0 0.0
      %1684 = vmatprep.subr.mxu0 0.0
      %1685 = vmatpush1.xpose.msra.mxu0 0.0
      %1686 = vmatprep.subr.mxu0 0.0
      %1687 = vmatpush1.xpose.msra.mxu0 0.0
      %1688 = vmatprep.subr.mxu0 0.0
      %1689 = vmatpush1.xpose.msra.mxu0 0.0
      %1690 = vmatprep.subr.mxu0 0.0
      %1691 = vmatpush1.xpose.msra.mxu0 0.0
      %1692 = vmatprep.subr.mxu0 0.0
      %1693 = vmatpush1.xpose.msra.mxu0 0.0
      %1694 = vmatprep.subr.mxu0 0.0
      %1695 = vmatpush1.xpose.msra.mxu0 0.0
      %1696 = vmatprep.subr.mxu0 0.0
      %1697 = vmatpush1.xpose.msra.mxu0 0.0
      %1698 = vmatprep.subr.mxu0 0.0
      %1699 = vmatpush1.xpose.msra.mxu0 0.0
      %1700 = vmatprep.subr.mxu0 0.0
      %1701 = vmatpush1.xpose.msra.mxu0 0.0
      %1702 = vmatprep.subr.mxu0 0.0
      %1703 = vmatpush1.xpose.msra.mxu0 0.0
      %1704 = vmatprep.subr.mxu0 0.0
      %1705 = vmatpush1.xpose.msra.mxu0 0.0
      %1706 = vmatprep.subr.mxu0 0.0
      %1707 = vmatpush1.xpose.msra.mxu0 0.0
      %1708 = vmatprep.subr.mxu0 0.0
      %1709 = vmatpush1.xpose.msra.mxu0 0.0
      %1710 = vmatprep.subr.mxu0 0.0
      %1711 = vmatpush1.xpose.msra.mxu0 0.0
      %1712 = vmatprep.subr.mxu0 0.0
      %1713 = vmatpush1.xpose.msra.mxu0 0.0
      %1714 = vmatprep.subr.mxu0 0.0
      %1715 = vmatpush1.xpose.msra.mxu0 0.0
      %1716 = vmatprep.subr.mxu0 0.0
      %1717 = vmatpush1.xpose.msra.mxu0 0.0
      %1718 = vmatprep.subr.mxu0 0.0
      %1719 = vmatpush1.xpose.msra.mxu0 0.0
      %1720 = vmatprep.subr.mxu0 0.0
      %1721 = vmatpush1.xpose.msra.mxu0 0.0
      %1722 = vmatprep.subr.mxu0 0.0
      %1723 = vmatpush1.xpose.msra.mxu0 0.0
      %1724 = vmatprep.subr.mxu0 0.0
      %1725 = vmatpush1.xpose.msra.mxu0 0.0
      %1726 = vmatprep.subr.mxu0 0.0
      %1727 = vmatpush1.xpose.msra.mxu0 0.0
      %1728 = vmatprep.subr.mxu0 0.0
      %1729 = vmatpush1.xpose.msra.mxu0 0.0
      %1730 = vmatprep.subr.mxu0 0.0
      %1731 = vmatpush1.xpose.msra.mxu0 0.0
      %1732 = vmatprep.subr.mxu0 0.0
      %1733 = vmatpush1.xpose.msra.mxu0 0.0
      %1734 = vmatprep.subr.mxu0 0.0
      %1735 = vmatpush1.xpose.msra.mxu0 0.0
      %1736 = vmatprep.subr.mxu0 0.0
      %1737 = vmatpush1.xpose.msra.mxu0 0.0
      %1738 = vmatprep.subr.mxu0 0.0
      %1739 = vmatpush1.xpose.msra.mxu0 0.0
      %1740 = vmatprep.mubr.f32.mxu0 0.0
      %1741 = vmatmul.mubr.f32.gmra.mrb[0].mxu0 %v1672
      %v1742 = vpop.f32.mrb[0].mxu0
      %v1743 = vadd.f32 %v909, %v1742
      %v1744 = vpop.f32.mrb[0].mxu0
      %1745 = vdwg.mxu0
      %1746 = vrot.lane.b32.xlu0 %v916, 112
      %v1747 = vpop.permute.xlu0 %1746
      %1748 = vrot.lane.b32.xlu0 %v828, 80
      %v1749 = vpop.permute.xlu0 %1748
      %v1750 = vsel %vm921, %v1747, 0
      %v1752 = vsel %vm921, %v1749, 0
      %1754 = vmatprep.subr.mxu0 0.0
      %1755 = vmatpush1.xpose.msra.mxu0 %v1752
      %1756 = vmatprep.subr.mxu0 0.0
      %1757 = vmatpush1.xpose.msra.mxu0 0.0
      %1758 = vmatprep.subr.mxu0 0.0
      %1759 = vmatpush1.xpose.msra.mxu0 0.0
      %1760 = vmatprep.subr.mxu0 0.0
      %1761 = vmatpush1.xpose.msra.mxu0 0.0
      %1762 = vmatprep.subr.mxu0 0.0
      %1763 = vmatpush1.xpose.msra.mxu0 0.0
      %1764 = vmatprep.subr.mxu0 0.0
      %1765 = vmatpush1.xpose.msra.mxu0 0.0
      %1766 = vmatprep.subr.mxu0 0.0
      %1767 = vmatpush1.xpose.msra.mxu0 0.0
      %1768 = vmatprep.subr.mxu0 0.0
      %1769 = vmatpush1.xpose.msra.mxu0 0.0
      %1770 = vmatprep.subr.mxu0 0.0
      %1771 = vmatpush1.xpose.msra.mxu0 0.0
      %1772 = vmatprep.subr.mxu0 0.0
      %1773 = vmatpush1.xpose.msra.mxu0 0.0
      %1774 = vmatprep.subr.mxu0 0.0
      %1775 = vmatpush1.xpose.msra.mxu0 0.0
      %1776 = vmatprep.subr.mxu0 0.0
      %1777 = vmatpush1.xpose.msra.mxu0 0.0
      %1778 = vmatprep.subr.mxu0 0.0
      %1779 = vmatpush1.xpose.msra.mxu0 0.0
      %1780 = vmatprep.subr.mxu0 0.0
      %1781 = vmatpush1.xpose.msra.mxu0 0.0
      %1782 = vmatprep.subr.mxu0 0.0
      %1783 = vmatpush1.xpose.msra.mxu0 0.0
      %1784 = vmatprep.subr.mxu0 0.0
      %1785 = vmatpush1.xpose.msra.mxu0 0.0
      %1786 = vmatprep.subr.mxu0 0.0
      %1787 = vmatpush1.xpose.msra.mxu0 0.0
      %1788 = vmatprep.subr.mxu0 0.0
      %1789 = vmatpush1.xpose.msra.mxu0 0.0
      %1790 = vmatprep.subr.mxu0 0.0
      %1791 = vmatpush1.xpose.msra.mxu0 0.0
      %1792 = vmatprep.subr.mxu0 0.0
      %1793 = vmatpush1.xpose.msra.mxu0 0.0
      %1794 = vmatprep.subr.mxu0 0.0
      %1795 = vmatpush1.xpose.msra.mxu0 0.0
      %1796 = vmatprep.subr.mxu0 0.0
      %1797 = vmatpush1.xpose.msra.mxu0 0.0
      %1798 = vmatprep.subr.mxu0 0.0
      %1799 = vmatpush1.xpose.msra.mxu0 0.0
      %1800 = vmatprep.subr.mxu0 0.0
      %1801 = vmatpush1.xpose.msra.mxu0 0.0
      %1802 = vmatprep.subr.mxu0 0.0
      %1803 = vmatpush1.xpose.msra.mxu0 0.0
      %1804 = vmatprep.subr.mxu0 0.0
      %1805 = vmatpush1.xpose.msra.mxu0 0.0
      %1806 = vmatprep.subr.mxu0 0.0
      %1807 = vmatpush1.xpose.msra.mxu0 0.0
      %1808 = vmatprep.subr.mxu0 0.0
      %1809 = vmatpush1.xpose.msra.mxu0 0.0
      %1810 = vmatprep.subr.mxu0 0.0
      %1811 = vmatpush1.xpose.msra.mxu0 0.0
      %1812 = vmatprep.subr.mxu0 0.0
      %1813 = vmatpush1.xpose.msra.mxu0 0.0
      %1814 = vmatprep.subr.mxu0 0.0
      %1815 = vmatpush1.xpose.msra.mxu0 0.0
      %1816 = vmatprep.subr.mxu0 0.0
      %1817 = vmatpush1.xpose.msra.mxu0 0.0
      %1818 = vmatprep.mubr.f32.mxu0 0.0
      %1819 = vmatmul.mubr.f32.gmra.mrb[0].mxu0 %v1750
      %v1820 = vpop.f32.mrb[0].mxu0
      %v1821 = vadd.f32 %v909, %v1820
      %v1822 = vpop.f32.mrb[0].mxu0
      %1823 = vdwg.mxu0
      %1824 = vrot.lane.b32.xlu0 %v917, 112
      %v1825 = vpop.permute.xlu0 %1824
      %1826 = vrot.lane.b32.xlu0 %v901, 80
      %v1827 = vpop.permute.xlu0 %1826
      %v1828 = vsel %vm921, %v1825, 0
      %v1830 = vsel %vm921, %v1827, 0
      %1832 = vmatprep.subr.mxu0 0.0
      %1833 = vmatpush1.xpose.msra.mxu0 %v1830
      %1834 = vmatprep.subr.mxu0 0.0
      %1835 = vmatpush1.xpose.msra.mxu0 0.0
      %1836 = vmatprep.subr.mxu0 0.0
      %1837 = vmatpush1.xpose.msra.mxu0 0.0
      %1838 = vmatprep.subr.mxu0 0.0
      %1839 = vmatpush1.xpose.msra.mxu0 0.0
      %1840 = vmatprep.subr.mxu0 0.0
      %1841 = vmatpush1.xpose.msra.mxu0 0.0
      %1842 = vmatprep.subr.mxu0 0.0
      %1843 = vmatpush1.xpose.msra.mxu0 0.0
      %1844 = vmatprep.subr.mxu0 0.0
      %1845 = vmatpush1.xpose.msra.mxu0 0.0
      %1846 = vmatprep.subr.mxu0 0.0
      %1847 = vmatpush1.xpose.msra.mxu0 0.0
      %1848 = vmatprep.subr.mxu0 0.0
      %1849 = vmatpush1.xpose.msra.mxu0 0.0
      %1850 = vmatprep.subr.mxu0 0.0
      %1851 = vmatpush1.xpose.msra.mxu0 0.0
      %1852 = vmatprep.subr.mxu0 0.0
      %1853 = vmatpush1.xpose.msra.mxu0 0.0
      %1854 = vmatprep.subr.mxu0 0.0
      %1855 = vmatpush1.xpose.msra.mxu0 0.0
      %1856 = vmatprep.subr.mxu0 0.0
      %1857 = vmatpush1.xpose.msra.mxu0 0.0
      %1858 = vmatprep.subr.mxu0 0.0
      %1859 = vmatpush1.xpose.msra.mxu0 0.0
      %1860 = vmatprep.subr.mxu0 0.0
      %1861 = vmatpush1.xpose.msra.mxu0 0.0
      %1862 = vmatprep.subr.mxu0 0.0
      %1863 = vmatpush1.xpose.msra.mxu0 0.0
      %1864 = vmatprep.subr.mxu0 0.0
      %1865 = vmatpush1.xpose.msra.mxu0 0.0
      %1866 = vmatprep.subr.mxu0 0.0
      %1867 = vmatpush1.xpose.msra.mxu0 0.0
      %1868 = vmatprep.subr.mxu0 0.0
      %1869 = vmatpush1.xpose.msra.mxu0 0.0
      %1870 = vmatprep.subr.mxu0 0.0
      %1871 = vmatpush1.xpose.msra.mxu0 0.0
      %1872 = vmatprep.subr.mxu0 0.0
      %1873 = vmatpush1.xpose.msra.mxu0 0.0
      %1874 = vmatprep.subr.mxu0 0.0
      %1875 = vmatpush1.xpose.msra.mxu0 0.0
      %1876 = vmatprep.subr.mxu0 0.0
      %1877 = vmatpush1.xpose.msra.mxu0 0.0
      %1878 = vmatprep.subr.mxu0 0.0
      %1879 = vmatpush1.xpose.msra.mxu0 0.0
      %1880 = vmatprep.subr.mxu0 0.0
      %1881 = vmatpush1.xpose.msra.mxu0 0.0
      %1882 = vmatprep.subr.mxu0 0.0
      %1883 = vmatpush1.xpose.msra.mxu0 0.0
      %1884 = vmatprep.subr.mxu0 0.0
      %1885 = vmatpush1.xpose.msra.mxu0 0.0
      %1886 = vmatprep.subr.mxu0 0.0
      %1887 = vmatpush1.xpose.msra.mxu0 0.0
      %1888 = vmatprep.subr.mxu0 0.0
      %1889 = vmatpush1.xpose.msra.mxu0 0.0
      %1890 = vmatprep.subr.mxu0 0.0
      %1891 = vmatpush1.xpose.msra.mxu0 0.0
      %1892 = vmatprep.subr.mxu0 0.0
      %1893 = vmatpush1.xpose.msra.mxu0 0.0
      %1894 = vmatprep.subr.mxu0 0.0
      %1895 = vmatpush1.xpose.msra.mxu0 0.0
      %1896 = vmatprep.mubr.f32.mxu0 0.0
      %1897 = vmatmul.mubr.f32.gmra.mrb[0].mxu0 %v1828
      %v1898 = vpop.f32.mrb[0].mxu0
      %v1899 = vadd.f32 %v909, %v1898
      %v1900 = vpop.f32.mrb[0].mxu0
      %1901 = vdwg.mxu0
      %v1902 = vadd.f32 %v1665, %v910
      %v1903 = vadd.f32 %v1743, %v911
      %v1904 = vadd.f32 %v1821, %v912
      %v1905 = vadd.f32 %v1899, %v913
      %v1906 = vsel %vm1235, %v1902, -inf
      %1907 = vmax.xlane.f32.xlu0 %v1906
      %v1908 = vpop.xlane.xlu0 %1907
      %v1909 = vsel %vm1235, %v1903, -inf
      %1910 = vmax.xlane.f32.xlu0 %v1909
      %v1911 = vpop.xlane.xlu0 %1910
      %v1912 = vsel %vm1235, %v1904, -inf
      %1913 = vmax.xlane.f32.xlu0 %v1912
      %v1914 = vpop.xlane.xlu0 %1913
      %v1915 = vsel %vm1235, %v1905, -inf
      %1916 = vmax.xlane.f32.xlu0 %v1915
      %v1917 = vpop.xlane.xlu0 %1916
      %v1918 = vsub.f32 %v1902, %v1908
      %v1919 = vsub.f32 %v1903, %v1911
      %v1920 = vsub.f32 %v1904, %v1914
      %v1921 = vsub.f32 %v1905, %v1917
      %v1922 = vmul.f32 %v1918, 1.442695
      %v1923 = vpow.pop %v1922
      %v1924 = vmul.f32 %v1919, 1.442695
      %v1925 = vpow.pop %v1924
      %v1926 = vmul.f32 %v1920, 1.442695
      %v1927 = vpow.pop %v1926
      %v1928 = vmul.f32 %v1921, 1.442695
      %v1929 = vpow.pop %v1928
      %v1930 = vsel %vm1235, %v1923, 0.0
      %1931 = vadd.xlane.f32.xlu0 %v1930
      %v1932 = vpop.xlane.xlu0 %1931
      %v1933 = vsel %vm1235, %v1925, 0.0
      %1934 = vadd.xlane.f32.xlu0 %v1933
      %v1935 = vpop.xlane.xlu0 %1934
      %v1936 = vsel %vm1235, %v1927, 0.0
      %1937 = vadd.xlane.f32.xlu0 %v1936
      %v1938 = vpop.xlane.xlu0 %1937
      %v1939 = vsel %vm1235, %v1929, 0.0
      %1940 = vadd.xlane.f32.xlu0 %v1939
      %v1941 = vpop.xlane.xlu0 %1940
      %v1942 = vrcp.pop %v1932
      %v1943 = vrcp.pop %v1935
      %v1944 = vrcp.pop %v1938
      %v1945 = vrcp.pop %v1941
      %v1946 = vmul.f32 %v1923, %v1942
      %v1947 = vmul.f32 %v1925, %v1943
      %v1948 = vmul.f32 %v1927, %v1944
      %v1949 = vmul.f32 %v1929, %v1945
      %1950 = vrot.lane.b32.xlu0 %v682, 48
      %v1951 = vpop.permute.xlu0 %1950
      %v1953 = vsel %vm1282, %v1946, 0
      %v1955 = vsel %vm1286, %v1951, 0
      %1957 = vmatprep.subr.mxu0 0.0
      %1958 = vmatpush1.msra.mxu0 %v1955
      %1959 = vmatprep.subr.mxu0 0.0
      %1960 = vmatpush1.msra.mxu0 0.0
      %1961 = vmatprep.subr.mxu0 0.0
      %1962 = vmatpush1.msra.mxu0 0.0
      %1963 = vmatprep.subr.mxu0 0.0
      %1964 = vmatpush1.msra.mxu0 0.0
      %1965 = vmatprep.subr.mxu0 0.0
      %1966 = vmatpush1.msra.mxu0 0.0
      %1967 = vmatprep.subr.mxu0 0.0
      %1968 = vmatpush1.msra.mxu0 0.0
      %1969 = vmatprep.subr.mxu0 0.0
      %1970 = vmatpush1.msra.mxu0 0.0
      %1971 = vmatprep.subr.mxu0 0.0
      %1972 = vmatpush1.msra.mxu0 0.0
      %1973 = vmatprep.subr.mxu0 0.0
      %1974 = vmatpush1.msra.mxu0 0.0
      %1975 = vmatprep.subr.mxu0 0.0
      %1976 = vmatpush1.msra.mxu0 0.0
      %1977 = vmatprep.subr.mxu0 0.0
      %1978 = vmatpush1.msra.mxu0 0.0
      %1979 = vmatprep.subr.mxu0 0.0
      %1980 = vmatpush1.msra.mxu0 0.0
      %1981 = vmatprep.subr.mxu0 0.0
      %1982 = vmatpush1.msra.mxu0 0.0
      %1983 = vmatprep.subr.mxu0 0.0
      %1984 = vmatpush1.msra.mxu0 0.0
      %1985 = vmatprep.subr.mxu0 0.0
      %1986 = vmatpush1.msra.mxu0 0.0
      %1987 = vmatprep.subr.mxu0 0.0
      %1988 = vmatpush1.msra.mxu0 0.0
      %1989 = vmatprep.subr.mxu0 0.0
      %1990 = vmatpush1.msra.mxu0 0.0
      %1991 = vmatprep.subr.mxu0 0.0
      %1992 = vmatpush1.msra.mxu0 0.0
      %1993 = vmatprep.subr.mxu0 0.0
      %1994 = vmatpush1.msra.mxu0 0.0
      %1995 = vmatprep.subr.mxu0 0.0
      %1996 = vmatpush1.msra.mxu0 0.0
      %1997 = vmatprep.subr.mxu0 0.0
      %1998 = vmatpush1.msra.mxu0 0.0
      %1999 = vmatprep.subr.mxu0 0.0
      %2000 = vmatpush1.msra.mxu0 0.0
      %2001 = vmatprep.subr.mxu0 0.0
      %2002 = vmatpush1.msra.mxu0 0.0
      %2003 = vmatprep.subr.mxu0 0.0
      %2004 = vmatpush1.msra.mxu0 0.0
      %2005 = vmatprep.subr.mxu0 0.0
      %2006 = vmatpush1.msra.mxu0 0.0
      %2007 = vmatprep.subr.mxu0 0.0
      %2008 = vmatpush1.msra.mxu0 0.0
      %2009 = vmatprep.subr.mxu0 0.0
      %2010 = vmatpush1.msra.mxu0 0.0
      %2011 = vmatprep.subr.mxu0 0.0
      %2012 = vmatpush1.msra.mxu0 0.0
      %2013 = vmatprep.subr.mxu0 0.0
      %2014 = vmatpush1.msra.mxu0 0.0
      %2015 = vmatprep.subr.mxu0 0.0
      %2016 = vmatpush1.msra.mxu0 0.0
      %2017 = vmatprep.subr.mxu0 0.0
      %2018 = vmatpush1.msra.mxu0 0.0
      %2019 = vmatprep.subr.mxu0 0.0
      %2020 = vmatpush1.msra.mxu0 0.0
      %2021 = vmatprep.mubr.f32.mxu0 0.0
      %2022 = vmatmul.mubr.f32.gmra.mrb[0].mxu0 %v1953
      %v2023 = vpop.f32.mrb[0].mxu0
      %v2024 = vadd.f32 0.0, %v2023
      %v2025 = vpop.f32.mrb[0].mxu0
      %2026 = vdwg.mxu0
      %2027 = vrot.lane.b32.xlu0 %v755, 48
      %v2028 = vpop.permute.xlu0 %2027
      %v2030 = vsel %vm1282, %v1947, 0
      %v2032 = vsel %vm1286, %v2028, 0
      %2034 = vmatprep.subr.mxu0 0.0
      %2035 = vmatpush1.msra.mxu0 %v2032
      %2036 = vmatprep.subr.mxu0 0.0
      %2037 = vmatpush1.msra.mxu0 0.0
      %2038 = vmatprep.subr.mxu0 0.0
      %2039 = vmatpush1.msra.mxu0 0.0
      %2040 = vmatprep.subr.mxu0 0.0
      %2041 = vmatpush1.msra.mxu0 0.0
      %2042 = vmatprep.subr.mxu0 0.0
      %2043 = vmatpush1.msra.mxu0 0.0
      %2044 = vmatprep.subr.mxu0 0.0
      %2045 = vmatpush1.msra.mxu0 0.0
      %2046 = vmatprep.subr.mxu0 0.0
      %2047 = vmatpush1.msra.mxu0 0.0
      %2048 = vmatprep.subr.mxu0 0.0
      %2049 = vmatpush1.msra.mxu0 0.0
      %2050 = vmatprep.subr.mxu0 0.0
      %2051 = vmatpush1.msra.mxu0 0.0
      %2052 = vmatprep.subr.mxu0 0.0
      %2053 = vmatpush1.msra.mxu0 0.0
      %2054 = vmatprep.subr.mxu0 0.0
      %2055 = vmatpush1.msra.mxu0 0.0
      %2056 = vmatprep.subr.mxu0 0.0
      %2057 = vmatpush1.msra.mxu0 0.0
      %2058 = vmatprep.subr.mxu0 0.0
      %2059 = vmatpush1.msra.mxu0 0.0
      %2060 = vmatprep.subr.mxu0 0.0
      %2061 = vmatpush1.msra.mxu0 0.0
      %2062 = vmatprep.subr.mxu0 0.0
      %2063 = vmatpush1.msra.mxu0 0.0
      %2064 = vmatprep.subr.mxu0 0.0
      %2065 = vmatpush1.msra.mxu0 0.0
      %2066 = vmatprep.subr.mxu0 0.0
      %2067 = vmatpush1.msra.mxu0 0.0
      %2068 = vmatprep.subr.mxu0 0.0
      %2069 = vmatpush1.msra.mxu0 0.0
      %2070 = vmatprep.subr.mxu0 0.0
      %2071 = vmatpush1.msra.mxu0 0.0
      %2072 = vmatprep.subr.mxu0 0.0
      %2073 = vmatpush1.msra.mxu0 0.0
      %2074 = vmatprep.subr.mxu0 0.0
      %2075 = vmatpush1.msra.mxu0 0.0
      %2076 = vmatprep.subr.mxu0 0.0
      %2077 = vmatpush1.msra.mxu0 0.0
      %2078 = vmatprep.subr.mxu0 0.0
      %2079 = vmatpush1.msra.mxu0 0.0
      %2080 = vmatprep.subr.mxu0 0.0
      %2081 = vmatpush1.msra.mxu0 0.0
      %2082 = vmatprep.subr.mxu0 0.0
      %2083 = vmatpush1.msra.mxu0 0.0
      %2084 = vmatprep.subr.mxu0 0.0
      %2085 = vmatpush1.msra.mxu0 0.0
      %2086 = vmatprep.subr.mxu0 0.0
      %2087 = vmatpush1.msra.mxu0 0.0
      %2088 = vmatprep.subr.mxu0 0.0
      %2089 = vmatpush1.msra.mxu0 0.0
      %2090 = vmatprep.subr.mxu0 0.0
      %2091 = vmatpush1.msra.mxu0 0.0
      %2092 = vmatprep.subr.mxu0 0.0
      %2093 = vmatpush1.msra.mxu0 0.0
      %2094 = vmatprep.subr.mxu0 0.0
      %2095 = vmatpush1.msra.mxu0 0.0
      %2096 = vmatprep.subr.mxu0 0.0
      %2097 = vmatpush1.msra.mxu0 0.0
      %2098 = vmatprep.mubr.f32.mxu0 0.0
      %2099 = vmatmul.mubr.f32.gmra.mrb[0].mxu0 %v2030
      %v2100 = vpop.f32.mrb[0].mxu0
      %v2101 = vadd.f32 0.0, %v2100
      %v2102 = vpop.f32.mrb[0].mxu0
      %2103 = vdwg.mxu0
      %2104 = vrot.lane.b32.xlu0 %v828, 48
      %v2105 = vpop.permute.xlu0 %2104
      %v2107 = vsel %vm1282, %v1948, 0
      %v2109 = vsel %vm1286, %v2105, 0
      %2111 = vmatprep.subr.mxu0 0.0
      %2112 = vmatpush1.msra.mxu0 %v2109
      %2113 = vmatprep.subr.mxu0 0.0
      %2114 = vmatpush1.msra.mxu0 0.0
      %2115 = vmatprep.subr.mxu0 0.0
      %2116 = vmatpush1.msra.mxu0 0.0
      %2117 = vmatprep.subr.mxu0 0.0
      %2118 = vmatpush1.msra.mxu0 0.0
      %2119 = vmatprep.subr.mxu0 0.0
      %2120 = vmatpush1.msra.mxu0 0.0
      %2121 = vmatprep.subr.mxu0 0.0
      %2122 = vmatpush1.msra.mxu0 0.0
      %2123 = vmatprep.subr.mxu0 0.0
      %2124 = vmatpush1.msra.mxu0 0.0
      %2125 = vmatprep.subr.mxu0 0.0
      %2126 = vmatpush1.msra.mxu0 0.0
      %2127 = vmatprep.subr.mxu0 0.0
      %2128 = vmatpush1.msra.mxu0 0.0
      %2129 = vmatprep.subr.mxu0 0.0
      %2130 = vmatpush1.msra.mxu0 0.0
      %2131 = vmatprep.subr.mxu0 0.0
      %2132 = vmatpush1.msra.mxu0 0.0
      %2133 = vmatprep.subr.mxu0 0.0
      %2134 = vmatpush1.msra.mxu0 0.0
      %2135 = vmatprep.subr.mxu0 0.0
      %2136 = vmatpush1.msra.mxu0 0.0
      %2137 = vmatprep.subr.mxu0 0.0
      %2138 = vmatpush1.msra.mxu0 0.0
      %2139 = vmatprep.subr.mxu0 0.0
      %2140 = vmatpush1.msra.mxu0 0.0
      %2141 = vmatprep.subr.mxu0 0.0
      %2142 = vmatpush1.msra.mxu0 0.0
      %2143 = vmatprep.subr.mxu0 0.0
      %2144 = vmatpush1.msra.mxu0 0.0
      %2145 = vmatprep.subr.mxu0 0.0
      %2146 = vmatpush1.msra.mxu0 0.0
      %2147 = vmatprep.subr.mxu0 0.0
      %2148 = vmatpush1.msra.mxu0 0.0
      %2149 = vmatprep.subr.mxu0 0.0
      %2150 = vmatpush1.msra.mxu0 0.0
      %2151 = vmatprep.subr.mxu0 0.0
      %2152 = vmatpush1.msra.mxu0 0.0
      %2153 = vmatprep.subr.mxu0 0.0
      %2154 = vmatpush1.msra.mxu0 0.0
      %2155 = vmatprep.subr.mxu0 0.0
      %2156 = vmatpush1.msra.mxu0 0.0
      %2157 = vmatprep.subr.mxu0 0.0
      %2158 = vmatpush1.msra.mxu0 0.0
      %2159 = vmatprep.subr.mxu0 0.0
      %2160 = vmatpush1.msra.mxu0 0.0
      %2161 = vmatprep.subr.mxu0 0.0
      %2162 = vmatpush1.msra.mxu0 0.0
      %2163 = vmatprep.subr.mxu0 0.0
      %2164 = vmatpush1.msra.mxu0 0.0
      %2165 = vmatprep.subr.mxu0 0.0
      %2166 = vmatpush1.msra.mxu0 0.0
      %2167 = vmatprep.subr.mxu0 0.0
      %2168 = vmatpush1.msra.mxu0 0.0
      %2169 = vmatprep.subr.mxu0 0.0
      %2170 = vmatpush1.msra.mxu0 0.0
      %2171 = vmatprep.subr.mxu0 0.0
      %2172 = vmatpush1.msra.mxu0 0.0
      %2173 = vmatprep.subr.mxu0 0.0
      %2174 = vmatpush1.msra.mxu0 0.0
      %2175 = vmatprep.mubr.f32.mxu0 0.0
      %2176 = vmatmul.mubr.f32.gmra.mrb[0].mxu0 %v2107
      %v2177 = vpop.f32.mrb[0].mxu0
      %v2178 = vadd.f32 0.0, %v2177
      %v2179 = vpop.f32.mrb[0].mxu0
      %2180 = vdwg.mxu0
      %2181 = vrot.lane.b32.xlu0 %v901, 48
      %v2182 = vpop.permute.xlu0 %2181
      %v2184 = vsel %vm1282, %v1949, 0
      %v2186 = vsel %vm1286, %v2182, 0
      %2188 = vmatprep.subr.mxu0 0.0
      %2189 = vmatpush1.msra.mxu0 %v2186
      %2190 = vmatprep.subr.mxu0 0.0
      %2191 = vmatpush1.msra.mxu0 0.0
      %2192 = vmatprep.subr.mxu0 0.0
      %2193 = vmatpush1.msra.mxu0 0.0
      %2194 = vmatprep.subr.mxu0 0.0
      %2195 = vmatpush1.msra.mxu0 0.0
      %2196 = vmatprep.subr.mxu0 0.0
      %2197 = vmatpush1.msra.mxu0 0.0
      %2198 = vmatprep.subr.mxu0 0.0
      %2199 = vmatpush1.msra.mxu0 0.0
      %2200 = vmatprep.subr.mxu0 0.0
      %2201 = vmatpush1.msra.mxu0 0.0
      %2202 = vmatprep.subr.mxu0 0.0
      %2203 = vmatpush1.msra.mxu0 0.0
      %2204 = vmatprep.subr.mxu0 0.0
      %2205 = vmatpush1.msra.mxu0 0.0
      %2206 = vmatprep.subr.mxu0 0.0
      %2207 = vmatpush1.msra.mxu0 0.0
      %2208 = vmatprep.subr.mxu0 0.0
      %2209 = vmatpush1.msra.mxu0 0.0
      %2210 = vmatprep.subr.mxu0 0.0
      %2211 = vmatpush1.msra.mxu0 0.0
      %2212 = vmatprep.subr.mxu0 0.0
      %2213 = vmatpush1.msra.mxu0 0.0
      %2214 = vmatprep.subr.mxu0 0.0
      %2215 = vmatpush1.msra.mxu0 0.0
      %2216 = vmatprep.subr.mxu0 0.0
      %2217 = vmatpush1.msra.mxu0 0.0
      %2218 = vmatprep.subr.mxu0 0.0
      %2219 = vmatpush1.msra.mxu0 0.0
      %2220 = vmatprep.subr.mxu0 0.0
      %2221 = vmatpush1.msra.mxu0 0.0
      %2222 = vmatprep.subr.mxu0 0.0
      %2223 = vmatpush1.msra.mxu0 0.0
      %2224 = vmatprep.subr.mxu0 0.0
      %2225 = vmatpush1.msra.mxu0 0.0
      %2226 = vmatprep.subr.mxu0 0.0
      %2227 = vmatpush1.msra.mxu0 0.0
      %2228 = vmatprep.subr.mxu0 0.0
      %2229 = vmatpush1.msra.mxu0 0.0
      %2230 = vmatprep.subr.mxu0 0.0
      %2231 = vmatpush1.msra.mxu0 0.0
      %2232 = vmatprep.subr.mxu0 0.0
      %2233 = vmatpush1.msra.mxu0 0.0
      %2234 = vmatprep.subr.mxu0 0.0
      %2235 = vmatpush1.msra.mxu0 0.0
      %2236 = vmatprep.subr.mxu0 0.0
      %2237 = vmatpush1.msra.mxu0 0.0
      %2238 = vmatprep.subr.mxu0 0.0
      %2239 = vmatpush1.msra.mxu0 0.0
      %2240 = vmatprep.subr.mxu0 0.0
      %2241 = vmatpush1.msra.mxu0 0.0
      %2242 = vmatprep.subr.mxu0 0.0
      %2243 = vmatpush1.msra.mxu0 0.0
      %2244 = vmatprep.subr.mxu0 0.0
      %2245 = vmatpush1.msra.mxu0 0.0
      %2246 = vmatprep.subr.mxu0 0.0
      %2247 = vmatpush1.msra.mxu0 0.0
      %2248 = vmatprep.subr.mxu0 0.0
      %2249 = vmatpush1.msra.mxu0 0.0
      %2250 = vmatprep.subr.mxu0 0.0
      %2251 = vmatpush1.msra.mxu0 0.0
      %2252 = vmatprep.mubr.f32.mxu0 0.0
      %2253 = vmatmul.mubr.f32.gmra.mrb[0].mxu0 %v2184
      %v2254 = vpop.f32.mrb[0].mxu0
      %v2255 = vadd.f32 0.0, %v2254
      %v2256 = vpop.f32.mrb[0].mxu0
      %2257 = vdwg.mxu0
      %v2259 = vsel %vm921, %v2024, 0
      %2261 = vmatprep.subr.mxu0 0.0
      %2262 = vmatpush1.msra.mxu0 %v906
      %2263 = vmatprep.subr.mxu0 0.0
      %2264 = vmatpush1.msra.mxu0 %v907
      %2265 = vmatprep.subr.mxu0 0.0
      %2266 = vmatpush1.msra.mxu0 0.0
      %2267 = vmatprep.subr.mxu0 0.0
      %2268 = vmatpush1.msra.mxu0 0.0
      %2269 = vmatprep.subr.mxu0 0.0
      %2270 = vmatpush1.msra.mxu0 0.0
      %2271 = vmatprep.subr.mxu0 0.0
      %2272 = vmatpush1.msra.mxu0 0.0
      %2273 = vmatprep.subr.mxu0 0.0
      %2274 = vmatpush1.msra.mxu0 0.0
      %2275 = vmatprep.subr.mxu0 0.0
      %2276 = vmatpush1.msra.mxu0 0.0
      %2277 = vmatprep.subr.mxu0 0.0
      %2278 = vmatpush1.msra.mxu0 0.0
      %2279 = vmatprep.subr.mxu0 0.0
      %2280 = vmatpush1.msra.mxu0 0.0
      %2281 = vmatprep.subr.mxu0 0.0
      %2282 = vmatpush1.msra.mxu0 0.0
      %2283 = vmatprep.subr.mxu0 0.0
      %2284 = vmatpush1.msra.mxu0 0.0
      %2285 = vmatprep.subr.mxu0 0.0
      %2286 = vmatpush1.msra.mxu0 0.0
      %2287 = vmatprep.subr.mxu0 0.0
      %2288 = vmatpush1.msra.mxu0 0.0
      %2289 = vmatprep.subr.mxu0 0.0
      %2290 = vmatpush1.msra.mxu0 0.0
      %2291 = vmatprep.subr.mxu0 0.0
      %2292 = vmatpush1.msra.mxu0 0.0
      %2293 = vmatprep.subr.mxu0 0.0
      %2294 = vmatpush1.msra.mxu0 0.0
      %2295 = vmatprep.subr.mxu0 0.0
      %2296 = vmatpush1.msra.mxu0 0.0
      %2297 = vmatprep.subr.mxu0 0.0
      %2298 = vmatpush1.msra.mxu0 0.0
      %2299 = vmatprep.subr.mxu0 0.0
      %2300 = vmatpush1.msra.mxu0 0.0
      %2301 = vmatprep.subr.mxu0 0.0
      %2302 = vmatpush1.msra.mxu0 0.0
      %2303 = vmatprep.subr.mxu0 0.0
      %2304 = vmatpush1.msra.mxu0 0.0
      %2305 = vmatprep.subr.mxu0 0.0
      %2306 = vmatpush1.msra.mxu0 0.0
      %2307 = vmatprep.subr.mxu0 0.0
      %2308 = vmatpush1.msra.mxu0 0.0
      %2309 = vmatprep.subr.mxu0 0.0
      %2310 = vmatpush1.msra.mxu0 0.0
      %2311 = vmatprep.subr.mxu0 0.0
      %2312 = vmatpush1.msra.mxu0 0.0
      %2313 = vmatprep.subr.mxu0 0.0
      %2314 = vmatpush1.msra.mxu0 0.0
      %2315 = vmatprep.subr.mxu0 0.0
      %2316 = vmatpush1.msra.mxu0 0.0
      %2317 = vmatprep.subr.mxu0 0.0
      %2318 = vmatpush1.msra.mxu0 0.0
      %2319 = vmatprep.subr.mxu0 0.0
      %2320 = vmatpush1.msra.mxu0 0.0
      %2321 = vmatprep.subr.mxu0 0.0
      %2322 = vmatpush1.msra.mxu0 0.0
      %2323 = vmatprep.subr.mxu0 0.0
      %2324 = vmatpush1.msra.mxu0 0.0
      %2325 = vmatprep.mubr.f32.mxu0 0.0
      %2326 = vmatmul.mubr.f32.gmra.mrb[0].mxu0 %v2259
      %v2327 = vpop.f32.mrb[0].mxu0
      %v2328 = vadd.f32 0.0, %v2327
      %v2329 = vpop.f32.mrb[0].mxu0
      %2330 = vdwg.mxu0
      %v2332 = vsel %vm921, %v2101, 0
      %2334 = vmatprep.subr.mxu0 0.0
      %2335 = vmatpush1.msra.mxu0 %v906
      %2336 = vmatprep.subr.mxu0 0.0
      %2337 = vmatpush1.msra.mxu0 %v907
      %2338 = vmatprep.subr.mxu0 0.0
      %2339 = vmatpush1.msra.mxu0 0.0
      %2340 = vmatprep.subr.mxu0 0.0
      %2341 = vmatpush1.msra.mxu0 0.0
      %2342 = vmatprep.subr.mxu0 0.0
      %2343 = vmatpush1.msra.mxu0 0.0
      %2344 = vmatprep.subr.mxu0 0.0
      %2345 = vmatpush1.msra.mxu0 0.0
      %2346 = vmatprep.subr.mxu0 0.0
      %2347 = vmatpush1.msra.mxu0 0.0
      %2348 = vmatprep.subr.mxu0 0.0
      %2349 = vmatpush1.msra.mxu0 0.0
      %2350 = vmatprep.subr.mxu0 0.0
      %2351 = vmatpush1.msra.mxu0 0.0
      %2352 = vmatprep.subr.mxu0 0.0
      %2353 = vmatpush1.msra.mxu0 0.0
      %2354 = vmatprep.subr.mxu0 0.0
      %2355 = vmatpush1.msra.mxu0 0.0
      %2356 = vmatprep.subr.mxu0 0.0
      %2357 = vmatpush1.msra.mxu0 0.0
      %2358 = vmatprep.subr.mxu0 0.0
      %2359 = vmatpush1.msra.mxu0 0.0
      %2360 = vmatprep.subr.mxu0 0.0
      %2361 = vmatpush1.msra.mxu0 0.0
      %2362 = vmatprep.subr.mxu0 0.0
      %2363 = vmatpush1.msra.mxu0 0.0
      %2364 = vmatprep.subr.mxu0 0.0
      %2365 = vmatpush1.msra.mxu0 0.0
      %2366 = vmatprep.subr.mxu0 0.0
      %2367 = vmatpush1.msra.mxu0 0.0
      %2368 = vmatprep.subr.mxu0 0.0
      %2369 = vmatpush1.msra.mxu0 0.0
      %2370 = vmatprep.subr.mxu0 0.0
      %2371 = vmatpush1.msra.mxu0 0.0
      %2372 = vmatprep.subr.mxu0 0.0
      %2373 = vmatpush1.msra.mxu0 0.0
      %2374 = vmatprep.subr.mxu0 0.0
      %2375 = vmatpush1.msra.mxu0 0.0
      %2376 = vmatprep.subr.mxu0 0.0
      %2377 = vmatpush1.msra.mxu0 0.0
      %2378 = vmatprep.subr.mxu0 0.0
      %2379 = vmatpush1.msra.mxu0 0.0
      %2380 = vmatprep.subr.mxu0 0.0
      %2381 = vmatpush1.msra.mxu0 0.0
      %2382 = vmatprep.subr.mxu0 0.0
      %2383 = vmatpush1.msra.mxu0 0.0
      %2384 = vmatprep.subr.mxu0 0.0
      %2385 = vmatpush1.msra.mxu0 0.0
      %2386 = vmatprep.subr.mxu0 0.0
      %2387 = vmatpush1.msra.mxu0 0.0
      %2388 = vmatprep.subr.mxu0 0.0
      %2389 = vmatpush1.msra.mxu0 0.0
      %2390 = vmatprep.subr.mxu0 0.0
      %2391 = vmatpush1.msra.mxu0 0.0
      %2392 = vmatprep.subr.mxu0 0.0
      %2393 = vmatpush1.msra.mxu0 0.0
      %2394 = vmatprep.subr.mxu0 0.0
      %2395 = vmatpush1.msra.mxu0 0.0
      %2396 = vmatprep.subr.mxu0 0.0
      %2397 = vmatpush1.msra.mxu0 0.0
      %2398 = vmatprep.mubr.f32.mxu0 0.0
      %2399 = vmatmul.mubr.f32.gmra.mrb[0].mxu0 %v2332
      %v2400 = vpop.f32.mrb[0].mxu0
      %v2401 = vadd.f32 0.0, %v2400
      %v2402 = vpop.f32.mrb[0].mxu0
      %2403 = vdwg.mxu0
      %v2405 = vsel %vm921, %v2178, 0
      %2407 = vmatprep.subr.mxu0 0.0
      %2408 = vmatpush1.msra.mxu0 %v906
      %2409 = vmatprep.subr.mxu0 0.0
      %2410 = vmatpush1.msra.mxu0 %v907
      %2411 = vmatprep.subr.mxu0 0.0
      %2412 = vmatpush1.msra.mxu0 0.0
      %2413 = vmatprep.subr.mxu0 0.0
      %2414 = vmatpush1.msra.mxu0 0.0
      %2415 = vmatprep.subr.mxu0 0.0
      %2416 = vmatpush1.msra.mxu0 0.0
      %2417 = vmatprep.subr.mxu0 0.0
      %2418 = vmatpush1.msra.mxu0 0.0
      %2419 = vmatprep.subr.mxu0 0.0
      %2420 = vmatpush1.msra.mxu0 0.0
      %2421 = vmatprep.subr.mxu0 0.0
      %2422 = vmatpush1.msra.mxu0 0.0
      %2423 = vmatprep.subr.mxu0 0.0
      %2424 = vmatpush1.msra.mxu0 0.0
      %2425 = vmatprep.subr.mxu0 0.0
      %2426 = vmatpush1.msra.mxu0 0.0
      %2427 = vmatprep.subr.mxu0 0.0
      %2428 = vmatpush1.msra.mxu0 0.0
      %2429 = vmatprep.subr.mxu0 0.0
      %2430 = vmatpush1.msra.mxu0 0.0
      %2431 = vmatprep.subr.mxu0 0.0
      %2432 = vmatpush1.msra.mxu0 0.0
      %2433 = vmatprep.subr.mxu0 0.0
      %2434 = vmatpush1.msra.mxu0 0.0
      %2435 = vmatprep.subr.mxu0 0.0
      %2436 = vmatpush1.msra.mxu0 0.0
      %2437 = vmatprep.subr.mxu0 0.0
      %2438 = vmatpush1.msra.mxu0 0.0
      %2439 = vmatprep.subr.mxu0 0.0
      %2440 = vmatpush1.msra.mxu0 0.0
      %2441 = vmatprep.subr.mxu0 0.0
      %2442 = vmatpush1.msra.mxu0 0.0
      %2443 = vmatprep.subr.mxu0 0.0
      %2444 = vmatpush1.msra.mxu0 0.0
      %2445 = vmatprep.subr.mxu0 0.0
      %2446 = vmatpush1.msra.mxu0 0.0
      %2447 = vmatprep.subr.mxu0 0.0
      %2448 = vmatpush1.msra.mxu0 0.0
      %2449 = vmatprep.subr.mxu0 0.0
      %2450 = vmatpush1.msra.mxu0 0.0
      %2451 = vmatprep.subr.mxu0 0.0
      %2452 = vmatpush1.msra.mxu0 0.0
      %2453 = vmatprep.subr.mxu0 0.0
      %2454 = vmatpush1.msra.mxu0 0.0
      %2455 = vmatprep.subr.mxu0 0.0
      %2456 = vmatpush1.msra.mxu0 0.0
      %2457 = vmatprep.subr.mxu0 0.0
      %2458 = vmatpush1.msra.mxu0 0.0
      %2459 = vmatprep.subr.mxu0 0.0
      %2460 = vmatpush1.msra.mxu0 0.0
      %2461 = vmatprep.subr.mxu0 0.0
      %2462 = vmatpush1.msra.mxu0 0.0
      %2463 = vmatprep.subr.mxu0 0.0
      %2464 = vmatpush1.msra.mxu0 0.0
      %2465 = vmatprep.subr.mxu0 0.0
      %2466 = vmatpush1.msra.mxu0 0.0
      %2467 = vmatprep.subr.mxu0 0.0
      %2468 = vmatpush1.msra.mxu0 0.0
      %2469 = vmatprep.subr.mxu0 0.0
      %2470 = vmatpush1.msra.mxu0 0.0
      %2471 = vmatprep.mubr.f32.mxu0 0.0
      %2472 = vmatmul.mubr.f32.gmra.mrb[0].mxu0 %v2405
      %v2473 = vpop.f32.mrb[0].mxu0
      %v2474 = vadd.f32 0.0, %v2473
      %v2475 = vpop.f32.mrb[0].mxu0
      %2476 = vdwg.mxu0
      %v2478 = vsel %vm921, %v2255, 0
      %2480 = vmatprep.subr.mxu0 0.0
      %2481 = vmatpush1.msra.mxu0 %v906
      %2482 = vmatprep.subr.mxu0 0.0
      %2483 = vmatpush1.msra.mxu0 %v907
      %2484 = vmatprep.subr.mxu0 0.0
      %2485 = vmatpush1.msra.mxu0 0.0
      %2486 = vmatprep.subr.mxu0 0.0
      %2487 = vmatpush1.msra.mxu0 0.0
      %2488 = vmatprep.subr.mxu0 0.0
      %2489 = vmatpush1.msra.mxu0 0.0
      %2490 = vmatprep.subr.mxu0 0.0
      %2491 = vmatpush1.msra.mxu0 0.0
      %2492 = vmatprep.subr.mxu0 0.0
      %2493 = vmatpush1.msra.mxu0 0.0
      %2494 = vmatprep.subr.mxu0 0.0
      %2495 = vmatpush1.msra.mxu0 0.0
      %2496 = vmatprep.subr.mxu0 0.0
      %2497 = vmatpush1.msra.mxu0 0.0
      %2498 = vmatprep.subr.mxu0 0.0
      %2499 = vmatpush1.msra.mxu0 0.0
      %2500 = vmatprep.subr.mxu0 0.0
      %2501 = vmatpush1.msra.mxu0 0.0
      %2502 = vmatprep.subr.mxu0 0.0
      %2503 = vmatpush1.msra.mxu0 0.0
      %2504 = vmatprep.subr.mxu0 0.0
      %2505 = vmatpush1.msra.mxu0 0.0
      %2506 = vmatprep.subr.mxu0 0.0
      %2507 = vmatpush1.msra.mxu0 0.0
      %2508 = vmatprep.subr.mxu0 0.0
      %2509 = vmatpush1.msra.mxu0 0.0
      %2510 = vmatprep.subr.mxu0 0.0
      %2511 = vmatpush1.msra.mxu0 0.0
      %2512 = vmatprep.subr.mxu0 0.0
      %2513 = vmatpush1.msra.mxu0 0.0
      %2514 = vmatprep.subr.mxu0 0.0
      %2515 = vmatpush1.msra.mxu0 0.0
      %2516 = vmatprep.subr.mxu0 0.0
      %2517 = vmatpush1.msra.mxu0 0.0
      %2518 = vmatprep.subr.mxu0 0.0
      %2519 = vmatpush1.msra.mxu0 0.0
      %2520 = vmatprep.subr.mxu0 0.0
      %2521 = vmatpush1.msra.mxu0 0.0
      %2522 = vmatprep.subr.mxu0 0.0
      %2523 = vmatpush1.msra.mxu0 0.0
      %2524 = vmatprep.subr.mxu0 0.0
      %2525 = vmatpush1.msra.mxu0 0.0
      %2526 = vmatprep.subr.mxu0 0.0
      %2527 = vmatpush1.msra.mxu0 0.0
      %2528 = vmatprep.subr.mxu0 0.0
      %2529 = vmatpush1.msra.mxu0 0.0
      %2530 = vmatprep.subr.mxu0 0.0
      %2531 = vmatpush1.msra.mxu0 0.0
      %2532 = vmatprep.subr.mxu0 0.0
      %2533 = vmatpush1.msra.mxu0 0.0
      %2534 = vmatprep.subr.mxu0 0.0
      %2535 = vmatpush1.msra.mxu0 0.0
      %2536 = vmatprep.subr.mxu0 0.0
      %2537 = vmatpush1.msra.mxu0 0.0
      %2538 = vmatprep.subr.mxu0 0.0
      %2539 = vmatpush1.msra.mxu0 0.0
      %2540 = vmatprep.subr.mxu0 0.0
      %2541 = vmatpush1.msra.mxu0 0.0
      %2542 = vmatprep.subr.mxu0 0.0
      %2543 = vmatpush1.msra.mxu0 0.0
      %2544 = vmatprep.mubr.f32.mxu0 0.0
      %2545 = vmatmul.mubr.f32.gmra.mrb[0].mxu0 %v2478
      %v2546 = vpop.f32.mrb[0].mxu0
      %v2547 = vadd.f32 0.0, %v2546
      %v2548 = vpop.f32.mrb[0].mxu0
      %2549 = vdwg.mxu0
      %v2551 = vsel %vm921, %v1356, 0
      %2553 = vmatprep.subr.mxu0 0.0
      %2554 = vmatpush1.msra.mxu0 %v904
      %2555 = vmatprep.subr.mxu0 0.0
      %2556 = vmatpush1.msra.mxu0 %v905
      %2557 = vmatprep.subr.mxu0 0.0
      %2558 = vmatpush1.msra.mxu0 0.0
      %2559 = vmatprep.subr.mxu0 0.0
      %2560 = vmatpush1.msra.mxu0 0.0
      %2561 = vmatprep.subr.mxu0 0.0
      %2562 = vmatpush1.msra.mxu0 0.0
      %2563 = vmatprep.subr.mxu0 0.0
      %2564 = vmatpush1.msra.mxu0 0.0
      %2565 = vmatprep.subr.mxu0 0.0
      %2566 = vmatpush1.msra.mxu0 0.0
      %2567 = vmatprep.subr.mxu0 0.0
      %2568 = vmatpush1.msra.mxu0 0.0
      %2569 = vmatprep.subr.mxu0 0.0
      %2570 = vmatpush1.msra.mxu0 0.0
      %2571 = vmatprep.subr.mxu0 0.0
      %2572 = vmatpush1.msra.mxu0 0.0
      %2573 = vmatprep.subr.mxu0 0.0
      %2574 = vmatpush1.msra.mxu0 0.0
      %2575 = vmatprep.subr.mxu0 0.0
      %2576 = vmatpush1.msra.mxu0 0.0
      %2577 = vmatprep.subr.mxu0 0.0
      %2578 = vmatpush1.msra.mxu0 0.0
      %2579 = vmatprep.subr.mxu0 0.0
      %2580 = vmatpush1.msra.mxu0 0.0
      %2581 = vmatprep.subr.mxu0 0.0
      %2582 = vmatpush1.msra.mxu0 0.0
      %2583 = vmatprep.subr.mxu0 0.0
      %2584 = vmatpush1.msra.mxu0 0.0
      %2585 = vmatprep.subr.mxu0 0.0
      %2586 = vmatpush1.msra.mxu0 0.0
      %2587 = vmatprep.subr.mxu0 0.0
      %2588 = vmatpush1.msra.mxu0 0.0
      %2589 = vmatprep.subr.mxu0 0.0
      %2590 = vmatpush1.msra.mxu0 0.0
      %2591 = vmatprep.subr.mxu0 0.0
      %2592 = vmatpush1.msra.mxu0 0.0
      %2593 = vmatprep.subr.mxu0 0.0
      %2594 = vmatpush1.msra.mxu0 0.0
      %2595 = vmatprep.subr.mxu0 0.0
      %2596 = vmatpush1.msra.mxu0 0.0
      %2597 = vmatprep.subr.mxu0 0.0
      %2598 = vmatpush1.msra.mxu0 0.0
      %2599 = vmatprep.subr.mxu0 0.0
      %2600 = vmatpush1.msra.mxu0 0.0
      %2601 = vmatprep.subr.mxu0 0.0
      %2602 = vmatpush1.msra.mxu0 0.0
      %2603 = vmatprep.subr.mxu0 0.0
      %2604 = vmatpush1.msra.mxu0 0.0
      %2605 = vmatprep.subr.mxu0 0.0
      %2606 = vmatpush1.msra.mxu0 0.0
      %2607 = vmatprep.subr.mxu0 0.0
      %2608 = vmatpush1.msra.mxu0 0.0
      %2609 = vmatprep.subr.mxu0 0.0
      %2610 = vmatpush1.msra.mxu0 0.0
      %2611 = vmatprep.subr.mxu0 0.0
      %2612 = vmatpush1.msra.mxu0 0.0
      %2613 = vmatprep.subr.mxu0 0.0
      %2614 = vmatpush1.msra.mxu0 0.0
      %2615 = vmatprep.subr.mxu0 0.0
      %2616 = vmatpush1.msra.mxu0 0.0
      %2617 = vmatprep.mubr.f32.mxu0 0.0
      %2618 = vmatmul.mubr.f32.gmra.mrb[0].mxu0 %v2551
      %v2619 = vpop.f32.mrb[0].mxu0
      %v2620 = vadd.f32 %v2328, %v2619
      %v2621 = vpop.f32.mrb[0].mxu0
      %2622 = vdwg.mxu0
      %v2624 = vsel %vm921, %v1433, 0
      %2626 = vmatprep.subr.mxu0 0.0
      %2627 = vmatpush1.msra.mxu0 %v904
      %2628 = vmatprep.subr.mxu0 0.0
      %2629 = vmatpush1.msra.mxu0 %v905
      %2630 = vmatprep.subr.mxu0 0.0
      %2631 = vmatpush1.msra.mxu0 0.0
      %2632 = vmatprep.subr.mxu0 0.0
      %2633 = vmatpush1.msra.mxu0 0.0
      %2634 = vmatprep.subr.mxu0 0.0
      %2635 = vmatpush1.msra.mxu0 0.0
      %2636 = vmatprep.subr.mxu0 0.0
      %2637 = vmatpush1.msra.mxu0 0.0
      %2638 = vmatprep.subr.mxu0 0.0
      %2639 = vmatpush1.msra.mxu0 0.0
      %2640 = vmatprep.subr.mxu0 0.0
      %2641 = vmatpush1.msra.mxu0 0.0
      %2642 = vmatprep.subr.mxu0 0.0
      %2643 = vmatpush1.msra.mxu0 0.0
      %2644 = vmatprep.subr.mxu0 0.0
      %2645 = vmatpush1.msra.mxu0 0.0
      %2646 = vmatprep.subr.mxu0 0.0
      %2647 = vmatpush1.msra.mxu0 0.0
      %2648 = vmatprep.subr.mxu0 0.0
      %2649 = vmatpush1.msra.mxu0 0.0
      %2650 = vmatprep.subr.mxu0 0.0
      %2651 = vmatpush1.msra.mxu0 0.0
      %2652 = vmatprep.subr.mxu0 0.0
      %2653 = vmatpush1.msra.mxu0 0.0
      %2654 = vmatprep.subr.mxu0 0.0
      %2655 = vmatpush1.msra.mxu0 0.0
      %2656 = vmatprep.subr.mxu0 0.0
      %2657 = vmatpush1.msra.mxu0 0.0
      %2658 = vmatprep.subr.mxu0 0.0
      %2659 = vmatpush1.msra.mxu0 0.0
      %2660 = vmatprep.subr.mxu0 0.0
      %2661 = vmatpush1.msra.mxu0 0.0
      %2662 = vmatprep.subr.mxu0 0.0
      %2663 = vmatpush1.msra.mxu0 0.0
      %2664 = vmatprep.subr.mxu0 0.0
      %2665 = vmatpush1.msra.mxu0 0.0
      %2666 = vmatprep.subr.mxu0 0.0
      %2667 = vmatpush1.msra.mxu0 0.0
      %2668 = vmatprep.subr.mxu0 0.0
      %2669 = vmatpush1.msra.mxu0 0.0
      %2670 = vmatprep.subr.mxu0 0.0
      %2671 = vmatpush1.msra.mxu0 0.0
      %2672 = vmatprep.subr.mxu0 0.0
      %2673 = vmatpush1.msra.mxu0 0.0
      %2674 = vmatprep.subr.mxu0 0.0
      %2675 = vmatpush1.msra.mxu0 0.0
      %2676 = vmatprep.subr.mxu0 0.0
      %2677 = vmatpush1.msra.mxu0 0.0
      %2678 = vmatprep.subr.mxu0 0.0
      %2679 = vmatpush1.msra.mxu0 0.0
      %2680 = vmatprep.subr.mxu0 0.0
      %2681 = vmatpush1.msra.mxu0 0.0
      %2682 = vmatprep.subr.mxu0 0.0
      %2683 = vmatpush1.msra.mxu0 0.0
      %2684 = vmatprep.subr.mxu0 0.0
      %2685 = vmatpush1.msra.mxu0 0.0
      %2686 = vmatprep.subr.mxu0 0.0
      %2687 = vmatpush1.msra.mxu0 0.0
      %2688 = vmatprep.subr.mxu0 0.0
      %2689 = vmatpush1.msra.mxu0 0.0
      %2690 = vmatprep.mubr.f32.mxu0 0.0
      %2691 = vmatmul.mubr.f32.gmra.mrb[0].mxu0 %v2624
      %v2692 = vpop.f32.mrb[0].mxu0
      %v2693 = vadd.f32 %v2401, %v2692
      %v2694 = vpop.f32.mrb[0].mxu0
      %2695 = vdwg.mxu0
      %v2697 = vsel %vm921, %v1510, 0
      %2699 = vmatprep.subr.mxu0 0.0
      %2700 = vmatpush1.msra.mxu0 %v904
      %2701 = vmatprep.subr.mxu0 0.0
      %2702 = vmatpush1.msra.mxu0 %v905
      %2703 = vmatprep.subr.mxu0 0.0
      %2704 = vmatpush1.msra.mxu0 0.0
      %2705 = vmatprep.subr.mxu0 0.0
      %2706 = vmatpush1.msra.mxu0 0.0
      %2707 = vmatprep.subr.mxu0 0.0
      %2708 = vmatpush1.msra.mxu0 0.0
      %2709 = vmatprep.subr.mxu0 0.0
      %2710 = vmatpush1.msra.mxu0 0.0
      %2711 = vmatprep.subr.mxu0 0.0
      %2712 = vmatpush1.msra.mxu0 0.0
      %2713 = vmatprep.subr.mxu0 0.0
      %2714 = vmatpush1.msra.mxu0 0.0
      %2715 = vmatprep.subr.mxu0 0.0
      %2716 = vmatpush1.msra.mxu0 0.0
      %2717 = vmatprep.subr.mxu0 0.0
      %2718 = vmatpush1.msra.mxu0 0.0
      %2719 = vmatprep.subr.mxu0 0.0
      %2720 = vmatpush1.msra.mxu0 0.0
      %2721 = vmatprep.subr.mxu0 0.0
      %2722 = vmatpush1.msra.mxu0 0.0
      %2723 = vmatprep.subr.mxu0 0.0
      %2724 = vmatpush1.msra.mxu0 0.0
      %2725 = vmatprep.subr.mxu0 0.0
      %2726 = vmatpush1.msra.mxu0 0.0
      %2727 = vmatprep.subr.mxu0 0.0
      %2728 = vmatpush1.msra.mxu0 0.0
      %2729 = vmatprep.subr.mxu0 0.0
      %2730 = vmatpush1.msra.mxu0 0.0
      %2731 = vmatprep.subr.mxu0 0.0
      %2732 = vmatpush1.msra.mxu0 0.0
      %2733 = vmatprep.subr.mxu0 0.0
      %2734 = vmatpush1.msra.mxu0 0.0
      %2735 = vmatprep.subr.mxu0 0.0
      %2736 = vmatpush1.msra.mxu0 0.0
      %2737 = vmatprep.subr.mxu0 0.0
      %2738 = vmatpush1.msra.mxu0 0.0
      %2739 = vmatprep.subr.mxu0 0.0
      %2740 = vmatpush1.msra.mxu0 0.0
      %2741 = vmatprep.subr.mxu0 0.0
      %2742 = vmatpush1.msra.mxu0 0.0
      %2743 = vmatprep.subr.mxu0 0.0
      %2744 = vmatpush1.msra.mxu0 0.0
      %2745 = vmatprep.subr.mxu0 0.0
      %2746 = vmatpush1.msra.mxu0 0.0
      %2747 = vmatprep.subr.mxu0 0.0
      %2748 = vmatpush1.msra.mxu0 0.0
      %2749 = vmatprep.subr.mxu0 0.0
      %2750 = vmatpush1.msra.mxu0 0.0
      %2751 = vmatprep.subr.mxu0 0.0
      %2752 = vmatpush1.msra.mxu0 0.0
      %2753 = vmatprep.subr.mxu0 0.0
      %2754 = vmatpush1.msra.mxu0 0.0
      %2755 = vmatprep.subr.mxu0 0.0
      %2756 = vmatpush1.msra.mxu0 0.0
      %2757 = vmatprep.subr.mxu0 0.0
      %2758 = vmatpush1.msra.mxu0 0.0
      %2759 = vmatprep.subr.mxu0 0.0
      %2760 = vmatpush1.msra.mxu0 0.0
      %2761 = vmatprep.subr.mxu0 0.0
      %2762 = vmatpush1.msra.mxu0 0.0
      %2763 = vmatprep.mubr.f32.mxu0 0.0
      %2764 = vmatmul.mubr.f32.gmra.mrb[0].mxu0 %v2697
      %v2765 = vpop.f32.mrb[0].mxu0
      %v2766 = vadd.f32 %v2474, %v2765
      %v2767 = vpop.f32.mrb[0].mxu0
      %2768 = vdwg.mxu0
      %v2770 = vsel %vm921, %v1587, 0
      %2772 = vmatprep.subr.mxu0 0.0
      %2773 = vmatpush1.msra.mxu0 %v904
      %2774 = vmatprep.subr.mxu0 0.0
      %2775 = vmatpush1.msra.mxu0 %v905
      %2776 = vmatprep.subr.mxu0 0.0
      %2777 = vmatpush1.msra.mxu0 0.0
      %2778 = vmatprep.subr.mxu0 0.0
      %2779 = vmatpush1.msra.mxu0 0.0
      %2780 = vmatprep.subr.mxu0 0.0
      %2781 = vmatpush1.msra.mxu0 0.0
      %2782 = vmatprep.subr.mxu0 0.0
      %2783 = vmatpush1.msra.mxu0 0.0
      %2784 = vmatprep.subr.mxu0 0.0
      %2785 = vmatpush1.msra.mxu0 0.0
      %2786 = vmatprep.subr.mxu0 0.0
      %2787 = vmatpush1.msra.mxu0 0.0
      %2788 = vmatprep.subr.mxu0 0.0
      %2789 = vmatpush1.msra.mxu0 0.0
      %2790 = vmatprep.subr.mxu0 0.0
      %2791 = vmatpush1.msra.mxu0 0.0
      %2792 = vmatprep.subr.mxu0 0.0
      %2793 = vmatpush1.msra.mxu0 0.0
      %2794 = vmatprep.subr.mxu0 0.0
      %2795 = vmatpush1.msra.mxu0 0.0
      %2796 = vmatprep.subr.mxu0 0.0
      %2797 = vmatpush1.msra.mxu0 0.0
      %2798 = vmatprep.subr.mxu0 0.0
      %2799 = vmatpush1.msra.mxu0 0.0
      %2800 = vmatprep.subr.mxu0 0.0
      %2801 = vmatpush1.msra.mxu0 0.0
      %2802 = vmatprep.subr.mxu0 0.0
      %2803 = vmatpush1.msra.mxu0 0.0
      %2804 = vmatprep.subr.mxu0 0.0
      %2805 = vmatpush1.msra.mxu0 0.0
      %2806 = vmatprep.subr.mxu0 0.0
      %2807 = vmatpush1.msra.mxu0 0.0
      %2808 = vmatprep.subr.mxu0 0.0
      %2809 = vmatpush1.msra.mxu0 0.0
      %2810 = vmatprep.subr.mxu0 0.0
      %2811 = vmatpush1.msra.mxu0 0.0
      %2812 = vmatprep.subr.mxu0 0.0
      %2813 = vmatpush1.msra.mxu0 0.0
      %2814 = vmatprep.subr.mxu0 0.0
      %2815 = vmatpush1.msra.mxu0 0.0
      %2816 = vmatprep.subr.mxu0 0.0
      %2817 = vmatpush1.msra.mxu0 0.0
      %2818 = vmatprep.subr.mxu0 0.0
      %2819 = vmatpush1.msra.mxu0 0.0
      %2820 = vmatprep.subr.mxu0 0.0
      %2821 = vmatpush1.msra.mxu0 0.0
      %2822 = vmatprep.subr.mxu0 0.0
      %2823 = vmatpush1.msra.mxu0 0.0
      %2824 = vmatprep.subr.mxu0 0.0
      %2825 = vmatpush1.msra.mxu0 0.0
      %2826 = vmatprep.subr.mxu0 0.0
      %2827 = vmatpush1.msra.mxu0 0.0
      %2828 = vmatprep.subr.mxu0 0.0
      %2829 = vmatpush1.msra.mxu0 0.0
      %2830 = vmatprep.subr.mxu0 0.0
      %2831 = vmatpush1.msra.mxu0 0.0
      %2832 = vmatprep.subr.mxu0 0.0
      %2833 = vmatpush1.msra.mxu0 0.0
      %2834 = vmatprep.subr.mxu0 0.0
      %2835 = vmatpush1.msra.mxu0 0.0
      %2836 = vmatprep.mubr.f32.mxu0 0.0
      %2837 = vmatmul.mubr.f32.gmra.mrb[0].mxu0 %v2770
      %v2838 = vpop.f32.mrb[0].mxu0
      %v2839 = vadd.f32 %v2547, %v2838
      %v2840 = vpop.f32.mrb[0].mxu0
      %2841 = vdwg.mxu0
      %v2842 = vadd.f32 %v520, %v2620
      %v2843 = vadd.f32 %v521, %v2693
      %v2844 = vadd.f32 %v522, %v2766
      %v2845 = vadd.f32 %v523, %v2839
      %v2846 = vld [vmem:[%s8] sm:$0x1]
      %v2848 = vlaneseq
      %v2849 = vshrl.u32 %v2848, 7
      %v2850 = vsub.s32 0, %v2849
      %v2851 = vrot.slane %v2846, %v2850
      %v2853 = vadd.f32 %v2842, %v2851
      %v2854 = vadd.f32 %v2843, %v2851
      %v2855 = vadd.f32 %v2844, %v2851
      %v2856 = vadd.f32 %v2845, %v2851
      %v2857 = vld [vmem:[%s9] sm:$0x1]
      %v2858 = vld [vmem:[%s10] sm:$0x1]
      %v2859 = vsel %vm526, %v2853, 0.0
      %2860 = vadd.xlane.f32.xlu0 %v2859
      %v2861 = vpop.xlane.xlu0 %2860
      %v2862 = vsel %vm526, %v2854, 0.0
      %2863 = vadd.xlane.f32.xlu0 %v2862
      %v2864 = vpop.xlane.xlu0 %2863
      %v2865 = vsel %vm526, %v2855, 0.0
      %2866 = vadd.xlane.f32.xlu0 %v2865
      %v2867 = vpop.xlane.xlu0 %2866
      %v2868 = vsel %vm526, %v2856, 0.0
      %2869 = vadd.xlane.f32.xlu0 %v2868
      %v2870 = vpop.xlane.xlu0 %2869
      %v2871 = vmul.f32 %v2861, %v539
      %v2872 = vmul.f32 %v2864, %v539
      %v2873 = vmul.f32 %v2867, %v539
      %v2874 = vmul.f32 %v2870, %v539
      %v2875 = vsub.f32 %v2853, %v2871
      %v2876 = vsub.f32 %v2854, %v2872
      %v2877 = vsub.f32 %v2855, %v2873
      %v2878 = vsub.f32 %v2856, %v2874
      %v2879 = vmul.f32 %v2875, %v2875
      %v2880 = vmul.f32 %v2876, %v2876
      %v2881 = vmul.f32 %v2877, %v2877
      %v2882 = vmul.f32 %v2878, %v2878
      %v2883 = vsel %vm526, %v2879, 0.0
      %2884 = vadd.xlane.f32.xlu0 %v2883
      %v2885 = vpop.xlane.xlu0 %2884
      %v2886 = vsel %vm526, %v2880, 0.0
      %2887 = vadd.xlane.f32.xlu0 %v2886
      %v2888 = vpop.xlane.xlu0 %2887
      %v2889 = vsel %vm526, %v2881, 0.0
      %2890 = vadd.xlane.f32.xlu0 %v2889
      %v2891 = vpop.xlane.xlu0 %2890
      %v2892 = vsel %vm526, %v2882, 0.0
      %2893 = vadd.xlane.f32.xlu0 %v2892
      %v2894 = vpop.xlane.xlu0 %2893
      %v2895 = vmul.f32 %v2885, %v539
      %v2896 = vmul.f32 %v2888, %v539
      %v2897 = vmul.f32 %v2891, %v539
      %v2898 = vmul.f32 %v2894, %v539
      %v2899 = vadd.f32 %v2895, 1e-05
      %v2900 = vadd.f32 %v2896, 1e-05
      %v2901 = vadd.f32 %v2897, 1e-05
      %v2902 = vadd.f32 %v2898, 1e-05
      %v2903 = vrsqrt.pop %v2899
      %v2904 = vrsqrt.pop %v2900
      %v2905 = vrsqrt.pop %v2901
      %v2906 = vrsqrt.pop %v2902
      %v2907 = vmul.f32 %v2875, %v2903
      %v2908 = vmul.f32 %v2876, %v2904
      %v2909 = vmul.f32 %v2877, %v2905
      %v2910 = vmul.f32 %v2878, %v2906
      %v2912 = vlaneseq
      %v2913 = vshrl.u32 %v2912, 7
      %v2914 = vsub.s32 0, %v2913
      %v2915 = vrot.slane %v2857, %v2914
      %v2917 = vmul.f32 %v2907, %v2915
      %v2918 = vmul.f32 %v2908, %v2915
      %v2919 = vmul.f32 %v2909, %v2915
      %v2920 = vmul.f32 %v2910, %v2915
      %v2922 = vlaneseq
      %v2923 = vshrl.u32 %v2922, 7
      %v2924 = vsub.s32 0, %v2923
      %v2925 = vrot.slane %v2858, %v2924
      %v2927 = vadd.f32 %v2917, %v2925
      %v2928 = vadd.f32 %v2918, %v2925
      %v2929 = vadd.f32 %v2919, %v2925
      %v2930 = vadd.f32 %v2920, %v2925
      %v2931 = vld [vmem:[%s11] sm:$0xff]
      %v2932 = vld [vmem:[%s11 + $0x8] sm:$0xff]
      %v2933 = vld [vmem:[%s11 + $0x10] sm:$0xff]
      %v2934 = vld [vmem:[%s11 + $0x18] sm:$0xff]
      %v2935 = vld [vmem:[%s12] sm:$0x1]
      %v2937 = vlaneseq
      %v2938 = vshrl.u32 %v2937, 7
      %v2939 = vsub.s32 0, %v2938
      %v2940 = vrot.slane %v2935, %v2939
      %v2943 = vsel %vm611, %v2927, 0
      %2945 = vmatprep.subr.mxu0 0.0
      %2946 = vmatpush1.msra.mxu0 %v2931
      %2947 = vmatprep.subr.mxu0 0.0
      %2948 = vmatpush1.msra.mxu0 %v2932
      %2949 = vmatprep.subr.mxu0 0.0
      %2950 = vmatpush1.msra.mxu0 %v2933
      %2951 = vmatprep.subr.mxu0 0.0
      %2952 = vmatpush1.msra.mxu0 %v2934
      %2953 = vmatprep.subr.mxu0 0.0
      %2954 = vmatpush1.msra.mxu0 0.0
      %2955 = vmatprep.subr.mxu0 0.0
      %2956 = vmatpush1.msra.mxu0 0.0
      %2957 = vmatprep.subr.mxu0 0.0
      %2958 = vmatpush1.msra.mxu0 0.0
      %2959 = vmatprep.subr.mxu0 0.0
      %2960 = vmatpush1.msra.mxu0 0.0
      %2961 = vmatprep.subr.mxu0 0.0
      %2962 = vmatpush1.msra.mxu0 0.0
      %2963 = vmatprep.subr.mxu0 0.0
      %2964 = vmatpush1.msra.mxu0 0.0
      %2965 = vmatprep.subr.mxu0 0.0
      %2966 = vmatpush1.msra.mxu0 0.0
      %2967 = vmatprep.subr.mxu0 0.0
      %2968 = vmatpush1.msra.mxu0 0.0
      %2969 = vmatprep.subr.mxu0 0.0
      %2970 = vmatpush1.msra.mxu0 0.0
      %2971 = vmatprep.subr.mxu0 0.0
      %2972 = vmatpush1.msra.mxu0 0.0
      %2973 = vmatprep.subr.mxu0 0.0
      %2974 = vmatpush1.msra.mxu0 0.0
      %2975 = vmatprep.subr.mxu0 0.0
      %2976 = vmatpush1.msra.mxu0 0.0
      %2977 = vmatprep.subr.mxu0 0.0
      %2978 = vmatpush1.msra.mxu0 0.0
      %2979 = vmatprep.subr.mxu0 0.0
      %2980 = vmatpush1.msra.mxu0 0.0
      %2981 = vmatprep.subr.mxu0 0.0
      %2982 = vmatpush1.msra.mxu0 0.0
      %2983 = vmatprep.subr.mxu0 0.0
      %2984 = vmatpush1.msra.mxu0 0.0
      %2985 = vmatprep.subr.mxu0 0.0
      %2986 = vmatpush1.msra.mxu0 0.0
      %2987 = vmatprep.subr.mxu0 0.0
      %2988 = vmatpush1.msra.mxu0 0.0
      %2989 = vmatprep.subr.mxu0 0.0
      %2990 = vmatpush1.msra.mxu0 0.0
      %2991 = vmatprep.subr.mxu0 0.0
      %2992 = vmatpush1.msra.mxu0 0.0
      %2993 = vmatprep.subr.mxu0 0.0
      %2994 = vmatpush1.msra.mxu0 0.0
      %2995 = vmatprep.subr.mxu0 0.0
      %2996 = vmatpush1.msra.mxu0 0.0
      %2997 = vmatprep.subr.mxu0 0.0
      %2998 = vmatpush1.msra.mxu0 0.0
      %2999 = vmatprep.subr.mxu0 0.0
      %3000 = vmatpush1.msra.mxu0 0.0
      %3001 = vmatprep.subr.mxu0 0.0
      %3002 = vmatpush1.msra.mxu0 0.0
      %3003 = vmatprep.subr.mxu0 0.0
      %3004 = vmatpush1.msra.mxu0 0.0
      %3005 = vmatprep.subr.mxu0 0.0
      %3006 = vmatpush1.msra.mxu0 0.0
      %3007 = vmatprep.subr.mxu0 0.0
      %3008 = vmatpush1.msra.mxu0 0.0
      %3009 = vmatprep.mubr.f32.mxu0 0.0
      %3010 = vmatmul.mubr.f32.gmra.mrb[0].mxu0 %v2943
      %v3011 = vpop.f32.mrb[0].mxu0
      %v3012 = vadd.f32 %v2940, %v3011
      %v3013 = vpop.f32.mrb[0].mxu0
      %3014 = vdwg.mxu0
      %v3016 = vsel %vm611, %v2928, 0
      %3018 = vmatprep.subr.mxu0 0.0
      %3019 = vmatpush1.msra.mxu0 %v2931
      %3020 = vmatprep.subr.mxu0 0.0
      %3021 = vmatpush1.msra.mxu0 %v2932
      %3022 = vmatprep.subr.mxu0 0.0
      %3023 = vmatpush1.msra.mxu0 %v2933
      %3024 = vmatprep.subr.mxu0 0.0
      %3025 = vmatpush1.msra.mxu0 %v2934
      %3026 = vmatprep.subr.mxu0 0.0
      %3027 = vmatpush1.msra.mxu0 0.0
      %3028 = vmatprep.subr.mxu0 0.0
      %3029 = vmatpush1.msra.mxu0 0.0
      %3030 = vmatprep.subr.mxu0 0.0
      %3031 = vmatpush1.msra.mxu0 0.0
      %3032 = vmatprep.subr.mxu0 0.0
      %3033 = vmatpush1.msra.mxu0 0.0
      %3034 = vmatprep.subr.mxu0 0.0
      %3035 = vmatpush1.msra.mxu0 0.0
      %3036 = vmatprep.subr.mxu0 0.0
      %3037 = vmatpush1.msra.mxu0 0.0
      %3038 = vmatprep.subr.mxu0 0.0
      %3039 = vmatpush1.msra.mxu0 0.0
      %3040 = vmatprep.subr.mxu0 0.0
      %3041 = vmatpush1.msra.mxu0 0.0
      %3042 = vmatprep.subr.mxu0 0.0
      %3043 = vmatpush1.msra.mxu0 0.0
      %3044 = vmatprep.subr.mxu0 0.0
      %3045 = vmatpush1.msra.mxu0 0.0
      %3046 = vmatprep.subr.mxu0 0.0
      %3047 = vmatpush1.msra.mxu0 0.0
      %3048 = vmatprep.subr.mxu0 0.0
      %3049 = vmatpush1.msra.mxu0 0.0
      %3050 = vmatprep.subr.mxu0 0.0
      %3051 = vmatpush1.msra.mxu0 0.0
      %3052 = vmatprep.subr.mxu0 0.0
      %3053 = vmatpush1.msra.mxu0 0.0
      %3054 = vmatprep.subr.mxu0 0.0
      %3055 = vmatpush1.msra.mxu0 0.0
      %3056 = vmatprep.subr.mxu0 0.0
      %3057 = vmatpush1.msra.mxu0 0.0
      %3058 = vmatprep.subr.mxu0 0.0
      %3059 = vmatpush1.msra.mxu0 0.0
      %3060 = vmatprep.subr.mxu0 0.0
      %3061 = vmatpush1.msra.mxu0 0.0
      %3062 = vmatprep.subr.mxu0 0.0
      %3063 = vmatpush1.msra.mxu0 0.0
      %3064 = vmatprep.subr.mxu0 0.0
      %3065 = vmatpush1.msra.mxu0 0.0
      %3066 = vmatprep.subr.mxu0 0.0
      %3067 = vmatpush1.msra.mxu0 0.0
      %3068 = vmatprep.subr.mxu0 0.0
      %3069 = vmatpush1.msra.mxu0 0.0
      %3070 = vmatprep.subr.mxu0 0.0
      %3071 = vmatpush1.msra.mxu0 0.0
      %3072 = vmatprep.subr.mxu0 0.0
      %3073 = vmatpush1.msra.mxu0 0.0
      %3074 = vmatprep.subr.mxu0 0.0
      %3075 = vmatpush1.msra.mxu0 0.0
      %3076 = vmatprep.subr.mxu0 0.0
      %3077 = vmatpush1.msra.mxu0 0.0
      %3078 = vmatprep.subr.mxu0 0.0
      %3079 = vmatpush1.msra.mxu0 0.0
      %3080 = vmatprep.subr.mxu0 0.0
      %3081 = vmatpush1.msra.mxu0 0.0
      %3082 = vmatprep.mubr.f32.mxu0 0.0
      %3083 = vmatmul.mubr.f32.gmra.mrb[0].mxu0 %v3016
      %v3084 = vpop.f32.mrb[0].mxu0
      %v3085 = vadd.f32 %v2940, %v3084
      %v3086 = vpop.f32.mrb[0].mxu0
      %3087 = vdwg.mxu0
      %v3089 = vsel %vm611, %v2929, 0
      %3091 = vmatprep.subr.mxu0 0.0
      %3092 = vmatpush1.msra.mxu0 %v2931
      %3093 = vmatprep.subr.mxu0 0.0
      %3094 = vmatpush1.msra.mxu0 %v2932
      %3095 = vmatprep.subr.mxu0 0.0
      %3096 = vmatpush1.msra.mxu0 %v2933
      %3097 = vmatprep.subr.mxu0 0.0
      %3098 = vmatpush1.msra.mxu0 %v2934
      %3099 = vmatprep.subr.mxu0 0.0
      %3100 = vmatpush1.msra.mxu0 0.0
      %3101 = vmatprep.subr.mxu0 0.0
      %3102 = vmatpush1.msra.mxu0 0.0
      %3103 = vmatprep.subr.mxu0 0.0
      %3104 = vmatpush1.msra.mxu0 0.0
      %3105 = vmatprep.subr.mxu0 0.0
      %3106 = vmatpush1.msra.mxu0 0.0
      %3107 = vmatprep.subr.mxu0 0.0
      %3108 = vmatpush1.msra.mxu0 0.0
      %3109 = vmatprep.subr.mxu0 0.0
      %3110 = vmatpush1.msra.mxu0 0.0
      %3111 = vmatprep.subr.mxu0 0.0
      %3112 = vmatpush1.msra.mxu0 0.0
      %3113 = vmatprep.subr.mxu0 0.0
      %3114 = vmatpush1.msra.mxu0 0.0
      %3115 = vmatprep.subr.mxu0 0.0
      %3116 = vmatpush1.msra.mxu0 0.0
      %3117 = vmatprep.subr.mxu0 0.0
      %3118 = vmatpush1.msra.mxu0 0.0
      %3119 = vmatprep.subr.mxu0 0.0
      %3120 = vmatpush1.msra.mxu0 0.0
      %3121 = vmatprep.subr.mxu0 0.0
      %3122 = vmatpush1.msra.mxu0 0.0
      %3123 = vmatprep.subr.mxu0 0.0
      %3124 = vmatpush1.msra.mxu0 0.0
      %3125 = vmatprep.subr.mxu0 0.0
      %3126 = vmatpush1.msra.mxu0 0.0
      %3127 = vmatprep.subr.mxu0 0.0
      %3128 = vmatpush1.msra.mxu0 0.0
      %3129 = vmatprep.subr.mxu0 0.0
      %3130 = vmatpush1.msra.mxu0 0.0
      %3131 = vmatprep.subr.mxu0 0.0
      %3132 = vmatpush1.msra.mxu0 0.0
      %3133 = vmatprep.subr.mxu0 0.0
      %3134 = vmatpush1.msra.mxu0 0.0
      %3135 = vmatprep.subr.mxu0 0.0
      %3136 = vmatpush1.msra.mxu0 0.0
      %3137 = vmatprep.subr.mxu0 0.0
      %3138 = vmatpush1.msra.mxu0 0.0
      %3139 = vmatprep.subr.mxu0 0.0
      %3140 = vmatpush1.msra.mxu0 0.0
      %3141 = vmatprep.subr.mxu0 0.0
      %3142 = vmatpush1.msra.mxu0 0.0
      %3143 = vmatprep.subr.mxu0 0.0
      %3144 = vmatpush1.msra.mxu0 0.0
      %3145 = vmatprep.subr.mxu0 0.0
      %3146 = vmatpush1.msra.mxu0 0.0
      %3147 = vmatprep.subr.mxu0 0.0
      %3148 = vmatpush1.msra.mxu0 0.0
      %3149 = vmatprep.subr.mxu0 0.0
      %3150 = vmatpush1.msra.mxu0 0.0
      %3151 = vmatprep.subr.mxu0 0.0
      %3152 = vmatpush1.msra.mxu0 0.0
      %3153 = vmatprep.subr.mxu0 0.0
      %3154 = vmatpush1.msra.mxu0 0.0
      %3155 = vmatprep.mubr.f32.mxu0 0.0
      %3156 = vmatmul.mubr.f32.gmra.mrb[0].mxu0 %v3089
      %v3157 = vpop.f32.mrb[0].mxu0
      %v3158 = vadd.f32 %v2940, %v3157
      %v3159 = vpop.f32.mrb[0].mxu0
      %3160 = vdwg.mxu0
      %v3162 = vsel %vm611, %v2930, 0
      %3164 = vmatprep.subr.mxu0 0.0
      %3165 = vmatpush1.msra.mxu0 %v2931
      %3166 = vmatprep.subr.mxu0 0.0
      %3167 = vmatpush1.msra.mxu0 %v2932
      %3168 = vmatprep.subr.mxu0 0.0
      %3169 = vmatpush1.msra.mxu0 %v2933
      %3170 = vmatprep.subr.mxu0 0.0
      %3171 = vmatpush1.msra.mxu0 %v2934
      %3172 = vmatprep.subr.mxu0 0.0
      %3173 = vmatpush1.msra.mxu0 0.0
      %3174 = vmatprep.subr.mxu0 0.0
      %3175 = vmatpush1.msra.mxu0 0.0
      %3176 = vmatprep.subr.mxu0 0.0
      %3177 = vmatpush1.msra.mxu0 0.0
      %3178 = vmatprep.subr.mxu0 0.0
      %3179 = vmatpush1.msra.mxu0 0.0
      %3180 = vmatprep.subr.mxu0 0.0
      %3181 = vmatpush1.msra.mxu0 0.0
      %3182 = vmatprep.subr.mxu0 0.0
      %3183 = vmatpush1.msra.mxu0 0.0
      %3184 = vmatprep.subr.mxu0 0.0
      %3185 = vmatpush1.msra.mxu0 0.0
      %3186 = vmatprep.subr.mxu0 0.0
      %3187 = vmatpush1.msra.mxu0 0.0
      %3188 = vmatprep.subr.mxu0 0.0
      %3189 = vmatpush1.msra.mxu0 0.0
      %3190 = vmatprep.subr.mxu0 0.0
      %3191 = vmatpush1.msra.mxu0 0.0
      %3192 = vmatprep.subr.mxu0 0.0
      %3193 = vmatpush1.msra.mxu0 0.0
      %3194 = vmatprep.subr.mxu0 0.0
      %3195 = vmatpush1.msra.mxu0 0.0
      %3196 = vmatprep.subr.mxu0 0.0
      %3197 = vmatpush1.msra.mxu0 0.0
      %3198 = vmatprep.subr.mxu0 0.0
      %3199 = vmatpush1.msra.mxu0 0.0
      %3200 = vmatprep.subr.mxu0 0.0
      %3201 = vmatpush1.msra.mxu0 0.0
      %3202 = vmatprep.subr.mxu0 0.0
      %3203 = vmatpush1.msra.mxu0 0.0
      %3204 = vmatprep.subr.mxu0 0.0
      %3205 = vmatpush1.msra.mxu0 0.0
      %3206 = vmatprep.subr.mxu0 0.0
      %3207 = vmatpush1.msra.mxu0 0.0
      %3208 = vmatprep.subr.mxu0 0.0
      %3209 = vmatpush1.msra.mxu0 0.0
      %3210 = vmatprep.subr.mxu0 0.0
      %3211 = vmatpush1.msra.mxu0 0.0
      %3212 = vmatprep.subr.mxu0 0.0
      %3213 = vmatpush1.msra.mxu0 0.0
      %3214 = vmatprep.subr.mxu0 0.0
      %3215 = vmatpush1.msra.mxu0 0.0
      %3216 = vmatprep.subr.mxu0 0.0
      %3217 = vmatpush1.msra.mxu0 0.0
      %3218 = vmatprep.subr.mxu0 0.0
      %3219 = vmatpush1.msra.mxu0 0.0
      %3220 = vmatprep.subr.mxu0 0.0
      %3221 = vmatpush1.msra.mxu0 0.0
      %3222 = vmatprep.subr.mxu0 0.0
      %3223 = vmatpush1.msra.mxu0 0.0
      %3224 = vmatprep.subr.mxu0 0.0
      %3225 = vmatpush1.msra.mxu0 0.0
      %3226 = vmatprep.subr.mxu0 0.0
      %3227 = vmatpush1.msra.mxu0 0.0
      %3228 = vmatprep.mubr.f32.mxu0 0.0
      %3229 = vmatmul.mubr.f32.gmra.mrb[0].mxu0 %v3162
      %v3230 = vpop.f32.mrb[0].mxu0
      %v3231 = vadd.f32 %v2940, %v3230
      %v3232 = vpop.f32.mrb[0].mxu0
      %3233 = vdwg.mxu0
      %v3234 = vmul.f32 %v3012, %v3012
      %v3235 = vmul.f32 %v3085, %v3085
      %v3236 = vmul.f32 %v3158, %v3158
      %v3237 = vmul.f32 %v3231, %v3231
      %v3238 = vmul.f32 %v3012, %v3234
      %v3239 = vmul.f32 %v3085, %v3235
      %v3240 = vmul.f32 %v3158, %v3236
      %v3241 = vmul.f32 %v3231, %v3237
      %v3242 = vmul.f32 %v3238, 0.044715
      %v3243 = vmul.f32 %v3239, 0.044715
      %v3244 = vmul.f32 %v3240, 0.044715
      %v3245 = vmul.f32 %v3241, 0.044715
      %v3246 = vadd.f32 %v3012, %v3242
      %v3247 = vadd.f32 %v3085, %v3243
      %v3248 = vadd.f32 %v3158, %v3244
      %v3249 = vadd.f32 %v3231, %v3245
      %v3250 = vmul.f32 %v3246, 0.7978846
      %v3251 = vmul.f32 %v3247, 0.7978846
      %v3252 = vmul.f32 %v3248, 0.7978846
      %v3253 = vmul.f32 %v3249, 0.7978846
      %v3254 = vtanh.pop %v3250
      %v3255 = vtanh.pop %v3251
      %v3256 = vtanh.pop %v3252
      %v3257 = vtanh.pop %v3253
      %v3258 = vadd.f32 %v3254, 1.0
      %v3259 = vadd.f32 %v3255, 1.0
      %v3260 = vadd.f32 %v3256, 1.0
      %v3261 = vadd.f32 %v3257, 1.0
      %v3262 = vmul.f32 %v3258, 0.5
      %v3263 = vmul.f32 %v3259, 0.5
      %v3264 = vmul.f32 %v3260, 0.5
      %v3265 = vmul.f32 %v3261, 0.5
      %v3266 = vmul.f32 %v3012, %v3262
      %v3267 = vmul.f32 %v3085, %v3263
      %v3268 = vmul.f32 %v3158, %v3264
      %v3269 = vmul.f32 %v3231, %v3265
      %v3270 = vld [vmem:[%s13] sm:$0xff]
      %v3271 = vld [vmem:[%s13 + $0x8] sm:$0xff]
      %v3272 = vld [vmem:[%s13 + $0x10] sm:$0xff]
      %v3273 = vld [vmem:[%s13 + $0x18] sm:$0xff]
      %v3274 = vld [vmem:[%s13 + $0x20] sm:$0xff]
      %v3275 = vld [vmem:[%s13 + $0x28] sm:$0xff]
      %v3276 = vld [vmem:[%s13 + $0x30] sm:$0xff]
      %v3277 = vld [vmem:[%s13 + $0x38] sm:$0xff]
      %v3278 = vld [vmem:[%s13 + $0x40] sm:$0xff]
      %v3279 = vld [vmem:[%s13 + $0x48] sm:$0xff]
      %v3280 = vld [vmem:[%s13 + $0x50] sm:$0xff]
      %v3281 = vld [vmem:[%s13 + $0x58] sm:$0xff]
      %v3282 = vld [vmem:[%s13 + $0x60] sm:$0xff]
      %v3283 = vld [vmem:[%s13 + $0x68] sm:$0xff]
      %v3284 = vld [vmem:[%s13 + $0x70] sm:$0xff]
      %v3285 = vld [vmem:[%s13 + $0x78] sm:$0xff]
      %v3286 = vld [vmem:[%s14] sm:$0x1]
      %v3288 = vlaneseq
      %v3289 = vshrl.u32 %v3288, 7
      %v3290 = vsub.s32 0, %v3289
      %v3291 = vrot.slane %v3286, %v3290
      %3293 = vmatprep.subr.mxu0 0.0
      %3294 = vmatpush1.msra.mxu0 %v3270
      %3295 = vmatprep.subr.mxu0 0.0
      %3296 = vmatpush1.msra.mxu0 %v3271
      %3297 = vmatprep.subr.mxu0 0.0
      %3298 = vmatpush1.msra.mxu0 %v3272
      %3299 = vmatprep.subr.mxu0 0.0
      %3300 = vmatpush1.msra.mxu0 %v3273
      %3301 = vmatprep.subr.mxu0 0.0
      %3302 = vmatpush1.msra.mxu0 %v3274
      %3303 = vmatprep.subr.mxu0 0.0
      %3304 = vmatpush1.msra.mxu0 %v3275
      %3305 = vmatprep.subr.mxu0 0.0
      %3306 = vmatpush1.msra.mxu0 %v3276
      %3307 = vmatprep.subr.mxu0 0.0
      %3308 = vmatpush1.msra.mxu0 %v3277
      %3309 = vmatprep.subr.mxu0 0.0
      %3310 = vmatpush1.msra.mxu0 %v3278
      %3311 = vmatprep.subr.mxu0 0.0
      %3312 = vmatpush1.msra.mxu0 %v3279
      %3313 = vmatprep.subr.mxu0 0.0
      %3314 = vmatpush1.msra.mxu0 %v3280
      %3315 = vmatprep.subr.mxu0 0.0
      %3316 = vmatpush1.msra.mxu0 %v3281
      %3317 = vmatprep.subr.mxu0 0.0
      %3318 = vmatpush1.msra.mxu0 %v3282
      %3319 = vmatprep.subr.mxu0 0.0
      %3320 = vmatpush1.msra.mxu0 %v3283
      %3321 = vmatprep.subr.mxu0 0.0
      %3322 = vmatpush1.msra.mxu0 %v3284
      %3323 = vmatprep.subr.mxu0 0.0
      %3324 = vmatpush1.msra.mxu0 %v3285
      %3325 = vmatprep.subr.mxu0 0.0
      %3326 = vmatpush1.msra.mxu0 0.0
      %3327 = vmatprep.subr.mxu0 0.0
      %3328 = vmatpush1.msra.mxu0 0.0
      %3329 = vmatprep.subr.mxu0 0.0
      %3330 = vmatpush1.msra.mxu0 0.0
      %3331 = vmatprep.subr.mxu0 0.0
      %3332 = vmatpush1.msra.mxu0 0.0
      %3333 = vmatprep.subr.mxu0 0.0
      %3334 = vmatpush1.msra.mxu0 0.0
      %3335 = vmatprep.subr.mxu0 0.0
      %3336 = vmatpush1.msra.mxu0 0.0
      %3337 = vmatprep.subr.mxu0 0.0
      %3338 = vmatpush1.msra.mxu0 0.0
      %3339 = vmatprep.subr.mxu0 0.0
      %3340 = vmatpush1.msra.mxu0 0.0
      %3341 = vmatprep.subr.mxu0 0.0
      %3342 = vmatpush1.msra.mxu0 0.0
      %3343 = vmatprep.subr.mxu0 0.0
      %3344 = vmatpush1.msra.mxu0 0.0
      %3345 = vmatprep.subr.mxu0 0.0
      %3346 = vmatpush1.msra.mxu0 0.0
      %3347 = vmatprep.subr.mxu0 0.0
      %3348 = vmatpush1.msra.mxu0 0.0
      %3349 = vmatprep.subr.mxu0 0.0
      %3350 = vmatpush1.msra.mxu0 0.0
      %3351 = vmatprep.subr.mxu0 0.0
      %3352 = vmatpush1.msra.mxu0 0.0
      %3353 = vmatprep.subr.mxu0 0.0
      %3354 = vmatpush1.msra.mxu0 0.0
      %3355 = vmatprep.subr.mxu0 0.0
      %3356 = vmatpush1.msra.mxu0 0.0
      %3357 = vmatprep.mubr.f32.mxu0 0.0
      %3358 = vmatmul.mubr.f32.gmra.mrb[0].mxu0 %v3266
      %v3359 = vpop.f32.mrb[0].mxu0
      %v3360 = vadd.f32 %v3291, %v3359
      %v3361 = vpop.f32.mrb[0].mxu0
      %3362 = vdwg.mxu0
      %3363 = vmatprep.subr.mxu0 0.0
      %3364 = vmatpush1.msra.mxu0 %v3270
      %3365 = vmatprep.subr.mxu0 0.0
      %3366 = vmatpush1.msra.mxu0 %v3271
      %3367 = vmatprep.subr.mxu0 0.0
      %3368 = vmatpush1.msra.mxu0 %v3272
      %3369 = vmatprep.subr.mxu0 0.0
      %3370 = vmatpush1.msra.mxu0 %v3273
      %3371 = vmatprep.subr.mxu0 0.0
      %3372 = vmatpush1.msra.mxu0 %v3274
      %3373 = vmatprep.subr.mxu0 0.0
      %3374 = vmatpush1.msra.mxu0 %v3275
      %3375 = vmatprep.subr.mxu0 0.0
      %3376 = vmatpush1.msra.mxu0 %v3276
      %3377 = vmatprep.subr.mxu0 0.0
      %3378 = vmatpush1.msra.mxu0 %v3277
      %3379 = vmatprep.subr.mxu0 0.0
      %3380 = vmatpush1.msra.mxu0 %v3278
      %3381 = vmatprep.subr.mxu0 0.0
      %3382 = vmatpush1.msra.mxu0 %v3279
      %3383 = vmatprep.subr.mxu0 0.0
      %3384 = vmatpush1.msra.mxu0 %v3280
      %3385 = vmatprep.subr.mxu0 0.0
      %3386 = vmatpush1.msra.mxu0 %v3281
      %3387 = vmatprep.subr.mxu0 0.0
      %3388 = vmatpush1.msra.mxu0 %v3282
      %3389 = vmatprep.subr.mxu0 0.0
      %3390 = vmatpush1.msra.mxu0 %v3283
      %3391 = vmatprep.subr.mxu0 0.0
      %3392 = vmatpush1.msra.mxu0 %v3284
      %3393 = vmatprep.subr.mxu0 0.0
      %3394 = vmatpush1.msra.mxu0 %v3285
      %3395 = vmatprep.subr.mxu0 0.0
      %3396 = vmatpush1.msra.mxu0 0.0
      %3397 = vmatprep.subr.mxu0 0.0
      %3398 = vmatpush1.msra.mxu0 0.0
      %3399 = vmatprep.subr.mxu0 0.0
      %3400 = vmatpush1.msra.mxu0 0.0
      %3401 = vmatprep.subr.mxu0 0.0
      %3402 = vmatpush1.msra.mxu0 0.0
      %3403 = vmatprep.subr.mxu0 0.0
      %3404 = vmatpush1.msra.mxu0 0.0
      %3405 = vmatprep.subr.mxu0 0.0
      %3406 = vmatpush1.msra.mxu0 0.0
      %3407 = vmatprep.subr.mxu0 0.0
      %3408 = vmatpush1.msra.mxu0 0.0
      %3409 = vmatprep.subr.mxu0 0.0
      %3410 = vmatpush1.msra.mxu0 0.0
      %3411 = vmatprep.subr.mxu0 0.0
      %3412 = vmatpush1.msra.mxu0 0.0
      %3413 = vmatprep.subr.mxu0 0.0
      %3414 = vmatpush1.msra.mxu0 0.0
      %3415 = vmatprep.subr.mxu0 0.0
      %3416 = vmatpush1.msra.mxu0 0.0
      %3417 = vmatprep.subr.mxu0 0.0
      %3418 = vmatpush1.msra.mxu0 0.0
      %3419 = vmatprep.subr.mxu0 0.0
      %3420 = vmatpush1.msra.mxu0 0.0
      %3421 = vmatprep.subr.mxu0 0.0
      %3422 = vmatpush1.msra.mxu0 0.0
      %3423 = vmatprep.subr.mxu0 0.0
      %3424 = vmatpush1.msra.mxu0 0.0
      %3425 = vmatprep.subr.mxu0 0.0
      %3426 = vmatpush1.msra.mxu0 0.0
      %3427 = vmatprep.mubr.f32.mxu0 0.0
      %3428 = vmatmul.mubr.f32.gmra.mrb[0].mxu0 %v3267
      %v3429 = vpop.f32.mrb[0].mxu0
      %v3430 = vadd.f32 %v3291, %v3429
      %v3431 = vpop.f32.mrb[0].mxu0
      %3432 = vdwg.mxu0
      %3433 = vmatprep.subr.mxu0 0.0
      %3434 = vmatpush1.msra.mxu0 %v3270
      %3435 = vmatprep.subr.mxu0 0.0
      %3436 = vmatpush1.msra.mxu0 %v3271
      %3437 = vmatprep.subr.mxu0 0.0
      %3438 = vmatpush1.msra.mxu0 %v3272
      %3439 = vmatprep.subr.mxu0 0.0
      %3440 = vmatpush1.msra.mxu0 %v3273
      %3441 = vmatprep.subr.mxu0 0.0
      %3442 = vmatpush1.msra.mxu0 %v3274
      %3443 = vmatprep.subr.mxu0 0.0
      %3444 = vmatpush1.msra.mxu0 %v3275
      %3445 = vmatprep.subr.mxu0 0.0
      %3446 = vmatpush1.msra.mxu0 %v3276
      %3447 = vmatprep.subr.mxu0 0.0
      %3448 = vmatpush1.msra.mxu0 %v3277
      %3449 = vmatprep.subr.mxu0 0.0
      %3450 = vmatpush1.msra.mxu0 %v3278
      %3451 = vmatprep.subr.mxu0 0.0
      %3452 = vmatpush1.msra.mxu0 %v3279
      %3453 = vmatprep.subr.mxu0 0.0
      %3454 = vmatpush1.msra.mxu0 %v3280
      %3455 = vmatprep.subr.mxu0 0.0
      %3456 = vmatpush1.msra.mxu0 %v3281
      %3457 = vmatprep.subr.mxu0 0.0
      %3458 = vmatpush1.msra.mxu0 %v3282
      %3459 = vmatprep.subr.mxu0 0.0
      %3460 = vmatpush1.msra.mxu0 %v3283
      %3461 = vmatprep.subr.mxu0 0.0
      %3462 = vmatpush1.msra.mxu0 %v3284
      %3463 = vmatprep.subr.mxu0 0.0
      %3464 = vmatpush1.msra.mxu0 %v3285
      %3465 = vmatprep.subr.mxu0 0.0
      %3466 = vmatpush1.msra.mxu0 0.0
      %3467 = vmatprep.subr.mxu0 0.0
      %3468 = vmatpush1.msra.mxu0 0.0
      %3469 = vmatprep.subr.mxu0 0.0
      %3470 = vmatpush1.msra.mxu0 0.0
      %3471 = vmatprep.subr.mxu0 0.0
      %3472 = vmatpush1.msra.mxu0 0.0
      %3473 = vmatprep.subr.mxu0 0.0
      %3474 = vmatpush1.msra.mxu0 0.0
      %3475 = vmatprep.subr.mxu0 0.0
      %3476 = vmatpush1.msra.mxu0 0.0
      %3477 = vmatprep.subr.mxu0 0.0
      %3478 = vmatpush1.msra.mxu0 0.0
      %3479 = vmatprep.subr.mxu0 0.0
      %3480 = vmatpush1.msra.mxu0 0.0
      %3481 = vmatprep.subr.mxu0 0.0
      %3482 = vmatpush1.msra.mxu0 0.0
      %3483 = vmatprep.subr.mxu0 0.0
      %3484 = vmatpush1.msra.mxu0 0.0
      %3485 = vmatprep.subr.mxu0 0.0
      %3486 = vmatpush1.msra.mxu0 0.0
      %3487 = vmatprep.subr.mxu0 0.0
      %3488 = vmatpush1.msra.mxu0 0.0
      %3489 = vmatprep.subr.mxu0 0.0
      %3490 = vmatpush1.msra.mxu0 0.0
      %3491 = vmatprep.subr.mxu0 0.0
      %3492 = vmatpush1.msra.mxu0 0.0
      %3493 = vmatprep.subr.mxu0 0.0
      %3494 = vmatpush1.msra.mxu0 0.0
      %3495 = vmatprep.subr.mxu0 0.0
      %3496 = vmatpush1.msra.mxu0 0.0
      %3497 = vmatprep.mubr.f32.mxu0 0.0
      %3498 = vmatmul.mubr.f32.gmra.mrb[0].mxu0 %v3268
      %v3499 = vpop.f32.mrb[0].mxu0
      %v3500 = vadd.f32 %v3291, %v3499
      %v3501 = vpop.f32.mrb[0].mxu0
      %3502 = vdwg.mxu0
      %3503 = vmatprep.subr.mxu0 0.0
      %3504 = vmatpush1.msra.mxu0 %v3270
      %3505 = vmatprep.subr.mxu0 0.0
      %3506 = vmatpush1.msra.mxu0 %v3271
      %3507 = vmatprep.subr.mxu0 0.0
      %3508 = vmatpush1.msra.mxu0 %v3272
      %3509 = vmatprep.subr.mxu0 0.0
      %3510 = vmatpush1.msra.mxu0 %v3273
      %3511 = vmatprep.subr.mxu0 0.0
      %3512 = vmatpush1.msra.mxu0 %v3274
      %3513 = vmatprep.subr.mxu0 0.0
      %3514 = vmatpush1.msra.mxu0 %v3275
      %3515 = vmatprep.subr.mxu0 0.0
      %3516 = vmatpush1.msra.mxu0 %v3276
      %3517 = vmatprep.subr.mxu0 0.0
      %3518 = vmatpush1.msra.mxu0 %v3277
      %3519 = vmatprep.subr.mxu0 0.0
      %3520 = vmatpush1.msra.mxu0 %v3278
      %3521 = vmatprep.subr.mxu0 0.0
      %3522 = vmatpush1.msra.mxu0 %v3279
      %3523 = vmatprep.subr.mxu0 0.0
      %3524 = vmatpush1.msra.mxu0 %v3280
      %3525 = vmatprep.subr.mxu0 0.0
      %3526 = vmatpush1.msra.mxu0 %v3281
      %3527 = vmatprep.subr.mxu0 0.0
      %3528 = vmatpush1.msra.mxu0 %v3282
      %3529 = vmatprep.subr.mxu0 0.0
      %3530 = vmatpush1.msra.mxu0 %v3283
      %3531 = vmatprep.subr.mxu0 0.0
      %3532 = vmatpush1.msra.mxu0 %v3284
      %3533 = vmatprep.subr.mxu0 0.0
      %3534 = vmatpush1.msra.mxu0 %v3285
      %3535 = vmatprep.subr.mxu0 0.0
      %3536 = vmatpush1.msra.mxu0 0.0
      %3537 = vmatprep.subr.mxu0 0.0
      %3538 = vmatpush1.msra.mxu0 0.0
      %3539 = vmatprep.subr.mxu0 0.0
      %3540 = vmatpush1.msra.mxu0 0.0
      %3541 = vmatprep.subr.mxu0 0.0
      %3542 = vmatpush1.msra.mxu0 0.0
      %3543 = vmatprep.subr.mxu0 0.0
      %3544 = vmatpush1.msra.mxu0 0.0
      %3545 = vmatprep.subr.mxu0 0.0
      %3546 = vmatpush1.msra.mxu0 0.0
      %3547 = vmatprep.subr.mxu0 0.0
      %3548 = vmatpush1.msra.mxu0 0.0
      %3549 = vmatprep.subr.mxu0 0.0
      %3550 = vmatpush1.msra.mxu0 0.0
      %3551 = vmatprep.subr.mxu0 0.0
      %3552 = vmatpush1.msra.mxu0 0.0
      %3553 = vmatprep.subr.mxu0 0.0
      %3554 = vmatpush1.msra.mxu0 0.0
      %3555 = vmatprep.subr.mxu0 0.0
      %3556 = vmatpush1.msra.mxu0 0.0
      %3557 = vmatprep.subr.mxu0 0.0
      %3558 = vmatpush1.msra.mxu0 0.0
      %3559 = vmatprep.subr.mxu0 0.0
      %3560 = vmatpush1.msra.mxu0 0.0
      %3561 = vmatprep.subr.mxu0 0.0
      %3562 = vmatpush1.msra.mxu0 0.0
      %3563 = vmatprep.subr.mxu0 0.0
      %3564 = vmatpush1.msra.mxu0 0.0
      %3565 = vmatprep.subr.mxu0 0.0
      %3566 = vmatpush1.msra.mxu0 0.0
      %3567 = vmatprep.mubr.f32.mxu0 0.0
      %3568 = vmatmul.mubr.f32.gmra.mrb[0].mxu0 %v3269
      %v3569 = vpop.f32.mrb[0].mxu0
      %v3570 = vadd.f32 %v3291, %v3569
      %v3571 = vpop.f32.mrb[0].mxu0
      %3572 = vdwg.mxu0
      %v3573 = vadd.f32 %v2853, %v3360
      %v3574 = vadd.f32 %v2854, %v3430
      %v3575 = vadd.f32 %v2855, %v3500
      %v3576 = vadd.f32 %v2856, %v3570
      %3577 = vst.msk [vmem:[%s518] sm:$0xf] %vm526, %v3573
      %3578 = vst.msk [vmem:[%s518 + $0x4] sm:$0xf] %vm526, %v3574
      %3579 = vst.msk [vmem:[%s518 + $0x8] sm:$0xf] %vm526, %v3575
      %3580 = vst.msk [vmem:[%s518 + $0xc] sm:$0xf] %vm526, %v3576
      %s3581 = smul.u32 4, %s26
      %p3582 = scmp.lt.s32.totalorder %s3581, 7
      %s3583 = scalar_select %p3582, %s3581, 7
      %s3584 = smul.addr %s3583, 4
      %s3585 = scalar_lea.vmem %s15, %s3584
      // Predicated region
      $region81: #{swin_forward.9} parent=79 // pred_check
        %p3586 = pneg %p369
      $region82: #{swin_forward.9} parent=79 // pred_check_branch
        %3588 = sbr.rel (%p3586) target = $region84
      $region83: #{swin_forward.9} parent=79 // pred_region
        %s3589 = smul.u32 4, %s26
      $region84: #{swin_forward.9} parent=79 // pred_fallthru
        _
    $region80: #{swin_forward.9} parent=5 // pred_fallthru
      _
    %p3590 = scmp.le.s32.totalorder 2, %s21
    // Predicated region
    $region85: #{swin_forward.9} parent=5 // pred_check
      %p3591 = pneg %p3590
    $region86: #{swin_forward.9} parent=5 // pred_check_branch
      %3593 = sbr.rel (%p3591) target = $region88
    $region87: #{swin_forward.9} parent=5 // pred_region
      %s3594 = ssub.s32 %s21, 2
      // Predicated region
      $region89: #{swin_forward.9} parent=87 // pred_check
        %p3595 = pneg %p375
      $region90: #{swin_forward.9} parent=87 // pred_check_branch
        %3597 = sbr.rel (%p3595) target = $region92
      $region91: #{swin_forward.9} parent=87 // pred_region
        %s3598 = smul.u32 4, %s27
        %p3599 = scmp.lt.s32.totalorder %s3598, 7
        %s3600 = scalar_select %p3599, %s3598, 7
        %s3601 = smul.addr %s3600, 4
        %s3602 = scalar_lea.vmem %s15, %s3601
      $region92: #{swin_forward.9} parent=87 // pred_fallthru
        _
    $region88: #{swin_forward.9} parent=5 // pred_fallthru
      _
  $region6: #{swin_forward.9} parent=0 // loop_footer
    %s25 = sadd.s32 1, %s21
  $region7: #{swin_forward.9} parent=0 // loop_footer_branch
    %20 = sbr.rel target = $region3
  $region8: #{swin_forward.9} parent=0 // loop_exit
    _

// kernel: swin_forward.8
$region0: #{swin_forward.8}
  #allocation0 [shape = 'u32[]', space=smem, size = 0x4, offset = 0x4, fixed_abs, tag = 'smem constant byte address 0x4 - core index']
  #allocation1 [shape = 'u32[144,128]{1,0:T(1,128)}', space=vmem, size = 0x12000, scoped, tag = 'internal scratch']
  %s0 = inlined_call_operand.vmem [shape: f32[8,4,32], index: 0, kind: input, shape index: {}]
  %s1 = inlined_call_operand.vmem [shape: f32[1,1,32], index: 1, kind: input, shape index: {}]
  %s2 = inlined_call_operand.vmem [shape: f32[1,1,32], index: 2, kind: input, shape index: {}]
  %s3 = inlined_call_operand.vmem [shape: f32[1,32,96], index: 3, kind: input, shape index: {}]
  %s4 = inlined_call_operand.vmem [shape: f32[1,1,96], index: 4, kind: input, shape index: {}]
  %s5 = inlined_call_operand.vmem [shape: f32[2,4,4], index: 5, kind: input, shape index: {}]
  %s6 = inlined_call_operand.vmem [shape: f32[1,32,32], index: 6, kind: input, shape index: {}]
  %s7 = inlined_call_operand.vmem [shape: f32[1,1,32], index: 7, kind: input, shape index: {}]
  %s8 = inlined_call_operand.vmem [shape: f32[1,1,32], index: 8, kind: input, shape index: {}]
  %s9 = inlined_call_operand.vmem [shape: f32[1,1,32], index: 9, kind: input, shape index: {}]
  %s10 = inlined_call_operand.vmem [shape: f32[1,32,128], index: 10, kind: input, shape index: {}]
  %s11 = inlined_call_operand.vmem [shape: f32[1,1,128], index: 11, kind: input, shape index: {}]
  %s12 = inlined_call_operand.vmem [shape: f32[1,128,32], index: 12, kind: input, shape index: {}]
  %s13 = inlined_call_operand.vmem [shape: f32[1,1,32], index: 13, kind: input, shape index: {}]
  %s14 = inlined_call_operand.vmem [shape: f32[8,4,32], index: 14, kind: output, shape index: {}]
  %s15 = sld [smem:[#allocation0]]
  $region89: #{swin_forward.8} parent=0
    _
  %s17 = ssub.s32 1, %s15
  %s18 = scalar_select 0, %s17, %s15
  loop: start=0, step=1, limit=4
  $region2: #{swin_forward.8} parent=0 // loop_pre_header
    _
  $region3: #{swin_forward.8} parent=0 // loop_header
    %s20 = sphi 0, %s24
    %p21 = scmp.ge.s32.totalorder %s20, 4
    %s30 = sphi 0, %s32
    %s33 = sphi 0, %s30
    %s34 = sphi 0, %s33
    %s50 = sphi 0, %s34
    %s54 = sphi 0, %s54
    %s56 = sphi 0, %s54
    %s57 = sphi 0, %s56
    %s71 = sphi 0, %s57
    %s75 = sphi 0, %s75
    %s77 = sphi 0, %s75
    %s78 = sphi 0, %s77
    %s92 = sphi 0, %s78
    %s96 = sphi 0, %s96
    %s98 = sphi 0, %s96
    %s99 = sphi 0, %s98
    %s113 = sphi 0, %s99
    %s117 = sphi 0, %s117
    %s119 = sphi 0, %s117
    %s120 = sphi 0, %s119
    %s134 = sphi 0, %s120
    %s138 = sphi 0, %s138
    %s140 = sphi 0, %s138
    %s141 = sphi 0, %s140
    %s155 = sphi 0, %s141
    %s159 = sphi 0, %s159
    %s161 = sphi 0, %s159
    %s162 = sphi 0, %s161
    %s176 = sphi 0, %s162
    %s180 = sphi 0, %s180
    %s182 = sphi 0, %s180
    %s183 = sphi 0, %s182
    %s197 = sphi 0, %s183
    %s201 = sphi 0, %s201
    %s203 = sphi 0, %s201
    %s204 = sphi 0, %s203
    %s218 = sphi 0, %s204
    %s222 = sphi 0, %s222
    %s224 = sphi 0, %s222
    %s225 = sphi 0, %s224
    %s239 = sphi 0, %s225
    %s243 = sphi 0, %s243
    %s245 = sphi 0, %s243
    %s246 = sphi 0, %s245
    %s260 = sphi 0, %s246
    %s264 = sphi 0, %s264
    %s266 = sphi 0, %s264
    %s267 = sphi 0, %s266
    %s281 = sphi 0, %s267
    %s285 = sphi 0, %s285
    %s287 = sphi 0, %s285
    %s288 = sphi 0, %s287
    %s302 = sphi 0, %s288
    %s306 = sphi 0, %s306
    %s308 = sphi 0, %s306
    %s309 = sphi 0, %s308
    %s323 = sphi 0, %s309
    %s329 = sphi 0, %s331
    %s332 = sphi 0, %s329
    %s333 = sphi 0, %s332
    %s349 = sphi 0, %s333
  $region4: #{swin_forward.8} parent=0 // loop_header_branch
    %23 = sbr.rel (%p21) target = $region8
  $region5: #{swin_forward.8} parent=0 // loop_body
    %s25 = ssub.s32 %s20, 1
    %s26 = ssub.s32 %s20, 2
    %s27 = sadd.s32 %s20, 1
    %s28 = ssub.s32 %s20, %s27
    %p29 = scmp.eq.s32.totalorder %s28, 0
    %s31 = sadd.s32 %s30, 1
    %s32 = scalar_select %p29, %s30, %s31
    %p35 = pneg %p29
    %p36 = scmp.eq.s32.totalorder %s20, 1
    %p37 = por %p35, %p36
    %p38 = scmp.ne.s32.totalorder %s30, %s33
    %p39 = scmp.eq.s32.totalorder %s20, 0
    %p40 = por %p38, %p39
    %p41 = scmp.ne.s32.totalorder %s30, %s33
    %p42 = scmp.eq.s32.totalorder %s25, 1
    %p43 = por %p41, %p42
    %p44 = scmp.ne.s32.totalorder %s33, %s34
    %p45 = scmp.eq.s32.totalorder %s25, 0
    %p46 = por %p44, %p45
    %p47 = scmp.ne.s32.totalorder %s33, %s34
    %p48 = scmp.eq.s32.totalorder %s26, 1
    %p49 = por %p47, %p48
    %p51 = scmp.ne.s32.totalorder %s34, %s50
    %p52 = scmp.eq.s32.totalorder %s26, 0
    %p53 = por %p51, %p52
    %s55 = sadd.s32 %s54, 1
    %p58 = scmp.eq.s32.totalorder %s20, 1
    %p59 = scmp.ne.s32.totalorder %s54, %s56
    %p60 = scmp.eq.s32.totalorder %s20, 0
    %p61 = por %p59, %p60
    %p62 = scmp.ne.s32.totalorder %s54, %s56
    %p63 = scmp.eq.s32.totalorder %s25, 1
    %p64 = por %p62, %p63
    %p65 = scmp.ne.s32.totalorder %s56, %s57
    %p66 = scmp.eq.s32.totalorder %s25, 0
    %p67 = por %p65, %p66
    %p68 = scmp.ne.s32.totalorder %s56, %s57
    %p69 = scmp.eq.s32.totalorder %s26, 1
    %p70 = por %p68, %p69
    %p72 = scmp.ne.s32.totalorder %s57, %s71
    %p73 = scmp.eq.s32.totalorder %s26, 0
    %p74 = por %p72, %p73
    %s76 = sadd.s32 %s75, 1
    %p79 = scmp.eq.s32.totalorder %s20, 1
    %p80 = scmp.ne.s32.totalorder %s75, %s77
    %p81 = scmp.eq.s32.totalorder %s20, 0
    %p82 = por %p80, %p81
    %p83 = scmp.ne.s32.totalorder %s75, %s77
    %p84 = scmp.eq.s32.totalorder %s25, 1
    %p85 = por %p83, %p84
    %p86 = scmp.ne.s32.totalorder %s77, %s78
    %p87 = scmp.eq.s32.totalorder %s25, 0
    %p88 = por %p86, %p87
    %p89 = scmp.ne.s32.totalorder %s77, %s78
    %p90 = scmp.eq.s32.totalorder %s26, 1
    %p91 = por %p89, %p90
    %p93 = scmp.ne.s32.totalorder %s78, %s92
    %p94 = scmp.eq.s32.totalorder %s26, 0
    %p95 = por %p93, %p94
    %s97 = sadd.s32 %s96, 1
    %p100 = scmp.eq.s32.totalorder %s20, 1
    %p101 = scmp.ne.s32.totalorder %s96, %s98
    %p102 = scmp.eq.s32.totalorder %s20, 0
    %p103 = por %p101, %p102
    %p104 = scmp.ne.s32.totalorder %s96, %s98
    %p105 = scmp.eq.s32.totalorder %s25, 1
    %p106 = por %p104, %p105
    %p107 = scmp.ne.s32.totalorder %s98, %s99
    %p108 = scmp.eq.s32.totalorder %s25, 0
    %p109 = por %p107, %p108
    %p110 = scmp.ne.s32.totalorder %s98, %s99
    %p111 = scmp.eq.s32.totalorder %s26, 1
    %p112 = por %p110, %p111
    %p114 = scmp.ne.s32.totalorder %s99, %s113
    %p115 = scmp.eq.s32.totalorder %s26, 0
    %p116 = por %p114, %p115
    %s118 = sadd.s32 %s117, 1
    %p121 = scmp.eq.s32.totalorder %s20, 1
    %p122 = scmp.ne.s32.totalorder %s117, %s119
    %p123 = scmp.eq.s32.totalorder %s20, 0
    %p124 = por %p122, %p123
    %p125 = scmp.ne.s32.totalorder %s117, %s119
    %p126 = scmp.eq.s32.totalorder %s25, 1
    %p127 = por %p125, %p126
    %p128 = scmp.ne.s32.totalorder %s119, %s120
    %p129 = scmp.eq.s32.totalorder %s25, 0
    %p130 = por %p128, %p129
    %p131 = scmp.ne.s32.totalorder %s119, %s120
    %p132 = scmp.eq.s32.totalorder %s26, 1
    %p133 = por %p131, %p132
    %p135 = scmp.ne.s32.totalorder %s120, %s134
    %p136 = scmp.eq.s32.totalorder %s26, 0
    %p137 = por %p135, %p136
    %s139 = sadd.s32 %s138, 1
    %p142 = scmp.eq.s32.totalorder %s20, 1
    %p143 = scmp.ne.s32.totalorder %s138, %s140
    %p144 = scmp.eq.s32.totalorder %s20, 0
    %p145 = por %p143, %p144
    %p146 = scmp.ne.s32.totalorder %s138, %s140
    %p147 = scmp.eq.s32.totalorder %s25, 1
    %p148 = por %p146, %p147
    %p149 = scmp.ne.s32.totalorder %s140, %s141
    %p150 = scmp.eq.s32.totalorder %s25, 0
    %p151 = por %p149, %p150
    %p152 = scmp.ne.s32.totalorder %s140, %s141
    %p153 = scmp.eq.s32.totalorder %s26, 1
    %p154 = por %p152, %p153
    %p156 = scmp.ne.s32.totalorder %s141, %s155
    %p157 = scmp.eq.s32.totalorder %s26, 0
    %p158 = por %p156, %p157
    %s160 = sadd.s32 %s159, 1
    %p163 = scmp.eq.s32.totalorder %s20, 1
    %p164 = scmp.ne.s32.totalorder %s159, %s161
    %p165 = scmp.eq.s32.totalorder %s20, 0
    %p166 = por %p164, %p165
    %p167 = scmp.ne.s32.totalorder %s159, %s161
    %p168 = scmp.eq.s32.totalorder %s25, 1
    %p169 = por %p167, %p168
    %p170 = scmp.ne.s32.totalorder %s161, %s162
    %p171 = scmp.eq.s32.totalorder %s25, 0
    %p172 = por %p170, %p171
    %p173 = scmp.ne.s32.totalorder %s161, %s162
    %p174 = scmp.eq.s32.totalorder %s26, 1
    %p175 = por %p173, %p174
    %p177 = scmp.ne.s32.totalorder %s162, %s176
    %p178 = scmp.eq.s32.totalorder %s26, 0
    %p179 = por %p177, %p178
    %s181 = sadd.s32 %s180, 1
    %p184 = scmp.eq.s32.totalorder %s20, 1
    %p185 = scmp.ne.s32.totalorder %s180, %s182
    %p186 = scmp.eq.s32.totalorder %s20, 0
    %p187 = por %p185, %p186
    %p188 = scmp.ne.s32.totalorder %s180, %s182
    %p189 = scmp.eq.s32.totalorder %s25, 1
    %p190 = por %p188, %p189
    %p191 = scmp.ne.s32.totalorder %s182, %s183
    %p192 = scmp.eq.s32.totalorder %s25, 0
    %p193 = por %p191, %p192
    %p194 = scmp.ne.s32.totalorder %s182, %s183
    %p195 = scmp.eq.s32.totalorder %s26, 1
    %p196 = por %p194, %p195
    %p198 = scmp.ne.s32.totalorder %s183, %s197
    %p199 = scmp.eq.s32.totalorder %s26, 0
    %p200 = por %p198, %p199
    %s202 = sadd.s32 %s201, 1
    %p205 = scmp.eq.s32.totalorder %s20, 1
    %p206 = scmp.ne.s32.totalorder %s201, %s203
    %p207 = scmp.eq.s32.totalorder %s20, 0
    %p208 = por %p206, %p207
    %p209 = scmp.ne.s32.totalorder %s201, %s203
    %p210 = scmp.eq.s32.totalorder %s25, 1
    %p211 = por %p209, %p210
    %p212 = scmp.ne.s32.totalorder %s203, %s204
    %p213 = scmp.eq.s32.totalorder %s25, 0
    %p214 = por %p212, %p213
    %p215 = scmp.ne.s32.totalorder %s203, %s204
    %p216 = scmp.eq.s32.totalorder %s26, 1
    %p217 = por %p215, %p216
    %p219 = scmp.ne.s32.totalorder %s204, %s218
    %p220 = scmp.eq.s32.totalorder %s26, 0
    %p221 = por %p219, %p220
    %s223 = sadd.s32 %s222, 1
    %p226 = scmp.eq.s32.totalorder %s20, 1
    %p227 = scmp.ne.s32.totalorder %s222, %s224
    %p228 = scmp.eq.s32.totalorder %s20, 0
    %p229 = por %p227, %p228
    %p230 = scmp.ne.s32.totalorder %s222, %s224
    %p231 = scmp.eq.s32.totalorder %s25, 1
    %p232 = por %p230, %p231
    %p233 = scmp.ne.s32.totalorder %s224, %s225
    %p234 = scmp.eq.s32.totalorder %s25, 0
    %p235 = por %p233, %p234
    %p236 = scmp.ne.s32.totalorder %s224, %s225
    %p237 = scmp.eq.s32.totalorder %s26, 1
    %p238 = por %p236, %p237
    %p240 = scmp.ne.s32.totalorder %s225, %s239
    %p241 = scmp.eq.s32.totalorder %s26, 0
    %p242 = por %p240, %p241
    %s244 = sadd.s32 %s243, 1
    %p247 = scmp.eq.s32.totalorder %s20, 1
    %p248 = scmp.ne.s32.totalorder %s243, %s245
    %p249 = scmp.eq.s32.totalorder %s20, 0
    %p250 = por %p248, %p249
    %p251 = scmp.ne.s32.totalorder %s243, %s245
    %p252 = scmp.eq.s32.totalorder %s25, 1
    %p253 = por %p251, %p252
    %p254 = scmp.ne.s32.totalorder %s245, %s246
    %p255 = scmp.eq.s32.totalorder %s25, 0
    %p256 = por %p254, %p255
    %p257 = scmp.ne.s32.totalorder %s245, %s246
    %p258 = scmp.eq.s32.totalorder %s26, 1
    %p259 = por %p257, %p258
    %p261 = scmp.ne.s32.totalorder %s246, %s260
    %p262 = scmp.eq.s32.totalorder %s26, 0
    %p263 = por %p261, %p262
    %s265 = sadd.s32 %s264, 1
    %p268 = scmp.eq.s32.totalorder %s20, 1
    %p269 = scmp.ne.s32.totalorder %s264, %s266
    %p270 = scmp.eq.s32.totalorder %s20, 0
    %p271 = por %p269, %p270
    %p272 = scmp.ne.s32.totalorder %s264, %s266
    %p273 = scmp.eq.s32.totalorder %s25, 1
    %p274 = por %p272, %p273
    %p275 = scmp.ne.s32.totalorder %s266, %s267
    %p276 = scmp.eq.s32.totalorder %s25, 0
    %p277 = por %p275, %p276
    %p278 = scmp.ne.s32.totalorder %s266, %s267
    %p279 = scmp.eq.s32.totalorder %s26, 1
    %p280 = por %p278, %p279
    %p282 = scmp.ne.s32.totalorder %s267, %s281
    %p283 = scmp.eq.s32.totalorder %s26, 0
    %p284 = por %p282, %p283
    %s286 = sadd.s32 %s285, 1
    %p289 = scmp.eq.s32.totalorder %s20, 1
    %p290 = scmp.ne.s32.totalorder %s285, %s287
    %p291 = scmp.eq.s32.totalorder %s20, 0
    %p292 = por %p290, %p291
    %p293 = scmp.ne.s32.totalorder %s285, %s287
    %p294 = scmp.eq.s32.totalorder %s25, 1
    %p295 = por %p293, %p294
    %p296 = scmp.ne.s32.totalorder %s287, %s288
    %p297 = scmp.eq.s32.totalorder %s25, 0
    %p298 = por %p296, %p297
    %p299 = scmp.ne.s32.totalorder %s287, %s288
    %p300 = scmp.eq.s32.totalorder %s26, 1
    %p301 = por %p299, %p300
    %p303 = scmp.ne.s32.totalorder %s288, %s302
    %p304 = scmp.eq.s32.totalorder %s26, 0
    %p305 = por %p303, %p304
    %s307 = sadd.s32 %s306, 1
    %p310 = scmp.eq.s32.totalorder %s20, 1
    %p311 = scmp.ne.s32.totalorder %s306, %s308
    %p312 = scmp.eq.s32.totalorder %s20, 0
    %p313 = por %p311, %p312
    %p314 = scmp.ne.s32.totalorder %s306, %s308
    %p315 = scmp.eq.s32.totalorder %s25, 1
    %p316 = por %p314, %p315
    %p317 = scmp.ne.s32.totalorder %s308, %s309
    %p318 = scmp.eq.s32.totalorder %s25, 0
    %p319 = por %p317, %p318
    %p320 = scmp.ne.s32.totalorder %s308, %s309
    %p321 = scmp.eq.s32.totalorder %s26, 1
    %p322 = por %p320, %p321
    %p324 = scmp.ne.s32.totalorder %s309, %s323
    %p325 = scmp.eq.s32.totalorder %s26, 0
    %p326 = por %p324, %p325
    %s327 = ssub.s32 %s20, %s27
    %p328 = scmp.eq.s32.totalorder %s327, 0
    %s330 = sadd.s32 %s329, 1
    %s331 = scalar_select %p328, %s329, %s330
    %p334 = pneg %p328
    %p335 = scmp.eq.s32.totalorder %s20, 1
    %p336 = por %p334, %p335
    %p337 = scmp.ne.s32.totalorder %s329, %s332
    %p338 = scmp.eq.s32.totalorder %s20, 0
    %p339 = por %p337, %p338
    %p340 = scmp.ne.s32.totalorder %s329, %s332
    %p341 = scmp.eq.s32.totalorder %s25, 1
    %p342 = por %p340, %p341
    %p343 = scmp.ne.s32.totalorder %s332, %s333
    %p344 = scmp.eq.s32.totalorder %s25, 0
    %p345 = por %p343, %p344
    %p346 = scmp.ne.s32.totalorder %s332, %s333
    %p347 = scmp.eq.s32.totalorder %s26, 1
    %p348 = por %p346, %p347
    %p350 = scmp.ne.s32.totalorder %s333, %s349
    %p351 = scmp.eq.s32.totalorder %s26, 0
    %p352 = por %p350, %p351
    %p353 = scmp.le.s32.totalorder 1, %s20
    %p354 = scmp.lt.s32.totalorder %s20, 3
    %p355 = pnand %p353, %p354
    %p356 = pneg %p355
    // Predicated region
    $region9: #{swin_forward.8} parent=5 // pred_check
      _
    $region10: #{swin_forward.8} parent=5 // pred_check_branch
      %358 = sbr.rel (%p355) target = $region12
    $region11: #{swin_forward.8} parent=5 // pred_region
      %s359 = ssub.s32 %s20, 1
      // Predicated region
      $region13: #{swin_forward.8} parent=11 // pred_check
        %p360 = pneg %p67
      $region14: #{swin_forward.8} parent=11 // pred_check_branch
        %362 = sbr.rel (%p360) target = $region16
      $region15: #{swin_forward.8} parent=11 // pred_region
        _
      $region16: #{swin_forward.8} parent=11 // pred_fallthru
        _
      // Predicated region
      $region17: #{swin_forward.8} parent=11 // pred_check
        %p363 = pneg %p88
      $region18: #{swin_forward.8} parent=11 // pred_check_branch
        %365 = sbr.rel (%p363) target = $region20
      $region19: #{swin_forward.8} parent=11 // pred_region
        _
      $region20: #{swin_forward.8} parent=11 // pred_fallthru
        _
      // Predicated region
      $region21: #{swin_forward.8} parent=11 // pred_check
        %p366 = pneg %p109
      $region22: #{swin_forward.8} parent=11 // pred_check_branch
        %368 = sbr.rel (%p366) target = $region24
      $region23: #{swin_forward.8} parent=11 // pred_region
        _
      $region24: #{swin_forward.8} parent=11 // pred_fallthru
        _
      // Predicated region
      $region25: #{swin_forward.8} parent=11 // pred_check
        %p369 = pneg %p130
      $region26: #{swin_forward.8} parent=11 // pred_check_branch
        %371 = sbr.rel (%p369) target = $region28
      $region27: #{swin_forward.8} parent=11 // pred_region
        _
      $region28: #{swin_forward.8} parent=11 // pred_fallthru
        _
      // Predicated region
      $region29: #{swin_forward.8} parent=11 // pred_check
        %p372 = pneg %p151
      $region30: #{swin_forward.8} parent=11 // pred_check_branch
        %374 = sbr.rel (%p372) target = $region32
      $region31: #{swin_forward.8} parent=11 // pred_region
        _
      $region32: #{swin_forward.8} parent=11 // pred_fallthru
        _
      // Predicated region
      $region33: #{swin_forward.8} parent=11 // pred_check
        %p375 = pneg %p172
      $region34: #{swin_forward.8} parent=11 // pred_check_branch
        %377 = sbr.rel (%p375) target = $region36
      $region35: #{swin_forward.8} parent=11 // pred_region
        _
      $region36: #{swin_forward.8} parent=11 // pred_fallthru
        _
      // Predicated region
      $region37: #{swin_forward.8} parent=11 // pred_check
        %p378 = pneg %p193
      $region38: #{swin_forward.8} parent=11 // pred_check_branch
        %380 = sbr.rel (%p378) target = $region40
      $region39: #{swin_forward.8} parent=11 // pred_region
        _
      $region40: #{swin_forward.8} parent=11 // pred_fallthru
        _
      // Predicated region
      $region41: #{swin_forward.8} parent=11 // pred_check
        %p381 = pneg %p214
      $region42: #{swin_forward.8} parent=11 // pred_check_branch
        %383 = sbr.rel (%p381) target = $region44
      $region43: #{swin_forward.8} parent=11 // pred_region
        _
      $region44: #{swin_forward.8} parent=11 // pred_fallthru
        _
      // Predicated region
      $region45: #{swin_forward.8} parent=11 // pred_check
        %p384 = pneg %p235
      $region46: #{swin_forward.8} parent=11 // pred_check_branch
        %386 = sbr.rel (%p384) target = $region48
      $region47: #{swin_forward.8} parent=11 // pred_region
        _
      $region48: #{swin_forward.8} parent=11 // pred_fallthru
        _
      // Predicated region
      $region49: #{swin_forward.8} parent=11 // pred_check
        %p387 = pneg %p256
      $region50: #{swin_forward.8} parent=11 // pred_check_branch
        %389 = sbr.rel (%p387) target = $region52
      $region51: #{swin_forward.8} parent=11 // pred_region
        _
      $region52: #{swin_forward.8} parent=11 // pred_fallthru
        _
      // Predicated region
      $region53: #{swin_forward.8} parent=11 // pred_check
        %p390 = pneg %p277
      $region54: #{swin_forward.8} parent=11 // pred_check_branch
        %392 = sbr.rel (%p390) target = $region56
      $region55: #{swin_forward.8} parent=11 // pred_region
        _
      $region56: #{swin_forward.8} parent=11 // pred_fallthru
        _
      // Predicated region
      $region57: #{swin_forward.8} parent=11 // pred_check
        %p393 = pneg %p298
      $region58: #{swin_forward.8} parent=11 // pred_check_branch
        %395 = sbr.rel (%p393) target = $region60
      $region59: #{swin_forward.8} parent=11 // pred_region
        _
      $region60: #{swin_forward.8} parent=11 // pred_fallthru
        _
      // Predicated region
      $region61: #{swin_forward.8} parent=11 // pred_check
        %p396 = pneg %p319
      $region62: #{swin_forward.8} parent=11 // pred_check_branch
        %398 = sbr.rel (%p396) target = $region64
      $region63: #{swin_forward.8} parent=11 // pred_region
        _
      $region64: #{swin_forward.8} parent=11 // pred_fallthru
        _
    $region12: #{swin_forward.8} parent=5 // pred_fallthru
      _
    %p399 = scmp.lt.s32.totalorder %s20, 2
    // Predicated region
    $region65: #{swin_forward.8} parent=5 // pred_check
      %p400 = pneg %p399
    $region66: #{swin_forward.8} parent=5 // pred_check_branch
      %402 = sbr.rel (%p400) target = $region68
    $region67: #{swin_forward.8} parent=5 // pred_region
      // Predicated region
      $region69: #{swin_forward.8} parent=67 // pred_check
        %p403 = pneg %p40
      $region70: #{swin_forward.8} parent=67 // pred_check_branch
        %405 = sbr.rel (%p403) target = $region72
      $region71: #{swin_forward.8} parent=67 // pred_region
        %s406 = smul.u32 4, %s20
        %p407 = scmp.lt.s32.totalorder %s406, 7
        %s408 = scalar_select %p407, %s406, 7
        %s409 = smul.addr %s408, 4
        %s410 = scalar_lea.vmem %s0, %s409
        %s411 = smul.u32 4, %s20
      $region72: #{swin_forward.8} parent=67 // pred_fallthru
        _
    $region68: #{swin_forward.8} parent=5 // pred_fallthru
      _
    %p412 = scmp.le.s32.totalorder 1, %s20
    %p413 = scmp.lt.s32.totalorder %s20, 3
    %p414 = pnand %p412, %p413
    %p415 = pneg %p414
    // Predicated region
    $region73: #{swin_forward.8} parent=5 // pred_check
      _
    $region74: #{swin_forward.8} parent=5 // pred_check_branch
      %417 = sbr.rel (%p414) target = $region76
    $region75: #{swin_forward.8} parent=5 // pred_region
      %s418 = ssub.s32 %s20, 1
      %s419 = smul.u32 4, %s25
      %p420 = scmp.lt.s32.totalorder %s419, 7
      %s421 = scalar_select %p420, %s419, 7
      %s422 = smul.addr %s421, 4
      %s423 = scalar_lea.vmem %s0, %s422
      %p424 = pneg %p46
      %p425 = pneg %p43
      %p426 = pneg %p67
      %p427 = pneg %p64
      %p428 = pneg %p88
      %p429 = pneg %p85
      %p430 = pneg %p109
      %p431 = pneg %p106
      %p432 = pneg %p130
      %p433 = pneg %p127
      %p434 = pneg %p151
      %p435 = pneg %p148
      %p436 = pneg %p172
      %p437 = pneg %p169
      %p438 = pneg %p193
      %p439 = pneg %p190
      %p440 = pneg %p214
      %p441 = pneg %p211
      %p442 = pneg %p235
      %p443 = pneg %p232
      %p444 = pneg %p256
      %p445 = pneg %p253
      %p446 = pneg %p277
      %p447 = pneg %p274
      %p448 = pneg %p298
      %p449 = pneg %p295
      %p450 = pneg %p319
      %p451 = pneg %p316
      %p452 = pneg %p345
      %p453 = pneg %p342
      %s454 = smul.u32 4, %s25
      %p455 = scmp.lt.s32.totalorder %s454, 7
      %s456 = scalar_select %p455, %s454, 7
      %s457 = smul.addr %s456, 4
      %s458 = scalar_lea.vmem %s14, %s457
      %s459 = smul.u32 4, %s25
      %p460 = scmp.lt.s32.totalorder %s459, 7
      %s461 = scalar_select %p460, %s459, 7
      %s462 = smul.addr %s461, 4
      %s463 = scalar_lea.vmem %s0, %s462
      %s464 = smul.u32 4, %s25
      %s465 = smul.u32 4, %s25
      %p466 = scmp.lt.s32.totalorder %s465, 7
      %s467 = scalar_select %p466, %s465, 7
      %s468 = smul.addr %s467, 4
      %s469 = scalar_lea.vmem %s14, %s468
      %s470 = smul.u32 4, %s25
      %v471 = vld [vmem:[%s463] sm:$0xf]
      %v472 = vld [vmem:[%s463 + $0x4] sm:$0xf]
      %v473 = vld [vmem:[%s463 + $0x8] sm:$0xf]
      %v474 = vld [vmem:[%s463 + $0xc] sm:$0xf]
      %v475 = vld [vmem:[%s1] sm:$0x1]
      %v476 = vld [vmem:[%s2] sm:$0x1]
      %vm477 = vcmask 257024
      %v478 = vsel %vm477, %v471, 0.0
      %479 = vadd.xlane.f32.xlu0 %v478
      %v480 = vpop.xlane.xlu0 %479
      %v481 = vsel %vm477, %v472, 0.0
      %482 = vadd.xlane.f32.xlu0 %v481
      %v483 = vpop.xlane.xlu0 %482
      %v484 = vsel %vm477, %v473, 0.0
      %485 = vadd.xlane.f32.xlu0 %v484
      %v486 = vpop.xlane.xlu0 %485
      %v487 = vsel %vm477, %v474, 0.0
      %488 = vadd.xlane.f32.xlu0 %v487
      %v489 = vpop.xlane.xlu0 %488
      %v490 = vrcp.pop 32.0
      %v491 = vmul.f32 %v480, %v490
      %v492 = vmul.f32 %v483, %v490
      %v493 = vmul.f32 %v486, %v490
      %v494 = vmul.f32 %v489, %v490
      %v495 = vsub.f32 %v471, %v491
      %v496 = vsub.f32 %v472, %v492
      %v497 = vsub.f32 %v473, %v493
      %v498 = vsub.f32 %v474, %v494
      %v499 = vmul.f32 %v495, %v495
      %v500 = vmul.f32 %v496, %v496
      %v501 = vmul.f32 %v497, %v497
      %v502 = vmul.f32 %v498, %v498
      %v503 = vsel %vm477, %v499, 0.0
      %504 = vadd.xlane.f32.xlu0 %v503
      %v505 = vpop.xlane.xlu0 %504
      %v506 = vsel %vm477, %v500, 0.0
      %507 = vadd.xlane.f32.xlu0 %v506
      %v508 = vpop.xlane.xlu0 %507
      %v509 = vsel %vm477, %v501, 0.0
      %510 = vadd.xlane.f32.xlu0 %v509
      %v511 = vpop.xlane.xlu0 %510
      %v512 = vsel %vm477, %v502, 0.0
      %513 = vadd.xlane.f32.xlu0 %v512
      %v514 = vpop.xlane.xlu0 %513
      %v515 = vmul.f32 %v505, %v490
      %v516 = vmul.f32 %v508, %v490
      %v517 = vmul.f32 %v511, %v490
      %v518 = vmul.f32 %v514, %v490
      %v519 = vadd.f32 %v515, 1e-05
      %v520 = vadd.f32 %v516, 1e-05
      %v521 = vadd.f32 %v517, 1e-05
      %v522 = vadd.f32 %v518, 1e-05
      %v523 = vrsqrt.pop %v519
      %v524 = vrsqrt.pop %v520
      %v525 = vrsqrt.pop %v521
      %v526 = vrsqrt.pop %v522
      %v527 = vmul.f32 %v495, %v523
      %v528 = vmul.f32 %v496, %v524
      %v529 = vmul.f32 %v497, %v525
      %v530 = vmul.f32 %v498, %v526
      %v532 = vlaneseq
      %v533 = vshrl.u32 %v532, 7
      %v534 = vsub.s32 0, %v533
      %v535 = vrot.slane %v475, %v534
      %v537 = vmul.f32 %v527, %v535
      %v538 = vmul.f32 %v528, %v535
      %v539 = vmul.f32 %v529, %v535
      %v540 = vmul.f32 %v530, %v535
      %v542 = vlaneseq
      %v543 = vshrl.u32 %v542, 7
      %v544 = vsub.s32 0, %v543
      %v545 = vrot.slane %v476, %v544
      %v547 = vadd.f32 %v537, %v545
      %v548 = vadd.f32 %v538, %v545
      %v549 = vadd.f32 %v539, %v545
      %v550 = vadd.f32 %v540, %v545
      %v551 = vld [vmem:[%s3] sm:$0xff]
      %v552 = vld [vmem:[%s3 + $0x8] sm:$0xff]
      %v553 = vld [vmem:[%s3 + $0x10] sm:$0xff]
      %v554 = vld [vmem:[%s3 + $0x18] sm:$0xff]
      %v555 = vld [vmem:[%s4] sm:$0x1]
      %v557 = vlaneseq
      %v558 = vshrl.u32 %v557, 7
      %v559 = vsub.s32 0, %v558
      %v560 = vrot.slane %v555, %v559
      %vm562 = vcmask 261120
      %v564 = vsel %vm562, %v547, 0
      %566 = vmatprep.subr.mxu0 0.0
      %567 = vmatpush1.msra.mxu0 %v551
      %568 = vmatprep.subr.mxu0 0.0
      %569 = vmatpush1.msra.mxu0 %v552
      %570 = vmatprep.subr.mxu0 0.0
      %571 = vmatpush1.msra.mxu0 %v553
      %572 = vmatprep.subr.mxu0 0.0
      %573 = vmatpush1.msra.mxu0 %v554
      %574 = vmatprep.subr.mxu0 0.0
      %575 = vmatpush1.msra.mxu0 0.0
      %576 = vmatprep.subr.mxu0 0.0
      %577 = vmatpush1.msra.mxu0 0.0
      %578 = vmatprep.subr.mxu0 0.0
      %579 = vmatpush1.msra.mxu0 0.0
      %580 = vmatprep.subr.mxu0 0.0
      %581 = vmatpush1.msra.mxu0 0.0
      %582 = vmatprep.subr.mxu0 0.0
      %583 = vmatpush1.msra.mxu0 0.0
      %584 = vmatprep.subr.mxu0 0.0
      %585 = vmatpush1.msra.mxu0 0.0
      %586 = vmatprep.subr.mxu0 0.0
      %587 = vmatpush1.msra.mxu0 0.0
      %588 = vmatprep.subr.mxu0 0.0
      %589 = vmatpush1.msra.mxu0 0.0
      %590 = vmatprep.subr.mxu0 0.0
      %591 = vmatpush1.msra.mxu0 0.0
      %592 = vmatprep.subr.mxu0 0.0
      %593 = vmatpush1.msra.mxu0 0.0
      %594 = vmatprep.subr.mxu0 0.0
      %595 = vmatpush1.msra.mxu0 0.0
      %596 = vmatprep.subr.mxu0 0.0
      %597 = vmatpush1.msra.mxu0 0.0
      %598 = vmatprep.subr.mxu0 0.0
      %599 = vmatpush1.msra.mxu0 0.0
      %600 = vmatprep.subr.mxu0 0.0
      %601 = vmatpush1.msra.mxu0 0.0
      %602 = vmatprep.subr.mxu0 0.0
      %603 = vmatpush1.msra.mxu0 0.0
      %604 = vmatprep.subr.mxu0 0.0
      %605 = vmatpush1.msra.mxu0 0.0
      %606 = vmatprep.subr.mxu0 0.0
      %607 = vmatpush1.msra.mxu0 0.0
      %608 = vmatprep.subr.mxu0 0.0
      %609 = vmatpush1.msra.mxu0 0.0
      %610 = vmatprep.subr.mxu0 0.0
      %611 = vmatpush1.msra.mxu0 0.0
      %612 = vmatprep.subr.mxu0 0.0
      %613 = vmatpush1.msra.mxu0 0.0
      %614 = vmatprep.subr.mxu0 0.0
      %615 = vmatpush1.msra.mxu0 0.0
      %616 = vmatprep.subr.mxu0 0.0
      %617 = vmatpush1.msra.mxu0 0.0
      %618 = vmatprep.subr.mxu0 0.0
      %619 = vmatpush1.msra.mxu0 0.0
      %620 = vmatprep.subr.mxu0 0.0
      %621 = vmatpush1.msra.mxu0 0.0
      %622 = vmatprep.subr.mxu0 0.0
      %623 = vmatpush1.msra.mxu0 0.0
      %624 = vmatprep.subr.mxu0 0.0
      %625 = vmatpush1.msra.mxu0 0.0
      %626 = vmatprep.subr.mxu0 0.0
      %627 = vmatpush1.msra.mxu0 0.0
      %628 = vmatprep.subr.mxu0 0.0
      %629 = vmatpush1.msra.mxu0 0.0
      %630 = vmatprep.mubr.f32.mxu0 0.0
      %631 = vmatmul.mubr.f32.gmra.mrb[0].mxu0 %v564
      %v632 = vpop.f32.mrb[0].mxu0
      %v633 = vadd.f32 %v560, %v632
      %v634 = vpop.f32.mrb[0].mxu0
      %635 = vdwg.mxu0
      %v637 = vsel %vm562, %v548, 0
      %639 = vmatprep.subr.mxu0 0.0
      %640 = vmatpush1.msra.mxu0 %v551
      %641 = vmatprep.subr.mxu0 0.0
      %642 = vmatpush1.msra.mxu0 %v552
      %643 = vmatprep.subr.mxu0 0.0
      %644 = vmatpush1.msra.mxu0 %v553
      %645 = vmatprep.subr.mxu0 0.0
      %646 = vmatpush1.msra.mxu0 %v554
      %647 = vmatprep.subr.mxu0 0.0
      %648 = vmatpush1.msra.mxu0 0.0
      %649 = vmatprep.subr.mxu0 0.0
      %650 = vmatpush1.msra.mxu0 0.0
      %651 = vmatprep.subr.mxu0 0.0
      %652 = vmatpush1.msra.mxu0 0.0
      %653 = vmatprep.subr.mxu0 0.0
      %654 = vmatpush1.msra.mxu0 0.0
      %655 = vmatprep.subr.mxu0 0.0
      %656 = vmatpush1.msra.mxu0 0.0
      %657 = vmatprep.subr.mxu0 0.0
      %658 = vmatpush1.msra.mxu0 0.0
      %659 = vmatprep.subr.mxu0 0.0
      %660 = vmatpush1.msra.mxu0 0.0
      %661 = vmatprep.subr.mxu0 0.0
      %662 = vmatpush1.msra.mxu0 0.0
      %663 = vmatprep.subr.mxu0 0.0
      %664 = vmatpush1.msra.mxu0 0.0
      %665 = vmatprep.subr.mxu0 0.0
      %666 = vmatpush1.msra.mxu0 0.0
      %667 = vmatprep.subr.mxu0 0.0
      %668 = vmatpush1.msra.mxu0 0.0
      %669 = vmatprep.subr.mxu0 0.0
      %670 = vmatpush1.msra.mxu0 0.0
      %671 = vmatprep.subr.mxu0 0.0
      %672 = vmatpush1.msra.mxu0 0.0
      %673 = vmatprep.subr.mxu0 0.0
      %674 = vmatpush1.msra.mxu0 0.0
      %675 = vmatprep.subr.mxu0 0.0
      %676 = vmatpush1.msra.mxu0 0.0
      %677 = vmatprep.subr.mxu0 0.0
      %678 = vmatpush1.msra.mxu0 0.0
      %679 = vmatprep.subr.mxu0 0.0
      %680 = vmatpush1.msra.mxu0 0.0
      %681 = vmatprep.subr.mxu0 0.0
      %682 = vmatpush1.msra.mxu0 0.0
      %683 = vmatprep.subr.mxu0 0.0
      %684 = vmatpush1.msra.mxu0 0.0
      %685 = vmatprep.subr.mxu0 0.0
      %686 = vmatpush1.msra.mxu0 0.0
      %687 = vmatprep.subr.mxu0 0.0
      %688 = vmatpush1.msra.mxu0 0.0
      %689 = vmatprep.subr.mxu0 0.0
      %690 = vmatpush1.msra.mxu0 0.0
      %691 = vmatprep.subr.mxu0 0.0
      %692 = vmatpush1.msra.mxu0 0.0
      %693 = vmatprep.subr.mxu0 0.0
      %694 = vmatpush1.msra.mxu0 0.0
      %695 = vmatprep.subr.mxu0 0.0
      %696 = vmatpush1.msra.mxu0 0.0
      %697 = vmatprep.subr.mxu0 0.0
      %698 = vmatpush1.msra.mxu0 0.0
      %699 = vmatprep.subr.mxu0 0.0
      %700 = vmatpush1.msra.mxu0 0.0
      %701 = vmatprep.subr.mxu0 0.0
      %702 = vmatpush1.msra.mxu0 0.0
      %703 = vmatprep.mubr.f32.mxu0 0.0
      %704 = vmatmul.mubr.f32.gmra.mrb[0].mxu0 %v637
      %v705 = vpop.f32.mrb[0].mxu0
      %v706 = vadd.f32 %v560, %v705
      %v707 = vpop.f32.mrb[0].mxu0
      %708 = vdwg.mxu0
      %v710 = vsel %vm562, %v549, 0
      %712 = vmatprep.subr.mxu0 0.0
      %713 = vmatpush1.msra.mxu0 %v551
      %714 = vmatprep.subr.mxu0 0.0
      %715 = vmatpush1.msra.mxu0 %v552
      %716 = vmatprep.subr.mxu0 0.0
      %717 = vmatpush1.msra.mxu0 %v553
      %718 = vmatprep.subr.mxu0 0.0
      %719 = vmatpush1.msra.mxu0 %v554
      %720 = vmatprep.subr.mxu0 0.0
      %721 = vmatpush1.msra.mxu0 0.0
      %722 = vmatprep.subr.mxu0 0.0
      %723 = vmatpush1.msra.mxu0 0.0
      %724 = vmatprep.subr.mxu0 0.0
      %725 = vmatpush1.msra.mxu0 0.0
      %726 = vmatprep.subr.mxu0 0.0
      %727 = vmatpush1.msra.mxu0 0.0
      %728 = vmatprep.subr.mxu0 0.0
      %729 = vmatpush1.msra.mxu0 0.0
      %730 = vmatprep.subr.mxu0 0.0
      %731 = vmatpush1.msra.mxu0 0.0
      %732 = vmatprep.subr.mxu0 0.0
      %733 = vmatpush1.msra.mxu0 0.0
      %734 = vmatprep.subr.mxu0 0.0
      %735 = vmatpush1.msra.mxu0 0.0
      %736 = vmatprep.subr.mxu0 0.0
      %737 = vmatpush1.msra.mxu0 0.0
      %738 = vmatprep.subr.mxu0 0.0
      %739 = vmatpush1.msra.mxu0 0.0
      %740 = vmatprep.subr.mxu0 0.0
      %741 = vmatpush1.msra.mxu0 0.0
      %742 = vmatprep.subr.mxu0 0.0
      %743 = vmatpush1.msra.mxu0 0.0
      %744 = vmatprep.subr.mxu0 0.0
      %745 = vmatpush1.msra.mxu0 0.0
      %746 = vmatprep.subr.mxu0 0.0
      %747 = vmatpush1.msra.mxu0 0.0
      %748 = vmatprep.subr.mxu0 0.0
      %749 = vmatpush1.msra.mxu0 0.0
      %750 = vmatprep.subr.mxu0 0.0
      %751 = vmatpush1.msra.mxu0 0.0
      %752 = vmatprep.subr.mxu0 0.0
      %753 = vmatpush1.msra.mxu0 0.0
      %754 = vmatprep.subr.mxu0 0.0
      %755 = vmatpush1.msra.mxu0 0.0
      %756 = vmatprep.subr.mxu0 0.0
      %757 = vmatpush1.msra.mxu0 0.0
      %758 = vmatprep.subr.mxu0 0.0
      %759 = vmatpush1.msra.mxu0 0.0
      %760 = vmatprep.subr.mxu0 0.0
      %761 = vmatpush1.msra.mxu0 0.0
      %762 = vmatprep.subr.mxu0 0.0
      %763 = vmatpush1.msra.mxu0 0.0
      %764 = vmatprep.subr.mxu0 0.0
      %765 = vmatpush1.msra.mxu0 0.0
      %766 = vmatprep.subr.mxu0 0.0
      %767 = vmatpush1.msra.mxu0 0.0
      %768 = vmatprep.subr.mxu0 0.0
      %769 = vmatpush1.msra.mxu0 0.0
      %770 = vmatprep.subr.mxu0 0.0
      %771 = vmatpush1.msra.mxu0 0.0
      %772 = vmatprep.subr.mxu0 0.0
      %773 = vmatpush1.msra.mxu0 0.0
      %774 = vmatprep.subr.mxu0 0.0
      %775 = vmatpush1.msra.mxu0 0.0
      %776 = vmatprep.mubr.f32.mxu0 0.0
      %777 = vmatmul.mubr.f32.gmra.mrb[0].mxu0 %v710
      %v778 = vpop.f32.mrb[0].mxu0
      %v779 = vadd.f32 %v560, %v778
      %v780 = vpop.f32.mrb[0].mxu0
      %781 = vdwg.mxu0
      %v783 = vsel %vm562, %v550, 0
      %785 = vmatprep.subr.mxu0 0.0
      %786 = vmatpush1.msra.mxu0 %v551
      %787 = vmatprep.subr.mxu0 0.0
      %788 = vmatpush1.msra.mxu0 %v552
      %789 = vmatprep.subr.mxu0 0.0
      %790 = vmatpush1.msra.mxu0 %v553
      %791 = vmatprep.subr.mxu0 0.0
      %792 = vmatpush1.msra.mxu0 %v554
      %793 = vmatprep.subr.mxu0 0.0
      %794 = vmatpush1.msra.mxu0 0.0
      %795 = vmatprep.subr.mxu0 0.0
      %796 = vmatpush1.msra.mxu0 0.0
      %797 = vmatprep.subr.mxu0 0.0
      %798 = vmatpush1.msra.mxu0 0.0
      %799 = vmatprep.subr.mxu0 0.0
      %800 = vmatpush1.msra.mxu0 0.0
      %801 = vmatprep.subr.mxu0 0.0
      %802 = vmatpush1.msra.mxu0 0.0
      %803 = vmatprep.subr.mxu0 0.0
      %804 = vmatpush1.msra.mxu0 0.0
      %805 = vmatprep.subr.mxu0 0.0
      %806 = vmatpush1.msra.mxu0 0.0
      %807 = vmatprep.subr.mxu0 0.0
      %808 = vmatpush1.msra.mxu0 0.0
      %809 = vmatprep.subr.mxu0 0.0
      %810 = vmatpush1.msra.mxu0 0.0
      %811 = vmatprep.subr.mxu0 0.0
      %812 = vmatpush1.msra.mxu0 0.0
      %813 = vmatprep.subr.mxu0 0.0
      %814 = vmatpush1.msra.mxu0 0.0
      %815 = vmatprep.subr.mxu0 0.0
      %816 = vmatpush1.msra.mxu0 0.0
      %817 = vmatprep.subr.mxu0 0.0
      %818 = vmatpush1.msra.mxu0 0.0
      %819 = vmatprep.subr.mxu0 0.0
      %820 = vmatpush1.msra.mxu0 0.0
      %821 = vmatprep.subr.mxu0 0.0
      %822 = vmatpush1.msra.mxu0 0.0
      %823 = vmatprep.subr.mxu0 0.0
      %824 = vmatpush1.msra.mxu0 0.0
      %825 = vmatprep.subr.mxu0 0.0
      %826 = vmatpush1.msra.mxu0 0.0
      %827 = vmatprep.subr.mxu0 0.0
      %828 = vmatpush1.msra.mxu0 0.0
      %829 = vmatprep.subr.mxu0 0.0
      %830 = vmatpush1.msra.mxu0 0.0
      %831 = vmatprep.subr.mxu0 0.0
      %832 = vmatpush1.msra.mxu0 0.0
      %833 = vmatprep.subr.mxu0 0.0
      %834 = vmatpush1.msra.mxu0 0.0
      %835 = vmatprep.subr.mxu0 0.0
      %836 = vmatpush1.msra.mxu0 0.0
      %837 = vmatprep.subr.mxu0 0.0
      %838 = vmatpush1.msra.mxu0 0.0
      %839 = vmatprep.subr.mxu0 0.0
      %840 = vmatpush1.msra.mxu0 0.0
      %841 = vmatprep.subr.mxu0 0.0
      %842 = vmatpush1.msra.mxu0 0.0
      %843 = vmatprep.subr.mxu0 0.0
      %844 = vmatpush1.msra.mxu0 0.0
      %845 = vmatprep.subr.mxu0 0.0
      %846 = vmatpush1.msra.mxu0 0.0
      %847 = vmatprep.subr.mxu0 0.0
      %848 = vmatpush1.msra.mxu0 0.0
      %849 = vmatprep.mubr.f32.mxu0 0.0
      %850 = vmatmul.mubr.f32.gmra.mrb[0].mxu0 %v783
      %v851 = vpop.f32.mrb[0].mxu0
      %v852 = vadd.f32 %v560, %v851
      %v853 = vpop.f32.mrb[0].mxu0
      %854 = vdwg.mxu0
      %v855 = vld [vmem:[%s6] sm:$0xff]
      %v856 = vld [vmem:[%s6 + $0x8] sm:$0xff]
      %v857 = vld [vmem:[%s6 + $0x10] sm:$0xff]
      %v858 = vld [vmem:[%s6 + $0x18] sm:$0xff]
      %v859 = vld [vmem:[%s5] sm:$0xf]
      %v860 = vld [vmem:[%s5 + $0x4] sm:$0xf]
      %v861 = vmul.f32 %v633, 0.25
      %v862 = vmul.f32 %v706, 0.25
      %v863 = vmul.f32 %v779, 0.25
      %v864 = vmul.f32 %v852, 0.25
      %866 = vrot.lane.b32.xlu0 %v633, 96
      %v867 = vpop.permute.xlu0 %866
      %vm868 = vcmask 130048
      %v870 = vsel %vm868, %v861, 0
      %v872 = vsel %vm868, %v867, 0
      %874 = vmatprep.subr.mxu0 0.0
      %875 = vmatpush1.xpose.msra.mxu0 %v872
      %876 = vmatprep.subr.mxu0 0.0
      %877 = vmatpush1.xpose.msra.mxu0 0.0
      %878 = vmatprep.subr.mxu0 0.0
      %879 = vmatpush1.xpose.msra.mxu0 0.0
      %880 = vmatprep.subr.mxu0 0.0
      %881 = vmatpush1.xpose.msra.mxu0 0.0
      %882 = vmatprep.subr.mxu0 0.0
      %883 = vmatpush1.xpose.msra.mxu0 0.0
      %884 = vmatprep.subr.mxu0 0.0
      %885 = vmatpush1.xpose.msra.mxu0 0.0
      %886 = vmatprep.subr.mxu0 0.0
      %887 = vmatpush1.xpose.msra.mxu0 0.0
      %888 = vmatprep.subr.mxu0 0.0
      %889 = vmatpush1.xpose.msra.mxu0 0.0
      %890 = vmatprep.subr.mxu0 0.0
      %891 = vmatpush1.xpose.msra.mxu0 0.0
      %892 = vmatprep.subr.mxu0 0.0
      %893 = vmatpush1.xpose.msra.mxu0 0.0
      %894 = vmatprep.subr.mxu0 0.0
      %895 = vmatpush1.xpose.msra.mxu0 0.0
      %896 = vmatprep.subr.mxu0 0.0
      %897 = vmatpush1.xpose.msra.mxu0 0.0
      %898 = vmatprep.subr.mxu0 0.0
      %899 = vmatpush1.xpose.msra.mxu0 0.0
      %900 = vmatprep.subr.mxu0 0.0
      %901 = vmatpush1.xpose.msra.mxu0 0.0
      %902 = vmatprep.subr.mxu0 0.0
      %903 = vmatpush1.xpose.msra.mxu0 0.0
      %904 = vmatprep.subr.mxu0 0.0
      %905 = vmatpush1.xpose.msra.mxu0 0.0
      %906 = vmatprep.subr.mxu0 0.0
      %907 = vmatpush1.xpose.msra.mxu0 0.0
      %908 = vmatprep.subr.mxu0 0.0
      %909 = vmatpush1.xpose.msra.mxu0 0.0
      %910 = vmatprep.subr.mxu0 0.0
      %911 = vmatpush1.xpose.msra.mxu0 0.0
      %912 = vmatprep.subr.mxu0 0.0
      %913 = vmatpush1.xpose.msra.mxu0 0.0
      %914 = vmatprep.subr.mxu0 0.0
      %915 = vmatpush1.xpose.msra.mxu0 0.0
      %916 = vmatprep.subr.mxu0 0.0
      %917 = vmatpush1.xpose.msra.mxu0 0.0
      %918 = vmatprep.subr.mxu0 0.0
      %919 = vmatpush1.xpose.msra.mxu0 0.0
      %920 = vmatprep.subr.mxu0 0.0
      %921 = vmatpush1.xpose.msra.mxu0 0.0
      %922 = vmatprep.subr.mxu0 0.0
      %923 = vmatpush1.xpose.msra.mxu0 0.0
      %924 = vmatprep.subr.mxu0 0.0
      %925 = vmatpush1.xpose.msra.mxu0 0.0
      %926 = vmatprep.subr.mxu0 0.0
      %927 = vmatpush1.xpose.msra.mxu0 0.0
      %928 = vmatprep.subr.mxu0 0.0
      %929 = vmatpush1.xpose.msra.mxu0 0.0
      %930 = vmatprep.subr.mxu0 0.0
      %931 = vmatpush1.xpose.msra.mxu0 0.0
      %932 = vmatprep.subr.mxu0 0.0
      %933 = vmatpush1.xpose.msra.mxu0 0.0
      %934 = vmatprep.subr.mxu0 0.0
      %935 = vmatpush1.xpose.msra.mxu0 0.0
      %936 = vmatprep.subr.mxu0 0.0
      %937 = vmatpush1.xpose.msra.mxu0 0.0
      %938 = vmatprep.mubr.f32.mxu0 0.0
      %939 = vmatmul.mubr.f32.gmra.mrb[0].mxu0 %v870
      %v940 = vpop.f32.mrb[0].mxu0
      %v941 = vadd.f32 %v859, %v940
      %v942 = vpop.f32.mrb[0].mxu0
      %943 = vdwg.mxu0
      %945 = vrot.lane.b32.xlu0 %v706, 96
      %v946 = vpop.permute.xlu0 %945
      %v948 = vsel %vm868, %v862, 0
      %v950 = vsel %vm868, %v946, 0
      %952 = vmatprep.subr.mxu0 0.0
      %953 = vmatpush1.xpose.msra.mxu0 %v950
      %954 = vmatprep.subr.mxu0 0.0
      %955 = vmatpush1.xpose.msra.mxu0 0.0
      %956 = vmatprep.subr.mxu0 0.0
      %957 = vmatpush1.xpose.msra.mxu0 0.0
      %958 = vmatprep.subr.mxu0 0.0
      %959 = vmatpush1.xpose.msra.mxu0 0.0
      %960 = vmatprep.subr.mxu0 0.0
      %961 = vmatpush1.xpose.msra.mxu0 0.0
      %962 = vmatprep.subr.mxu0 0.0
      %963 = vmatpush1.xpose.msra.mxu0 0.0
      %964 = vmatprep.subr.mxu0 0.0
      %965 = vmatpush1.xpose.msra.mxu0 0.0
      %966 = vmatprep.subr.mxu0 0.0
      %967 = vmatpush1.xpose.msra.mxu0 0.0
      %968 = vmatprep.subr.mxu0 0.0
      %969 = vmatpush1.xpose.msra.mxu0 0.0
      %970 = vmatprep.subr.mxu0 0.0
      %971 = vmatpush1.xpose.msra.mxu0 0.0
      %972 = vmatprep.subr.mxu0 0.0
      %973 = vmatpush1.xpose.msra.mxu0 0.0
      %974 = vmatprep.subr.mxu0 0.0
      %975 = vmatpush1.xpose.msra.mxu0 0.0
      %976 = vmatprep.subr.mxu0 0.0
      %977 = vmatpush1.xpose.msra.mxu0 0.0
      %978 = vmatprep.subr.mxu0 0.0
      %979 = vmatpush1.xpose.msra.mxu0 0.0
      %980 = vmatprep.subr.mxu0 0.0
      %981 = vmatpush1.xpose.msra.mxu0 0.0
      %982 = vmatprep.subr.mxu0 0.0
      %983 = vmatpush1.xpose.msra.mxu0 0.0
      %984 = vmatprep.subr.mxu0 0.0
      %985 = vmatpush1.xpose.msra.mxu0 0.0
      %986 = vmatprep.subr.mxu0 0.0
      %987 = vmatpush1.xpose.msra.mxu0 0.0
      %988 = vmatprep.subr.mxu0 0.0
      %989 = vmatpush1.xpose.msra.mxu0 0.0
      %990 = vmatprep.subr.mxu0 0.0
      %991 = vmatpush1.xpose.msra.mxu0 0.0
      %992 = vmatprep.subr.mxu0 0.0
      %993 = vmatpush1.xpose.msra.mxu0 0.0
      %994 = vmatprep.subr.mxu0 0.0
      %995 = vmatpush1.xpose.msra.mxu0 0.0
      %996 = vmatprep.subr.mxu0 0.0
      %997 = vmatpush1.xpose.msra.mxu0 0.0
      %998 = vmatprep.subr.mxu0 0.0
      %999 = vmatpush1.xpose.msra.mxu0 0.0
      %1000 = vmatprep.subr.mxu0 0.0
      %1001 = vmatpush1.xpose.msra.mxu0 0.0
      %1002 = vmatprep.subr.mxu0 0.0
      %1003 = vmatpush1.xpose.msra.mxu0 0.0
      %1004 = vmatprep.subr.mxu0 0.0
      %1005 = vmatpush1.xpose.msra.mxu0 0.0
      %1006 = vmatprep.subr.mxu0 0.0
      %1007 = vmatpush1.xpose.msra.mxu0 0.0
      %1008 = vmatprep.subr.mxu0 0.0
      %1009 = vmatpush1.xpose.msra.mxu0 0.0
      %1010 = vmatprep.subr.mxu0 0.0
      %1011 = vmatpush1.xpose.msra.mxu0 0.0
      %1012 = vmatprep.subr.mxu0 0.0
      %1013 = vmatpush1.xpose.msra.mxu0 0.0
      %1014 = vmatprep.subr.mxu0 0.0
      %1015 = vmatpush1.xpose.msra.mxu0 0.0
      %1016 = vmatprep.mubr.f32.mxu0 0.0
      %1017 = vmatmul.mubr.f32.gmra.mrb[0].mxu0 %v948
      %v1018 = vpop.f32.mrb[0].mxu0
      %v1019 = vadd.f32 %v859, %v1018
      %v1020 = vpop.f32.mrb[0].mxu0
      %1021 = vdwg.mxu0
      %1023 = vrot.lane.b32.xlu0 %v779, 96
      %v1024 = vpop.permute.xlu0 %1023
      %v1026 = vsel %vm868, %v863, 0
      %v1028 = vsel %vm868, %v1024, 0
      %1030 = vmatprep.subr.mxu0 0.0
      %1031 = vmatpush1.xpose.msra.mxu0 %v1028
      %1032 = vmatprep.subr.mxu0 0.0
      %1033 = vmatpush1.xpose.msra.mxu0 0.0
      %1034 = vmatprep.subr.mxu0 0.0
      %1035 = vmatpush1.xpose.msra.mxu0 0.0
      %1036 = vmatprep.subr.mxu0 0.0
      %1037 = vmatpush1.xpose.msra.mxu0 0.0
      %1038 = vmatprep.subr.mxu0 0.0
      %1039 = vmatpush1.xpose.msra.mxu0 0.0
      %1040 = vmatprep.subr.mxu0 0.0
      %1041 = vmatpush1.xpose.msra.mxu0 0.0
      %1042 = vmatprep.subr.mxu0 0.0
      %1043 = vmatpush1.xpose.msra.mxu0 0.0
      %1044 = vmatprep.subr.mxu0 0.0
      %1045 = vmatpush1.xpose.msra.mxu0 0.0
      %1046 = vmatprep.subr.mxu0 0.0
      %1047 = vmatpush1.xpose.msra.mxu0 0.0
      %1048 = vmatprep.subr.mxu0 0.0
      %1049 = vmatpush1.xpose.msra.mxu0 0.0
      %1050 = vmatprep.subr.mxu0 0.0
      %1051 = vmatpush1.xpose.msra.mxu0 0.0
      %1052 = vmatprep.subr.mxu0 0.0
      %1053 = vmatpush1.xpose.msra.mxu0 0.0
      %1054 = vmatprep.subr.mxu0 0.0
      %1055 = vmatpush1.xpose.msra.mxu0 0.0
      %1056 = vmatprep.subr.mxu0 0.0
      %1057 = vmatpush1.xpose.msra.mxu0 0.0
      %1058 = vmatprep.subr.mxu0 0.0
      %1059 = vmatpush1.xpose.msra.mxu0 0.0
      %1060 = vmatprep.subr.mxu0 0.0
      %1061 = vmatpush1.xpose.msra.mxu0 0.0
      %1062 = vmatprep.subr.mxu0 0.0
      %1063 = vmatpush1.xpose.msra.mxu0 0.0
      %1064 = vmatprep.subr.mxu0 0.0
      %1065 = vmatpush1.xpose.msra.mxu0 0.0
      %1066 = vmatprep.subr.mxu0 0.0
      %1067 = vmatpush1.xpose.msra.mxu0 0.0
      %1068 = vmatprep.subr.mxu0 0.0
      %1069 = vmatpush1.xpose.msra.mxu0 0.0
      %1070 = vmatprep.subr.mxu0 0.0
      %1071 = vmatpush1.xpose.msra.mxu0 0.0
      %1072 = vmatprep.subr.mxu0 0.0
      %1073 = vmatpush1.xpose.msra.mxu0 0.0
      %1074 = vmatprep.subr.mxu0 0.0
      %1075 = vmatpush1.xpose.msra.mxu0 0.0
      %1076 = vmatprep.subr.mxu0 0.0
      %1077 = vmatpush1.xpose.msra.mxu0 0.0
      %1078 = vmatprep.subr.mxu0 0.0
      %1079 = vmatpush1.xpose.msra.mxu0 0.0
      %1080 = vmatprep.subr.mxu0 0.0
      %1081 = vmatpush1.xpose.msra.mxu0 0.0
      %1082 = vmatprep.subr.mxu0 0.0
      %1083 = vmatpush1.xpose.msra.mxu0 0.0
      %1084 = vmatprep.subr.mxu0 0.0
      %1085 = vmatpush1.xpose.msra.mxu0 0.0
      %1086 = vmatprep.subr.mxu0 0.0
      %1087 = vmatpush1.xpose.msra.mxu0 0.0
      %1088 = vmatprep.subr.mxu0 0.0
      %1089 = vmatpush1.xpose.msra.mxu0 0.0
      %1090 = vmatprep.subr.mxu0 0.0
      %1091 = vmatpush1.xpose.msra.mxu0 0.0
      %1092 = vmatprep.subr.mxu0 0.0
      %1093 = vmatpush1.xpose.msra.mxu0 0.0
      %1094 = vmatprep.mubr.f32.mxu0 0.0
      %1095 = vmatmul.mubr.f32.gmra.mrb[0].mxu0 %v1026
      %v1096 = vpop.f32.mrb[0].mxu0
      %v1097 = vadd.f32 %v859, %v1096
      %v1098 = vpop.f32.mrb[0].mxu0
      %1099 = vdwg.mxu0
      %1101 = vrot.lane.b32.xlu0 %v852, 96
      %v1102 = vpop.permute.xlu0 %1101
      %v1104 = vsel %vm868, %v864, 0
      %v1106 = vsel %vm868, %v1102, 0
      %1108 = vmatprep.subr.mxu0 0.0
      %1109 = vmatpush1.xpose.msra.mxu0 %v1106
      %1110 = vmatprep.subr.mxu0 0.0
      %1111 = vmatpush1.xpose.msra.mxu0 0.0
      %1112 = vmatprep.subr.mxu0 0.0
      %1113 = vmatpush1.xpose.msra.mxu0 0.0
      %1114 = vmatprep.subr.mxu0 0.0
      %1115 = vmatpush1.xpose.msra.mxu0 0.0
      %1116 = vmatprep.subr.mxu0 0.0
      %1117 = vmatpush1.xpose.msra.mxu0 0.0
      %1118 = vmatprep.subr.mxu0 0.0
      %1119 = vmatpush1.xpose.msra.mxu0 0.0
      %1120 = vmatprep.subr.mxu0 0.0
      %1121 = vmatpush1.xpose.msra.mxu0 0.0
      %1122 = vmatprep.subr.mxu0 0.0
      %1123 = vmatpush1.xpose.msra.mxu0 0.0
      %1124 = vmatprep.subr.mxu0 0.0
      %1125 = vmatpush1.xpose.msra.mxu0 0.0
      %1126 = vmatprep.subr.mxu0 0.0
      %1127 = vmatpush1.xpose.msra.mxu0 0.0
      %1128 = vmatprep.subr.mxu0 0.0
      %1129 = vmatpush1.xpose.msra.mxu0 0.0
      %1130 = vmatprep.subr.mxu0 0.0
      %1131 = vmatpush1.xpose.msra.mxu0 0.0
      %1132 = vmatprep.subr.mxu0 0.0
      %1133 = vmatpush1.xpose.msra.mxu0 0.0
      %1134 = vmatprep.subr.mxu0 0.0
      %1135 = vmatpush1.xpose.msra.mxu0 0.0
      %1136 = vmatprep.subr.mxu0 0.0
      %1137 = vmatpush1.xpose.msra.mxu0 0.0
      %1138 = vmatprep.subr.mxu0 0.0
      %1139 = vmatpush1.xpose.msra.mxu0 0.0
      %1140 = vmatprep.subr.mxu0 0.0
      %1141 = vmatpush1.xpose.msra.mxu0 0.0
      %1142 = vmatprep.subr.mxu0 0.0
      %1143 = vmatpush1.xpose.msra.mxu0 0.0
      %1144 = vmatprep.subr.mxu0 0.0
      %1145 = vmatpush1.xpose.msra.mxu0 0.0
      %1146 = vmatprep.subr.mxu0 0.0
      %1147 = vmatpush1.xpose.msra.mxu0 0.0
      %1148 = vmatprep.subr.mxu0 0.0
      %1149 = vmatpush1.xpose.msra.mxu0 0.0
      %1150 = vmatprep.subr.mxu0 0.0
      %1151 = vmatpush1.xpose.msra.mxu0 0.0
      %1152 = vmatprep.subr.mxu0 0.0
      %1153 = vmatpush1.xpose.msra.mxu0 0.0
      %1154 = vmatprep.subr.mxu0 0.0
      %1155 = vmatpush1.xpose.msra.mxu0 0.0
      %1156 = vmatprep.subr.mxu0 0.0
      %1157 = vmatpush1.xpose.msra.mxu0 0.0
      %1158 = vmatprep.subr.mxu0 0.0
      %1159 = vmatpush1.xpose.msra.mxu0 0.0
      %1160 = vmatprep.subr.mxu0 0.0
      %1161 = vmatpush1.xpose.msra.mxu0 0.0
      %1162 = vmatprep.subr.mxu0 0.0
      %1163 = vmatpush1.xpose.msra.mxu0 0.0
      %1164 = vmatprep.subr.mxu0 0.0
      %1165 = vmatpush1.xpose.msra.mxu0 0.0
      %1166 = vmatprep.subr.mxu0 0.0
      %1167 = vmatpush1.xpose.msra.mxu0 0.0
      %1168 = vmatprep.subr.mxu0 0.0
      %1169 = vmatpush1.xpose.msra.mxu0 0.0
      %1170 = vmatprep.subr.mxu0 0.0
      %1171 = vmatpush1.xpose.msra.mxu0 0.0
      %1172 = vmatprep.mubr.f32.mxu0 0.0
      %1173 = vmatmul.mubr.f32.gmra.mrb[0].mxu0 %v1104
      %v1174 = vpop.f32.mrb[0].mxu0
      %v1175 = vadd.f32 %v859, %v1174
      %v1176 = vpop.f32.mrb[0].mxu0
      %1177 = vdwg.mxu0
      %vm1178 = vcmask 27648
      %v1179 = vsel %vm1178, %v941, -inf
      %1180 = vmax.xlane.f32.xlu0 %v1179
      %v1181 = vpop.xlane.xlu0 %1180
      %v1182 = vsel %vm1178, %v1019, -inf
      %1183 = vmax.xlane.f32.xlu0 %v1182
      %v1184 = vpop.xlane.xlu0 %1183
      %v1185 = vsel %vm1178, %v1097, -inf
      %1186 = vmax.xlane.f32.xlu0 %v1185
      %v1187 = vpop.xlane.xlu0 %1186
      %v1188 = vsel %vm1178, %v1175, -inf
      %1189 = vmax.xlane.f32.xlu0 %v1188
      %v1190 = vpop.xlane.xlu0 %1189
      %v1191 = vsub.f32 %v941, %v1181
      %v1192 = vsub.f32 %v1019, %v1184
      %v1193 = vsub.f32 %v1097, %v1187
      %v1194 = vsub.f32 %v1175, %v1190
      %v1195 = vmul.f32 %v1191, 1.442695
      %v1196 = vpow.pop %v1195
      %v1197 = vmul.f32 %v1192, 1.442695
      %v1198 = vpow.pop %v1197
      %v1199 = vmul.f32 %v1193, 1.442695
      %v1200 = vpow.pop %v1199
      %v1201 = vmul.f32 %v1194, 1.442695
      %v1202 = vpow.pop %v1201
      %v1203 = vsel %vm1178, %v1196, 0.0
      %1204 = vadd.xlane.f32.xlu0 %v1203
      %v1205 = vpop.xlane.xlu0 %1204
      %v1206 = vsel %vm1178, %v1198, 0.0
      %1207 = vadd.xlane.f32.xlu0 %v1206
      %v1208 = vpop.xlane.xlu0 %1207
      %v1209 = vsel %vm1178, %v1200, 0.0
      %1210 = vadd.xlane.f32.xlu0 %v1209
      %v1211 = vpop.xlane.xlu0 %1210
      %v1212 = vsel %vm1178, %v1202, 0.0
      %1213 = vadd.xlane.f32.xlu0 %v1212
      %v1214 = vpop.xlane.xlu0 %1213
      %v1215 = vrcp.pop %v1205
      %v1216 = vrcp.pop %v1208
      %v1217 = vrcp.pop %v1211
      %v1218 = vrcp.pop %v1214
      %v1219 = vmul.f32 %v1196, %v1215
      %v1220 = vmul.f32 %v1198, %v1216
      %v1221 = vmul.f32 %v1200, %v1217
      %v1222 = vmul.f32 %v1202, %v1218
      %1223 = vrot.lane.b32.xlu0 %v633, 64
      %v1224 = vpop.permute.xlu0 %1223
      %vm1225 = vcmask 31744
      %v1227 = vsel %vm1225, %v1219, 0
      %vm1229 = vcmask 1043456
      %v1230 = vsel %vm1229, %v1224, 0
      %1232 = vmatprep.subr.mxu0 0.0
      %1233 = vmatpush1.msra.mxu0 %v1230
      %1234 = vmatprep.subr.mxu0 0.0
      %1235 = vmatpush1.msra.mxu0 0.0
      %1236 = vmatprep.subr.mxu0 0.0
      %1237 = vmatpush1.msra.mxu0 0.0
      %1238 = vmatprep.subr.mxu0 0.0
      %1239 = vmatpush1.msra.mxu0 0.0
      %1240 = vmatprep.subr.mxu0 0.0
      %1241 = vmatpush1.msra.mxu0 0.0
      %1242 = vmatprep.subr.mxu0 0.0
      %1243 = vmatpush1.msra.mxu0 0.0
      %1244 = vmatprep.subr.mxu0 0.0
      %1245 = vmatpush1.msra.mxu0 0.0
      %1246 = vmatprep.subr.mxu0 0.0
      %1247 = vmatpush1.msra.mxu0 0.0
      %1248 = vmatprep.subr.mxu0 0.0
      %1249 = vmatpush1.msra.mxu0 0.0
      %1250 = vmatprep.subr.mxu0 0.0
      %1251 = vmatpush1.msra.mxu0 0.0
      %1252 = vmatprep.subr.mxu0 0.0
      %1253 = vmatpush1.msra.mxu0 0.0
      %1254 = vmatprep.subr.mxu0 0.0
      %1255 = vmatpush1.msra.mxu0 0.0
      %1256 = vmatprep.subr.mxu0 0.0
      %1257 = vmatpush1.msra.mxu0 0.0
      %1258 = vmatprep.subr.mxu0 0.0
      %1259 = vmatpush1.msra.mxu0 0.0
      %1260 = vmatprep.subr.mxu0 0.0
      %1261 = vmatpush1.msra.mxu0 0.0
      %1262 = vmatprep.subr.mxu0 0.0
      %1263 = vmatpush1.msra.mxu0 0.0
      %1264 = vmatprep.subr.mxu0 0.0
      %1265 = vmatpush1.msra.mxu0 0.0
      %1266 = vmatprep.subr.mxu0 0.0
      %1267 = vmatpush1.msra.mxu0 0.0
      %1268 = vmatprep.subr.mxu0 0.0
      %1269 = vmatpush1.msra.mxu0 0.0
      %1270 = vmatprep.subr.mxu0 0.0
      %1271 = vmatpush1.msra.mxu0 0.0
      %1272 = vmatprep.subr.mxu0 0.0
      %1273 = vmatpush1.msra.mxu0 0.0
      %1274 = vmatprep.subr.mxu0 0.0
      %1275 = vmatpush1.msra.mxu0 0.0
      %1276 = vmatprep.subr.mxu0 0.0
      %1277 = vmatpush1.msra.mxu0 0.0
      %1278 = vmatprep.subr.mxu0 0.0
      %1279 = vmatpush1.msra.mxu0 0.0
      %1280 = vmatprep.subr.mxu0 0.0
      %1281 = vmatpush1.msra.mxu0 0.0
      %1282 = vmatprep.subr.mxu0 0.0
      %1283 = vmatpush1.msra.mxu0 0.0
      %1284 = vmatprep.subr.mxu0 0.0
      %1285 = vmatpush1.msra.mxu0 0.0
      %1286 = vmatprep.subr.mxu0 0.0
      %1287 = vmatpush1.msra.mxu0 0.0
      %1288 = vmatprep.subr.mxu0 0.0
      %1289 = vmatpush1.msra.mxu0 0.0
      %1290 = vmatprep.subr.mxu0 0.0
      %1291 = vmatpush1.msra.mxu0 0.0
      %1292 = vmatprep.subr.mxu0 0.0
      %1293 = vmatpush1.msra.mxu0 0.0
      %1294 = vmatprep.subr.mxu0 0.0
      %1295 = vmatpush1.msra.mxu0 0.0
      %1296 = vmatprep.mubr.f32.mxu0 0.0
      %1297 = vmatmul.mubr.f32.gmra.mrb[0].mxu0 %v1227
      %v1298 = vpop.f32.mrb[0].mxu0
      %v1299 = vadd.f32 0.0, %v1298
      %v1300 = vpop.f32.mrb[0].mxu0
      %1301 = vdwg.mxu0
      %1302 = vrot.lane.b32.xlu0 %v706, 64
      %v1303 = vpop.permute.xlu0 %1302
      %v1305 = vsel %vm1225, %v1220, 0
      %v1307 = vsel %vm1229, %v1303, 0
      %1309 = vmatprep.subr.mxu0 0.0
      %1310 = vmatpush1.msra.mxu0 %v1307
      %1311 = vmatprep.subr.mxu0 0.0
      %1312 = vmatpush1.msra.mxu0 0.0
      %1313 = vmatprep.subr.mxu0 0.0
      %1314 = vmatpush1.msra.mxu0 0.0
      %1315 = vmatprep.subr.mxu0 0.0
      %1316 = vmatpush1.msra.mxu0 0.0
      %1317 = vmatprep.subr.mxu0 0.0
      %1318 = vmatpush1.msra.mxu0 0.0
      %1319 = vmatprep.subr.mxu0 0.0
      %1320 = vmatpush1.msra.mxu0 0.0
      %1321 = vmatprep.subr.mxu0 0.0
      %1322 = vmatpush1.msra.mxu0 0.0
      %1323 = vmatprep.subr.mxu0 0.0
      %1324 = vmatpush1.msra.mxu0 0.0
      %1325 = vmatprep.subr.mxu0 0.0
      %1326 = vmatpush1.msra.mxu0 0.0
      %1327 = vmatprep.subr.mxu0 0.0
      %1328 = vmatpush1.msra.mxu0 0.0
      %1329 = vmatprep.subr.mxu0 0.0
      %1330 = vmatpush1.msra.mxu0 0.0
      %1331 = vmatprep.subr.mxu0 0.0
      %1332 = vmatpush1.msra.mxu0 0.0
      %1333 = vmatprep.subr.mxu0 0.0
      %1334 = vmatpush1.msra.mxu0 0.0
      %1335 = vmatprep.subr.mxu0 0.0
      %1336 = vmatpush1.msra.mxu0 0.0
      %1337 = vmatprep.subr.mxu0 0.0
      %1338 = vmatpush1.msra.mxu0 0.0
      %1339 = vmatprep.subr.mxu0 0.0
      %1340 = vmatpush1.msra.mxu0 0.0
      %1341 = vmatprep.subr.mxu0 0.0
      %1342 = vmatpush1.msra.mxu0 0.0
      %1343 = vmatprep.subr.mxu0 0.0
      %1344 = vmatpush1.msra.mxu0 0.0
      %1345 = vmatprep.subr.mxu0 0.0
      %1346 = vmatpush1.msra.mxu0 0.0
      %1347 = vmatprep.subr.mxu0 0.0
      %1348 = vmatpush1.msra.mxu0 0.0
      %1349 = vmatprep.subr.mxu0 0.0
      %1350 = vmatpush1.msra.mxu0 0.0
      %1351 = vmatprep.subr.mxu0 0.0
      %1352 = vmatpush1.msra.mxu0 0.0
      %1353 = vmatprep.subr.mxu0 0.0
      %1354 = vmatpush1.msra.mxu0 0.0
      %1355 = vmatprep.subr.mxu0 0.0
      %1356 = vmatpush1.msra.mxu0 0.0
      %1357 = vmatprep.subr.mxu0 0.0
      %1358 = vmatpush1.msra.mxu0 0.0
      %1359 = vmatprep.subr.mxu0 0.0
      %1360 = vmatpush1.msra.mxu0 0.0
      %1361 = vmatprep.subr.mxu0 0.0
      %1362 = vmatpush1.msra.mxu0 0.0
      %1363 = vmatprep.subr.mxu0 0.0
      %1364 = vmatpush1.msra.mxu0 0.0
      %1365 = vmatprep.subr.mxu0 0.0
      %1366 = vmatpush1.msra.mxu0 0.0
      %1367 = vmatprep.subr.mxu0 0.0
      %1368 = vmatpush1.msra.mxu0 0.0
      %1369 = vmatprep.subr.mxu0 0.0
      %1370 = vmatpush1.msra.mxu0 0.0
      %1371 = vmatprep.subr.mxu0 0.0
      %1372 = vmatpush1.msra.mxu0 0.0
      %1373 = vmatprep.mubr.f32.mxu0 0.0
      %1374 = vmatmul.mubr.f32.gmra.mrb[0].mxu0 %v1305
      %v1375 = vpop.f32.mrb[0].mxu0
      %v1376 = vadd.f32 0.0, %v1375
      %v1377 = vpop.f32.mrb[0].mxu0
      %1378 = vdwg.mxu0
      %1379 = vrot.lane.b32.xlu0 %v779, 64
      %v1380 = vpop.permute.xlu0 %1379
      %v1382 = vsel %vm1225, %v1221, 0
      %v1384 = vsel %vm1229, %v1380, 0
      %1386 = vmatprep.subr.mxu0 0.0
      %1387 = vmatpush1.msra.mxu0 %v1384
      %1388 = vmatprep.subr.mxu0 0.0
      %1389 = vmatpush1.msra.mxu0 0.0
      %1390 = vmatprep.subr.mxu0 0.0
      %1391 = vmatpush1.msra.mxu0 0.0
      %1392 = vmatprep.subr.mxu0 0.0
      %1393 = vmatpush1.msra.mxu0 0.0
      %1394 = vmatprep.subr.mxu0 0.0
      %1395 = vmatpush1.msra.mxu0 0.0
      %1396 = vmatprep.subr.mxu0 0.0
      %1397 = vmatpush1.msra.mxu0 0.0
      %1398 = vmatprep.subr.mxu0 0.0
      %1399 = vmatpush1.msra.mxu0 0.0
      %1400 = vmatprep.subr.mxu0 0.0
      %1401 = vmatpush1.msra.mxu0 0.0
      %1402 = vmatprep.subr.mxu0 0.0
      %1403 = vmatpush1.msra.mxu0 0.0
      %1404 = vmatprep.subr.mxu0 0.0
      %1405 = vmatpush1.msra.mxu0 0.0
      %1406 = vmatprep.subr.mxu0 0.0
      %1407 = vmatpush1.msra.mxu0 0.0
      %1408 = vmatprep.subr.mxu0 0.0
      %1409 = vmatpush1.msra.mxu0 0.0
      %1410 = vmatprep.subr.mxu0 0.0
      %1411 = vmatpush1.msra.mxu0 0.0
      %1412 = vmatprep.subr.mxu0 0.0
      %1413 = vmatpush1.msra.mxu0 0.0
      %1414 = vmatprep.subr.mxu0 0.0
      %1415 = vmatpush1.msra.mxu0 0.0
      %1416 = vmatprep.subr.mxu0 0.0
      %1417 = vmatpush1.msra.mxu0 0.0
      %1418 = vmatprep.subr.mxu0 0.0
      %1419 = vmatpush1.msra.mxu0 0.0
      %1420 = vmatprep.subr.mxu0 0.0
      %1421 = vmatpush1.msra.mxu0 0.0
      %1422 = vmatprep.subr.mxu0 0.0
      %1423 = vmatpush1.msra.mxu0 0.0
      %1424 = vmatprep.subr.mxu0 0.0
      %1425 = vmatpush1.msra.mxu0 0.0
      %1426 = vmatprep.subr.mxu0 0.0
      %1427 = vmatpush1.msra.mxu0 0.0
      %1428 = vmatprep.subr.mxu0 0.0
      %1429 = vmatpush1.msra.mxu0 0.0
      %1430 = vmatprep.subr.mxu0 0.0
      %1431 = vmatpush1.msra.mxu0 0.0
      %1432 = vmatprep.subr.mxu0 0.0
      %1433 = vmatpush1.msra.mxu0 0.0
      %1434 = vmatprep.subr.mxu0 0.0
      %1435 = vmatpush1.msra.mxu0 0.0
      %1436 = vmatprep.subr.mxu0 0.0
      %1437 = vmatpush1.msra.mxu0 0.0
      %1438 = vmatprep.subr.mxu0 0.0
      %1439 = vmatpush1.msra.mxu0 0.0
      %1440 = vmatprep.subr.mxu0 0.0
      %1441 = vmatpush1.msra.mxu0 0.0
      %1442 = vmatprep.subr.mxu0 0.0
      %1443 = vmatpush1.msra.mxu0 0.0
      %1444 = vmatprep.subr.mxu0 0.0
      %1445 = vmatpush1.msra.mxu0 0.0
      %1446 = vmatprep.subr.mxu0 0.0
      %1447 = vmatpush1.msra.mxu0 0.0
      %1448 = vmatprep.subr.mxu0 0.0
      %1449 = vmatpush1.msra.mxu0 0.0
      %1450 = vmatprep.mubr.f32.mxu0 0.0
      %1451 = vmatmul.mubr.f32.gmra.mrb[0].mxu0 %v1382
      %v1452 = vpop.f32.mrb[0].mxu0
      %v1453 = vadd.f32 0.0, %v1452
      %v1454 = vpop.f32.mrb[0].mxu0
      %1455 = vdwg.mxu0
      %1456 = vrot.lane.b32.xlu0 %v852, 64
      %v1457 = vpop.permute.xlu0 %1456
      %v1459 = vsel %vm1225, %v1222, 0
      %v1461 = vsel %vm1229, %v1457, 0
      %1463 = vmatprep.subr.mxu0 0.0
      %1464 = vmatpush1.msra.mxu0 %v1461
      %1465 = vmatprep.subr.mxu0 0.0
      %1466 = vmatpush1.msra.mxu0 0.0
      %1467 = vmatprep.subr.mxu0 0.0
      %1468 = vmatpush1.msra.mxu0 0.0
      %1469 = vmatprep.subr.mxu0 0.0
      %1470 = vmatpush1.msra.mxu0 0.0
      %1471 = vmatprep.subr.mxu0 0.0
      %1472 = vmatpush1.msra.mxu0 0.0
      %1473 = vmatprep.subr.mxu0 0.0
      %1474 = vmatpush1.msra.mxu0 0.0
      %1475 = vmatprep.subr.mxu0 0.0
      %1476 = vmatpush1.msra.mxu0 0.0
      %1477 = vmatprep.subr.mxu0 0.0
      %1478 = vmatpush1.msra.mxu0 0.0
      %1479 = vmatprep.subr.mxu0 0.0
      %1480 = vmatpush1.msra.mxu0 0.0
      %1481 = vmatprep.subr.mxu0 0.0
      %1482 = vmatpush1.msra.mxu0 0.0
      %1483 = vmatprep.subr.mxu0 0.0
      %1484 = vmatpush1.msra.mxu0 0.0
      %1485 = vmatprep.subr.mxu0 0.0
      %1486 = vmatpush1.msra.mxu0 0.0
      %1487 = vmatprep.subr.mxu0 0.0
      %1488 = vmatpush1.msra.mxu0 0.0
      %1489 = vmatprep.subr.mxu0 0.0
      %1490 = vmatpush1.msra.mxu0 0.0
      %1491 = vmatprep.subr.mxu0 0.0
      %1492 = vmatpush1.msra.mxu0 0.0
      %1493 = vmatprep.subr.mxu0 0.0
      %1494 = vmatpush1.msra.mxu0 0.0
      %1495 = vmatprep.subr.mxu0 0.0
      %1496 = vmatpush1.msra.mxu0 0.0
      %1497 = vmatprep.subr.mxu0 0.0
      %1498 = vmatpush1.msra.mxu0 0.0
      %1499 = vmatprep.subr.mxu0 0.0
      %1500 = vmatpush1.msra.mxu0 0.0
      %1501 = vmatprep.subr.mxu0 0.0
      %1502 = vmatpush1.msra.mxu0 0.0
      %1503 = vmatprep.subr.mxu0 0.0
      %1504 = vmatpush1.msra.mxu0 0.0
      %1505 = vmatprep.subr.mxu0 0.0
      %1506 = vmatpush1.msra.mxu0 0.0
      %1507 = vmatprep.subr.mxu0 0.0
      %1508 = vmatpush1.msra.mxu0 0.0
      %1509 = vmatprep.subr.mxu0 0.0
      %1510 = vmatpush1.msra.mxu0 0.0
      %1511 = vmatprep.subr.mxu0 0.0
      %1512 = vmatpush1.msra.mxu0 0.0
      %1513 = vmatprep.subr.mxu0 0.0
      %1514 = vmatpush1.msra.mxu0 0.0
      %1515 = vmatprep.subr.mxu0 0.0
      %1516 = vmatpush1.msra.mxu0 0.0
      %1517 = vmatprep.subr.mxu0 0.0
      %1518 = vmatpush1.msra.mxu0 0.0
      %1519 = vmatprep.subr.mxu0 0.0
      %1520 = vmatpush1.msra.mxu0 0.0
      %1521 = vmatprep.subr.mxu0 0.0
      %1522 = vmatpush1.msra.mxu0 0.0
      %1523 = vmatprep.subr.mxu0 0.0
      %1524 = vmatpush1.msra.mxu0 0.0
      %1525 = vmatprep.subr.mxu0 0.0
      %1526 = vmatpush1.msra.mxu0 0.0
      %1527 = vmatprep.mubr.f32.mxu0 0.0
      %1528 = vmatmul.mubr.f32.gmra.mrb[0].mxu0 %v1459
      %v1529 = vpop.f32.mrb[0].mxu0
      %v1530 = vadd.f32 0.0, %v1529
      %v1531 = vpop.f32.mrb[0].mxu0
      %1532 = vdwg.mxu0
      %1533 = vrot.lane.b32.xlu0 %v861, 112
      %v1534 = vpop.permute.xlu0 %1533
      %1535 = vrot.lane.b32.xlu0 %v633, 80
      %v1536 = vpop.permute.xlu0 %1535
      %v1537 = vsel %vm868, %v1534, 0
      %v1539 = vsel %vm868, %v1536, 0
      %1541 = vmatprep.subr.mxu0 0.0
      %1542 = vmatpush1.xpose.msra.mxu0 %v1539
      %1543 = vmatprep.subr.mxu0 0.0
      %1544 = vmatpush1.xpose.msra.mxu0 0.0
      %1545 = vmatprep.subr.mxu0 0.0
      %1546 = vmatpush1.xpose.msra.mxu0 0.0
      %1547 = vmatprep.subr.mxu0 0.0
      %1548 = vmatpush1.xpose.msra.mxu0 0.0
      %1549 = vmatprep.subr.mxu0 0.0
      %1550 = vmatpush1.xpose.msra.mxu0 0.0
      %1551 = vmatprep.subr.mxu0 0.0
      %1552 = vmatpush1.xpose.msra.mxu0 0.0
      %1553 = vmatprep.subr.mxu0 0.0
      %1554 = vmatpush1.xpose.msra.mxu0 0.0
      %1555 = vmatprep.subr.mxu0 0.0
      %1556 = vmatpush1.xpose.msra.mxu0 0.0
      %1557 = vmatprep.subr.mxu0 0.0
      %1558 = vmatpush1.xpose.msra.mxu0 0.0
      %1559 = vmatprep.subr.mxu0 0.0
      %1560 = vmatpush1.xpose.msra.mxu0 0.0
      %1561 = vmatprep.subr.mxu0 0.0
      %1562 = vmatpush1.xpose.msra.mxu0 0.0
      %1563 = vmatprep.subr.mxu0 0.0
      %1564 = vmatpush1.xpose.msra.mxu0 0.0
      %1565 = vmatprep.subr.mxu0 0.0
      %1566 = vmatpush1.xpose.msra.mxu0 0.0
      %1567 = vmatprep.subr.mxu0 0.0
      %1568 = vmatpush1.xpose.msra.mxu0 0.0
      %1569 = vmatprep.subr.mxu0 0.0
      %1570 = vmatpush1.xpose.msra.mxu0 0.0
      %1571 = vmatprep.subr.mxu0 0.0
      %1572 = vmatpush1.xpose.msra.mxu0 0.0
      %1573 = vmatprep.subr.mxu0 0.0
      %1574 = vmatpush1.xpose.msra.mxu0 0.0
      %1575 = vmatprep.subr.mxu0 0.0
      %1576 = vmatpush1.xpose.msra.mxu0 0.0
      %1577 = vmatprep.subr.mxu0 0.0
      %1578 = vmatpush1.xpose.msra.mxu0 0.0
      %1579 = vmatprep.subr.mxu0 0.0
      %1580 = vmatpush1.xpose.msra.mxu0 0.0
      %1581 = vmatprep.subr.mxu0 0.0
      %1582 = vmatpush1.xpose.msra.mxu0 0.0
      %1583 = vmatprep.subr.mxu0 0.0
      %1584 = vmatpush1.xpose.msra.mxu0 0.0
      %1585 = vmatprep.subr.mxu0 0.0
      %1586 = vmatpush1.xpose.msra.mxu0 0.0
      %1587 = vmatprep.subr.mxu0 0.0
      %1588 = vmatpush1.xpose.msra.mxu0 0.0
      %1589 = vmatprep.subr.mxu0 0.0
      %1590 = vmatpush1.xpose.msra.mxu0 0.0
      %1591 = vmatprep.subr.mxu0 0.0
      %1592 = vmatpush1.xpose.msra.mxu0 0.0
      %1593 = vmatprep.subr.mxu0 0.0
      %1594 = vmatpush1.xpose.msra.mxu0 0.0
      %1595 = vmatprep.subr.mxu0 0.0
      %1596 = vmatpush1.xpose.msra.mxu0 0.0
      %1597 = vmatprep.subr.mxu0 0.0
      %1598 = vmatpush1.xpose.msra.mxu0 0.0
      %1599 = vmatprep.subr.mxu0 0.0
      %1600 = vmatpush1.xpose.msra.mxu0 0.0
      %1601 = vmatprep.subr.mxu0 0.0
      %1602 = vmatpush1.xpose.msra.mxu0 0.0
      %1603 = vmatprep.subr.mxu0 0.0
      %1604 = vmatpush1.xpose.msra.mxu0 0.0
      %1605 = vmatprep.mubr.f32.mxu0 0.0
      %1606 = vmatmul.mubr.f32.gmra.mrb[0].mxu0 %v1537
      %v1607 = vpop.f32.mrb[0].mxu0
      %v1608 = vadd.f32 %v860, %v1607
      %v1609 = vpop.f32.mrb[0].mxu0
      %1610 = vdwg.mxu0
      %1611 = vrot.lane.b32.xlu0 %v862, 112
      %v1612 = vpop.permute.xlu0 %1611
      %1613 = vrot.lane.b32.xlu0 %v706, 80
      %v1614 = vpop.permute.xlu0 %1613
      %v1615 = vsel %vm868, %v1612, 0
      %v1617 = vsel %vm868, %v1614, 0
      %1619 = vmatprep.subr.mxu0 0.0
      %1620 = vmatpush1.xpose.msra.mxu0 %v1617
      %1621 = vmatprep.subr.mxu0 0.0
      %1622 = vmatpush1.xpose.msra.mxu0 0.0
      %1623 = vmatprep.subr.mxu0 0.0
      %1624 = vmatpush1.xpose.msra.mxu0 0.0
      %1625 = vmatprep.subr.mxu0 0.0
      %1626 = vmatpush1.xpose.msra.mxu0 0.0
      %1627 = vmatprep.subr.mxu0 0.0
      %1628 = vmatpush1.xpose.msra.mxu0 0.0
      %1629 = vmatprep.subr.mxu0 0.0
      %1630 = vmatpush1.xpose.msra.mxu0 0.0
      %1631 = vmatprep.subr.mxu0 0.0
      %1632 = vmatpush1.xpose.msra.mxu0 0.0
      %1633 = vmatprep.subr.mxu0 0.0
      %1634 = vmatpush1.xpose.msra.mxu0 0.0
      %1635 = vmatprep.subr.mxu0 0.0
      %1636 = vmatpush1.xpose.msra.mxu0 0.0
      %1637 = vmatprep.subr.mxu0 0.0
      %1638 = vmatpush1.xpose.msra.mxu0 0.0
      %1639 = vmatprep.subr.mxu0 0.0
      %1640 = vmatpush1.xpose.msra.mxu0 0.0
      %1641 = vmatprep.subr.mxu0 0.0
      %1642 = vmatpush1.xpose.msra.mxu0 0.0
      %1643 = vmatprep.subr.mxu0 0.0
      %1644 = vmatpush1.xpose.msra.mxu0 0.0
      %1645 = vmatprep.subr.mxu0 0.0
      %1646 = vmatpush1.xpose.msra.mxu0 0.0
      %1647 = vmatprep.subr.mxu0 0.0
      %1648 = vmatpush1.xpose.msra.mxu0 0.0
      %1649 = vmatprep.subr.mxu0 0.0
      %1650 = vmatpush1.xpose.msra.mxu0 0.0
      %1651 = vmatprep.subr.mxu0 0.0
      %1652 = vmatpush1.xpose.msra.mxu0 0.0
      %1653 = vmatprep.subr.mxu0 0.0
      %1654 = vmatpush1.xpose.msra.mxu0 0.0
      %1655 = vmatprep.subr.mxu0 0.0
      %1656 = vmatpush1.xpose.msra.mxu0 0.0
      %1657 = vmatprep.subr.mxu0 0.0
      %1658 = vmatpush1.xpose.msra.mxu0 0.0
      %1659 = vmatprep.subr.mxu0 0.0
      %1660 = vmatpush1.xpose.msra.mxu0 0.0
      %1661 = vmatprep.subr.mxu0 0.0
      %1662 = vmatpush1.xpose.msra.mxu0 0.0
      %1663 = vmatprep.subr.mxu0 0.0
      %1664 = vmatpush1.xpose.msra.mxu0 0.0
      %1665 = vmatprep.subr.mxu0 0.0
      %1666 = vmatpush1.xpose.msra.mxu0 0.0
      %1667 = vmatprep.subr.mxu0 0.0
      %1668 = vmatpush1.xpose.msra.mxu0 0.0
      %1669 = vmatprep.subr.mxu0 0.0
      %1670 = vmatpush1.xpose.msra.mxu0 0.0
      %1671 = vmatprep.subr.mxu0 0.0
      %1672 = vmatpush1.xpose.msra.mxu0 0.0
      %1673 = vmatprep.subr.mxu0 0.0
      %1674 = vmatpush1.xpose.msra.mxu0 0.0
      %1675 = vmatprep.subr.mxu0 0.0
      %1676 = vmatpush1.xpose.msra.mxu0 0.0
      %1677 = vmatprep.subr.mxu0 0.0
      %1678 = vmatpush1.xpose.msra.mxu0 0.0
      %1679 = vmatprep.subr.mxu0 0.0
      %1680 = vmatpush1.xpose.msra.mxu0 0.0
      %1681 = vmatprep.subr.mxu0 0.0
      %1682 = vmatpush1.xpose.msra.mxu0 0.0
      %1683 = vmatprep.mubr.f32.mxu0 0.0
      %1684 = vmatmul.mubr.f32.gmra.mrb[0].mxu0 %v1615
      %v1685 = vpop.f32.mrb[0].mxu0
      %v1686 = vadd.f32 %v860, %v1685
      %v1687 = vpop.f32.mrb[0].mxu0
      %1688 = vdwg.mxu0
      %1689 = vrot.lane.b32.xlu0 %v863, 112
      %v1690 = vpop.permute.xlu0 %1689
      %1691 = vrot.lane.b32.xlu0 %v779, 80
      %v1692 = vpop.permute.xlu0 %1691
      %v1693 = vsel %vm868, %v1690, 0
      %v1695 = vsel %vm868, %v1692, 0
      %1697 = vmatprep.subr.mxu0 0.0
      %1698 = vmatpush1.xpose.msra.mxu0 %v1695
      %1699 = vmatprep.subr.mxu0 0.0
      %1700 = vmatpush1.xpose.msra.mxu0 0.0
      %1701 = vmatprep.subr.mxu0 0.0
      %1702 = vmatpush1.xpose.msra.mxu0 0.0
      %1703 = vmatprep.subr.mxu0 0.0
      %1704 = vmatpush1.xpose.msra.mxu0 0.0
      %1705 = vmatprep.subr.mxu0 0.0
      %1706 = vmatpush1.xpose.msra.mxu0 0.0
      %1707 = vmatprep.subr.mxu0 0.0
      %1708 = vmatpush1.xpose.msra.mxu0 0.0
      %1709 = vmatprep.subr.mxu0 0.0
      %1710 = vmatpush1.xpose.msra.mxu0 0.0
      %1711 = vmatprep.subr.mxu0 0.0
      %1712 = vmatpush1.xpose.msra.mxu0 0.0
      %1713 = vmatprep.subr.mxu0 0.0
      %1714 = vmatpush1.xpose.msra.mxu0 0.0
      %1715 = vmatprep.subr.mxu0 0.0
      %1716 = vmatpush1.xpose.msra.mxu0 0.0
      %1717 = vmatprep.subr.mxu0 0.0
      %1718 = vmatpush1.xpose.msra.mxu0 0.0
      %1719 = vmatprep.subr.mxu0 0.0
      %1720 = vmatpush1.xpose.msra.mxu0 0.0
      %1721 = vmatprep.subr.mxu0 0.0
      %1722 = vmatpush1.xpose.msra.mxu0 0.0
      %1723 = vmatprep.subr.mxu0 0.0
      %1724 = vmatpush1.xpose.msra.mxu0 0.0
      %1725 = vmatprep.subr.mxu0 0.0
      %1726 = vmatpush1.xpose.msra.mxu0 0.0
      %1727 = vmatprep.subr.mxu0 0.0
      %1728 = vmatpush1.xpose.msra.mxu0 0.0
      %1729 = vmatprep.subr.mxu0 0.0
      %1730 = vmatpush1.xpose.msra.mxu0 0.0
      %1731 = vmatprep.subr.mxu0 0.0
      %1732 = vmatpush1.xpose.msra.mxu0 0.0
      %1733 = vmatprep.subr.mxu0 0.0
      %1734 = vmatpush1.xpose.msra.mxu0 0.0
      %1735 = vmatprep.subr.mxu0 0.0
      %1736 = vmatpush1.xpose.msra.mxu0 0.0
      %1737 = vmatprep.subr.mxu0 0.0
      %1738 = vmatpush1.xpose.msra.mxu0 0.0
      %1739 = vmatprep.subr.mxu0 0.0
      %1740 = vmatpush1.xpose.msra.mxu0 0.0
      %1741 = vmatprep.subr.mxu0 0.0
      %1742 = vmatpush1.xpose.msra.mxu0 0.0
      %1743 = vmatprep.subr.mxu0 0.0
      %1744 = vmatpush1.xpose.msra.mxu0 0.0
      %1745 = vmatprep.subr.mxu0 0.0
      %1746 = vmatpush1.xpose.msra.mxu0 0.0
      %1747 = vmatprep.subr.mxu0 0.0
      %1748 = vmatpush1.xpose.msra.mxu0 0.0
      %1749 = vmatprep.subr.mxu0 0.0
      %1750 = vmatpush1.xpose.msra.mxu0 0.0
      %1751 = vmatprep.subr.mxu0 0.0
      %1752 = vmatpush1.xpose.msra.mxu0 0.0
      %1753 = vmatprep.subr.mxu0 0.0
      %1754 = vmatpush1.xpose.msra.mxu0 0.0
      %1755 = vmatprep.subr.mxu0 0.0
      %1756 = vmatpush1.xpose.msra.mxu0 0.0
      %1757 = vmatprep.subr.mxu0 0.0
      %1758 = vmatpush1.xpose.msra.mxu0 0.0
      %1759 = vmatprep.subr.mxu0 0.0
      %1760 = vmatpush1.xpose.msra.mxu0 0.0
      %1761 = vmatprep.mubr.f32.mxu0 0.0
      %1762 = vmatmul.mubr.f32.gmra.mrb[0].mxu0 %v1693
      %v1763 = vpop.f32.mrb[0].mxu0
      %v1764 = vadd.f32 %v860, %v1763
      %v1765 = vpop.f32.mrb[0].mxu0
      %1766 = vdwg.mxu0
      %1767 = vrot.lane.b32.xlu0 %v864, 112
      %v1768 = vpop.permute.xlu0 %1767
      %1769 = vrot.lane.b32.xlu0 %v852, 80
      %v1770 = vpop.permute.xlu0 %1769
      %v1771 = vsel %vm868, %v1768, 0
      %v1773 = vsel %vm868, %v1770, 0
      %1775 = vmatprep.subr.mxu0 0.0
      %1776 = vmatpush1.xpose.msra.mxu0 %v1773
      %1777 = vmatprep.subr.mxu0 0.0
      %1778 = vmatpush1.xpose.msra.mxu0 0.0
      %1779 = vmatprep.subr.mxu0 0.0
      %1780 = vmatpush1.xpose.msra.mxu0 0.0
      %1781 = vmatprep.subr.mxu0 0.0
      %1782 = vmatpush1.xpose.msra.mxu0 0.0
      %1783 = vmatprep.subr.mxu0 0.0
      %1784 = vmatpush1.xpose.msra.mxu0 0.0
      %1785 = vmatprep.subr.mxu0 0.0
      %1786 = vmatpush1.xpose.msra.mxu0 0.0
      %1787 = vmatprep.subr.mxu0 0.0
      %1788 = vmatpush1.xpose.msra.mxu0 0.0
      %1789 = vmatprep.subr.mxu0 0.0
      %1790 = vmatpush1.xpose.msra.mxu0 0.0
      %1791 = vmatprep.subr.mxu0 0.0
      %1792 = vmatpush1.xpose.msra.mxu0 0.0
      %1793 = vmatprep.subr.mxu0 0.0
      %1794 = vmatpush1.xpose.msra.mxu0 0.0
      %1795 = vmatprep.subr.mxu0 0.0
      %1796 = vmatpush1.xpose.msra.mxu0 0.0
      %1797 = vmatprep.subr.mxu0 0.0
      %1798 = vmatpush1.xpose.msra.mxu0 0.0
      %1799 = vmatprep.subr.mxu0 0.0
      %1800 = vmatpush1.xpose.msra.mxu0 0.0
      %1801 = vmatprep.subr.mxu0 0.0
      %1802 = vmatpush1.xpose.msra.mxu0 0.0
      %1803 = vmatprep.subr.mxu0 0.0
      %1804 = vmatpush1.xpose.msra.mxu0 0.0
      %1805 = vmatprep.subr.mxu0 0.0
      %1806 = vmatpush1.xpose.msra.mxu0 0.0
      %1807 = vmatprep.subr.mxu0 0.0
      %1808 = vmatpush1.xpose.msra.mxu0 0.0
      %1809 = vmatprep.subr.mxu0 0.0
      %1810 = vmatpush1.xpose.msra.mxu0 0.0
      %1811 = vmatprep.subr.mxu0 0.0
      %1812 = vmatpush1.xpose.msra.mxu0 0.0
      %1813 = vmatprep.subr.mxu0 0.0
      %1814 = vmatpush1.xpose.msra.mxu0 0.0
      %1815 = vmatprep.subr.mxu0 0.0
      %1816 = vmatpush1.xpose.msra.mxu0 0.0
      %1817 = vmatprep.subr.mxu0 0.0
      %1818 = vmatpush1.xpose.msra.mxu0 0.0
      %1819 = vmatprep.subr.mxu0 0.0
      %1820 = vmatpush1.xpose.msra.mxu0 0.0
      %1821 = vmatprep.subr.mxu0 0.0
      %1822 = vmatpush1.xpose.msra.mxu0 0.0
      %1823 = vmatprep.subr.mxu0 0.0
      %1824 = vmatpush1.xpose.msra.mxu0 0.0
      %1825 = vmatprep.subr.mxu0 0.0
      %1826 = vmatpush1.xpose.msra.mxu0 0.0
      %1827 = vmatprep.subr.mxu0 0.0
      %1828 = vmatpush1.xpose.msra.mxu0 0.0
      %1829 = vmatprep.subr.mxu0 0.0
      %1830 = vmatpush1.xpose.msra.mxu0 0.0
      %1831 = vmatprep.subr.mxu0 0.0
      %1832 = vmatpush1.xpose.msra.mxu0 0.0
      %1833 = vmatprep.subr.mxu0 0.0
      %1834 = vmatpush1.xpose.msra.mxu0 0.0
      %1835 = vmatprep.subr.mxu0 0.0
      %1836 = vmatpush1.xpose.msra.mxu0 0.0
      %1837 = vmatprep.subr.mxu0 0.0
      %1838 = vmatpush1.xpose.msra.mxu0 0.0
      %1839 = vmatprep.mubr.f32.mxu0 0.0
      %1840 = vmatmul.mubr.f32.gmra.mrb[0].mxu0 %v1771
      %v1841 = vpop.f32.mrb[0].mxu0
      %v1842 = vadd.f32 %v860, %v1841
      %v1843 = vpop.f32.mrb[0].mxu0
      %1844 = vdwg.mxu0
      %v1845 = vsel %vm1178, %v1608, -inf
      %1846 = vmax.xlane.f32.xlu0 %v1845
      %v1847 = vpop.xlane.xlu0 %1846
      %v1848 = vsel %vm1178, %v1686, -inf
      %1849 = vmax.xlane.f32.xlu0 %v1848
      %v1850 = vpop.xlane.xlu0 %1849
      %v1851 = vsel %vm1178, %v1764, -inf
      %1852 = vmax.xlane.f32.xlu0 %v1851
      %v1853 = vpop.xlane.xlu0 %1852
      %v1854 = vsel %vm1178, %v1842, -inf
      %1855 = vmax.xlane.f32.xlu0 %v1854
      %v1856 = vpop.xlane.xlu0 %1855
      %v1857 = vsub.f32 %v1608, %v1847
      %v1858 = vsub.f32 %v1686, %v1850
      %v1859 = vsub.f32 %v1764, %v1853
      %v1860 = vsub.f32 %v1842, %v1856
      %v1861 = vmul.f32 %v1857, 1.442695
      %v1862 = vpow.pop %v1861
      %v1863 = vmul.f32 %v1858, 1.442695
      %v1864 = vpow.pop %v1863
      %v1865 = vmul.f32 %v1859, 1.442695
      %v1866 = vpow.pop %v1865
      %v1867 = vmul.f32 %v1860, 1.442695
      %v1868 = vpow.pop %v1867
      %v1869 = vsel %vm1178, %v1862, 0.0
      %1870 = vadd.xlane.f32.xlu0 %v1869
      %v1871 = vpop.xlane.xlu0 %1870
      %v1872 = vsel %vm1178, %v1864, 0.0
      %1873 = vadd.xlane.f32.xlu0 %v1872
      %v1874 = vpop.xlane.xlu0 %1873
      %v1875 = vsel %vm1178, %v1866, 0.0
      %1876 = vadd.xlane.f32.xlu0 %v1875
      %v1877 = vpop.xlane.xlu0 %1876
      %v1878 = vsel %vm1178, %v1868, 0.0
      %1879 = vadd.xlane.f32.xlu0 %v1878
      %v1880 = vpop.xlane.xlu0 %1879
      %v1881 = vrcp.pop %v1871
      %v1882 = vrcp.pop %v1874
      %v1883 = vrcp.pop %v1877
      %v1884 = vrcp.pop %v1880
      %v1885 = vmul.f32 %v1862, %v1881
      %v1886 = vmul.f32 %v1864, %v1882
      %v1887 = vmul.f32 %v1866, %v1883
      %v1888 = vmul.f32 %v1868, %v1884
      %1889 = vrot.lane.b32.xlu0 %v633, 48
      %v1890 = vpop.permute.xlu0 %1889
      %v1892 = vsel %vm1225, %v1885, 0
      %v1894 = vsel %vm1229, %v1890, 0
      %1896 = vmatprep.subr.mxu0 0.0
      %1897 = vmatpush1.msra.mxu0 %v1894
      %1898 = vmatprep.subr.mxu0 0.0
      %1899 = vmatpush1.msra.mxu0 0.0
      %1900 = vmatprep.subr.mxu0 0.0
      %1901 = vmatpush1.msra.mxu0 0.0
      %1902 = vmatprep.subr.mxu0 0.0
      %1903 = vmatpush1.msra.mxu0 0.0
      %1904 = vmatprep.subr.mxu0 0.0
      %1905 = vmatpush1.msra.mxu0 0.0
      %1906 = vmatprep.subr.mxu0 0.0
      %1907 = vmatpush1.msra.mxu0 0.0
      %1908 = vmatprep.subr.mxu0 0.0
      %1909 = vmatpush1.msra.mxu0 0.0
      %1910 = vmatprep.subr.mxu0 0.0
      %1911 = vmatpush1.msra.mxu0 0.0
      %1912 = vmatprep.subr.mxu0 0.0
      %1913 = vmatpush1.msra.mxu0 0.0
      %1914 = vmatprep.subr.mxu0 0.0
      %1915 = vmatpush1.msra.mxu0 0.0
      %1916 = vmatprep.subr.mxu0 0.0
      %1917 = vmatpush1.msra.mxu0 0.0
      %1918 = vmatprep.subr.mxu0 0.0
      %1919 = vmatpush1.msra.mxu0 0.0
      %1920 = vmatprep.subr.mxu0 0.0
      %1921 = vmatpush1.msra.mxu0 0.0
      %1922 = vmatprep.subr.mxu0 0.0
      %1923 = vmatpush1.msra.mxu0 0.0
      %1924 = vmatprep.subr.mxu0 0.0
      %1925 = vmatpush1.msra.mxu0 0.0
      %1926 = vmatprep.subr.mxu0 0.0
      %1927 = vmatpush1.msra.mxu0 0.0
      %1928 = vmatprep.subr.mxu0 0.0
      %1929 = vmatpush1.msra.mxu0 0.0
      %1930 = vmatprep.subr.mxu0 0.0
      %1931 = vmatpush1.msra.mxu0 0.0
      %1932 = vmatprep.subr.mxu0 0.0
      %1933 = vmatpush1.msra.mxu0 0.0
      %1934 = vmatprep.subr.mxu0 0.0
      %1935 = vmatpush1.msra.mxu0 0.0
      %1936 = vmatprep.subr.mxu0 0.0
      %1937 = vmatpush1.msra.mxu0 0.0
      %1938 = vmatprep.subr.mxu0 0.0
      %1939 = vmatpush1.msra.mxu0 0.0
      %1940 = vmatprep.subr.mxu0 0.0
      %1941 = vmatpush1.msra.mxu0 0.0
      %1942 = vmatprep.subr.mxu0 0.0
      %1943 = vmatpush1.msra.mxu0 0.0
      %1944 = vmatprep.subr.mxu0 0.0
      %1945 = vmatpush1.msra.mxu0 0.0
      %1946 = vmatprep.subr.mxu0 0.0
      %1947 = vmatpush1.msra.mxu0 0.0
      %1948 = vmatprep.subr.mxu0 0.0
      %1949 = vmatpush1.msra.mxu0 0.0
      %1950 = vmatprep.subr.mxu0 0.0
      %1951 = vmatpush1.msra.mxu0 0.0
      %1952 = vmatprep.subr.mxu0 0.0
      %1953 = vmatpush1.msra.mxu0 0.0
      %1954 = vmatprep.subr.mxu0 0.0
      %1955 = vmatpush1.msra.mxu0 0.0
      %1956 = vmatprep.subr.mxu0 0.0
      %1957 = vmatpush1.msra.mxu0 0.0
      %1958 = vmatprep.subr.mxu0 0.0
      %1959 = vmatpush1.msra.mxu0 0.0
      %1960 = vmatprep.mubr.f32.mxu0 0.0
      %1961 = vmatmul.mubr.f32.gmra.mrb[0].mxu0 %v1892
      %v1962 = vpop.f32.mrb[0].mxu0
      %v1963 = vadd.f32 0.0, %v1962
      %v1964 = vpop.f32.mrb[0].mxu0
      %1965 = vdwg.mxu0
      %1966 = vrot.lane.b32.xlu0 %v706, 48
      %v1967 = vpop.permute.xlu0 %1966
      %v1969 = vsel %vm1225, %v1886, 0
      %v1971 = vsel %vm1229, %v1967, 0
      %1973 = vmatprep.subr.mxu0 0.0
      %1974 = vmatpush1.msra.mxu0 %v1971
      %1975 = vmatprep.subr.mxu0 0.0
      %1976 = vmatpush1.msra.mxu0 0.0
      %1977 = vmatprep.subr.mxu0 0.0
      %1978 = vmatpush1.msra.mxu0 0.0
      %1979 = vmatprep.subr.mxu0 0.0
      %1980 = vmatpush1.msra.mxu0 0.0
      %1981 = vmatprep.subr.mxu0 0.0
      %1982 = vmatpush1.msra.mxu0 0.0
      %1983 = vmatprep.subr.mxu0 0.0
      %1984 = vmatpush1.msra.mxu0 0.0
      %1985 = vmatprep.subr.mxu0 0.0
      %1986 = vmatpush1.msra.mxu0 0.0
      %1987 = vmatprep.subr.mxu0 0.0
      %1988 = vmatpush1.msra.mxu0 0.0
      %1989 = vmatprep.subr.mxu0 0.0
      %1990 = vmatpush1.msra.mxu0 0.0
      %1991 = vmatprep.subr.mxu0 0.0
      %1992 = vmatpush1.msra.mxu0 0.0
      %1993 = vmatprep.subr.mxu0 0.0
      %1994 = vmatpush1.msra.mxu0 0.0
      %1995 = vmatprep.subr.mxu0 0.0
      %1996 = vmatpush1.msra.mxu0 0.0
      %1997 = vmatprep.subr.mxu0 0.0
      %1998 = vmatpush1.msra.mxu0 0.0
      %1999 = vmatprep.subr.mxu0 0.0
      %2000 = vmatpush1.msra.mxu0 0.0
      %2001 = vmatprep.subr.mxu0 0.0
      %2002 = vmatpush1.msra.mxu0 0.0
      %2003 = vmatprep.subr.mxu0 0.0
      %2004 = vmatpush1.msra.mxu0 0.0
      %2005 = vmatprep.subr.mxu0 0.0
      %2006 = vmatpush1.msra.mxu0 0.0
      %2007 = vmatprep.subr.mxu0 0.0
      %2008 = vmatpush1.msra.mxu0 0.0
      %2009 = vmatprep.subr.mxu0 0.0
      %2010 = vmatpush1.msra.mxu0 0.0
      %2011 = vmatprep.subr.mxu0 0.0
      %2012 = vmatpush1.msra.mxu0 0.0
      %2013 = vmatprep.subr.mxu0 0.0
      %2014 = vmatpush1.msra.mxu0 0.0
      %2015 = vmatprep.subr.mxu0 0.0
      %2016 = vmatpush1.msra.mxu0 0.0
      %2017 = vmatprep.subr.mxu0 0.0
      %2018 = vmatpush1.msra.mxu0 0.0
      %2019 = vmatprep.subr.mxu0 0.0
      %2020 = vmatpush1.msra.mxu0 0.0
      %2021 = vmatprep.subr.mxu0 0.0
      %2022 = vmatpush1.msra.mxu0 0.0
      %2023 = vmatprep.subr.mxu0 0.0
      %2024 = vmatpush1.msra.mxu0 0.0
      %2025 = vmatprep.subr.mxu0 0.0
      %2026 = vmatpush1.msra.mxu0 0.0
      %2027 = vmatprep.subr.mxu0 0.0
      %2028 = vmatpush1.msra.mxu0 0.0
      %2029 = vmatprep.subr.mxu0 0.0
      %2030 = vmatpush1.msra.mxu0 0.0
      %2031 = vmatprep.subr.mxu0 0.0
      %2032 = vmatpush1.msra.mxu0 0.0
      %2033 = vmatprep.subr.mxu0 0.0
      %2034 = vmatpush1.msra.mxu0 0.0
      %2035 = vmatprep.subr.mxu0 0.0
      %2036 = vmatpush1.msra.mxu0 0.0
      %2037 = vmatprep.mubr.f32.mxu0 0.0
      %2038 = vmatmul.mubr.f32.gmra.mrb[0].mxu0 %v1969
      %v2039 = vpop.f32.mrb[0].mxu0
      %v2040 = vadd.f32 0.0, %v2039
      %v2041 = vpop.f32.mrb[0].mxu0
      %2042 = vdwg.mxu0
      %2043 = vrot.lane.b32.xlu0 %v779, 48
      %v2044 = vpop.permute.xlu0 %2043
      %v2046 = vsel %vm1225, %v1887, 0
      %v2048 = vsel %vm1229, %v2044, 0
      %2050 = vmatprep.subr.mxu0 0.0
      %2051 = vmatpush1.msra.mxu0 %v2048
      %2052 = vmatprep.subr.mxu0 0.0
      %2053 = vmatpush1.msra.mxu0 0.0
      %2054 = vmatprep.subr.mxu0 0.0
      %2055 = vmatpush1.msra.mxu0 0.0
      %2056 = vmatprep.subr.mxu0 0.0
      %2057 = vmatpush1.msra.mxu0 0.0
      %2058 = vmatprep.subr.mxu0 0.0
      %2059 = vmatpush1.msra.mxu0 0.0
      %2060 = vmatprep.subr.mxu0 0.0
      %2061 = vmatpush1.msra.mxu0 0.0
      %2062 = vmatprep.subr.mxu0 0.0
      %2063 = vmatpush1.msra.mxu0 0.0
      %2064 = vmatprep.subr.mxu0 0.0
      %2065 = vmatpush1.msra.mxu0 0.0
      %2066 = vmatprep.subr.mxu0 0.0
      %2067 = vmatpush1.msra.mxu0 0.0
      %2068 = vmatprep.subr.mxu0 0.0
      %2069 = vmatpush1.msra.mxu0 0.0
      %2070 = vmatprep.subr.mxu0 0.0
      %2071 = vmatpush1.msra.mxu0 0.0
      %2072 = vmatprep.subr.mxu0 0.0
      %2073 = vmatpush1.msra.mxu0 0.0
      %2074 = vmatprep.subr.mxu0 0.0
      %2075 = vmatpush1.msra.mxu0 0.0
      %2076 = vmatprep.subr.mxu0 0.0
      %2077 = vmatpush1.msra.mxu0 0.0
      %2078 = vmatprep.subr.mxu0 0.0
      %2079 = vmatpush1.msra.mxu0 0.0
      %2080 = vmatprep.subr.mxu0 0.0
      %2081 = vmatpush1.msra.mxu0 0.0
      %2082 = vmatprep.subr.mxu0 0.0
      %2083 = vmatpush1.msra.mxu0 0.0
      %2084 = vmatprep.subr.mxu0 0.0
      %2085 = vmatpush1.msra.mxu0 0.0
      %2086 = vmatprep.subr.mxu0 0.0
      %2087 = vmatpush1.msra.mxu0 0.0
      %2088 = vmatprep.subr.mxu0 0.0
      %2089 = vmatpush1.msra.mxu0 0.0
      %2090 = vmatprep.subr.mxu0 0.0
      %2091 = vmatpush1.msra.mxu0 0.0
      %2092 = vmatprep.subr.mxu0 0.0
      %2093 = vmatpush1.msra.mxu0 0.0
      %2094 = vmatprep.subr.mxu0 0.0
      %2095 = vmatpush1.msra.mxu0 0.0
      %2096 = vmatprep.subr.mxu0 0.0
      %2097 = vmatpush1.msra.mxu0 0.0
      %2098 = vmatprep.subr.mxu0 0.0
      %2099 = vmatpush1.msra.mxu0 0.0
      %2100 = vmatprep.subr.mxu0 0.0
      %2101 = vmatpush1.msra.mxu0 0.0
      %2102 = vmatprep.subr.mxu0 0.0
      %2103 = vmatpush1.msra.mxu0 0.0
      %2104 = vmatprep.subr.mxu0 0.0
      %2105 = vmatpush1.msra.mxu0 0.0
      %2106 = vmatprep.subr.mxu0 0.0
      %2107 = vmatpush1.msra.mxu0 0.0
      %2108 = vmatprep.subr.mxu0 0.0
      %2109 = vmatpush1.msra.mxu0 0.0
      %2110 = vmatprep.subr.mxu0 0.0
      %2111 = vmatpush1.msra.mxu0 0.0
      %2112 = vmatprep.subr.mxu0 0.0
      %2113 = vmatpush1.msra.mxu0 0.0
      %2114 = vmatprep.mubr.f32.mxu0 0.0
      %2115 = vmatmul.mubr.f32.gmra.mrb[0].mxu0 %v2046
      %v2116 = vpop.f32.mrb[0].mxu0
      %v2117 = vadd.f32 0.0, %v2116
      %v2118 = vpop.f32.mrb[0].mxu0
      %2119 = vdwg.mxu0
      %2120 = vrot.lane.b32.xlu0 %v852, 48
      %v2121 = vpop.permute.xlu0 %2120
      %v2123 = vsel %vm1225, %v1888, 0
      %v2125 = vsel %vm1229, %v2121, 0
      %2127 = vmatprep.subr.mxu0 0.0
      %2128 = vmatpush1.msra.mxu0 %v2125
      %2129 = vmatprep.subr.mxu0 0.0
      %2130 = vmatpush1.msra.mxu0 0.0
      %2131 = vmatprep.subr.mxu0 0.0
      %2132 = vmatpush1.msra.mxu0 0.0
      %2133 = vmatprep.subr.mxu0 0.0
      %2134 = vmatpush1.msra.mxu0 0.0
      %2135 = vmatprep.subr.mxu0 0.0
      %2136 = vmatpush1.msra.mxu0 0.0
      %2137 = vmatprep.subr.mxu0 0.0
      %2138 = vmatpush1.msra.mxu0 0.0
      %2139 = vmatprep.subr.mxu0 0.0
      %2140 = vmatpush1.msra.mxu0 0.0
      %2141 = vmatprep.subr.mxu0 0.0
      %2142 = vmatpush1.msra.mxu0 0.0
      %2143 = vmatprep.subr.mxu0 0.0
      %2144 = vmatpush1.msra.mxu0 0.0
      %2145 = vmatprep.subr.mxu0 0.0
      %2146 = vmatpush1.msra.mxu0 0.0
      %2147 = vmatprep.subr.mxu0 0.0
      %2148 = vmatpush1.msra.mxu0 0.0
      %2149 = vmatprep.subr.mxu0 0.0
      %2150 = vmatpush1.msra.mxu0 0.0
      %2151 = vmatprep.subr.mxu0 0.0
      %2152 = vmatpush1.msra.mxu0 0.0
      %2153 = vmatprep.subr.mxu0 0.0
      %2154 = vmatpush1.msra.mxu0 0.0
      %2155 = vmatprep.subr.mxu0 0.0
      %2156 = vmatpush1.msra.mxu0 0.0
      %2157 = vmatprep.subr.mxu0 0.0
      %2158 = vmatpush1.msra.mxu0 0.0
      %2159 = vmatprep.subr.mxu0 0.0
      %2160 = vmatpush1.msra.mxu0 0.0
      %2161 = vmatprep.subr.mxu0 0.0
      %2162 = vmatpush1.msra.mxu0 0.0
      %2163 = vmatprep.subr.mxu0 0.0
      %2164 = vmatpush1.msra.mxu0 0.0
      %2165 = vmatprep.subr.mxu0 0.0
      %2166 = vmatpush1.msra.mxu0 0.0
      %2167 = vmatprep.subr.mxu0 0.0
      %2168 = vmatpush1.msra.mxu0 0.0
      %2169 = vmatprep.subr.mxu0 0.0
      %2170 = vmatpush1.msra.mxu0 0.0
      %2171 = vmatprep.subr.mxu0 0.0
      %2172 = vmatpush1.msra.mxu0 0.0
      %2173 = vmatprep.subr.mxu0 0.0
      %2174 = vmatpush1.msra.mxu0 0.0
      %2175 = vmatprep.subr.mxu0 0.0
      %2176 = vmatpush1.msra.mxu0 0.0
      %2177 = vmatprep.subr.mxu0 0.0
      %2178 = vmatpush1.msra.mxu0 0.0
      %2179 = vmatprep.subr.mxu0 0.0
      %2180 = vmatpush1.msra.mxu0 0.0
      %2181 = vmatprep.subr.mxu0 0.0
      %2182 = vmatpush1.msra.mxu0 0.0
      %2183 = vmatprep.subr.mxu0 0.0
      %2184 = vmatpush1.msra.mxu0 0.0
      %2185 = vmatprep.subr.mxu0 0.0
      %2186 = vmatpush1.msra.mxu0 0.0
      %2187 = vmatprep.subr.mxu0 0.0
      %2188 = vmatpush1.msra.mxu0 0.0
      %2189 = vmatprep.subr.mxu0 0.0
      %2190 = vmatpush1.msra.mxu0 0.0
      %2191 = vmatprep.mubr.f32.mxu0 0.0
      %2192 = vmatmul.mubr.f32.gmra.mrb[0].mxu0 %v2123
      %v2193 = vpop.f32.mrb[0].mxu0
      %v2194 = vadd.f32 0.0, %v2193
      %v2195 = vpop.f32.mrb[0].mxu0
      %2196 = vdwg.mxu0
      %v2198 = vsel %vm868, %v1963, 0
      %2200 = vmatprep.subr.mxu0 0.0
      %2201 = vmatpush1.msra.mxu0 %v857
      %2202 = vmatprep.subr.mxu0 0.0
      %2203 = vmatpush1.msra.mxu0 %v858
      %2204 = vmatprep.subr.mxu0 0.0
      %2205 = vmatpush1.msra.mxu0 0.0
      %2206 = vmatprep.subr.mxu0 0.0
      %2207 = vmatpush1.msra.mxu0 0.0
      %2208 = vmatprep.subr.mxu0 0.0
      %2209 = vmatpush1.msra.mxu0 0.0
      %2210 = vmatprep.subr.mxu0 0.0
      %2211 = vmatpush1.msra.mxu0 0.0
      %2212 = vmatprep.subr.mxu0 0.0
      %2213 = vmatpush1.msra.mxu0 0.0
      %2214 = vmatprep.subr.mxu0 0.0
      %2215 = vmatpush1.msra.mxu0 0.0
      %2216 = vmatprep.subr.mxu0 0.0
      %2217 = vmatpush1.msra.mxu0 0.0
      %2218 = vmatprep.subr.mxu0 0.0
      %2219 = vmatpush1.msra.mxu0 0.0
      %2220 = vmatprep.subr.mxu0 0.0
      %2221 = vmatpush1.msra.mxu0 0.0
      %2222 = vmatprep.subr.mxu0 0.0
      %2223 = vmatpush1.msra.mxu0 0.0
      %2224 = vmatprep.subr.mxu0 0.0
      %2225 = vmatpush1.msra.mxu0 0.0
      %2226 = vmatprep.subr.mxu0 0.0
      %2227 = vmatpush1.msra.mxu0 0.0
      %2228 = vmatprep.subr.mxu0 0.0
      %2229 = vmatpush1.msra.mxu0 0.0
      %2230 = vmatprep.subr.mxu0 0.0
      %2231 = vmatpush1.msra.mxu0 0.0
      %2232 = vmatprep.subr.mxu0 0.0
      %2233 = vmatpush1.msra.mxu0 0.0
      %2234 = vmatprep.subr.mxu0 0.0
      %2235 = vmatpush1.msra.mxu0 0.0
      %2236 = vmatprep.subr.mxu0 0.0
      %2237 = vmatpush1.msra.mxu0 0.0
      %2238 = vmatprep.subr.mxu0 0.0
      %2239 = vmatpush1.msra.mxu0 0.0
      %2240 = vmatprep.subr.mxu0 0.0
      %2241 = vmatpush1.msra.mxu0 0.0
      %2242 = vmatprep.subr.mxu0 0.0
      %2243 = vmatpush1.msra.mxu0 0.0
      %2244 = vmatprep.subr.mxu0 0.0
      %2245 = vmatpush1.msra.mxu0 0.0
      %2246 = vmatprep.subr.mxu0 0.0
      %2247 = vmatpush1.msra.mxu0 0.0
      %2248 = vmatprep.subr.mxu0 0.0
      %2249 = vmatpush1.msra.mxu0 0.0
      %2250 = vmatprep.subr.mxu0 0.0
      %2251 = vmatpush1.msra.mxu0 0.0
      %2252 = vmatprep.subr.mxu0 0.0
      %2253 = vmatpush1.msra.mxu0 0.0
      %2254 = vmatprep.subr.mxu0 0.0
      %2255 = vmatpush1.msra.mxu0 0.0
      %2256 = vmatprep.subr.mxu0 0.0
      %2257 = vmatpush1.msra.mxu0 0.0
      %2258 = vmatprep.subr.mxu0 0.0
      %2259 = vmatpush1.msra.mxu0 0.0
      %2260 = vmatprep.subr.mxu0 0.0
      %2261 = vmatpush1.msra.mxu0 0.0
      %2262 = vmatprep.subr.mxu0 0.0
      %2263 = vmatpush1.msra.mxu0 0.0
      %2264 = vmatprep.mubr.f32.mxu0 0.0
      %2265 = vmatmul.mubr.f32.gmra.mrb[0].mxu0 %v2198
      %v2266 = vpop.f32.mrb[0].mxu0
      %v2267 = vadd.f32 0.0, %v2266
      %v2268 = vpop.f32.mrb[0].mxu0
      %2269 = vdwg.mxu0
      %v2271 = vsel %vm868, %v2040, 0
      %2273 = vmatprep.subr.mxu0 0.0
      %2274 = vmatpush1.msra.mxu0 %v857
      %2275 = vmatprep.subr.mxu0 0.0
      %2276 = vmatpush1.msra.mxu0 %v858
      %2277 = vmatprep.subr.mxu0 0.0
      %2278 = vmatpush1.msra.mxu0 0.0
      %2279 = vmatprep.subr.mxu0 0.0
      %2280 = vmatpush1.msra.mxu0 0.0
      %2281 = vmatprep.subr.mxu0 0.0
      %2282 = vmatpush1.msra.mxu0 0.0
      %2283 = vmatprep.subr.mxu0 0.0
      %2284 = vmatpush1.msra.mxu0 0.0
      %2285 = vmatprep.subr.mxu0 0.0
      %2286 = vmatpush1.msra.mxu0 0.0
      %2287 = vmatprep.subr.mxu0 0.0
      %2288 = vmatpush1.msra.mxu0 0.0
      %2289 = vmatprep.subr.mxu0 0.0
      %2290 = vmatpush1.msra.mxu0 0.0
      %2291 = vmatprep.subr.mxu0 0.0
      %2292 = vmatpush1.msra.mxu0 0.0
      %2293 = vmatprep.subr.mxu0 0.0
      %2294 = vmatpush1.msra.mxu0 0.0
      %2295 = vmatprep.subr.mxu0 0.0
      %2296 = vmatpush1.msra.mxu0 0.0
      %2297 = vmatprep.subr.mxu0 0.0
      %2298 = vmatpush1.msra.mxu0 0.0
      %2299 = vmatprep.subr.mxu0 0.0
      %2300 = vmatpush1.msra.mxu0 0.0
      %2301 = vmatprep.subr.mxu0 0.0
      %2302 = vmatpush1.msra.mxu0 0.0
      %2303 = vmatprep.subr.mxu0 0.0
      %2304 = vmatpush1.msra.mxu0 0.0
      %2305 = vmatprep.subr.mxu0 0.0
      %2306 = vmatpush1.msra.mxu0 0.0
      %2307 = vmatprep.subr.mxu0 0.0
      %2308 = vmatpush1.msra.mxu0 0.0
      %2309 = vmatprep.subr.mxu0 0.0
      %2310 = vmatpush1.msra.mxu0 0.0
      %2311 = vmatprep.subr.mxu0 0.0
      %2312 = vmatpush1.msra.mxu0 0.0
      %2313 = vmatprep.subr.mxu0 0.0
      %2314 = vmatpush1.msra.mxu0 0.0
      %2315 = vmatprep.subr.mxu0 0.0
      %2316 = vmatpush1.msra.mxu0 0.0
      %2317 = vmatprep.subr.mxu0 0.0
      %2318 = vmatpush1.msra.mxu0 0.0
      %2319 = vmatprep.subr.mxu0 0.0
      %2320 = vmatpush1.msra.mxu0 0.0
      %2321 = vmatprep.subr.mxu0 0.0
      %2322 = vmatpush1.msra.mxu0 0.0
      %2323 = vmatprep.subr.mxu0 0.0
      %2324 = vmatpush1.msra.mxu0 0.0
      %2325 = vmatprep.subr.mxu0 0.0
      %2326 = vmatpush1.msra.mxu0 0.0
      %2327 = vmatprep.subr.mxu0 0.0
      %2328 = vmatpush1.msra.mxu0 0.0
      %2329 = vmatprep.subr.mxu0 0.0
      %2330 = vmatpush1.msra.mxu0 0.0
      %2331 = vmatprep.subr.mxu0 0.0
      %2332 = vmatpush1.msra.mxu0 0.0
      %2333 = vmatprep.subr.mxu0 0.0
      %2334 = vmatpush1.msra.mxu0 0.0
      %2335 = vmatprep.subr.mxu0 0.0
      %2336 = vmatpush1.msra.mxu0 0.0
      %2337 = vmatprep.mubr.f32.mxu0 0.0
      %2338 = vmatmul.mubr.f32.gmra.mrb[0].mxu0 %v2271
      %v2339 = vpop.f32.mrb[0].mxu0
      %v2340 = vadd.f32 0.0, %v2339
      %v2341 = vpop.f32.mrb[0].mxu0
      %2342 = vdwg.mxu0
      %v2344 = vsel %vm868, %v2117, 0
      %2346 = vmatprep.subr.mxu0 0.0
      %2347 = vmatpush1.msra.mxu0 %v857
      %2348 = vmatprep.subr.mxu0 0.0
      %2349 = vmatpush1.msra.mxu0 %v858
      %2350 = vmatprep.subr.mxu0 0.0
      %2351 = vmatpush1.msra.mxu0 0.0
      %2352 = vmatprep.subr.mxu0 0.0
      %2353 = vmatpush1.msra.mxu0 0.0
      %2354 = vmatprep.subr.mxu0 0.0
      %2355 = vmatpush1.msra.mxu0 0.0
      %2356 = vmatprep.subr.mxu0 0.0
      %2357 = vmatpush1.msra.mxu0 0.0
      %2358 = vmatprep.subr.mxu0 0.0
      %2359 = vmatpush1.msra.mxu0 0.0
      %2360 = vmatprep.subr.mxu0 0.0
      %2361 = vmatpush1.msra.mxu0 0.0
      %2362 = vmatprep.subr.mxu0 0.0
      %2363 = vmatpush1.msra.mxu0 0.0
      %2364 = vmatprep.subr.mxu0 0.0
      %2365 = vmatpush1.msra.mxu0 0.0
      %2366 = vmatprep.subr.mxu0 0.0
      %2367 = vmatpush1.msra.mxu0 0.0
      %2368 = vmatprep.subr.mxu0 0.0
      %2369 = vmatpush1.msra.mxu0 0.0
      %2370 = vmatprep.subr.mxu0 0.0
      %2371 = vmatpush1.msra.mxu0 0.0
      %2372 = vmatprep.subr.mxu0 0.0
      %2373 = vmatpush1.msra.mxu0 0.0
      %2374 = vmatprep.subr.mxu0 0.0
      %2375 = vmatpush1.msra.mxu0 0.0
      %2376 = vmatprep.subr.mxu0 0.0
      %2377 = vmatpush1.msra.mxu0 0.0
      %2378 = vmatprep.subr.mxu0 0.0
      %2379 = vmatpush1.msra.mxu0 0.0
      %2380 = vmatprep.subr.mxu0 0.0
      %2381 = vmatpush1.msra.mxu0 0.0
      %2382 = vmatprep.subr.mxu0 0.0
      %2383 = vmatpush1.msra.mxu0 0.0
      %2384 = vmatprep.subr.mxu0 0.0
      %2385 = vmatpush1.msra.mxu0 0.0
      %2386 = vmatprep.subr.mxu0 0.0
      %2387 = vmatpush1.msra.mxu0 0.0
      %2388 = vmatprep.subr.mxu0 0.0
      %2389 = vmatpush1.msra.mxu0 0.0
      %2390 = vmatprep.subr.mxu0 0.0
      %2391 = vmatpush1.msra.mxu0 0.0
      %2392 = vmatprep.subr.mxu0 0.0
      %2393 = vmatpush1.msra.mxu0 0.0
      %2394 = vmatprep.subr.mxu0 0.0
      %2395 = vmatpush1.msra.mxu0 0.0
      %2396 = vmatprep.subr.mxu0 0.0
      %2397 = vmatpush1.msra.mxu0 0.0
      %2398 = vmatprep.subr.mxu0 0.0
      %2399 = vmatpush1.msra.mxu0 0.0
      %2400 = vmatprep.subr.mxu0 0.0
      %2401 = vmatpush1.msra.mxu0 0.0
      %2402 = vmatprep.subr.mxu0 0.0
      %2403 = vmatpush1.msra.mxu0 0.0
      %2404 = vmatprep.subr.mxu0 0.0
      %2405 = vmatpush1.msra.mxu0 0.0
      %2406 = vmatprep.subr.mxu0 0.0
      %2407 = vmatpush1.msra.mxu0 0.0
      %2408 = vmatprep.subr.mxu0 0.0
      %2409 = vmatpush1.msra.mxu0 0.0
      %2410 = vmatprep.mubr.f32.mxu0 0.0
      %2411 = vmatmul.mubr.f32.gmra.mrb[0].mxu0 %v2344
      %v2412 = vpop.f32.mrb[0].mxu0
      %v2413 = vadd.f32 0.0, %v2412
      %v2414 = vpop.f32.mrb[0].mxu0
      %2415 = vdwg.mxu0
      %v2417 = vsel %vm868, %v2194, 0
      %2419 = vmatprep.subr.mxu0 0.0
      %2420 = vmatpush1.msra.mxu0 %v857
      %2421 = vmatprep.subr.mxu0 0.0
      %2422 = vmatpush1.msra.mxu0 %v858
      %2423 = vmatprep.subr.mxu0 0.0
      %2424 = vmatpush1.msra.mxu0 0.0
      %2425 = vmatprep.subr.mxu0 0.0
      %2426 = vmatpush1.msra.mxu0 0.0
      %2427 = vmatprep.subr.mxu0 0.0
      %2428 = vmatpush1.msra.mxu0 0.0
      %2429 = vmatprep.subr.mxu0 0.0
      %2430 = vmatpush1.msra.mxu0 0.0
      %2431 = vmatprep.subr.mxu0 0.0
      %2432 = vmatpush1.msra.mxu0 0.0
      %2433 = vmatprep.subr.mxu0 0.0
      %2434 = vmatpush1.msra.mxu0 0.0
      %2435 = vmatprep.subr.mxu0 0.0
      %2436 = vmatpush1.msra.mxu0 0.0
      %2437 = vmatprep.subr.mxu0 0.0
      %2438 = vmatpush1.msra.mxu0 0.0
      %2439 = vmatprep.subr.mxu0 0.0
      %2440 = vmatpush1.msra.mxu0 0.0
      %2441 = vmatprep.subr.mxu0 0.0
      %2442 = vmatpush1.msra.mxu0 0.0
      %2443 = vmatprep.subr.mxu0 0.0
      %2444 = vmatpush1.msra.mxu0 0.0
      %2445 = vmatprep.subr.mxu0 0.0
      %2446 = vmatpush1.msra.mxu0 0.0
      %2447 = vmatprep.subr.mxu0 0.0
      %2448 = vmatpush1.msra.mxu0 0.0
      %2449 = vmatprep.subr.mxu0 0.0
      %2450 = vmatpush1.msra.mxu0 0.0
      %2451 = vmatprep.subr.mxu0 0.0
      %2452 = vmatpush1.msra.mxu0 0.0
      %2453 = vmatprep.subr.mxu0 0.0
      %2454 = vmatpush1.msra.mxu0 0.0
      %2455 = vmatprep.subr.mxu0 0.0
      %2456 = vmatpush1.msra.mxu0 0.0
      %2457 = vmatprep.subr.mxu0 0.0
      %2458 = vmatpush1.msra.mxu0 0.0
      %2459 = vmatprep.subr.mxu0 0.0
      %2460 = vmatpush1.msra.mxu0 0.0
      %2461 = vmatprep.subr.mxu0 0.0
      %2462 = vmatpush1.msra.mxu0 0.0
      %2463 = vmatprep.subr.mxu0 0.0
      %2464 = vmatpush1.msra.mxu0 0.0
      %2465 = vmatprep.subr.mxu0 0.0
      %2466 = vmatpush1.msra.mxu0 0.0
      %2467 = vmatprep.subr.mxu0 0.0
      %2468 = vmatpush1.msra.mxu0 0.0
      %2469 = vmatprep.subr.mxu0 0.0
      %2470 = vmatpush1.msra.mxu0 0.0
      %2471 = vmatprep.subr.mxu0 0.0
      %2472 = vmatpush1.msra.mxu0 0.0
      %2473 = vmatprep.subr.mxu0 0.0
      %2474 = vmatpush1.msra.mxu0 0.0
      %2475 = vmatprep.subr.mxu0 0.0
      %2476 = vmatpush1.msra.mxu0 0.0
      %2477 = vmatprep.subr.mxu0 0.0
      %2478 = vmatpush1.msra.mxu0 0.0
      %2479 = vmatprep.subr.mxu0 0.0
      %2480 = vmatpush1.msra.mxu0 0.0
      %2481 = vmatprep.subr.mxu0 0.0
      %2482 = vmatpush1.msra.mxu0 0.0
      %2483 = vmatprep.mubr.f32.mxu0 0.0
      %2484 = vmatmul.mubr.f32.gmra.mrb[0].mxu0 %v2417
      %v2485 = vpop.f32.mrb[0].mxu0
      %v2486 = vadd.f32 0.0, %v2485
      %v2487 = vpop.f32.mrb[0].mxu0
      %2488 = vdwg.mxu0
      %v2490 = vsel %vm868, %v1299, 0
      %2492 = vmatprep.subr.mxu0 0.0
      %2493 = vmatpush1.msra.mxu0 %v855
      %2494 = vmatprep.subr.mxu0 0.0
      %2495 = vmatpush1.msra.mxu0 %v856
      %2496 = vmatprep.subr.mxu0 0.0
      %2497 = vmatpush1.msra.mxu0 0.0
      %2498 = vmatprep.subr.mxu0 0.0
      %2499 = vmatpush1.msra.mxu0 0.0
      %2500 = vmatprep.subr.mxu0 0.0
      %2501 = vmatpush1.msra.mxu0 0.0
      %2502 = vmatprep.subr.mxu0 0.0
      %2503 = vmatpush1.msra.mxu0 0.0
      %2504 = vmatprep.subr.mxu0 0.0
      %2505 = vmatpush1.msra.mxu0 0.0
      %2506 = vmatprep.subr.mxu0 0.0
      %2507 = vmatpush1.msra.mxu0 0.0
      %2508 = vmatprep.subr.mxu0 0.0
      %2509 = vmatpush1.msra.mxu0 0.0
      %2510 = vmatprep.subr.mxu0 0.0
      %2511 = vmatpush1.msra.mxu0 0.0
      %2512 = vmatprep.subr.mxu0 0.0
      %2513 = vmatpush1.msra.mxu0 0.0
      %2514 = vmatprep.subr.mxu0 0.0
      %2515 = vmatpush1.msra.mxu0 0.0
      %2516 = vmatprep.subr.mxu0 0.0
      %2517 = vmatpush1.msra.mxu0 0.0
      %2518 = vmatprep.subr.mxu0 0.0
      %2519 = vmatpush1.msra.mxu0 0.0
      %2520 = vmatprep.subr.mxu0 0.0
      %2521 = vmatpush1.msra.mxu0 0.0
      %2522 = vmatprep.subr.mxu0 0.0
      %2523 = vmatpush1.msra.mxu0 0.0
      %2524 = vmatprep.subr.mxu0 0.0
      %2525 = vmatpush1.msra.mxu0 0.0
      %2526 = vmatprep.subr.mxu0 0.0
      %2527 = vmatpush1.msra.mxu0 0.0
      %2528 = vmatprep.subr.mxu0 0.0
      %2529 = vmatpush1.msra.mxu0 0.0
      %2530 = vmatprep.subr.mxu0 0.0
      %2531 = vmatpush1.msra.mxu0 0.0
      %2532 = vmatprep.subr.mxu0 0.0
      %2533 = vmatpush1.msra.mxu0 0.0
      %2534 = vmatprep.subr.mxu0 0.0
      %2535 = vmatpush1.msra.mxu0 0.0
      %2536 = vmatprep.subr.mxu0 0.0
      %2537 = vmatpush1.msra.mxu0 0.0
      %2538 = vmatprep.subr.mxu0 0.0
      %2539 = vmatpush1.msra.mxu0 0.0
      %2540 = vmatprep.subr.mxu0 0.0
      %2541 = vmatpush1.msra.mxu0 0.0
      %2542 = vmatprep.subr.mxu0 0.0
      %2543 = vmatpush1.msra.mxu0 0.0
      %2544 = vmatprep.subr.mxu0 0.0
      %2545 = vmatpush1.msra.mxu0 0.0
      %2546 = vmatprep.subr.mxu0 0.0
      %2547 = vmatpush1.msra.mxu0 0.0
      %2548 = vmatprep.subr.mxu0 0.0
      %2549 = vmatpush1.msra.mxu0 0.0
      %2550 = vmatprep.subr.mxu0 0.0
      %2551 = vmatpush1.msra.mxu0 0.0
      %2552 = vmatprep.subr.mxu0 0.0
      %2553 = vmatpush1.msra.mxu0 0.0
      %2554 = vmatprep.subr.mxu0 0.0
      %2555 = vmatpush1.msra.mxu0 0.0
      %2556 = vmatprep.mubr.f32.mxu0 0.0
      %2557 = vmatmul.mubr.f32.gmra.mrb[0].mxu0 %v2490
      %v2558 = vpop.f32.mrb[0].mxu0
      %v2559 = vadd.f32 %v2267, %v2558
      %v2560 = vpop.f32.mrb[0].mxu0
      %2561 = vdwg.mxu0
      %v2563 = vsel %vm868, %v1376, 0
      %2565 = vmatprep.subr.mxu0 0.0
      %2566 = vmatpush1.msra.mxu0 %v855
      %2567 = vmatprep.subr.mxu0 0.0
      %2568 = vmatpush1.msra.mxu0 %v856
      %2569 = vmatprep.subr.mxu0 0.0
      %2570 = vmatpush1.msra.mxu0 0.0
      %2571 = vmatprep.subr.mxu0 0.0
      %2572 = vmatpush1.msra.mxu0 0.0
      %2573 = vmatprep.subr.mxu0 0.0
      %2574 = vmatpush1.msra.mxu0 0.0
      %2575 = vmatprep.subr.mxu0 0.0
      %2576 = vmatpush1.msra.mxu0 0.0
      %2577 = vmatprep.subr.mxu0 0.0
      %2578 = vmatpush1.msra.mxu0 0.0
      %2579 = vmatprep.subr.mxu0 0.0
      %2580 = vmatpush1.msra.mxu0 0.0
      %2581 = vmatprep.subr.mxu0 0.0
      %2582 = vmatpush1.msra.mxu0 0.0
      %2583 = vmatprep.subr.mxu0 0.0
      %2584 = vmatpush1.msra.mxu0 0.0
      %2585 = vmatprep.subr.mxu0 0.0
      %2586 = vmatpush1.msra.mxu0 0.0
      %2587 = vmatprep.subr.mxu0 0.0
      %2588 = vmatpush1.msra.mxu0 0.0
      %2589 = vmatprep.subr.mxu0 0.0
      %2590 = vmatpush1.msra.mxu0 0.0
      %2591 = vmatprep.subr.mxu0 0.0
      %2592 = vmatpush1.msra.mxu0 0.0
      %2593 = vmatprep.subr.mxu0 0.0
      %2594 = vmatpush1.msra.mxu0 0.0
      %2595 = vmatprep.subr.mxu0 0.0
      %2596 = vmatpush1.msra.mxu0 0.0
      %2597 = vmatprep.subr.mxu0 0.0
      %2598 = vmatpush1.msra.mxu0 0.0
      %2599 = vmatprep.subr.mxu0 0.0
      %2600 = vmatpush1.msra.mxu0 0.0
      %2601 = vmatprep.subr.mxu0 0.0
      %2602 = vmatpush1.msra.mxu0 0.0
      %2603 = vmatprep.subr.mxu0 0.0
      %2604 = vmatpush1.msra.mxu0 0.0
      %2605 = vmatprep.subr.mxu0 0.0
      %2606 = vmatpush1.msra.mxu0 0.0
      %2607 = vmatprep.subr.mxu0 0.0
      %2608 = vmatpush1.msra.mxu0 0.0
      %2609 = vmatprep.subr.mxu0 0.0
      %2610 = vmatpush1.msra.mxu0 0.0
      %2611 = vmatprep.subr.mxu0 0.0
      %2612 = vmatpush1.msra.mxu0 0.0
      %2613 = vmatprep.subr.mxu0 0.0
      %2614 = vmatpush1.msra.mxu0 0.0
      %2615 = vmatprep.subr.mxu0 0.0
      %2616 = vmatpush1.msra.mxu0 0.0
      %2617 = vmatprep.subr.mxu0 0.0
      %2618 = vmatpush1.msra.mxu0 0.0
      %2619 = vmatprep.subr.mxu0 0.0
      %2620 = vmatpush1.msra.mxu0 0.0
      %2621 = vmatprep.subr.mxu0 0.0
      %2622 = vmatpush1.msra.mxu0 0.0
      %2623 = vmatprep.subr.mxu0 0.0
      %2624 = vmatpush1.msra.mxu0 0.0
      %2625 = vmatprep.subr.mxu0 0.0
      %2626 = vmatpush1.msra.mxu0 0.0
      %2627 = vmatprep.subr.mxu0 0.0
      %2628 = vmatpush1.msra.mxu0 0.0
      %2629 = vmatprep.mubr.f32.mxu0 0.0
      %2630 = vmatmul.mubr.f32.gmra.mrb[0].mxu0 %v2563
      %v2631 = vpop.f32.mrb[0].mxu0
      %v2632 = vadd.f32 %v2340, %v2631
      %v2633 = vpop.f32.mrb[0].mxu0
      %2634 = vdwg.mxu0
      %v2636 = vsel %vm868, %v1453, 0
      %2638 = vmatprep.subr.mxu0 0.0
      %2639 = vmatpush1.msra.mxu0 %v855
      %2640 = vmatprep.subr.mxu0 0.0
      %2641 = vmatpush1.msra.mxu0 %v856
      %2642 = vmatprep.subr.mxu0 0.0
      %2643 = vmatpush1.msra.mxu0 0.0
      %2644 = vmatprep.subr.mxu0 0.0
      %2645 = vmatpush1.msra.mxu0 0.0
      %2646 = vmatprep.subr.mxu0 0.0
      %2647 = vmatpush1.msra.mxu0 0.0
      %2648 = vmatprep.subr.mxu0 0.0
      %2649 = vmatpush1.msra.mxu0 0.0
      %2650 = vmatprep.subr.mxu0 0.0
      %2651 = vmatpush1.msra.mxu0 0.0
      %2652 = vmatprep.subr.mxu0 0.0
      %2653 = vmatpush1.msra.mxu0 0.0
      %2654 = vmatprep.subr.mxu0 0.0
      %2655 = vmatpush1.msra.mxu0 0.0
      %2656 = vmatprep.subr.mxu0 0.0
      %2657 = vmatpush1.msra.mxu0 0.0
      %2658 = vmatprep.subr.mxu0 0.0
      %2659 = vmatpush1.msra.mxu0 0.0
      %2660 = vmatprep.subr.mxu0 0.0
      %2661 = vmatpush1.msra.mxu0 0.0
      %2662 = vmatprep.subr.mxu0 0.0
      %2663 = vmatpush1.msra.mxu0 0.0
      %2664 = vmatprep.subr.mxu0 0.0
      %2665 = vmatpush1.msra.mxu0 0.0
      %2666 = vmatprep.subr.mxu0 0.0
      %2667 = vmatpush1.msra.mxu0 0.0
      %2668 = vmatprep.subr.mxu0 0.0
      %2669 = vmatpush1.msra.mxu0 0.0
      %2670 = vmatprep.subr.mxu0 0.0
      %2671 = vmatpush1.msra.mxu0 0.0
      %2672 = vmatprep.subr.mxu0 0.0
      %2673 = vmatpush1.msra.mxu0 0.0
      %2674 = vmatprep.subr.mxu0 0.0
      %2675 = vmatpush1.msra.mxu0 0.0
      %2676 = vmatprep.subr.mxu0 0.0
      %2677 = vmatpush1.msra.mxu0 0.0
      %2678 = vmatprep.subr.mxu0 0.0
      %2679 = vmatpush1.msra.mxu0 0.0
      %2680 = vmatprep.subr.mxu0 0.0
      %2681 = vmatpush1.msra.mxu0 0.0
      %2682 = vmatprep.subr.mxu0 0.0
      %2683 = vmatpush1.msra.mxu0 0.0
      %2684 = vmatprep.subr.mxu0 0.0
      %2685 = vmatpush1.msra.mxu0 0.0
      %2686 = vmatprep.subr.mxu0 0.0
      %2687 = vmatpush1.msra.mxu0 0.0
      %2688 = vmatprep.subr.mxu0 0.0
      %2689 = vmatpush1.msra.mxu0 0.0
      %2690 = vmatprep.subr.mxu0 0.0
      %2691 = vmatpush1.msra.mxu0 0.0
      %2692 = vmatprep.subr.mxu0 0.0
      %2693 = vmatpush1.msra.mxu0 0.0
      %2694 = vmatprep.subr.mxu0 0.0
      %2695 = vmatpush1.msra.mxu0 0.0
      %2696 = vmatprep.subr.mxu0 0.0
      %2697 = vmatpush1.msra.mxu0 0.0
      %2698 = vmatprep.subr.mxu0 0.0
      %2699 = vmatpush1.msra.mxu0 0.0
      %2700 = vmatprep.subr.mxu0 0.0
      %2701 = vmatpush1.msra.mxu0 0.0
      %2702 = vmatprep.mubr.f32.mxu0 0.0
      %2703 = vmatmul.mubr.f32.gmra.mrb[0].mxu0 %v2636
      %v2704 = vpop.f32.mrb[0].mxu0
      %v2705 = vadd.f32 %v2413, %v2704
      %v2706 = vpop.f32.mrb[0].mxu0
      %2707 = vdwg.mxu0
      %v2709 = vsel %vm868, %v1530, 0
      %2711 = vmatprep.subr.mxu0 0.0
      %2712 = vmatpush1.msra.mxu0 %v855
      %2713 = vmatprep.subr.mxu0 0.0
      %2714 = vmatpush1.msra.mxu0 %v856
      %2715 = vmatprep.subr.mxu0 0.0
      %2716 = vmatpush1.msra.mxu0 0.0
      %2717 = vmatprep.subr.mxu0 0.0
      %2718 = vmatpush1.msra.mxu0 0.0
      %2719 = vmatprep.subr.mxu0 0.0
      %2720 = vmatpush1.msra.mxu0 0.0
      %2721 = vmatprep.subr.mxu0 0.0
      %2722 = vmatpush1.msra.mxu0 0.0
      %2723 = vmatprep.subr.mxu0 0.0
      %2724 = vmatpush1.msra.mxu0 0.0
      %2725 = vmatprep.subr.mxu0 0.0
      %2726 = vmatpush1.msra.mxu0 0.0
      %2727 = vmatprep.subr.mxu0 0.0
      %2728 = vmatpush1.msra.mxu0 0.0
      %2729 = vmatprep.subr.mxu0 0.0
      %2730 = vmatpush1.msra.mxu0 0.0
      %2731 = vmatprep.subr.mxu0 0.0
      %2732 = vmatpush1.msra.mxu0 0.0
      %2733 = vmatprep.subr.mxu0 0.0
      %2734 = vmatpush1.msra.mxu0 0.0
      %2735 = vmatprep.subr.mxu0 0.0
      %2736 = vmatpush1.msra.mxu0 0.0
      %2737 = vmatprep.subr.mxu0 0.0
      %2738 = vmatpush1.msra.mxu0 0.0
      %2739 = vmatprep.subr.mxu0 0.0
      %2740 = vmatpush1.msra.mxu0 0.0
      %2741 = vmatprep.subr.mxu0 0.0
      %2742 = vmatpush1.msra.mxu0 0.0
      %2743 = vmatprep.subr.mxu0 0.0
      %2744 = vmatpush1.msra.mxu0 0.0
      %2745 = vmatprep.subr.mxu0 0.0
      %2746 = vmatpush1.msra.mxu0 0.0
      %2747 = vmatprep.subr.mxu0 0.0
      %2748 = vmatpush1.msra.mxu0 0.0
      %2749 = vmatprep.subr.mxu0 0.0
      %2750 = vmatpush1.msra.mxu0 0.0
      %2751 = vmatprep.subr.mxu0 0.0
      %2752 = vmatpush1.msra.mxu0 0.0
      %2753 = vmatprep.subr.mxu0 0.0
      %2754 = vmatpush1.msra.mxu0 0.0
      %2755 = vmatprep.subr.mxu0 0.0
      %2756 = vmatpush1.msra.mxu0 0.0
      %2757 = vmatprep.subr.mxu0 0.0
      %2758 = vmatpush1.msra.mxu0 0.0
      %2759 = vmatprep.subr.mxu0 0.0
      %2760 = vmatpush1.msra.mxu0 0.0
      %2761 = vmatprep.subr.mxu0 0.0
      %2762 = vmatpush1.msra.mxu0 0.0
      %2763 = vmatprep.subr.mxu0 0.0
      %2764 = vmatpush1.msra.mxu0 0.0
      %2765 = vmatprep.subr.mxu0 0.0
      %2766 = vmatpush1.msra.mxu0 0.0
      %2767 = vmatprep.subr.mxu0 0.0
      %2768 = vmatpush1.msra.mxu0 0.0
      %2769 = vmatprep.subr.mxu0 0.0
      %2770 = vmatpush1.msra.mxu0 0.0
      %2771 = vmatprep.subr.mxu0 0.0
      %2772 = vmatpush1.msra.mxu0 0.0
      %2773 = vmatprep.subr.mxu0 0.0
      %2774 = vmatpush1.msra.mxu0 0.0
      %2775 = vmatprep.mubr.f32.mxu0 0.0
      %2776 = vmatmul.mubr.f32.gmra.mrb[0].mxu0 %v2709
      %v2777 = vpop.f32.mrb[0].mxu0
      %v2778 = vadd.f32 %v2486, %v2777
      %v2779 = vpop.f32.mrb[0].mxu0
      %2780 = vdwg.mxu0
      %v2781 = vadd.f32 %v471, %v2559
      %v2782 = vadd.f32 %v472, %v2632
      %v2783 = vadd.f32 %v473, %v2705
      %v2784 = vadd.f32 %v474, %v2778
      %v2785 = vld [vmem:[%s7] sm:$0x1]
      %v2787 = vlaneseq
      %v2788 = vshrl.u32 %v2787, 7
      %v2789 = vsub.s32 0, %v2788
      %v2790 = vrot.slane %v2785, %v2789
      %v2792 = vadd.f32 %v2781, %v2790
      %v2793 = vadd.f32 %v2782, %v2790
      %v2794 = vadd.f32 %v2783, %v2790
      %v2795 = vadd.f32 %v2784, %v2790
      %v2796 = vld [vmem:[%s8] sm:$0x1]
      %v2797 = vld [vmem:[%s9] sm:$0x1]
      %v2798 = vsel %vm477, %v2792, 0.0
      %2799 = vadd.xlane.f32.xlu0 %v2798
      %v2800 = vpop.xlane.xlu0 %2799
      %v2801 = vsel %vm477, %v2793, 0.0
      %2802 = vadd.xlane.f32.xlu0 %v2801
      %v2803 = vpop.xlane.xlu0 %2802
      %v2804 = vsel %vm477, %v2794, 0.0
      %2805 = vadd.xlane.f32.xlu0 %v2804
      %v2806 = vpop.xlane.xlu0 %2805
      %v2807 = vsel %vm477, %v2795, 0.0
      %2808 = vadd.xlane.f32.xlu0 %v2807
      %v2809 = vpop.xlane.xlu0 %2808
      %v2810 = vmul.f32 %v2800, %v490
      %v2811 = vmul.f32 %v2803, %v490
      %v2812 = vmul.f32 %v2806, %v490
      %v2813 = vmul.f32 %v2809, %v490
      %v2814 = vsub.f32 %v2792, %v2810
      %v2815 = vsub.f32 %v2793, %v2811
      %v2816 = vsub.f32 %v2794, %v2812
      %v2817 = vsub.f32 %v2795, %v2813
      %v2818 = vmul.f32 %v2814, %v2814
      %v2819 = vmul.f32 %v2815, %v2815
      %v2820 = vmul.f32 %v2816, %v2816
      %v2821 = vmul.f32 %v2817, %v2817
      %v2822 = vsel %vm477, %v2818, 0.0
      %2823 = vadd.xlane.f32.xlu0 %v2822
      %v2824 = vpop.xlane.xlu0 %2823
      %v2825 = vsel %vm477, %v2819, 0.0
      %2826 = vadd.xlane.f32.xlu0 %v2825
      %v2827 = vpop.xlane.xlu0 %2826
      %v2828 = vsel %vm477, %v2820, 0.0
      %2829 = vadd.xlane.f32.xlu0 %v2828
      %v2830 = vpop.xlane.xlu0 %2829
      %v2831 = vsel %vm477, %v2821, 0.0
      %2832 = vadd.xlane.f32.xlu0 %v2831
      %v2833 = vpop.xlane.xlu0 %2832
      %v2834 = vmul.f32 %v2824, %v490
      %v2835 = vmul.f32 %v2827, %v490
      %v2836 = vmul.f32 %v2830, %v490
      %v2837 = vmul.f32 %v2833, %v490
      %v2838 = vadd.f32 %v2834, 1e-05
      %v2839 = vadd.f32 %v2835, 1e-05
      %v2840 = vadd.f32 %v2836, 1e-05
      %v2841 = vadd.f32 %v2837, 1e-05
      %v2842 = vrsqrt.pop %v2838
      %v2843 = vrsqrt.pop %v2839
      %v2844 = vrsqrt.pop %v2840
      %v2845 = vrsqrt.pop %v2841
      %v2846 = vmul.f32 %v2814, %v2842
      %v2847 = vmul.f32 %v2815, %v2843
      %v2848 = vmul.f32 %v2816, %v2844
      %v2849 = vmul.f32 %v2817, %v2845
      %v2851 = vlaneseq
      %v2852 = vshrl.u32 %v2851, 7
      %v2853 = vsub.s32 0, %v2852
      %v2854 = vrot.slane %v2796, %v2853
      %v2856 = vmul.f32 %v2846, %v2854
      %v2857 = vmul.f32 %v2847, %v2854
      %v2858 = vmul.f32 %v2848, %v2854
      %v2859 = vmul.f32 %v2849, %v2854
      %v2861 = vlaneseq
      %v2862 = vshrl.u32 %v2861, 7
      %v2863 = vsub.s32 0, %v2862
      %v2864 = vrot.slane %v2797, %v2863
      %v2866 = vadd.f32 %v2856, %v2864
      %v2867 = vadd.f32 %v2857, %v2864
      %v2868 = vadd.f32 %v2858, %v2864
      %v2869 = vadd.f32 %v2859, %v2864
      %v2870 = vld [vmem:[%s10] sm:$0xff]
      %v2871 = vld [vmem:[%s10 + $0x8] sm:$0xff]
      %v2872 = vld [vmem:[%s10 + $0x10] sm:$0xff]
      %v2873 = vld [vmem:[%s10 + $0x18] sm:$0xff]
      %v2874 = vld [vmem:[%s11] sm:$0x1]
      %v2876 = vlaneseq
      %v2877 = vshrl.u32 %v2876, 7
      %v2878 = vsub.s32 0, %v2877
      %v2879 = vrot.slane %v2874, %v2878
      %v2882 = vsel %vm562, %v2866, 0
      %2884 = vmatprep.subr.mxu0 0.0
      %2885 = vmatpush1.msra.mxu0 %v2870
      %2886 = vmatprep.subr.mxu0 0.0
      %2887 = vmatpush1.msra.mxu0 %v2871
      %2888 = vmatprep.subr.mxu0 0.0
      %2889 = vmatpush1.msra.mxu0 %v2872
      %2890 = vmatprep.subr.mxu0 0.0
      %2891 = vmatpush1.msra.mxu0 %v2873
      %2892 = vmatprep.subr.mxu0 0.0
      %2893 = vmatpush1.msra.mxu0 0.0
      %2894 = vmatprep.subr.mxu0 0.0
      %2895 = vmatpush1.msra.mxu0 0.0
      %2896 = vmatprep.subr.mxu0 0.0
      %2897 = vmatpush1.msra.mxu0 0.0
      %2898 = vmatprep.subr.mxu0 0.0
      %2899 = vmatpush1.msra.mxu0 0.0
      %2900 = vmatprep.subr.mxu0 0.0
      %2901 = vmatpush1.msra.mxu0 0.0
      %2902 = vmatprep.subr.mxu0 0.0
      %2903 = vmatpush1.msra.mxu0 0.0
      %2904 = vmatprep.subr.mxu0 0.0
      %2905 = vmatpush1.msra.mxu0 0.0
      %2906 = vmatprep.subr.mxu0 0.0
      %2907 = vmatpush1.msra.mxu0 0.0
      %2908 = vmatprep.subr.mxu0 0.0
      %2909 = vmatpush1.msra.mxu0 0.0
      %2910 = vmatprep.subr.mxu0 0.0
      %2911 = vmatpush1.msra.mxu0 0.0
      %2912 = vmatprep.subr.mxu0 0.0
      %2913 = vmatpush1.msra.mxu0 0.0
      %2914 = vmatprep.subr.mxu0 0.0
      %2915 = vmatpush1.msra.mxu0 0.0
      %2916 = vmatprep.subr.mxu0 0.0
      %2917 = vmatpush1.msra.mxu0 0.0
      %2918 = vmatprep.subr.mxu0 0.0
      %2919 = vmatpush1.msra.mxu0 0.0
      %2920 = vmatprep.subr.mxu0 0.0
      %2921 = vmatpush1.msra.mxu0 0.0
      %2922 = vmatprep.subr.mxu0 0.0
      %2923 = vmatpush1.msra.mxu0 0.0
      %2924 = vmatprep.subr.mxu0 0.0
      %2925 = vmatpush1.msra.mxu0 0.0
      %2926 = vmatprep.subr.mxu0 0.0
      %2927 = vmatpush1.msra.mxu0 0.0
      %2928 = vmatprep.subr.mxu0 0.0
      %2929 = vmatpush1.msra.mxu0 0.0
      %2930 = vmatprep.subr.mxu0 0.0
      %2931 = vmatpush1.msra.mxu0 0.0
      %2932 = vmatprep.subr.mxu0 0.0
      %2933 = vmatpush1.msra.mxu0 0.0
      %2934 = vmatprep.subr.mxu0 0.0
      %2935 = vmatpush1.msra.mxu0 0.0
      %2936 = vmatprep.subr.mxu0 0.0
      %2937 = vmatpush1.msra.mxu0 0.0
      %2938 = vmatprep.subr.mxu0 0.0
      %2939 = vmatpush1.msra.mxu0 0.0
      %2940 = vmatprep.subr.mxu0 0.0
      %2941 = vmatpush1.msra.mxu0 0.0
      %2942 = vmatprep.subr.mxu0 0.0
      %2943 = vmatpush1.msra.mxu0 0.0
      %2944 = vmatprep.subr.mxu0 0.0
      %2945 = vmatpush1.msra.mxu0 0.0
      %2946 = vmatprep.subr.mxu0 0.0
      %2947 = vmatpush1.msra.mxu0 0.0
      %2948 = vmatprep.mubr.f32.mxu0 0.0
      %2949 = vmatmul.mubr.f32.gmra.mrb[0].mxu0 %v2882
      %v2950 = vpop.f32.mrb[0].mxu0
      %v2951 = vadd.f32 %v2879, %v2950
      %v2952 = vpop.f32.mrb[0].mxu0
      %2953 = vdwg.mxu0
      %v2955 = vsel %vm562, %v2867, 0
      %2957 = vmatprep.subr.mxu0 0.0
      %2958 = vmatpush1.msra.mxu0 %v2870
      %2959 = vmatprep.subr.mxu0 0.0
      %2960 = vmatpush1.msra.mxu0 %v2871
      %2961 = vmatprep.subr.mxu0 0.0
      %2962 = vmatpush1.msra.mxu0 %v2872
      %2963 = vmatprep.subr.mxu0 0.0
      %2964 = vmatpush1.msra.mxu0 %v2873
      %2965 = vmatprep.subr.mxu0 0.0
      %2966 = vmatpush1.msra.mxu0 0.0
      %2967 = vmatprep.subr.mxu0 0.0
      %2968 = vmatpush1.msra.mxu0 0.0
      %2969 = vmatprep.subr.mxu0 0.0
      %2970 = vmatpush1.msra.mxu0 0.0
      %2971 = vmatprep.subr.mxu0 0.0
      %2972 = vmatpush1.msra.mxu0 0.0
      %2973 = vmatprep.subr.mxu0 0.0
      %2974 = vmatpush1.msra.mxu0 0.0
      %2975 = vmatprep.subr.mxu0 0.0
      %2976 = vmatpush1.msra.mxu0 0.0
      %2977 = vmatprep.subr.mxu0 0.0
      %2978 = vmatpush1.msra.mxu0 0.0
      %2979 = vmatprep.subr.mxu0 0.0
      %2980 = vmatpush1.msra.mxu0 0.0
      %2981 = vmatprep.subr.mxu0 0.0
      %2982 = vmatpush1.msra.mxu0 0.0
      %2983 = vmatprep.subr.mxu0 0.0
      %2984 = vmatpush1.msra.mxu0 0.0
      %2985 = vmatprep.subr.mxu0 0.0
      %2986 = vmatpush1.msra.mxu0 0.0
      %2987 = vmatprep.subr.mxu0 0.0
      %2988 = vmatpush1.msra.mxu0 0.0
      %2989 = vmatprep.subr.mxu0 0.0
      %2990 = vmatpush1.msra.mxu0 0.0
      %2991 = vmatprep.subr.mxu0 0.0
      %2992 = vmatpush1.msra.mxu0 0.0
      %2993 = vmatprep.subr.mxu0 0.0
      %2994 = vmatpush1.msra.mxu0 0.0
      %2995 = vmatprep.subr.mxu0 0.0
      %2996 = vmatpush1.msra.mxu0 0.0
      %2997 = vmatprep.subr.mxu0 0.0
      %2998 = vmatpush1.msra.mxu0 0.0
      %2999 = vmatprep.subr.mxu0 0.0
      %3000 = vmatpush1.msra.mxu0 0.0
      %3001 = vmatprep.subr.mxu0 0.0
      %3002 = vmatpush1.msra.mxu0 0.0
      %3003 = vmatprep.subr.mxu0 0.0
      %3004 = vmatpush1.msra.mxu0 0.0
      %3005 = vmatprep.subr.mxu0 0.0
      %3006 = vmatpush1.msra.mxu0 0.0
      %3007 = vmatprep.subr.mxu0 0.0
      %3008 = vmatpush1.msra.mxu0 0.0
      %3009 = vmatprep.subr.mxu0 0.0
      %3010 = vmatpush1.msra.mxu0 0.0
      %3011 = vmatprep.subr.mxu0 0.0
      %3012 = vmatpush1.msra.mxu0 0.0
      %3013 = vmatprep.subr.mxu0 0.0
      %3014 = vmatpush1.msra.mxu0 0.0
      %3015 = vmatprep.subr.mxu0 0.0
      %3016 = vmatpush1.msra.mxu0 0.0
      %3017 = vmatprep.subr.mxu0 0.0
      %3018 = vmatpush1.msra.mxu0 0.0
      %3019 = vmatprep.subr.mxu0 0.0
      %3020 = vmatpush1.msra.mxu0 0.0
      %3021 = vmatprep.mubr.f32.mxu0 0.0
      %3022 = vmatmul.mubr.f32.gmra.mrb[0].mxu0 %v2955
      %v3023 = vpop.f32.mrb[0].mxu0
      %v3024 = vadd.f32 %v2879, %v3023
      %v3025 = vpop.f32.mrb[0].mxu0
      %3026 = vdwg.mxu0
      %v3028 = vsel %vm562, %v2868, 0
      %3030 = vmatprep.subr.mxu0 0.0
      %3031 = vmatpush1.msra.mxu0 %v2870
      %3032 = vmatprep.subr.mxu0 0.0
      %3033 = vmatpush1.msra.mxu0 %v2871
      %3034 = vmatprep.subr.mxu0 0.0
      %3035 = vmatpush1.msra.mxu0 %v2872
      %3036 = vmatprep.subr.mxu0 0.0
      %3037 = vmatpush1.msra.mxu0 %v2873
      %3038 = vmatprep.subr.mxu0 0.0
      %3039 = vmatpush1.msra.mxu0 0.0
      %3040 = vmatprep.subr.mxu0 0.0
      %3041 = vmatpush1.msra.mxu0 0.0
      %3042 = vmatprep.subr.mxu0 0.0
      %3043 = vmatpush1.msra.mxu0 0.0
      %3044 = vmatprep.subr.mxu0 0.0
      %3045 = vmatpush1.msra.mxu0 0.0
      %3046 = vmatprep.subr.mxu0 0.0
      %3047 = vmatpush1.msra.mxu0 0.0
      %3048 = vmatprep.subr.mxu0 0.0
      %3049 = vmatpush1.msra.mxu0 0.0
      %3050 = vmatprep.subr.mxu0 0.0
      %3051 = vmatpush1.msra.mxu0 0.0
      %3052 = vmatprep.subr.mxu0 0.0
      %3053 = vmatpush1.msra.mxu0 0.0
      %3054 = vmatprep.subr.mxu0 0.0
      %3055 = vmatpush1.msra.mxu0 0.0
      %3056 = vmatprep.subr.mxu0 0.0
      %3057 = vmatpush1.msra.mxu0 0.0
      %3058 = vmatprep.subr.mxu0 0.0
      %3059 = vmatpush1.msra.mxu0 0.0
      %3060 = vmatprep.subr.mxu0 0.0
      %3061 = vmatpush1.msra.mxu0 0.0
      %3062 = vmatprep.subr.mxu0 0.0
      %3063 = vmatpush1.msra.mxu0 0.0
      %3064 = vmatprep.subr.mxu0 0.0
      %3065 = vmatpush1.msra.mxu0 0.0
      %3066 = vmatprep.subr.mxu0 0.0
      %3067 = vmatpush1.msra.mxu0 0.0
      %3068 = vmatprep.subr.mxu0 0.0
      %3069 = vmatpush1.msra.mxu0 0.0
      %3070 = vmatprep.subr.mxu0 0.0
      %3071 = vmatpush1.msra.mxu0 0.0
      %3072 = vmatprep.subr.mxu0 0.0
      %3073 = vmatpush1.msra.mxu0 0.0
      %3074 = vmatprep.subr.mxu0 0.0
      %3075 = vmatpush1.msra.mxu0 0.0
      %3076 = vmatprep.subr.mxu0 0.0
      %3077 = vmatpush1.msra.mxu0 0.0
      %3078 = vmatprep.subr.mxu0 0.0
      %3079 = vmatpush1.msra.mxu0 0.0
      %3080 = vmatprep.subr.mxu0 0.0
      %3081 = vmatpush1.msra.mxu0 0.0
      %3082 = vmatprep.subr.mxu0 0.0
      %3083 = vmatpush1.msra.mxu0 0.0
      %3084 = vmatprep.subr.mxu0 0.0
      %3085 = vmatpush1.msra.mxu0 0.0
      %3086 = vmatprep.subr.mxu0 0.0
      %3087 = vmatpush1.msra.mxu0 0.0
      %3088 = vmatprep.subr.mxu0 0.0
      %3089 = vmatpush1.msra.mxu0 0.0
      %3090 = vmatprep.subr.mxu0 0.0
      %3091 = vmatpush1.msra.mxu0 0.0
      %3092 = vmatprep.subr.mxu0 0.0
      %3093 = vmatpush1.msra.mxu0 0.0
      %3094 = vmatprep.mubr.f32.mxu0 0.0
      %3095 = vmatmul.mubr.f32.gmra.mrb[0].mxu0 %v3028
      %v3096 = vpop.f32.mrb[0].mxu0
      %v3097 = vadd.f32 %v2879, %v3096
      %v3098 = vpop.f32.mrb[0].mxu0
      %3099 = vdwg.mxu0
      %v3101 = vsel %vm562, %v2869, 0
      %3103 = vmatprep.subr.mxu0 0.0
      %3104 = vmatpush1.msra.mxu0 %v2870
      %3105 = vmatprep.subr.mxu0 0.0
      %3106 = vmatpush1.msra.mxu0 %v2871
      %3107 = vmatprep.subr.mxu0 0.0
      %3108 = vmatpush1.msra.mxu0 %v2872
      %3109 = vmatprep.subr.mxu0 0.0
      %3110 = vmatpush1.msra.mxu0 %v2873
      %3111 = vmatprep.subr.mxu0 0.0
      %3112 = vmatpush1.msra.mxu0 0.0
      %3113 = vmatprep.subr.mxu0 0.0
      %3114 = vmatpush1.msra.mxu0 0.0
      %3115 = vmatprep.subr.mxu0 0.0
      %3116 = vmatpush1.msra.mxu0 0.0
      %3117 = vmatprep.subr.mxu0 0.0
      %3118 = vmatpush1.msra.mxu0 0.0
      %3119 = vmatprep.subr.mxu0 0.0
      %3120 = vmatpush1.msra.mxu0 0.0
      %3121 = vmatprep.subr.mxu0 0.0
      %3122 = vmatpush1.msra.mxu0 0.0
      %3123 = vmatprep.subr.mxu0 0.0
      %3124 = vmatpush1.msra.mxu0 0.0
      %3125 = vmatprep.subr.mxu0 0.0
      %3126 = vmatpush1.msra.mxu0 0.0
      %3127 = vmatprep.subr.mxu0 0.0
      %3128 = vmatpush1.msra.mxu0 0.0
      %3129 = vmatprep.subr.mxu0 0.0
      %3130 = vmatpush1.msra.mxu0 0.0
      %3131 = vmatprep.subr.mxu0 0.0
      %3132 = vmatpush1.msra.mxu0 0.0
      %3133 = vmatprep.subr.mxu0 0.0
      %3134 = vmatpush1.msra.mxu0 0.0
      %3135 = vmatprep.subr.mxu0 0.0
      %3136 = vmatpush1.msra.mxu0 0.0
      %3137 = vmatprep.subr.mxu0 0.0
      %3138 = vmatpush1.msra.mxu0 0.0
      %3139 = vmatprep.subr.mxu0 0.0
      %3140 = vmatpush1.msra.mxu0 0.0
      %3141 = vmatprep.subr.mxu0 0.0
      %3142 = vmatpush1.msra.mxu0 0.0
      %3143 = vmatprep.subr.mxu0 0.0
      %3144 = vmatpush1.msra.mxu0 0.0
      %3145 = vmatprep.subr.mxu0 0.0
      %3146 = vmatpush1.msra.mxu0 0.0
      %3147 = vmatprep.subr.mxu0 0.0
      %3148 = vmatpush1.msra.mxu0 0.0
      %3149 = vmatprep.subr.mxu0 0.0
      %3150 = vmatpush1.msra.mxu0 0.0
      %3151 = vmatprep.subr.mxu0 0.0
      %3152 = vmatpush1.msra.mxu0 0.0
      %3153 = vmatprep.subr.mxu0 0.0
      %3154 = vmatpush1.msra.mxu0 0.0
      %3155 = vmatprep.subr.mxu0 0.0
      %3156 = vmatpush1.msra.mxu0 0.0
      %3157 = vmatprep.subr.mxu0 0.0
      %3158 = vmatpush1.msra.mxu0 0.0
      %3159 = vmatprep.subr.mxu0 0.0
      %3160 = vmatpush1.msra.mxu0 0.0
      %3161 = vmatprep.subr.mxu0 0.0
      %3162 = vmatpush1.msra.mxu0 0.0
      %3163 = vmatprep.subr.mxu0 0.0
      %3164 = vmatpush1.msra.mxu0 0.0
      %3165 = vmatprep.subr.mxu0 0.0
      %3166 = vmatpush1.msra.mxu0 0.0
      %3167 = vmatprep.mubr.f32.mxu0 0.0
      %3168 = vmatmul.mubr.f32.gmra.mrb[0].mxu0 %v3101
      %v3169 = vpop.f32.mrb[0].mxu0
      %v3170 = vadd.f32 %v2879, %v3169
      %v3171 = vpop.f32.mrb[0].mxu0
      %3172 = vdwg.mxu0
      %v3173 = vmul.f32 %v2951, %v2951
      %v3174 = vmul.f32 %v3024, %v3024
      %v3175 = vmul.f32 %v3097, %v3097
      %v3176 = vmul.f32 %v3170, %v3170
      %v3177 = vmul.f32 %v2951, %v3173
      %v3178 = vmul.f32 %v3024, %v3174
      %v3179 = vmul.f32 %v3097, %v3175
      %v3180 = vmul.f32 %v3170, %v3176
      %v3181 = vmul.f32 %v3177, 0.044715
      %v3182 = vmul.f32 %v3178, 0.044715
      %v3183 = vmul.f32 %v3179, 0.044715
      %v3184 = vmul.f32 %v3180, 0.044715
      %v3185 = vadd.f32 %v2951, %v3181
      %v3186 = vadd.f32 %v3024, %v3182
      %v3187 = vadd.f32 %v3097, %v3183
      %v3188 = vadd.f32 %v3170, %v3184
      %v3189 = vmul.f32 %v3185, 0.7978846
      %v3190 = vmul.f32 %v3186, 0.7978846
      %v3191 = vmul.f32 %v3187, 0.7978846
      %v3192 = vmul.f32 %v3188, 0.7978846
      %v3193 = vtanh.pop %v3189
      %v3194 = vtanh.pop %v3190
      %v3195 = vtanh.pop %v3191
      %v3196 = vtanh.pop %v3192
      %v3197 = vadd.f32 %v3193, 1.0
      %v3198 = vadd.f32 %v3194, 1.0
      %v3199 = vadd.f32 %v3195, 1.0
      %v3200 = vadd.f32 %v3196, 1.0
      %v3201 = vmul.f32 %v3197, 0.5
      %v3202 = vmul.f32 %v3198, 0.5
      %v3203 = vmul.f32 %v3199, 0.5
      %v3204 = vmul.f32 %v3200, 0.5
      %v3205 = vmul.f32 %v2951, %v3201
      %v3206 = vmul.f32 %v3024, %v3202
      %v3207 = vmul.f32 %v3097, %v3203
      %v3208 = vmul.f32 %v3170, %v3204
      %v3209 = vld [vmem:[%s12] sm:$0xff]
      %v3210 = vld [vmem:[%s12 + $0x8] sm:$0xff]
      %v3211 = vld [vmem:[%s12 + $0x10] sm:$0xff]
      %v3212 = vld [vmem:[%s12 + $0x18] sm:$0xff]
      %v3213 = vld [vmem:[%s12 + $0x20] sm:$0xff]
      %v3214 = vld [vmem:[%s12 + $0x28] sm:$0xff]
      %v3215 = vld [vmem:[%s12 + $0x30] sm:$0xff]
      %v3216 = vld [vmem:[%s12 + $0x38] sm:$0xff]
      %v3217 = vld [vmem:[%s12 + $0x40] sm:$0xff]
      %v3218 = vld [vmem:[%s12 + $0x48] sm:$0xff]
      %v3219 = vld [vmem:[%s12 + $0x50] sm:$0xff]
      %v3220 = vld [vmem:[%s12 + $0x58] sm:$0xff]
      %v3221 = vld [vmem:[%s12 + $0x60] sm:$0xff]
      %v3222 = vld [vmem:[%s12 + $0x68] sm:$0xff]
      %v3223 = vld [vmem:[%s12 + $0x70] sm:$0xff]
      %v3224 = vld [vmem:[%s12 + $0x78] sm:$0xff]
      %v3225 = vld [vmem:[%s13] sm:$0x1]
      %v3227 = vlaneseq
      %v3228 = vshrl.u32 %v3227, 7
      %v3229 = vsub.s32 0, %v3228
      %v3230 = vrot.slane %v3225, %v3229
      %3232 = vmatprep.subr.mxu0 0.0
      %3233 = vmatpush1.msra.mxu0 %v3209
      %3234 = vmatprep.subr.mxu0 0.0
      %3235 = vmatpush1.msra.mxu0 %v3210
      %3236 = vmatprep.subr.mxu0 0.0
      %3237 = vmatpush1.msra.mxu0 %v3211
      %3238 = vmatprep.subr.mxu0 0.0
      %3239 = vmatpush1.msra.mxu0 %v3212
      %3240 = vmatprep.subr.mxu0 0.0
      %3241 = vmatpush1.msra.mxu0 %v3213
      %3242 = vmatprep.subr.mxu0 0.0
      %3243 = vmatpush1.msra.mxu0 %v3214
      %3244 = vmatprep.subr.mxu0 0.0
      %3245 = vmatpush1.msra.mxu0 %v3215
      %3246 = vmatprep.subr.mxu0 0.0
      %3247 = vmatpush1.msra.mxu0 %v3216
      %3248 = vmatprep.subr.mxu0 0.0
      %3249 = vmatpush1.msra.mxu0 %v3217
      %3250 = vmatprep.subr.mxu0 0.0
      %3251 = vmatpush1.msra.mxu0 %v3218
      %3252 = vmatprep.subr.mxu0 0.0
      %3253 = vmatpush1.msra.mxu0 %v3219
      %3254 = vmatprep.subr.mxu0 0.0
      %3255 = vmatpush1.msra.mxu0 %v3220
      %3256 = vmatprep.subr.mxu0 0.0
      %3257 = vmatpush1.msra.mxu0 %v3221
      %3258 = vmatprep.subr.mxu0 0.0
      %3259 = vmatpush1.msra.mxu0 %v3222
      %3260 = vmatprep.subr.mxu0 0.0
      %3261 = vmatpush1.msra.mxu0 %v3223
      %3262 = vmatprep.subr.mxu0 0.0
      %3263 = vmatpush1.msra.mxu0 %v3224
      %3264 = vmatprep.subr.mxu0 0.0
      %3265 = vmatpush1.msra.mxu0 0.0
      %3266 = vmatprep.subr.mxu0 0.0
      %3267 = vmatpush1.msra.mxu0 0.0
      %3268 = vmatprep.subr.mxu0 0.0
      %3269 = vmatpush1.msra.mxu0 0.0
      %3270 = vmatprep.subr.mxu0 0.0
      %3271 = vmatpush1.msra.mxu0 0.0
      %3272 = vmatprep.subr.mxu0 0.0
      %3273 = vmatpush1.msra.mxu0 0.0
      %3274 = vmatprep.subr.mxu0 0.0
      %3275 = vmatpush1.msra.mxu0 0.0
      %3276 = vmatprep.subr.mxu0 0.0
      %3277 = vmatpush1.msra.mxu0 0.0
      %3278 = vmatprep.subr.mxu0 0.0
      %3279 = vmatpush1.msra.mxu0 0.0
      %3280 = vmatprep.subr.mxu0 0.0
      %3281 = vmatpush1.msra.mxu0 0.0
      %3282 = vmatprep.subr.mxu0 0.0
      %3283 = vmatpush1.msra.mxu0 0.0
      %3284 = vmatprep.subr.mxu0 0.0
      %3285 = vmatpush1.msra.mxu0 0.0
      %3286 = vmatprep.subr.mxu0 0.0
      %3287 = vmatpush1.msra.mxu0 0.0
      %3288 = vmatprep.subr.mxu0 0.0
      %3289 = vmatpush1.msra.mxu0 0.0
      %3290 = vmatprep.subr.mxu0 0.0
      %3291 = vmatpush1.msra.mxu0 0.0
      %3292 = vmatprep.subr.mxu0 0.0
      %3293 = vmatpush1.msra.mxu0 0.0
      %3294 = vmatprep.subr.mxu0 0.0
      %3295 = vmatpush1.msra.mxu0 0.0
      %3296 = vmatprep.mubr.f32.mxu0 0.0
      %3297 = vmatmul.mubr.f32.gmra.mrb[0].mxu0 %v3205
      %v3298 = vpop.f32.mrb[0].mxu0
      %v3299 = vadd.f32 %v3230, %v3298
      %v3300 = vpop.f32.mrb[0].mxu0
      %3301 = vdwg.mxu0
      %3302 = vmatprep.subr.mxu0 0.0
      %3303 = vmatpush1.msra.mxu0 %v3209
      %3304 = vmatprep.subr.mxu0 0.0
      %3305 = vmatpush1.msra.mxu0 %v3210
      %3306 = vmatprep.subr.mxu0 0.0
      %3307 = vmatpush1.msra.mxu0 %v3211
      %3308 = vmatprep.subr.mxu0 0.0
      %3309 = vmatpush1.msra.mxu0 %v3212
      %3310 = vmatprep.subr.mxu0 0.0
      %3311 = vmatpush1.msra.mxu0 %v3213
      %3312 = vmatprep.subr.mxu0 0.0
      %3313 = vmatpush1.msra.mxu0 %v3214
      %3314 = vmatprep.subr.mxu0 0.0
      %3315 = vmatpush1.msra.mxu0 %v3215
      %3316 = vmatprep.subr.mxu0 0.0
      %3317 = vmatpush1.msra.mxu0 %v3216
      %3318 = vmatprep.subr.mxu0 0.0
      %3319 = vmatpush1.msra.mxu0 %v3217
      %3320 = vmatprep.subr.mxu0 0.0
      %3321 = vmatpush1.msra.mxu0 %v3218
      %3322 = vmatprep.subr.mxu0 0.0
      %3323 = vmatpush1.msra.mxu0 %v3219
      %3324 = vmatprep.subr.mxu0 0.0
      %3325 = vmatpush1.msra.mxu0 %v3220
      %3326 = vmatprep.subr.mxu0 0.0
      %3327 = vmatpush1.msra.mxu0 %v3221
      %3328 = vmatprep.subr.mxu0 0.0
      %3329 = vmatpush1.msra.mxu0 %v3222
      %3330 = vmatprep.subr.mxu0 0.0
      %3331 = vmatpush1.msra.mxu0 %v3223
      %3332 = vmatprep.subr.mxu0 0.0
      %3333 = vmatpush1.msra.mxu0 %v3224
      %3334 = vmatprep.subr.mxu0 0.0
      %3335 = vmatpush1.msra.mxu0 0.0
      %3336 = vmatprep.subr.mxu0 0.0
      %3337 = vmatpush1.msra.mxu0 0.0
      %3338 = vmatprep.subr.mxu0 0.0
      %3339 = vmatpush1.msra.mxu0 0.0
      %3340 = vmatprep.subr.mxu0 0.0
      %3341 = vmatpush1.msra.mxu0 0.0
      %3342 = vmatprep.subr.mxu0 0.0
      %3343 = vmatpush1.msra.mxu0 0.0
      %3344 = vmatprep.subr.mxu0 0.0
      %3345 = vmatpush1.msra.mxu0 0.0
      %3346 = vmatprep.subr.mxu0 0.0
      %3347 = vmatpush1.msra.mxu0 0.0
      %3348 = vmatprep.subr.mxu0 0.0
      %3349 = vmatpush1.msra.mxu0 0.0
      %3350 = vmatprep.subr.mxu0 0.0
      %3351 = vmatpush1.msra.mxu0 0.0
      %3352 = vmatprep.subr.mxu0 0.0
      %3353 = vmatpush1.msra.mxu0 0.0
      %3354 = vmatprep.subr.mxu0 0.0
      %3355 = vmatpush1.msra.mxu0 0.0
      %3356 = vmatprep.subr.mxu0 0.0
      %3357 = vmatpush1.msra.mxu0 0.0
      %3358 = vmatprep.subr.mxu0 0.0
      %3359 = vmatpush1.msra.mxu0 0.0
      %3360 = vmatprep.subr.mxu0 0.0
      %3361 = vmatpush1.msra.mxu0 0.0
      %3362 = vmatprep.subr.mxu0 0.0
      %3363 = vmatpush1.msra.mxu0 0.0
      %3364 = vmatprep.subr.mxu0 0.0
      %3365 = vmatpush1.msra.mxu0 0.0
      %3366 = vmatprep.mubr.f32.mxu0 0.0
      %3367 = vmatmul.mubr.f32.gmra.mrb[0].mxu0 %v3206
      %v3368 = vpop.f32.mrb[0].mxu0
      %v3369 = vadd.f32 %v3230, %v3368
      %v3370 = vpop.f32.mrb[0].mxu0
      %3371 = vdwg.mxu0
      %3372 = vmatprep.subr.mxu0 0.0
      %3373 = vmatpush1.msra.mxu0 %v3209
      %3374 = vmatprep.subr.mxu0 0.0
      %3375 = vmatpush1.msra.mxu0 %v3210
      %3376 = vmatprep.subr.mxu0 0.0
      %3377 = vmatpush1.msra.mxu0 %v3211
      %3378 = vmatprep.subr.mxu0 0.0
      %3379 = vmatpush1.msra.mxu0 %v3212
      %3380 = vmatprep.subr.mxu0 0.0
      %3381 = vmatpush1.msra.mxu0 %v3213
      %3382 = vmatprep.subr.mxu0 0.0
      %3383 = vmatpush1.msra.mxu0 %v3214
      %3384 = vmatprep.subr.mxu0 0.0
      %3385 = vmatpush1.msra.mxu0 %v3215
      %3386 = vmatprep.subr.mxu0 0.0
      %3387 = vmatpush1.msra.mxu0 %v3216
      %3388 = vmatprep.subr.mxu0 0.0
      %3389 = vmatpush1.msra.mxu0 %v3217
      %3390 = vmatprep.subr.mxu0 0.0
      %3391 = vmatpush1.msra.mxu0 %v3218
      %3392 = vmatprep.subr.mxu0 0.0
      %3393 = vmatpush1.msra.mxu0 %v3219
      %3394 = vmatprep.subr.mxu0 0.0
      %3395 = vmatpush1.msra.mxu0 %v3220
      %3396 = vmatprep.subr.mxu0 0.0
      %3397 = vmatpush1.msra.mxu0 %v3221
      %3398 = vmatprep.subr.mxu0 0.0
      %3399 = vmatpush1.msra.mxu0 %v3222
      %3400 = vmatprep.subr.mxu0 0.0
      %3401 = vmatpush1.msra.mxu0 %v3223
      %3402 = vmatprep.subr.mxu0 0.0
      %3403 = vmatpush1.msra.mxu0 %v3224
      %3404 = vmatprep.subr.mxu0 0.0
      %3405 = vmatpush1.msra.mxu0 0.0
      %3406 = vmatprep.subr.mxu0 0.0
      %3407 = vmatpush1.msra.mxu0 0.0
      %3408 = vmatprep.subr.mxu0 0.0
      %3409 = vmatpush1.msra.mxu0 0.0
      %3410 = vmatprep.subr.mxu0 0.0
      %3411 = vmatpush1.msra.mxu0 0.0
      %3412 = vmatprep.subr.mxu0 0.0
      %3413 = vmatpush1.msra.mxu0 0.0
      %3414 = vmatprep.subr.mxu0 0.0
      %3415 = vmatpush1.msra.mxu0 0.0
      %3416 = vmatprep.subr.mxu0 0.0
      %3417 = vmatpush1.msra.mxu0 0.0
      %3418 = vmatprep.subr.mxu0 0.0
      %3419 = vmatpush1.msra.mxu0 0.0
      %3420 = vmatprep.subr.mxu0 0.0
      %3421 = vmatpush1.msra.mxu0 0.0
      %3422 = vmatprep.subr.mxu0 0.0
      %3423 = vmatpush1.msra.mxu0 0.0
      %3424 = vmatprep.subr.mxu0 0.0
      %3425 = vmatpush1.msra.mxu0 0.0
      %3426 = vmatprep.subr.mxu0 0.0
      %3427 = vmatpush1.msra.mxu0 0.0
      %3428 = vmatprep.subr.mxu0 0.0
      %3429 = vmatpush1.msra.mxu0 0.0
      %3430 = vmatprep.subr.mxu0 0.0
      %3431 = vmatpush1.msra.mxu0 0.0
      %3432 = vmatprep.subr.mxu0 0.0
      %3433 = vmatpush1.msra.mxu0 0.0
      %3434 = vmatprep.subr.mxu0 0.0
      %3435 = vmatpush1.msra.mxu0 0.0
      %3436 = vmatprep.mubr.f32.mxu0 0.0
      %3437 = vmatmul.mubr.f32.gmra.mrb[0].mxu0 %v3207
      %v3438 = vpop.f32.mrb[0].mxu0
      %v3439 = vadd.f32 %v3230, %v3438
      %v3440 = vpop.f32.mrb[0].mxu0
      %3441 = vdwg.mxu0
      %3442 = vmatprep.subr.mxu0 0.0
      %3443 = vmatpush1.msra.mxu0 %v3209
      %3444 = vmatprep.subr.mxu0 0.0
      %3445 = vmatpush1.msra.mxu0 %v3210
      %3446 = vmatprep.subr.mxu0 0.0
      %3447 = vmatpush1.msra.mxu0 %v3211
      %3448 = vmatprep.subr.mxu0 0.0
      %3449 = vmatpush1.msra.mxu0 %v3212
      %3450 = vmatprep.subr.mxu0 0.0
      %3451 = vmatpush1.msra.mxu0 %v3213
      %3452 = vmatprep.subr.mxu0 0.0
      %3453 = vmatpush1.msra.mxu0 %v3214
      %3454 = vmatprep.subr.mxu0 0.0
      %3455 = vmatpush1.msra.mxu0 %v3215
      %3456 = vmatprep.subr.mxu0 0.0
      %3457 = vmatpush1.msra.mxu0 %v3216
      %3458 = vmatprep.subr.mxu0 0.0
      %3459 = vmatpush1.msra.mxu0 %v3217
      %3460 = vmatprep.subr.mxu0 0.0
      %3461 = vmatpush1.msra.mxu0 %v3218
      %3462 = vmatprep.subr.mxu0 0.0
      %3463 = vmatpush1.msra.mxu0 %v3219
      %3464 = vmatprep.subr.mxu0 0.0
      %3465 = vmatpush1.msra.mxu0 %v3220
      %3466 = vmatprep.subr.mxu0 0.0
      %3467 = vmatpush1.msra.mxu0 %v3221
      %3468 = vmatprep.subr.mxu0 0.0
      %3469 = vmatpush1.msra.mxu0 %v3222
      %3470 = vmatprep.subr.mxu0 0.0
      %3471 = vmatpush1.msra.mxu0 %v3223
      %3472 = vmatprep.subr.mxu0 0.0
      %3473 = vmatpush1.msra.mxu0 %v3224
      %3474 = vmatprep.subr.mxu0 0.0
      %3475 = vmatpush1.msra.mxu0 0.0
      %3476 = vmatprep.subr.mxu0 0.0
      %3477 = vmatpush1.msra.mxu0 0.0
      %3478 = vmatprep.subr.mxu0 0.0
      %3479 = vmatpush1.msra.mxu0 0.0
      %3480 = vmatprep.subr.mxu0 0.0
      %3481 = vmatpush1.msra.mxu0 0.0
      %3482 = vmatprep.subr.mxu0 0.0
      %3483 = vmatpush1.msra.mxu0 0.0
      %3484 = vmatprep.subr.mxu0 0.0
      %3485 = vmatpush1.msra.mxu0 0.0
      %3486 = vmatprep.subr.mxu0 0.0
      %3487 = vmatpush1.msra.mxu0 0.0
      %3488 = vmatprep.subr.mxu0 0.0
      %3489 = vmatpush1.msra.mxu0 0.0
      %3490 = vmatprep.subr.mxu0 0.0
      %3491 = vmatpush1.msra.mxu0 0.0
      %3492 = vmatprep.subr.mxu0 0.0
      %3493 = vmatpush1.msra.mxu0 0.0
      %3494 = vmatprep.subr.mxu0 0.0
      %3495 = vmatpush1.msra.mxu0 0.0
      %3496 = vmatprep.subr.mxu0 0.0
      %3497 = vmatpush1.msra.mxu0 0.0
      %3498 = vmatprep.subr.mxu0 0.0
      %3499 = vmatpush1.msra.mxu0 0.0
      %3500 = vmatprep.subr.mxu0 0.0
      %3501 = vmatpush1.msra.mxu0 0.0
      %3502 = vmatprep.subr.mxu0 0.0
      %3503 = vmatpush1.msra.mxu0 0.0
      %3504 = vmatprep.subr.mxu0 0.0
      %3505 = vmatpush1.msra.mxu0 0.0
      %3506 = vmatprep.mubr.f32.mxu0 0.0
      %3507 = vmatmul.mubr.f32.gmra.mrb[0].mxu0 %v3208
      %v3508 = vpop.f32.mrb[0].mxu0
      %v3509 = vadd.f32 %v3230, %v3508
      %v3510 = vpop.f32.mrb[0].mxu0
      %3511 = vdwg.mxu0
      %v3512 = vadd.f32 %v2792, %v3299
      %v3513 = vadd.f32 %v2793, %v3369
      %v3514 = vadd.f32 %v2794, %v3439
      %v3515 = vadd.f32 %v2795, %v3509
      %3516 = vst.msk [vmem:[%s469] sm:$0xf] %vm477, %v3512
      %3517 = vst.msk [vmem:[%s469 + $0x4] sm:$0xf] %vm477, %v3513
      %3518 = vst.msk [vmem:[%s469 + $0x8] sm:$0xf] %vm477, %v3514
      %3519 = vst.msk [vmem:[%s469 + $0xc] sm:$0xf] %vm477, %v3515
      %s3520 = smul.u32 4, %s25
      %p3521 = scmp.lt.s32.totalorder %s3520, 7
      %s3522 = scalar_select %p3521, %s3520, 7
      %s3523 = smul.addr %s3522, 4
      %s3524 = scalar_lea.vmem %s14, %s3523
      // Predicated region
      $region77: #{swin_forward.8} parent=75 // pred_check
        %p3525 = pneg %p342
      $region78: #{swin_forward.8} parent=75 // pred_check_branch
        %3527 = sbr.rel (%p3525) target = $region80
      $region79: #{swin_forward.8} parent=75 // pred_region
        %s3528 = smul.u32 4, %s25
      $region80: #{swin_forward.8} parent=75 // pred_fallthru
        _
    $region76: #{swin_forward.8} parent=5 // pred_fallthru
      _
    %p3529 = scmp.le.s32.totalorder 2, %s20
    // Predicated region
    $region81: #{swin_forward.8} parent=5 // pred_check
      %p3530 = pneg %p3529
    $region82: #{swin_forward.8} parent=5 // pred_check_branch
      %3532 = sbr.rel (%p3530) target = $region84
    $region83: #{swin_forward.8} parent=5 // pred_region
      %s3533 = ssub.s32 %s20, 2
      // Predicated region
      $region85: #{swin_forward.8} parent=83 // pred_check
        %p3534 = pneg %p348
      $region86: #{swin_forward.8} parent=83 // pred_check_branch
        %3536 = sbr.rel (%p3534) target = $region88
      $region87: #{swin_forward.8} parent=83 // pred_region
        %s3537 = smul.u32 4, %s26
        %p3538 = scmp.lt.s32.totalorder %s3537, 7
        %s3539 = scalar_select %p3538, %s3537, 7
        %s3540 = smul.addr %s3539, 4
        %s3541 = scalar_lea.vmem %s14, %s3540
      $region88: #{swin_forward.8} parent=83 // pred_fallthru
        _
    $region84: #{swin_forward.8} parent=5 // pred_fallthru
      _
  $region6: #{swin_forward.8} parent=0 // loop_footer
    %s24 = sadd.s32 1, %s20
  $region7: #{swin_forward.8} parent=0 // loop_footer_branch
    %19 = sbr.rel target = $region3
  $region8: #{swin_forward.8} parent=0 // loop_exit
    _

// kernel: swin_forward.13
$region0: #{swin_forward.13}
  #allocation0 [shape = 'u32[]', space=smem, size = 0x4, offset = 0x4, fixed_abs, tag = 'smem constant byte address 0x4 - core index']
  #allocation1 [shape = 'u32[144,128]{1,0:T(1,128)}', space=vmem, size = 0x12000, scoped, tag = 'internal scratch']
  %s0 = inlined_call_operand.vmem [shape: f32[8,64], index: 0, kind: input, shape index: {}]
  %s1 = inlined_call_operand.vmem [shape: f32[1,64], index: 1, kind: input, shape index: {}]
  %s2 = inlined_call_operand.vmem [shape: f32[1,64], index: 2, kind: input, shape index: {}]
  %s3 = inlined_call_operand.hbm [shape: f32[8,64], index: 3, kind: output, shape index: {}]
  %s4 = sld [smem:[#allocation0]]
  $region22: #{swin_forward.13} parent=0
    _
  %s6 = ssub.s32 1, %s4
  %s7 = scalar_select 0, %s6, %s4
  $region1: #{swin_forward.13} parent=0
    #allocation2 [shape = 'u8[4096]{0}', space=vmem, size = 0x1000, scoped, tag = 'output window, operand 0, single buffered']
    #allocation3 [shape = 's32[1]{0}', space=sflag, size = 0x4, scoped, tag = 'scoped memory for swin_forward.13']
    %8 = vsyncpa [#allocation3], 0
    // Predicated region
    $region2: #{swin_forward.13} parent=1 // pred_check
      _
    $region3: #{swin_forward.13} parent=1 // pred_check_branch
      %10 = sbr.rel (0) target = $region5
    $region4: #{swin_forward.13} parent=1 // pred_region
      _
    $region5: #{swin_forward.13} parent=1 // pred_fallthru
      _
    // Predicated region
    $region6: #{swin_forward.13} parent=1 // pred_check
      _
    $region7: #{swin_forward.13} parent=1 // pred_check_branch
      %12 = sbr.rel (0) target = $region9
    $region8: #{swin_forward.13} parent=1 // pred_region
      _
    $region9: #{swin_forward.13} parent=1 // pred_fallthru
      _
    // Predicated region
    $region10: #{swin_forward.13} parent=1 // pred_check
      _
    $region11: #{swin_forward.13} parent=1 // pred_check_branch
      %14 = sbr.rel (0) target = $region13
    $region12: #{swin_forward.13} parent=1 // pred_region
      _
    $region13: #{swin_forward.13} parent=1 // pred_fallthru
      _
    %v15 = vld [vmem:[%s0] sm:$0xff]
    %v16 = vld [vmem:[%s1] sm:$0x1]
    %v17 = vld [vmem:[%s2] sm:$0x1]
    %vm18 = vcmask 523264
    %v19 = vsel %vm18, %v15, 0.0
    %20 = vadd.xlane.f32.xlu0 %v19
    %v21 = vpop.xlane.xlu0 %20
    %v22 = vrcp.pop 64.0
    %v23 = vmul.f32 %v21, %v22
    %v24 = vsub.f32 %v15, %v23
    %v25 = vmul.f32 %v24, %v24
    %v26 = vsel %vm18, %v25, 0.0
    %27 = vadd.xlane.f32.xlu0 %v26
    %v28 = vpop.xlane.xlu0 %27
    %v29 = vmul.f32 %v28, %v22
    %v30 = vadd.f32 %v29, 1e-05
    %v31 = vrsqrt.pop %v30
    %v32 = vmul.f32 %v24, %v31
    %v34 = vlaneseq
    %v35 = vshrl.u32 %v34, 7
    %v36 = vsub.s32 0, %v35
    %v37 = vrot.slane %v16, %v36
    %v39 = vmul.f32 %v32, %v37
    %v41 = vlaneseq
    %v42 = vshrl.u32 %v41, 7
    %v43 = vsub.s32 0, %v42
    %v44 = vrot.slane %v17, %v43
    %v46 = vadd.f32 %v39, %v44
    %47 = vst.msk [vmem:[#allocation2] sm:$0xff] %vm18, %v46
    // Predicated region
    $region14: #{swin_forward.13} parent=1 // pred_check
      _
    $region15: #{swin_forward.13} parent=1 // pred_check_branch
      %49 = sbr.rel (0) target = $region17
    $region16: #{swin_forward.13} parent=1 // pred_region
      %s51 = ssub.s32 128, 128
      %52 = vsyncadd [#allocation3], %s51
      %s54 = sshll.u32 [#allocation2], 4
      %s55 = int_to_ptr.vmem [resolvable:$true] %s54
      %57 = dma.vmem_to_hbm [thread:$0]  %s55, 128, %s3, [#allocation3]
    $region17: #{swin_forward.13} parent=1 // pred_fallthru
      _
    // Predicated region
    $region18: #{swin_forward.13} parent=1 // pred_check
      _
    $region19: #{swin_forward.13} parent=1 // pred_check_branch
      %59 = sbr.rel (0) target = $region21
    $region20: #{swin_forward.13} parent=1 // pred_region
      %60 = dma.done [#allocation3], 128
    $region21: #{swin_forward.13} parent=1 // pred_fallthru
      _
    %61 = vsyncpa [#allocation3], 1

// kernel: swin_forward.11
$region0: #{swin_forward.11}
  #allocation0 [shape = 'u32[]', space=smem, size = 0x4, offset = 0x4, fixed_abs, tag = 'smem constant byte address 0x4 - core index']
  #allocation1 [shape = 'u32[144,128]{1,0:T(1,128)}', space=vmem, size = 0x12000, scoped, tag = 'internal scratch']
  %s0 = inlined_call_operand.vmem [shape: f32[2,4,64], index: 0, kind: input, shape index: {}]
  %s1 = inlined_call_operand.vmem [shape: f32[1,1,64], index: 1, kind: input, shape index: {}]
  %s2 = inlined_call_operand.vmem [shape: f32[1,1,64], index: 2, kind: input, shape index: {}]
  %s3 = inlined_call_operand.vmem [shape: f32[1,64,192], index: 3, kind: input, shape index: {}]
  %s4 = inlined_call_operand.vmem [shape: f32[1,1,192], index: 4, kind: input, shape index: {}]
  %s5 = inlined_call_operand.vmem [shape: f32[4,4,4], index: 5, kind: input, shape index: {}]
  %s6 = inlined_call_operand.vmem [shape: f32[1,64,64], index: 6, kind: input, shape index: {}]
  %s7 = inlined_call_operand.vmem [shape: f32[1,1,64], index: 7, kind: input, shape index: {}]
  %s8 = inlined_call_operand.vmem [shape: f32[1,1,64], index: 8, kind: input, shape index: {}]
  %s9 = inlined_call_operand.vmem [shape: f32[1,1,64], index: 9, kind: input, shape index: {}]
  %s10 = inlined_call_operand.vmem [shape: f32[1,64,256], index: 10, kind: input, shape index: {}]
  %s11 = inlined_call_operand.vmem [shape: f32[1,1,256], index: 11, kind: input, shape index: {}]
  %s12 = inlined_call_operand.vmem [shape: f32[1,256,64], index: 12, kind: input, shape index: {}]
  %s13 = inlined_call_operand.vmem [shape: f32[1,1,64], index: 13, kind: input, shape index: {}]
  %s14 = inlined_call_operand.vmem [shape: f32[2,4,64], index: 14, kind: output, shape index: {}]
  %s15 = sld [smem:[#allocation0]]
  $region89: #{swin_forward.11} parent=0
    _
  %s17 = ssub.s32 1, %s15
  %s18 = scalar_select 0, %s17, %s15
  loop: start=0, step=1, limit=4
  $region2: #{swin_forward.11} parent=0 // loop_pre_header
    _
  $region3: #{swin_forward.11} parent=0 // loop_header
    %s20 = sphi 0, %s24
    %p21 = scmp.ge.s32.totalorder %s20, 4
    %s30 = sphi 0, %s32
    %s33 = sphi 0, %s30
    %s34 = sphi 0, %s33
    %s50 = sphi 0, %s34
    %s54 = sphi 0, %s54
    %s56 = sphi 0, %s54
    %s57 = sphi 0, %s56
    %s71 = sphi 0, %s57
    %s75 = sphi 0, %s75
    %s77 = sphi 0, %s75
    %s78 = sphi 0, %s77
    %s92 = sphi 0, %s78
    %s96 = sphi 0, %s96
    %s98 = sphi 0, %s96
    %s99 = sphi 0, %s98
    %s113 = sphi 0, %s99
    %s117 = sphi 0, %s117
    %s119 = sphi 0, %s117
    %s120 = sphi 0, %s119
    %s134 = sphi 0, %s120
    %s138 = sphi 0, %s138
    %s140 = sphi 0, %s138
    %s141 = sphi 0, %s140
    %s155 = sphi 0, %s141
    %s159 = sphi 0, %s159
    %s161 = sphi 0, %s159
    %s162 = sphi 0, %s161
    %s176 = sphi 0, %s162
    %s180 = sphi 0, %s180
    %s182 = sphi 0, %s180
    %s183 = sphi 0, %s182
    %s197 = sphi 0, %s183
    %s201 = sphi 0, %s201
    %s203 = sphi 0, %s201
    %s204 = sphi 0, %s203
    %s218 = sphi 0, %s204
    %s222 = sphi 0, %s222
    %s224 = sphi 0, %s222
    %s225 = sphi 0, %s224
    %s239 = sphi 0, %s225
    %s243 = sphi 0, %s243
    %s245 = sphi 0, %s243
    %s246 = sphi 0, %s245
    %s260 = sphi 0, %s246
    %s264 = sphi 0, %s264
    %s266 = sphi 0, %s264
    %s267 = sphi 0, %s266
    %s281 = sphi 0, %s267
    %s285 = sphi 0, %s285
    %s287 = sphi 0, %s285
    %s288 = sphi 0, %s287
    %s302 = sphi 0, %s288
    %s306 = sphi 0, %s306
    %s308 = sphi 0, %s306
    %s309 = sphi 0, %s308
    %s323 = sphi 0, %s309
    %s329 = sphi 0, %s331
    %s332 = sphi 0, %s329
    %s333 = sphi 0, %s332
    %s349 = sphi 0, %s333
  $region4: #{swin_forward.11} parent=0 // loop_header_branch
    %23 = sbr.rel (%p21) target = $region8
  $region5: #{swin_forward.11} parent=0 // loop_body
    %s25 = ssub.s32 %s20, 1
    %s26 = ssub.s32 %s20, 2
    %s27 = sadd.s32 %s20, 1
    %s28 = ssub.s32 %s20, %s27
    %p29 = scmp.eq.s32.totalorder %s28, 0
    %s31 = sadd.s32 %s30, 1
    %s32 = scalar_select %p29, %s30, %s31
    %p35 = pneg %p29
    %p36 = scmp.eq.s32.totalorder %s20, 1
    %p37 = por %p35, %p36
    %p38 = scmp.ne.s32.totalorder %s30, %s33
    %p39 = scmp.eq.s32.totalorder %s20, 0
    %p40 = por %p38, %p39
    %p41 = scmp.ne.s32.totalorder %s30, %s33
    %p42 = scmp.eq.s32.totalorder %s25, 1
    %p43 = por %p41, %p42
    %p44 = scmp.ne.s32.totalorder %s33, %s34
    %p45 = scmp.eq.s32.totalorder %s25, 0
    %p46 = por %p44, %p45
    %p47 = scmp.ne.s32.totalorder %s33, %s34
    %p48 = scmp.eq.s32.totalorder %s26, 1
    %p49 = por %p47, %p48
    %p51 = scmp.ne.s32.totalorder %s34, %s50
    %p52 = scmp.eq.s32.totalorder %s26, 0
    %p53 = por %p51, %p52
    %s55 = sadd.s32 %s54, 1
    %p58 = scmp.eq.s32.totalorder %s20, 1
    %p59 = scmp.ne.s32.totalorder %s54, %s56
    %p60 = scmp.eq.s32.totalorder %s20, 0
    %p61 = por %p59, %p60
    %p62 = scmp.ne.s32.totalorder %s54, %s56
    %p63 = scmp.eq.s32.totalorder %s25, 1
    %p64 = por %p62, %p63
    %p65 = scmp.ne.s32.totalorder %s56, %s57
    %p66 = scmp.eq.s32.totalorder %s25, 0
    %p67 = por %p65, %p66
    %p68 = scmp.ne.s32.totalorder %s56, %s57
    %p69 = scmp.eq.s32.totalorder %s26, 1
    %p70 = por %p68, %p69
    %p72 = scmp.ne.s32.totalorder %s57, %s71
    %p73 = scmp.eq.s32.totalorder %s26, 0
    %p74 = por %p72, %p73
    %s76 = sadd.s32 %s75, 1
    %p79 = scmp.eq.s32.totalorder %s20, 1
    %p80 = scmp.ne.s32.totalorder %s75, %s77
    %p81 = scmp.eq.s32.totalorder %s20, 0
    %p82 = por %p80, %p81
    %p83 = scmp.ne.s32.totalorder %s75, %s77
    %p84 = scmp.eq.s32.totalorder %s25, 1
    %p85 = por %p83, %p84
    %p86 = scmp.ne.s32.totalorder %s77, %s78
    %p87 = scmp.eq.s32.totalorder %s25, 0
    %p88 = por %p86, %p87
    %p89 = scmp.ne.s32.totalorder %s77, %s78
    %p90 = scmp.eq.s32.totalorder %s26, 1
    %p91 = por %p89, %p90
    %p93 = scmp.ne.s32.totalorder %s78, %s92
    %p94 = scmp.eq.s32.totalorder %s26, 0
    %p95 = por %p93, %p94
    %s97 = sadd.s32 %s96, 1
    %p100 = scmp.eq.s32.totalorder %s20, 1
    %p101 = scmp.ne.s32.totalorder %s96, %s98
    %p102 = scmp.eq.s32.totalorder %s20, 0
    %p103 = por %p101, %p102
    %p104 = scmp.ne.s32.totalorder %s96, %s98
    %p105 = scmp.eq.s32.totalorder %s25, 1
    %p106 = por %p104, %p105
    %p107 = scmp.ne.s32.totalorder %s98, %s99
    %p108 = scmp.eq.s32.totalorder %s25, 0
    %p109 = por %p107, %p108
    %p110 = scmp.ne.s32.totalorder %s98, %s99
    %p111 = scmp.eq.s32.totalorder %s26, 1
    %p112 = por %p110, %p111
    %p114 = scmp.ne.s32.totalorder %s99, %s113
    %p115 = scmp.eq.s32.totalorder %s26, 0
    %p116 = por %p114, %p115
    %s118 = sadd.s32 %s117, 1
    %p121 = scmp.eq.s32.totalorder %s20, 1
    %p122 = scmp.ne.s32.totalorder %s117, %s119
    %p123 = scmp.eq.s32.totalorder %s20, 0
    %p124 = por %p122, %p123
    %p125 = scmp.ne.s32.totalorder %s117, %s119
    %p126 = scmp.eq.s32.totalorder %s25, 1
    %p127 = por %p125, %p126
    %p128 = scmp.ne.s32.totalorder %s119, %s120
    %p129 = scmp.eq.s32.totalorder %s25, 0
    %p130 = por %p128, %p129
    %p131 = scmp.ne.s32.totalorder %s119, %s120
    %p132 = scmp.eq.s32.totalorder %s26, 1
    %p133 = por %p131, %p132
    %p135 = scmp.ne.s32.totalorder %s120, %s134
    %p136 = scmp.eq.s32.totalorder %s26, 0
    %p137 = por %p135, %p136
    %s139 = sadd.s32 %s138, 1
    %p142 = scmp.eq.s32.totalorder %s20, 1
    %p143 = scmp.ne.s32.totalorder %s138, %s140
    %p144 = scmp.eq.s32.totalorder %s20, 0
    %p145 = por %p143, %p144
    %p146 = scmp.ne.s32.totalorder %s138, %s140
    %p147 = scmp.eq.s32.totalorder %s25, 1
    %p148 = por %p146, %p147
    %p149 = scmp.ne.s32.totalorder %s140, %s141
    %p150 = scmp.eq.s32.totalorder %s25, 0
    %p151 = por %p149, %p150
    %p152 = scmp.ne.s32.totalorder %s140, %s141
    %p153 = scmp.eq.s32.totalorder %s26, 1
    %p154 = por %p152, %p153
    %p156 = scmp.ne.s32.totalorder %s141, %s155
    %p157 = scmp.eq.s32.totalorder %s26, 0
    %p158 = por %p156, %p157
    %s160 = sadd.s32 %s159, 1
    %p163 = scmp.eq.s32.totalorder %s20, 1
    %p164 = scmp.ne.s32.totalorder %s159, %s161
    %p165 = scmp.eq.s32.totalorder %s20, 0
    %p166 = por %p164, %p165
    %p167 = scmp.ne.s32.totalorder %s159, %s161
    %p168 = scmp.eq.s32.totalorder %s25, 1
    %p169 = por %p167, %p168
    %p170 = scmp.ne.s32.totalorder %s161, %s162
    %p171 = scmp.eq.s32.totalorder %s25, 0
    %p172 = por %p170, %p171
    %p173 = scmp.ne.s32.totalorder %s161, %s162
    %p174 = scmp.eq.s32.totalorder %s26, 1
    %p175 = por %p173, %p174
    %p177 = scmp.ne.s32.totalorder %s162, %s176
    %p178 = scmp.eq.s32.totalorder %s26, 0
    %p179 = por %p177, %p178
    %s181 = sadd.s32 %s180, 1
    %p184 = scmp.eq.s32.totalorder %s20, 1
    %p185 = scmp.ne.s32.totalorder %s180, %s182
    %p186 = scmp.eq.s32.totalorder %s20, 0
    %p187 = por %p185, %p186
    %p188 = scmp.ne.s32.totalorder %s180, %s182
    %p189 = scmp.eq.s32.totalorder %s25, 1
    %p190 = por %p188, %p189
    %p191 = scmp.ne.s32.totalorder %s182, %s183
    %p192 = scmp.eq.s32.totalorder %s25, 0
    %p193 = por %p191, %p192
    %p194 = scmp.ne.s32.totalorder %s182, %s183
    %p195 = scmp.eq.s32.totalorder %s26, 1
    %p196 = por %p194, %p195
    %p198 = scmp.ne.s32.totalorder %s183, %s197
    %p199 = scmp.eq.s32.totalorder %s26, 0
    %p200 = por %p198, %p199
    %s202 = sadd.s32 %s201, 1
    %p205 = scmp.eq.s32.totalorder %s20, 1
    %p206 = scmp.ne.s32.totalorder %s201, %s203
    %p207 = scmp.eq.s32.totalorder %s20, 0
    %p208 = por %p206, %p207
    %p209 = scmp.ne.s32.totalorder %s201, %s203
    %p210 = scmp.eq.s32.totalorder %s25, 1
    %p211 = por %p209, %p210
    %p212 = scmp.ne.s32.totalorder %s203, %s204
    %p213 = scmp.eq.s32.totalorder %s25, 0
    %p214 = por %p212, %p213
    %p215 = scmp.ne.s32.totalorder %s203, %s204
    %p216 = scmp.eq.s32.totalorder %s26, 1
    %p217 = por %p215, %p216
    %p219 = scmp.ne.s32.totalorder %s204, %s218
    %p220 = scmp.eq.s32.totalorder %s26, 0
    %p221 = por %p219, %p220
    %s223 = sadd.s32 %s222, 1
    %p226 = scmp.eq.s32.totalorder %s20, 1
    %p227 = scmp.ne.s32.totalorder %s222, %s224
    %p228 = scmp.eq.s32.totalorder %s20, 0
    %p229 = por %p227, %p228
    %p230 = scmp.ne.s32.totalorder %s222, %s224
    %p231 = scmp.eq.s32.totalorder %s25, 1
    %p232 = por %p230, %p231
    %p233 = scmp.ne.s32.totalorder %s224, %s225
    %p234 = scmp.eq.s32.totalorder %s25, 0
    %p235 = por %p233, %p234
    %p236 = scmp.ne.s32.totalorder %s224, %s225
    %p237 = scmp.eq.s32.totalorder %s26, 1
    %p238 = por %p236, %p237
    %p240 = scmp.ne.s32.totalorder %s225, %s239
    %p241 = scmp.eq.s32.totalorder %s26, 0
    %p242 = por %p240, %p241
    %s244 = sadd.s32 %s243, 1
    %p247 = scmp.eq.s32.totalorder %s20, 1
    %p248 = scmp.ne.s32.totalorder %s243, %s245
    %p249 = scmp.eq.s32.totalorder %s20, 0
    %p250 = por %p248, %p249
    %p251 = scmp.ne.s32.totalorder %s243, %s245
    %p252 = scmp.eq.s32.totalorder %s25, 1
    %p253 = por %p251, %p252
    %p254 = scmp.ne.s32.totalorder %s245, %s246
    %p255 = scmp.eq.s32.totalorder %s25, 0
    %p256 = por %p254, %p255
    %p257 = scmp.ne.s32.totalorder %s245, %s246
    %p258 = scmp.eq.s32.totalorder %s26, 1
    %p259 = por %p257, %p258
    %p261 = scmp.ne.s32.totalorder %s246, %s260
    %p262 = scmp.eq.s32.totalorder %s26, 0
    %p263 = por %p261, %p262
    %s265 = sadd.s32 %s264, 1
    %p268 = scmp.eq.s32.totalorder %s20, 1
    %p269 = scmp.ne.s32.totalorder %s264, %s266
    %p270 = scmp.eq.s32.totalorder %s20, 0
    %p271 = por %p269, %p270
    %p272 = scmp.ne.s32.totalorder %s264, %s266
    %p273 = scmp.eq.s32.totalorder %s25, 1
    %p274 = por %p272, %p273
    %p275 = scmp.ne.s32.totalorder %s266, %s267
    %p276 = scmp.eq.s32.totalorder %s25, 0
    %p277 = por %p275, %p276
    %p278 = scmp.ne.s32.totalorder %s266, %s267
    %p279 = scmp.eq.s32.totalorder %s26, 1
    %p280 = por %p278, %p279
    %p282 = scmp.ne.s32.totalorder %s267, %s281
    %p283 = scmp.eq.s32.totalorder %s26, 0
    %p284 = por %p282, %p283
    %s286 = sadd.s32 %s285, 1
    %p289 = scmp.eq.s32.totalorder %s20, 1
    %p290 = scmp.ne.s32.totalorder %s285, %s287
    %p291 = scmp.eq.s32.totalorder %s20, 0
    %p292 = por %p290, %p291
    %p293 = scmp.ne.s32.totalorder %s285, %s287
    %p294 = scmp.eq.s32.totalorder %s25, 1
    %p295 = por %p293, %p294
    %p296 = scmp.ne.s32.totalorder %s287, %s288
    %p297 = scmp.eq.s32.totalorder %s25, 0
    %p298 = por %p296, %p297
    %p299 = scmp.ne.s32.totalorder %s287, %s288
    %p300 = scmp.eq.s32.totalorder %s26, 1
    %p301 = por %p299, %p300
    %p303 = scmp.ne.s32.totalorder %s288, %s302
    %p304 = scmp.eq.s32.totalorder %s26, 0
    %p305 = por %p303, %p304
    %s307 = sadd.s32 %s306, 1
    %p310 = scmp.eq.s32.totalorder %s20, 1
    %p311 = scmp.ne.s32.totalorder %s306, %s308
    %p312 = scmp.eq.s32.totalorder %s20, 0
    %p313 = por %p311, %p312
    %p314 = scmp.ne.s32.totalorder %s306, %s308
    %p315 = scmp.eq.s32.totalorder %s25, 1
    %p316 = por %p314, %p315
    %p317 = scmp.ne.s32.totalorder %s308, %s309
    %p318 = scmp.eq.s32.totalorder %s25, 0
    %p319 = por %p317, %p318
    %p320 = scmp.ne.s32.totalorder %s308, %s309
    %p321 = scmp.eq.s32.totalorder %s26, 1
    %p322 = por %p320, %p321
    %p324 = scmp.ne.s32.totalorder %s309, %s323
    %p325 = scmp.eq.s32.totalorder %s26, 0
    %p326 = por %p324, %p325
    %s327 = ssub.s32 %s20, %s27
    %p328 = scmp.eq.s32.totalorder %s327, 0
    %s330 = sadd.s32 %s329, 1
    %s331 = scalar_select %p328, %s329, %s330
    %p334 = pneg %p328
    %p335 = scmp.eq.s32.totalorder %s20, 1
    %p336 = por %p334, %p335
    %p337 = scmp.ne.s32.totalorder %s329, %s332
    %p338 = scmp.eq.s32.totalorder %s20, 0
    %p339 = por %p337, %p338
    %p340 = scmp.ne.s32.totalorder %s329, %s332
    %p341 = scmp.eq.s32.totalorder %s25, 1
    %p342 = por %p340, %p341
    %p343 = scmp.ne.s32.totalorder %s332, %s333
    %p344 = scmp.eq.s32.totalorder %s25, 0
    %p345 = por %p343, %p344
    %p346 = scmp.ne.s32.totalorder %s332, %s333
    %p347 = scmp.eq.s32.totalorder %s26, 1
    %p348 = por %p346, %p347
    %p350 = scmp.ne.s32.totalorder %s333, %s349
    %p351 = scmp.eq.s32.totalorder %s26, 0
    %p352 = por %p350, %p351
    %p353 = scmp.le.s32.totalorder 1, %s20
    %p354 = scmp.lt.s32.totalorder %s20, 3
    %p355 = pnand %p353, %p354
    %p356 = pneg %p355
    // Predicated region
    $region9: #{swin_forward.11} parent=5 // pred_check
      _
    $region10: #{swin_forward.11} parent=5 // pred_check_branch
      %358 = sbr.rel (%p355) target = $region12
    $region11: #{swin_forward.11} parent=5 // pred_region
      %s359 = ssub.s32 %s20, 1
      // Predicated region
      $region13: #{swin_forward.11} parent=11 // pred_check
        %p360 = pneg %p67
      $region14: #{swin_forward.11} parent=11 // pred_check_branch
        %362 = sbr.rel (%p360) target = $region16
      $region15: #{swin_forward.11} parent=11 // pred_region
        _
      $region16: #{swin_forward.11} parent=11 // pred_fallthru
        _
      // Predicated region
      $region17: #{swin_forward.11} parent=11 // pred_check
        %p363 = pneg %p88
      $region18: #{swin_forward.11} parent=11 // pred_check_branch
        %365 = sbr.rel (%p363) target = $region20
      $region19: #{swin_forward.11} parent=11 // pred_region
        _
      $region20: #{swin_forward.11} parent=11 // pred_fallthru
        _
      // Predicated region
      $region21: #{swin_forward.11} parent=11 // pred_check
        %p366 = pneg %p109
      $region22: #{swin_forward.11} parent=11 // pred_check_branch
        %368 = sbr.rel (%p366) target = $region24
      $region23: #{swin_forward.11} parent=11 // pred_region
        _
      $region24: #{swin_forward.11} parent=11 // pred_fallthru
        _
      // Predicated region
      $region25: #{swin_forward.11} parent=11 // pred_check
        %p369 = pneg %p130
      $region26: #{swin_forward.11} parent=11 // pred_check_branch
        %371 = sbr.rel (%p369) target = $region28
      $region27: #{swin_forward.11} parent=11 // pred_region
        _
      $region28: #{swin_forward.11} parent=11 // pred_fallthru
        _
      // Predicated region
      $region29: #{swin_forward.11} parent=11 // pred_check
        %p372 = pneg %p151
      $region30: #{swin_forward.11} parent=11 // pred_check_branch
        %374 = sbr.rel (%p372) target = $region32
      $region31: #{swin_forward.11} parent=11 // pred_region
        _
      $region32: #{swin_forward.11} parent=11 // pred_fallthru
        _
      // Predicated region
      $region33: #{swin_forward.11} parent=11 // pred_check
        %p375 = pneg %p172
      $region34: #{swin_forward.11} parent=11 // pred_check_branch
        %377 = sbr.rel (%p375) target = $region36
      $region35: #{swin_forward.11} parent=11 // pred_region
        _
      $region36: #{swin_forward.11} parent=11 // pred_fallthru
        _
      // Predicated region
      $region37: #{swin_forward.11} parent=11 // pred_check
        %p378 = pneg %p193
      $region38: #{swin_forward.11} parent=11 // pred_check_branch
        %380 = sbr.rel (%p378) target = $region40
      $region39: #{swin_forward.11} parent=11 // pred_region
        _
      $region40: #{swin_forward.11} parent=11 // pred_fallthru
        _
      // Predicated region
      $region41: #{swin_forward.11} parent=11 // pred_check
        %p381 = pneg %p214
      $region42: #{swin_forward.11} parent=11 // pred_check_branch
        %383 = sbr.rel (%p381) target = $region44
      $region43: #{swin_forward.11} parent=11 // pred_region
        _
      $region44: #{swin_forward.11} parent=11 // pred_fallthru
        _
      // Predicated region
      $region45: #{swin_forward.11} parent=11 // pred_check
        %p384 = pneg %p235
      $region46: #{swin_forward.11} parent=11 // pred_check_branch
        %386 = sbr.rel (%p384) target = $region48
      $region47: #{swin_forward.11} parent=11 // pred_region
        _
      $region48: #{swin_forward.11} parent=11 // pred_fallthru
        _
      // Predicated region
      $region49: #{swin_forward.11} parent=11 // pred_check
        %p387 = pneg %p256
      $region50: #{swin_forward.11} parent=11 // pred_check_branch
        %389 = sbr.rel (%p387) target = $region52
      $region51: #{swin_forward.11} parent=11 // pred_region
        _
      $region52: #{swin_forward.11} parent=11 // pred_fallthru
        _
      // Predicated region
      $region53: #{swin_forward.11} parent=11 // pred_check
        %p390 = pneg %p277
      $region54: #{swin_forward.11} parent=11 // pred_check_branch
        %392 = sbr.rel (%p390) target = $region56
      $region55: #{swin_forward.11} parent=11 // pred_region
        _
      $region56: #{swin_forward.11} parent=11 // pred_fallthru
        _
      // Predicated region
      $region57: #{swin_forward.11} parent=11 // pred_check
        %p393 = pneg %p298
      $region58: #{swin_forward.11} parent=11 // pred_check_branch
        %395 = sbr.rel (%p393) target = $region60
      $region59: #{swin_forward.11} parent=11 // pred_region
        _
      $region60: #{swin_forward.11} parent=11 // pred_fallthru
        _
      // Predicated region
      $region61: #{swin_forward.11} parent=11 // pred_check
        %p396 = pneg %p319
      $region62: #{swin_forward.11} parent=11 // pred_check_branch
        %398 = sbr.rel (%p396) target = $region64
      $region63: #{swin_forward.11} parent=11 // pred_region
        _
      $region64: #{swin_forward.11} parent=11 // pred_fallthru
        _
    $region12: #{swin_forward.11} parent=5 // pred_fallthru
      _
    %p399 = scmp.lt.s32.totalorder %s20, 2
    // Predicated region
    $region65: #{swin_forward.11} parent=5 // pred_check
      %p400 = pneg %p399
    $region66: #{swin_forward.11} parent=5 // pred_check_branch
      %402 = sbr.rel (%p400) target = $region68
    $region67: #{swin_forward.11} parent=5 // pred_region
      // Predicated region
      $region69: #{swin_forward.11} parent=67 // pred_check
        %p403 = pneg %p40
      $region70: #{swin_forward.11} parent=67 // pred_check_branch
        %405 = sbr.rel (%p403) target = $region72
      $region71: #{swin_forward.11} parent=67 // pred_region
        %p406 = scmp.lt.s32.totalorder %s20, 1
        %s407 = scalar_select %p406, %s20, 1
        %s408 = smul.addr %s407, 4
        %s409 = scalar_lea.vmem %s0, %s408
      $region72: #{swin_forward.11} parent=67 // pred_fallthru
        _
    $region68: #{swin_forward.11} parent=5 // pred_fallthru
      _
    %p410 = scmp.le.s32.totalorder 1, %s20
    %p411 = scmp.lt.s32.totalorder %s20, 3
    %p412 = pnand %p410, %p411
    %p413 = pneg %p412
    // Predicated region
    $region73: #{swin_forward.11} parent=5 // pred_check
      _
    $region74: #{swin_forward.11} parent=5 // pred_check_branch
      %415 = sbr.rel (%p412) target = $region76
    $region75: #{swin_forward.11} parent=5 // pred_region
      %s416 = ssub.s32 %s20, 1
      %p417 = scmp.lt.s32.totalorder %s25, 1
      %s418 = scalar_select %p417, %s25, 1
      %s419 = smul.addr %s418, 4
      %s420 = scalar_lea.vmem %s0, %s419
      %p421 = pneg %p46
      %p422 = pneg %p43
      %p423 = pneg %p67
      %p424 = pneg %p64
      %p425 = pneg %p88
      %p426 = pneg %p85
      %p427 = pneg %p109
      %p428 = pneg %p106
      %p429 = pneg %p130
      %p430 = pneg %p127
      %p431 = pneg %p151
      %p432 = pneg %p148
      %p433 = pneg %p172
      %p434 = pneg %p169
      %p435 = pneg %p193
      %p436 = pneg %p190
      %p437 = pneg %p214
      %p438 = pneg %p211
      %p439 = pneg %p235
      %p440 = pneg %p232
      %p441 = pneg %p256
      %p442 = pneg %p253
      %p443 = pneg %p277
      %p444 = pneg %p274
      %p445 = pneg %p298
      %p446 = pneg %p295
      %p447 = pneg %p319
      %p448 = pneg %p316
      %p449 = pneg %p345
      %p450 = pneg %p342
      %p451 = scmp.lt.s32.totalorder %s25, 1
      %s452 = scalar_select %p451, %s25, 1
      %s453 = smul.addr %s452, 4
      %s454 = scalar_lea.vmem %s14, %s453
      %p455 = scmp.lt.s32.totalorder %s25, 1
      %s456 = scalar_select %p455, %s25, 1
      %s457 = smul.addr %s456, 4
      %s458 = scalar_lea.vmem %s0, %s457
      %p459 = scmp.lt.s32.totalorder %s25, 1
      %s460 = scalar_select %p459, %s25, 1
      %s461 = smul.addr %s460, 4
      %s462 = scalar_lea.vmem %s14, %s461
      %v463 = vld [vmem:[%s458] sm:$0xf]
      %v464 = vld [vmem:[%s1] sm:$0x1]
      %v465 = vld [vmem:[%s2] sm:$0x1]
      %vm466 = vcmask 519168
      %v467 = vsel %vm466, %v463, 0.0
      %468 = vadd.xlane.f32.xlu0 %v467
      %v469 = vpop.xlane.xlu0 %468
      %v470 = vrcp.pop 64.0
      %v471 = vmul.f32 %v469, %v470
      %v472 = vsub.f32 %v463, %v471
      %v473 = vmul.f32 %v472, %v472
      %v474 = vsel %vm466, %v473, 0.0
      %475 = vadd.xlane.f32.xlu0 %v474
      %v476 = vpop.xlane.xlu0 %475
      %v477 = vmul.f32 %v476, %v470
      %v478 = vadd.f32 %v477, 1e-05
      %v479 = vrsqrt.pop %v478
      %v480 = vmul.f32 %v472, %v479
      %v482 = vlaneseq
      %v483 = vshrl.u32 %v482, 7
      %v484 = vsub.s32 0, %v483
      %v485 = vrot.slane %v464, %v484
      %v487 = vmul.f32 %v480, %v485
      %v489 = vlaneseq
      %v490 = vshrl.u32 %v489, 7
      %v491 = vsub.s32 0, %v490
      %v492 = vrot.slane %v465, %v491
      %v494 = vadd.f32 %v487, %v492
      %v495 = vld [vmem:[%s3] sm:$0xff]
      %v496 = vld [vmem:[%s3 + $0x8] sm:$0xff]
      %v497 = vld [vmem:[%s3 + $0x10] sm:$0xff]
      %v498 = vld [vmem:[%s3 + $0x18] sm:$0xff]
      %v499 = vld [vmem:[%s3 + $0x20] sm:$0xff]
      %v500 = vld [vmem:[%s3 + $0x28] sm:$0xff]
      %v501 = vld [vmem:[%s3 + $0x30] sm:$0xff]
      %v502 = vld [vmem:[%s3 + $0x38] sm:$0xff]
      %v503 = vld [vmem:[%s3 + $0x40] sm:$0xff]
      %v504 = vld [vmem:[%s3 + $0x48] sm:$0xff]
      %v505 = vld [vmem:[%s3 + $0x50] sm:$0xff]
      %v506 = vld [vmem:[%s3 + $0x58] sm:$0xff]
      %v507 = vld [vmem:[%s3 + $0x60] sm:$0xff]
      %v508 = vld [vmem:[%s3 + $0x68] sm:$0xff]
      %v509 = vld [vmem:[%s3 + $0x70] sm:$0xff]
      %v510 = vld [vmem:[%s3 + $0x78] sm:$0xff]
      %v511 = vld [vmem:[%s4] sm:$0x3]
      %v513 = vlaneseq
      %v514 = vshrl.u32 %v513, 7
      %v515 = vsub.s32 0, %v514
      %v516 = vrot.slane %v511, %v515
      %v517 = vlaneseq
      %v518 = vshrl.u32 %v517, 7
      %v519 = vsub.s32 1, %v518
      %v520 = vrot.slane %v511, %v519
      %vm523 = vcmask 523264
      %v525 = vsel %vm523, %v494, 0
      %527 = vmatprep.subr.mxu0 %v496
      %528 = vmatpush1.msra.mxu0 %v495
      %529 = vmatprep.subr.mxu0 %v498
      %530 = vmatpush1.msra.mxu0 %v497
      %531 = vmatprep.subr.mxu0 %v500
      %532 = vmatpush1.msra.mxu0 %v499
      %533 = vmatprep.subr.mxu0 %v502
      %534 = vmatpush1.msra.mxu0 %v501
      %535 = vmatprep.subr.mxu0 %v504
      %536 = vmatpush1.msra.mxu0 %v503
      %537 = vmatprep.subr.mxu0 %v506
      %538 = vmatpush1.msra.mxu0 %v505
      %539 = vmatprep.subr.mxu0 %v508
      %540 = vmatpush1.msra.mxu0 %v507
      %541 = vmatprep.subr.mxu0 %v510
      %542 = vmatpush1.msra.mxu0 %v509
      %543 = vmatprep.subr.mxu0 0.0
      %544 = vmatpush1.msra.mxu0 0.0
      %545 = vmatprep.subr.mxu0 0.0
      %546 = vmatpush1.msra.mxu0 0.0
      %547 = vmatprep.subr.mxu0 0.0
      %548 = vmatpush1.msra.mxu0 0.0
      %549 = vmatprep.subr.mxu0 0.0
      %550 = vmatpush1.msra.mxu0 0.0
      %551 = vmatprep.subr.mxu0 0.0
      %552 = vmatpush1.msra.mxu0 0.0
      %553 = vmatprep.subr.mxu0 0.0
      %554 = vmatpush1.msra.mxu0 0.0
      %555 = vmatprep.subr.mxu0 0.0
      %556 = vmatpush1.msra.mxu0 0.0
      %557 = vmatprep.subr.mxu0 0.0
      %558 = vmatpush1.msra.mxu0 0.0
      %559 = vmatprep.subr.mxu0 0.0
      %560 = vmatpush1.msra.mxu0 0.0
      %561 = vmatprep.subr.mxu0 0.0
      %562 = vmatpush1.msra.mxu0 0.0
      %563 = vmatprep.subr.mxu0 0.0
      %564 = vmatpush1.msra.mxu0 0.0
      %565 = vmatprep.subr.mxu0 0.0
      %566 = vmatpush1.msra.mxu0 0.0
      %567 = vmatprep.subr.mxu0 0.0
      %568 = vmatpush1.msra.mxu0 0.0
      %569 = vmatprep.subr.mxu0 0.0
      %570 = vmatpush1.msra.mxu0 0.0
      %571 = vmatprep.subr.mxu0 0.0
      %572 = vmatpush1.msra.mxu0 0.0
      %573 = vmatprep.subr.mxu0 0.0
      %574 = vmatpush1.msra.mxu0 0.0
      %575 = vmatprep.subr.mxu0 0.0
      %576 = vmatpush1.msra.mxu0 0.0
      %577 = vmatprep.subr.mxu0 0.0
      %578 = vmatpush1.msra.mxu0 0.0
      %579 = vmatprep.subr.mxu0 0.0
      %580 = vmatpush1.msra.mxu0 0.0
      %581 = vmatprep.subr.mxu0 0.0
      %582 = vmatpush1.msra.mxu0 0.0
      %583 = vmatprep.subr.mxu0 0.0
      %584 = vmatpush1.msra.mxu0 0.0
      %585 = vmatprep.subr.mxu0 0.0
      %586 = vmatpush1.msra.mxu0 0.0
      %587 = vmatprep.subr.mxu0 0.0
      %588 = vmatpush1.msra.mxu0 0.0
      %589 = vmatprep.subr.mxu0 0.0
      %590 = vmatpush1.msra.mxu0 0.0
      %591 = vmatprep.mubr.f32.mxu0 0.0
      %592 = vmatmul.mubr.f32.gmra.mrb[0].mxu0 %v525
      %v593 = vpop.f32.mrb[0].mxu0
      %v594 = vadd.f32 %v516, %v593
      %v595 = vpop.f32.mrb[0].mxu0
      %v596 = vadd.f32 %v520, %v595
      %597 = vdwg.mxu0
      %v598 = vld [vmem:[%s6] sm:$0xff]
      %v599 = vld [vmem:[%s6 + $0x8] sm:$0xff]
      %v600 = vld [vmem:[%s6 + $0x10] sm:$0xff]
      %v601 = vld [vmem:[%s6 + $0x18] sm:$0xff]
      %v602 = vld [vmem:[%s6 + $0x20] sm:$0xff]
      %v603 = vld [vmem:[%s6 + $0x28] sm:$0xff]
      %v604 = vld [vmem:[%s6 + $0x30] sm:$0xff]
      %v605 = vld [vmem:[%s6 + $0x38] sm:$0xff]
      %v606 = vld [vmem:[%s5] sm:$0xf]
      %v607 = vld [vmem:[%s5 + $0x4] sm:$0xf]
      %v608 = vld [vmem:[%s5 + $0x8] sm:$0xf]
      %v609 = vld [vmem:[%s5 + $0xc] sm:$0xf]
      %v610 = vmul.f32 %v594, 0.25
      %612 = vrot.lane.b32.xlu0 %v594, 64
      %v613 = vpop.permute.xlu0 %612
      %vm614 = vcmask 130048
      %v616 = vsel %vm614, %v610, 0
      %v618 = vsel %vm614, %v613, 0
      %620 = vmatprep.subr.mxu0 0.0
      %621 = vmatpush1.xpose.msra.mxu0 %v618
      %622 = vmatprep.subr.mxu0 0.0
      %623 = vmatpush1.xpose.msra.mxu0 0.0
      %624 = vmatprep.subr.mxu0 0.0
      %625 = vmatpush1.xpose.msra.mxu0 0.0
      %626 = vmatprep.subr.mxu0 0.0
      %627 = vmatpush1.xpose.msra.mxu0 0.0
      %628 = vmatprep.subr.mxu0 0.0
      %629 = vmatpush1.xpose.msra.mxu0 0.0
      %630 = vmatprep.subr.mxu0 0.0
      %631 = vmatpush1.xpose.msra.mxu0 0.0
      %632 = vmatprep.subr.mxu0 0.0
      %633 = vmatpush1.xpose.msra.mxu0 0.0
      %634 = vmatprep.subr.mxu0 0.0
      %635 = vmatpush1.xpose.msra.mxu0 0.0
      %636 = vmatprep.subr.mxu0 0.0
      %637 = vmatpush1.xpose.msra.mxu0 0.0
      %638 = vmatprep.subr.mxu0 0.0
      %639 = vmatpush1.xpose.msra.mxu0 0.0
      %640 = vmatprep.subr.mxu0 0.0
      %641 = vmatpush1.xpose.msra.mxu0 0.0
      %642 = vmatprep.subr.mxu0 0.0
      %643 = vmatpush1.xpose.msra.mxu0 0.0
      %644 = vmatprep.subr.mxu0 0.0
      %645 = vmatpush1.xpose.msra.mxu0 0.0
      %646 = vmatprep.subr.mxu0 0.0
      %647 = vmatpush1.xpose.msra.mxu0 0.0
      %648 = vmatprep.subr.mxu0 0.0
      %649 = vmatpush1.xpose.msra.mxu0 0.0
      %650 = vmatprep.subr.mxu0 0.0
      %651 = vmatpush1.xpose.msra.mxu0 0.0
      %652 = vmatprep.subr.mxu0 0.0
      %653 = vmatpush1.xpose.msra.mxu0 0.0
      %654 = vmatprep.subr.mxu0 0.0
      %655 = vmatpush1.xpose.msra.mxu0 0.0
      %656 = vmatprep.subr.mxu0 0.0
      %657 = vmatpush1.xpose.msra.mxu0 0.0
      %658 = vmatprep.subr.mxu0 0.0
      %659 = vmatpush1.xpose.msra.mxu0 0.0
      %660 = vmatprep.subr.mxu0 0.0
      %661 = vmatpush1.xpose.msra.mxu0 0.0
      %662 = vmatprep.subr.mxu0 0.0
      %663 = vmatpush1.xpose.msra.mxu0 0.0
      %664 = vmatprep.subr.mxu0 0.0
      %665 = vmatpush1.xpose.msra.mxu0 0.0
      %666 = vmatprep.subr.mxu0 0.0
      %667 = vmatpush1.xpose.msra.mxu0 0.0
      %668 = vmatprep.subr.mxu0 0.0
      %669 = vmatpush1.xpose.msra.mxu0 0.0
      %670 = vmatprep.subr.mxu0 0.0
      %671 = vmatpush1.xpose.msra.mxu0 0.0
      %672 = vmatprep.subr.mxu0 0.0
      %673 = vmatpush1.xpose.msra.mxu0 0.0
      %674 = vmatprep.subr.mxu0 0.0
      %675 = vmatpush1.xpose.msra.mxu0 0.0
      %676 = vmatprep.subr.mxu0 0.0
      %677 = vmatpush1.xpose.msra.mxu0 0.0
      %678 = vmatprep.subr.mxu0 0.0
      %679 = vmatpush1.xpose.msra.mxu0 0.0
      %680 = vmatprep.subr.mxu0 0.0
      %681 = vmatpush1.xpose.msra.mxu0 0.0
      %682 = vmatprep.subr.mxu0 0.0
      %683 = vmatpush1.xpose.msra.mxu0 0.0
      %684 = vmatprep.mubr.f32.mxu0 0.0
      %685 = vmatmul.mubr.f32.gmra.mrb[0].mxu0 %v616
      %v686 = vpop.f32.mrb[0].mxu0
      %v687 = vadd.f32 %v606, %v686
      %v688 = vpop.f32.mrb[0].mxu0
      %689 = vdwg.mxu0
      %vm690 = vcmask 27648
      %v691 = vsel %vm690, %v687, -inf
      %692 = vmax.xlane.f32.xlu0 %v691
      %v693 = vpop.xlane.xlu0 %692
      %v694 = vsub.f32 %v687, %v693
      %v695 = vmul.f32 %v694, 1.442695
      %v696 = vpow.pop %v695
      %v697 = vsel %vm690, %v696, 0.0
      %698 = vadd.xlane.f32.xlu0 %v697
      %v699 = vpop.xlane.xlu0 %698
      %v700 = vrcp.pop %v699
      %v701 = vmul.f32 %v696, %v700
      %vm702 = vcmask 31744
      %v704 = vsel %vm702, %v701, 0
      %vm706 = vcmask 1043456
      %v708 = vsel %vm706, %v596, 0
      %710 = vmatprep.subr.mxu0 0.0
      %711 = vmatpush1.msra.mxu0 %v708
      %712 = vmatprep.subr.mxu0 0.0
      %713 = vmatpush1.msra.mxu0 0.0
      %714 = vmatprep.subr.mxu0 0.0
      %715 = vmatpush1.msra.mxu0 0.0
      %716 = vmatprep.subr.mxu0 0.0
      %717 = vmatpush1.msra.mxu0 0.0
      %718 = vmatprep.subr.mxu0 0.0
      %719 = vmatpush1.msra.mxu0 0.0
      %720 = vmatprep.subr.mxu0 0.0
      %721 = vmatpush1.msra.mxu0 0.0
      %722 = vmatprep.subr.mxu0 0.0
      %723 = vmatpush1.msra.mxu0 0.0
      %724 = vmatprep.subr.mxu0 0.0
      %725 = vmatpush1.msra.mxu0 0.0
      %726 = vmatprep.subr.mxu0 0.0
      %727 = vmatpush1.msra.mxu0 0.0
      %728 = vmatprep.subr.mxu0 0.0
      %729 = vmatpush1.msra.mxu0 0.0
      %730 = vmatprep.subr.mxu0 0.0
      %731 = vmatpush1.msra.mxu0 0.0
      %732 = vmatprep.subr.mxu0 0.0
      %733 = vmatpush1.msra.mxu0 0.0
      %734 = vmatprep.subr.mxu0 0.0
      %735 = vmatpush1.msra.mxu0 0.0
      %736 = vmatprep.subr.mxu0 0.0
      %737 = vmatpush1.msra.mxu0 0.0
      %738 = vmatprep.subr.mxu0 0.0
      %739 = vmatpush1.msra.mxu0 0.0
      %740 = vmatprep.subr.mxu0 0.0
      %741 = vmatpush1.msra.mxu0 0.0
      %742 = vmatprep.subr.mxu0 0.0
      %743 = vmatpush1.msra.mxu0 0.0
      %744 = vmatprep.subr.mxu0 0.0
      %745 = vmatpush1.msra.mxu0 0.0
      %746 = vmatprep.subr.mxu0 0.0
      %747 = vmatpush1.msra.mxu0 0.0
      %748 = vmatprep.subr.mxu0 0.0
      %749 = vmatpush1.msra.mxu0 0.0
      %750 = vmatprep.subr.mxu0 0.0
      %751 = vmatpush1.msra.mxu0 0.0
      %752 = vmatprep.subr.mxu0 0.0
      %753 = vmatpush1.msra.mxu0 0.0
      %754 = vmatprep.subr.mxu0 0.0
      %755 = vmatpush1.msra.mxu0 0.0
      %756 = vmatprep.subr.mxu0 0.0
      %757 = vmatpush1.msra.mxu0 0.0
      %758 = vmatprep.subr.mxu0 0.0
      %759 = vmatpush1.msra.mxu0 0.0
      %760 = vmatprep.subr.mxu0 0.0
      %761 = vmatpush1.msra.mxu0 0.0
      %762 = vmatprep.subr.mxu0 0.0
      %763 = vmatpush1.msra.mxu0 0.0
      %764 = vmatprep.subr.mxu0 0.0
      %765 = vmatpush1.msra.mxu0 0.0
      %766 = vmatprep.subr.mxu0 0.0
      %767 = vmatpush1.msra.mxu0 0.0
      %768 = vmatprep.subr.mxu0 0.0
      %769 = vmatpush1.msra.mxu0 0.0
      %770 = vmatprep.subr.mxu0 0.0
      %771 = vmatpush1.msra.mxu0 0.0
      %772 = vmatprep.subr.mxu0 0.0
      %773 = vmatpush1.msra.mxu0 0.0
      %774 = vmatprep.mubr.f32.mxu0 0.0
      %775 = vmatmul.mubr.f32.gmra.mrb[0].mxu0 %v704
      %v776 = vpop.f32.mrb[0].mxu0
      %v777 = vadd.f32 0.0, %v776
      %v778 = vpop.f32.mrb[0].mxu0
      %779 = vdwg.mxu0
      %780 = vrot.lane.b32.xlu0 %v610, 112
      %v781 = vpop.permute.xlu0 %780
      %782 = vrot.lane.b32.xlu0 %v594, 48
      %v783 = vpop.permute.xlu0 %782
      %v784 = vsel %vm614, %v781, 0
      %v786 = vsel %vm614, %v783, 0
      %788 = vmatprep.subr.mxu0 0.0
      %789 = vmatpush1.xpose.msra.mxu0 %v786
      %790 = vmatprep.subr.mxu0 0.0
      %791 = vmatpush1.xpose.msra.mxu0 0.0
      %792 = vmatprep.subr.mxu0 0.0
      %793 = vmatpush1.xpose.msra.mxu0 0.0
      %794 = vmatprep.subr.mxu0 0.0
      %795 = vmatpush1.xpose.msra.mxu0 0.0
      %796 = vmatprep.subr.mxu0 0.0
      %797 = vmatpush1.xpose.msra.mxu0 0.0
      %798 = vmatprep.subr.mxu0 0.0
      %799 = vmatpush1.xpose.msra.mxu0 0.0
      %800 = vmatprep.subr.mxu0 0.0
      %801 = vmatpush1.xpose.msra.mxu0 0.0
      %802 = vmatprep.subr.mxu0 0.0
      %803 = vmatpush1.xpose.msra.mxu0 0.0
      %804 = vmatprep.subr.mxu0 0.0
      %805 = vmatpush1.xpose.msra.mxu0 0.0
      %806 = vmatprep.subr.mxu0 0.0
      %807 = vmatpush1.xpose.msra.mxu0 0.0
      %808 = vmatprep.subr.mxu0 0.0
      %809 = vmatpush1.xpose.msra.mxu0 0.0
      %810 = vmatprep.subr.mxu0 0.0
      %811 = vmatpush1.xpose.msra.mxu0 0.0
      %812 = vmatprep.subr.mxu0 0.0
      %813 = vmatpush1.xpose.msra.mxu0 0.0
      %814 = vmatprep.subr.mxu0 0.0
      %815 = vmatpush1.xpose.msra.mxu0 0.0
      %816 = vmatprep.subr.mxu0 0.0
      %817 = vmatpush1.xpose.msra.mxu0 0.0
      %818 = vmatprep.subr.mxu0 0.0
      %819 = vmatpush1.xpose.msra.mxu0 0.0
      %820 = vmatprep.subr.mxu0 0.0
      %821 = vmatpush1.xpose.msra.mxu0 0.0
      %822 = vmatprep.subr.mxu0 0.0
      %823 = vmatpush1.xpose.msra.mxu0 0.0
      %824 = vmatprep.subr.mxu0 0.0
      %825 = vmatpush1.xpose.msra.mxu0 0.0
      %826 = vmatprep.subr.mxu0 0.0
      %827 = vmatpush1.xpose.msra.mxu0 0.0
      %828 = vmatprep.subr.mxu0 0.0
      %829 = vmatpush1.xpose.msra.mxu0 0.0
      %830 = vmatprep.subr.mxu0 0.0
      %831 = vmatpush1.xpose.msra.mxu0 0.0
      %832 = vmatprep.subr.mxu0 0.0
      %833 = vmatpush1.xpose.msra.mxu0 0.0
      %834 = vmatprep.subr.mxu0 0.0
      %835 = vmatpush1.xpose.msra.mxu0 0.0
      %836 = vmatprep.subr.mxu0 0.0
      %837 = vmatpush1.xpose.msra.mxu0 0.0
      %838 = vmatprep.subr.mxu0 0.0
      %839 = vmatpush1.xpose.msra.mxu0 0.0
      %840 = vmatprep.subr.mxu0 0.0
      %841 = vmatpush1.xpose.msra.mxu0 0.0
      %842 = vmatprep.subr.mxu0 0.0
      %843 = vmatpush1.xpose.msra.mxu0 0.0
      %844 = vmatprep.subr.mxu0 0.0
      %845 = vmatpush1.xpose.msra.mxu0 0.0
      %846 = vmatprep.subr.mxu0 0.0
      %847 = vmatpush1.xpose.msra.mxu0 0.0
      %848 = vmatprep.subr.mxu0 0.0
      %849 = vmatpush1.xpose.msra.mxu0 0.0
      %850 = vmatprep.subr.mxu0 0.0
      %851 = vmatpush1.xpose.msra.mxu0 0.0
      %852 = vmatprep.mubr.f32.mxu0 0.0
      %853 = vmatmul.mubr.f32.gmra.mrb[0].mxu0 %v784
      %v854 = vpop.f32.mrb[0].mxu0
      %v855 = vadd.f32 %v607, %v854
      %v856 = vpop.f32.mrb[0].mxu0
      %857 = vdwg.mxu0
      %v858 = vsel %vm690, %v855, -inf
      %859 = vmax.xlane.f32.xlu0 %v858
      %v860 = vpop.xlane.xlu0 %859
      %v861 = vsub.f32 %v855, %v860
      %v862 = vmul.f32 %v861, 1.442695
      %v863 = vpow.pop %v862
      %v864 = vsel %vm690, %v863, 0.0
      %865 = vadd.xlane.f32.xlu0 %v864
      %v866 = vpop.xlane.xlu0 %865
      %v867 = vrcp.pop %v866
      %v868 = vmul.f32 %v863, %v867
      %869 = vrot.lane.b32.xlu0 %v596, 112
      %v870 = vpop.permute.xlu0 %869
      %v872 = vsel %vm702, %v868, 0
      %v874 = vsel %vm706, %v870, 0
      %876 = vmatprep.subr.mxu0 0.0
      %877 = vmatpush1.msra.mxu0 %v874
      %878 = vmatprep.subr.mxu0 0.0
      %879 = vmatpush1.msra.mxu0 0.0
      %880 = vmatprep.subr.mxu0 0.0
      %881 = vmatpush1.msra.mxu0 0.0
      %882 = vmatprep.subr.mxu0 0.0
      %883 = vmatpush1.msra.mxu0 0.0
      %884 = vmatprep.subr.mxu0 0.0
      %885 = vmatpush1.msra.mxu0 0.0
      %886 = vmatprep.subr.mxu0 0.0
      %887 = vmatpush1.msra.mxu0 0.0
      %888 = vmatprep.subr.mxu0 0.0
      %889 = vmatpush1.msra.mxu0 0.0
      %890 = vmatprep.subr.mxu0 0.0
      %891 = vmatpush1.msra.mxu0 0.0
      %892 = vmatprep.subr.mxu0 0.0
      %893 = vmatpush1.msra.mxu0 0.0
      %894 = vmatprep.subr.mxu0 0.0
      %895 = vmatpush1.msra.mxu0 0.0
      %896 = vmatprep.subr.mxu0 0.0
      %897 = vmatpush1.msra.mxu0 0.0
      %898 = vmatprep.subr.mxu0 0.0
      %899 = vmatpush1.msra.mxu0 0.0
      %900 = vmatprep.subr.mxu0 0.0
      %901 = vmatpush1.msra.mxu0 0.0
      %902 = vmatprep.subr.mxu0 0.0
      %903 = vmatpush1.msra.mxu0 0.0
      %904 = vmatprep.subr.mxu0 0.0
      %905 = vmatpush1.msra.mxu0 0.0
      %906 = vmatprep.subr.mxu0 0.0
      %907 = vmatpush1.msra.mxu0 0.0
      %908 = vmatprep.subr.mxu0 0.0
      %909 = vmatpush1.msra.mxu0 0.0
      %910 = vmatprep.subr.mxu0 0.0
      %911 = vmatpush1.msra.mxu0 0.0
      %912 = vmatprep.subr.mxu0 0.0
      %913 = vmatpush1.msra.mxu0 0.0
      %914 = vmatprep.subr.mxu0 0.0
      %915 = vmatpush1.msra.mxu0 0.0
      %916 = vmatprep.subr.mxu0 0.0
      %917 = vmatpush1.msra.mxu0 0.0
      %918 = vmatprep.subr.mxu0 0.0
      %919 = vmatpush1.msra.mxu0 0.0
      %920 = vmatprep.subr.mxu0 0.0
      %921 = vmatpush1.msra.mxu0 0.0
      %922 = vmatprep.subr.mxu0 0.0
      %923 = vmatpush1.msra.mxu0 0.0
      %924 = vmatprep.subr.mxu0 0.0
      %925 = vmatpush1.msra.mxu0 0.0
      %926 = vmatprep.subr.mxu0 0.0
      %927 = vmatpush1.msra.mxu0 0.0
      %928 = vmatprep.subr.mxu0 0.0
      %929 = vmatpush1.msra.mxu0 0.0
      %930 = vmatprep.subr.mxu0 0.0
      %931 = vmatpush1.msra.mxu0 0.0
      %932 = vmatprep.subr.mxu0 0.0
      %933 = vmatpush1.msra.mxu0 0.0
      %934 = vmatprep.subr.mxu0 0.0
      %935 = vmatpush1.msra.mxu0 0.0
      %936 = vmatprep.subr.mxu0 0.0
      %937 = vmatpush1.msra.mxu0 0.0
      %938 = vmatprep.subr.mxu0 0.0
      %939 = vmatpush1.msra.mxu0 0.0
      %940 = vmatprep.mubr.f32.mxu0 0.0
      %941 = vmatmul.mubr.f32.gmra.mrb[0].mxu0 %v872
      %v942 = vpop.f32.mrb[0].mxu0
      %v943 = vadd.f32 0.0, %v942
      %v944 = vpop.f32.mrb[0].mxu0
      %945 = vdwg.mxu0
      %v947 = vsel %vm614, %v943, 0
      %949 = vmatprep.subr.mxu0 0.0
      %950 = vmatpush1.msra.mxu0 %v600
      %951 = vmatprep.subr.mxu0 0.0
      %952 = vmatpush1.msra.mxu0 %v601
      %953 = vmatprep.subr.mxu0 0.0
      %954 = vmatpush1.msra.mxu0 0.0
      %955 = vmatprep.subr.mxu0 0.0
      %956 = vmatpush1.msra.mxu0 0.0
      %957 = vmatprep.subr.mxu0 0.0
      %958 = vmatpush1.msra.mxu0 0.0
      %959 = vmatprep.subr.mxu0 0.0
      %960 = vmatpush1.msra.mxu0 0.0
      %961 = vmatprep.subr.mxu0 0.0
      %962 = vmatpush1.msra.mxu0 0.0
      %963 = vmatprep.subr.mxu0 0.0
      %964 = vmatpush1.msra.mxu0 0.0
      %965 = vmatprep.subr.mxu0 0.0
      %966 = vmatpush1.msra.mxu0 0.0
      %967 = vmatprep.subr.mxu0 0.0
      %968 = vmatpush1.msra.mxu0 0.0
      %969 = vmatprep.subr.mxu0 0.0
      %970 = vmatpush1.msra.mxu0 0.0
      %971 = vmatprep.subr.mxu0 0.0
      %972 = vmatpush1.msra.mxu0 0.0
      %973 = vmatprep.subr.mxu0 0.0
      %974 = vmatpush1.msra.mxu0 0.0
      %975 = vmatprep.subr.mxu0 0.0
      %976 = vmatpush1.msra.mxu0 0.0
      %977 = vmatprep.subr.mxu0 0.0
      %978 = vmatpush1.msra.mxu0 0.0
      %979 = vmatprep.subr.mxu0 0.0
      %980 = vmatpush1.msra.mxu0 0.0
      %981 = vmatprep.subr.mxu0 0.0
      %982 = vmatpush1.msra.mxu0 0.0
      %983 = vmatprep.subr.mxu0 0.0
      %984 = vmatpush1.msra.mxu0 0.0
      %985 = vmatprep.subr.mxu0 0.0
      %986 = vmatpush1.msra.mxu0 0.0
      %987 = vmatprep.subr.mxu0 0.0
      %988 = vmatpush1.msra.mxu0 0.0
      %989 = vmatprep.subr.mxu0 0.0
      %990 = vmatpush1.msra.mxu0 0.0
      %991 = vmatprep.subr.mxu0 0.0
      %992 = vmatpush1.msra.mxu0 0.0
      %993 = vmatprep.subr.mxu0 0.0
      %994 = vmatpush1.msra.mxu0 0.0
      %995 = vmatprep.subr.mxu0 0.0
      %996 = vmatpush1.msra.mxu0 0.0
      %997 = vmatprep.subr.mxu0 0.0
      %998 = vmatpush1.msra.mxu0 0.0
      %999 = vmatprep.subr.mxu0 0.0
      %1000 = vmatpush1.msra.mxu0 0.0
      %1001 = vmatprep.subr.mxu0 0.0
      %1002 = vmatpush1.msra.mxu0 0.0
      %1003 = vmatprep.subr.mxu0 0.0
      %1004 = vmatpush1.msra.mxu0 0.0
      %1005 = vmatprep.subr.mxu0 0.0
      %1006 = vmatpush1.msra.mxu0 0.0
      %1007 = vmatprep.subr.mxu0 0.0
      %1008 = vmatpush1.msra.mxu0 0.0
      %1009 = vmatprep.subr.mxu0 0.0
      %1010 = vmatpush1.msra.mxu0 0.0
      %1011 = vmatprep.subr.mxu0 0.0
      %1012 = vmatpush1.msra.mxu0 0.0
      %1013 = vmatprep.mubr.f32.mxu0 0.0
      %1014 = vmatmul.mubr.f32.gmra.mrb[0].mxu0 %v947
      %v1015 = vpop.f32.mrb[0].mxu0
      %v1016 = vadd.f32 0.0, %v1015
      %v1017 = vpop.f32.mrb[0].mxu0
      %1018 = vdwg.mxu0
      %v1020 = vsel %vm614, %v777, 0
      %1022 = vmatprep.subr.mxu0 0.0
      %1023 = vmatpush1.msra.mxu0 %v598
      %1024 = vmatprep.subr.mxu0 0.0
      %1025 = vmatpush1.msra.mxu0 %v599
      %1026 = vmatprep.subr.mxu0 0.0
      %1027 = vmatpush1.msra.mxu0 0.0
      %1028 = vmatprep.subr.mxu0 0.0
      %1029 = vmatpush1.msra.mxu0 0.0
      %1030 = vmatprep.subr.mxu0 0.0
      %1031 = vmatpush1.msra.mxu0 0.0
      %1032 = vmatprep.subr.mxu0 0.0
      %1033 = vmatpush1.msra.mxu0 0.0
      %1034 = vmatprep.subr.mxu0 0.0
      %1035 = vmatpush1.msra.mxu0 0.0
      %1036 = vmatprep.subr.mxu0 0.0
      %1037 = vmatpush1.msra.mxu0 0.0
      %1038 = vmatprep.subr.mxu0 0.0
      %1039 = vmatpush1.msra.mxu0 0.0
      %1040 = vmatprep.subr.mxu0 0.0
      %1041 = vmatpush1.msra.mxu0 0.0
      %1042 = vmatprep.subr.mxu0 0.0
      %1043 = vmatpush1.msra.mxu0 0.0
      %1044 = vmatprep.subr.mxu0 0.0
      %1045 = vmatpush1.msra.mxu0 0.0
      %1046 = vmatprep.subr.mxu0 0.0
      %1047 = vmatpush1.msra.mxu0 0.0
      %1048 = vmatprep.subr.mxu0 0.0
      %1049 = vmatpush1.msra.mxu0 0.0
      %1050 = vmatprep.subr.mxu0 0.0
      %1051 = vmatpush1.msra.mxu0 0.0
      %1052 = vmatprep.subr.mxu0 0.0
      %1053 = vmatpush1.msra.mxu0 0.0
      %1054 = vmatprep.subr.mxu0 0.0
      %1055 = vmatpush1.msra.mxu0 0.0
      %1056 = vmatprep.subr.mxu0 0.0
      %1057 = vmatpush1.msra.mxu0 0.0
      %1058 = vmatprep.subr.mxu0 0.0
      %1059 = vmatpush1.msra.mxu0 0.0
      %1060 = vmatprep.subr.mxu0 0.0
      %1061 = vmatpush1.msra.mxu0 0.0
      %1062 = vmatprep.subr.mxu0 0.0
      %1063 = vmatpush1.msra.mxu0 0.0
      %1064 = vmatprep.subr.mxu0 0.0
      %1065 = vmatpush1.msra.mxu0 0.0
      %1066 = vmatprep.subr.mxu0 0.0
      %1067 = vmatpush1.msra.mxu0 0.0
      %1068 = vmatprep.subr.mxu0 0.0
      %1069 = vmatpush1.msra.mxu0 0.0
      %1070 = vmatprep.subr.mxu0 0.0
      %1071 = vmatpush1.msra.mxu0 0.0
      %1072 = vmatprep.subr.mxu0 0.0
      %1073 = vmatpush1.msra.mxu0 0.0
      %1074 = vmatprep.subr.mxu0 0.0
      %1075 = vmatpush1.msra.mxu0 0.0
      %1076 = vmatprep.subr.mxu0 0.0
      %1077 = vmatpush1.msra.mxu0 0.0
      %1078 = vmatprep.subr.mxu0 0.0
      %1079 = vmatpush1.msra.mxu0 0.0
      %1080 = vmatprep.subr.mxu0 0.0
      %1081 = vmatpush1.msra.mxu0 0.0
      %1082 = vmatprep.subr.mxu0 0.0
      %1083 = vmatpush1.msra.mxu0 0.0
      %1084 = vmatprep.subr.mxu0 0.0
      %1085 = vmatpush1.msra.mxu0 0.0
      %1086 = vmatprep.mubr.f32.mxu0 0.0
      %1087 = vmatmul.mubr.f32.gmra.mrb[0].mxu0 %v1020
      %v1088 = vpop.f32.mrb[0].mxu0
      %v1089 = vadd.f32 %v1016, %v1088
      %v1090 = vpop.f32.mrb[0].mxu0
      %1091 = vdwg.mxu0
      %1092 = vrot.lane.b32.xlu0 %v610, 96
      %v1093 = vpop.permute.xlu0 %1092
      %1094 = vrot.lane.b32.xlu0 %v594, 32
      %v1095 = vpop.permute.xlu0 %1094
      %v1096 = vsel %vm614, %v1093, 0
      %v1098 = vsel %vm614, %v1095, 0
      %1100 = vmatprep.subr.mxu0 0.0
      %1101 = vmatpush1.xpose.msra.mxu0 %v1098
      %1102 = vmatprep.subr.mxu0 0.0
      %1103 = vmatpush1.xpose.msra.mxu0 0.0
      %1104 = vmatprep.subr.mxu0 0.0
      %1105 = vmatpush1.xpose.msra.mxu0 0.0
      %1106 = vmatprep.subr.mxu0 0.0
      %1107 = vmatpush1.xpose.msra.mxu0 0.0
      %1108 = vmatprep.subr.mxu0 0.0
      %1109 = vmatpush1.xpose.msra.mxu0 0.0
      %1110 = vmatprep.subr.mxu0 0.0
      %1111 = vmatpush1.xpose.msra.mxu0 0.0
      %1112 = vmatprep.subr.mxu0 0.0
      %1113 = vmatpush1.xpose.msra.mxu0 0.0
      %1114 = vmatprep.subr.mxu0 0.0
      %1115 = vmatpush1.xpose.msra.mxu0 0.0
      %1116 = vmatprep.subr.mxu0 0.0
      %1117 = vmatpush1.xpose.msra.mxu0 0.0
      %1118 = vmatprep.subr.mxu0 0.0
      %1119 = vmatpush1.xpose.msra.mxu0 0.0
      %1120 = vmatprep.subr.mxu0 0.0
      %1121 = vmatpush1.xpose.msra.mxu0 0.0
      %1122 = vmatprep.subr.mxu0 0.0
      %1123 = vmatpush1.xpose.msra.mxu0 0.0
      %1124 = vmatprep.subr.mxu0 0.0
      %1125 = vmatpush1.xpose.msra.mxu0 0.0
      %1126 = vmatprep.subr.mxu0 0.0
      %1127 = vmatpush1.xpose.msra.mxu0 0.0
      %1128 = vmatprep.subr.mxu0 0.0
      %1129 = vmatpush1.xpose.msra.mxu0 0.0
      %1130 = vmatprep.subr.mxu0 0.0
      %1131 = vmatpush1.xpose.msra.mxu0 0.0
      %1132 = vmatprep.subr.mxu0 0.0
      %1133 = vmatpush1.xpose.msra.mxu0 0.0
      %1134 = vmatprep.subr.mxu0 0.0
      %1135 = vmatpush1.xpose.msra.mxu0 0.0
      %1136 = vmatprep.subr.mxu0 0.0
      %1137 = vmatpush1.xpose.msra.mxu0 0.0
      %1138 = vmatprep.subr.mxu0 0.0
      %1139 = vmatpush1.xpose.msra.mxu0 0.0
      %1140 = vmatprep.subr.mxu0 0.0
      %1141 = vmatpush1.xpose.msra.mxu0 0.0
      %1142 = vmatprep.subr.mxu0 0.0
      %1143 = vmatpush1.xpose.msra.mxu0 0.0
      %1144 = vmatprep.subr.mxu0 0.0
      %1145 = vmatpush1.xpose.msra.mxu0 0.0
      %1146 = vmatprep.subr.mxu0 0.0
      %1147 = vmatpush1.xpose.msra.mxu0 0.0
      %1148 = vmatprep.subr.mxu0 0.0
      %1149 = vmatpush1.xpose.msra.mxu0 0.0
      %1150 = vmatprep.subr.mxu0 0.0
      %1151 = vmatpush1.xpose.msra.mxu0 0.0
      %1152 = vmatprep.subr.mxu0 0.0
      %1153 = vmatpush1.xpose.msra.mxu0 0.0
      %1154 = vmatprep.subr.mxu0 0.0
      %1155 = vmatpush1.xpose.msra.mxu0 0.0
      %1156 = vmatprep.subr.mxu0 0.0
      %1157 = vmatpush1.xpose.msra.mxu0 0.0
      %1158 = vmatprep.subr.mxu0 0.0
      %1159 = vmatpush1.xpose.msra.mxu0 0.0
      %1160 = vmatprep.subr.mxu0 0.0
      %1161 = vmatpush1.xpose.msra.mxu0 0.0
      %1162 = vmatprep.subr.mxu0 0.0
      %1163 = vmatpush1.xpose.msra.mxu0 0.0
      %1164 = vmatprep.mubr.f32.mxu0 0.0
      %1165 = vmatmul.mubr.f32.gmra.mrb[0].mxu0 %v1096
      %v1166 = vpop.f32.mrb[0].mxu0
      %v1167 = vadd.f32 %v608, %v1166
      %v1168 = vpop.f32.mrb[0].mxu0
      %1169 = vdwg.mxu0
      %v1170 = vsel %vm690, %v1167, -inf
      %1171 = vmax.xlane.f32.xlu0 %v1170
      %v1172 = vpop.xlane.xlu0 %1171
      %v1173 = vsub.f32 %v1167, %v1172
      %v1174 = vmul.f32 %v1173, 1.442695
      %v1175 = vpow.pop %v1174
      %v1176 = vsel %vm690, %v1175, 0.0
      %1177 = vadd.xlane.f32.xlu0 %v1176
      %v1178 = vpop.xlane.xlu0 %1177
      %v1179 = vrcp.pop %v1178
      %v1180 = vmul.f32 %v1175, %v1179
      %1181 = vrot.lane.b32.xlu0 %v596, 96
      %v1182 = vpop.permute.xlu0 %1181
      %v1184 = vsel %vm702, %v1180, 0
      %v1186 = vsel %vm706, %v1182, 0
      %1188 = vmatprep.subr.mxu0 0.0
      %1189 = vmatpush1.msra.mxu0 %v1186
      %1190 = vmatprep.subr.mxu0 0.0
      %1191 = vmatpush1.msra.mxu0 0.0
      %1192 = vmatprep.subr.mxu0 0.0
      %1193 = vmatpush1.msra.mxu0 0.0
      %1194 = vmatprep.subr.mxu0 0.0
      %1195 = vmatpush1.msra.mxu0 0.0
      %1196 = vmatprep.subr.mxu0 0.0
      %1197 = vmatpush1.msra.mxu0 0.0
      %1198 = vmatprep.subr.mxu0 0.0
      %1199 = vmatpush1.msra.mxu0 0.0
      %1200 = vmatprep.subr.mxu0 0.0
      %1201 = vmatpush1.msra.mxu0 0.0
      %1202 = vmatprep.subr.mxu0 0.0
      %1203 = vmatpush1.msra.mxu0 0.0
      %1204 = vmatprep.subr.mxu0 0.0
      %1205 = vmatpush1.msra.mxu0 0.0
      %1206 = vmatprep.subr.mxu0 0.0
      %1207 = vmatpush1.msra.mxu0 0.0
      %1208 = vmatprep.subr.mxu0 0.0
      %1209 = vmatpush1.msra.mxu0 0.0
      %1210 = vmatprep.subr.mxu0 0.0
      %1211 = vmatpush1.msra.mxu0 0.0
      %1212 = vmatprep.subr.mxu0 0.0
      %1213 = vmatpush1.msra.mxu0 0.0
      %1214 = vmatprep.subr.mxu0 0.0
      %1215 = vmatpush1.msra.mxu0 0.0
      %1216 = vmatprep.subr.mxu0 0.0
      %1217 = vmatpush1.msra.mxu0 0.0
      %1218 = vmatprep.subr.mxu0 0.0
      %1219 = vmatpush1.msra.mxu0 0.0
      %1220 = vmatprep.subr.mxu0 0.0
      %1221 = vmatpush1.msra.mxu0 0.0
      %1222 = vmatprep.subr.mxu0 0.0
      %1223 = vmatpush1.msra.mxu0 0.0
      %1224 = vmatprep.subr.mxu0 0.0
      %1225 = vmatpush1.msra.mxu0 0.0
      %1226 = vmatprep.subr.mxu0 0.0
      %1227 = vmatpush1.msra.mxu0 0.0
      %1228 = vmatprep.subr.mxu0 0.0
      %1229 = vmatpush1.msra.mxu0 0.0
      %1230 = vmatprep.subr.mxu0 0.0
      %1231 = vmatpush1.msra.mxu0 0.0
      %1232 = vmatprep.subr.mxu0 0.0
      %1233 = vmatpush1.msra.mxu0 0.0
      %1234 = vmatprep.subr.mxu0 0.0
      %1235 = vmatpush1.msra.mxu0 0.0
      %1236 = vmatprep.subr.mxu0 0.0
      %1237 = vmatpush1.msra.mxu0 0.0
      %1238 = vmatprep.subr.mxu0 0.0
      %1239 = vmatpush1.msra.mxu0 0.0
      %1240 = vmatprep.subr.mxu0 0.0
      %1241 = vmatpush1.msra.mxu0 0.0
      %1242 = vmatprep.subr.mxu0 0.0
      %1243 = vmatpush1.msra.mxu0 0.0
      %1244 = vmatprep.subr.mxu0 0.0
      %1245 = vmatpush1.msra.mxu0 0.0
      %1246 = vmatprep.subr.mxu0 0.0
      %1247 = vmatpush1.msra.mxu0 0.0
      %1248 = vmatprep.subr.mxu0 0.0
      %1249 = vmatpush1.msra.mxu0 0.0
      %1250 = vmatprep.subr.mxu0 0.0
      %1251 = vmatpush1.msra.mxu0 0.0
      %1252 = vmatprep.mubr.f32.mxu0 0.0
      %1253 = vmatmul.mubr.f32.gmra.mrb[0].mxu0 %v1184
      %v1254 = vpop.f32.mrb[0].mxu0
      %v1255 = vadd.f32 0.0, %v1254
      %v1256 = vpop.f32.mrb[0].mxu0
      %1257 = vdwg.mxu0
      %v1259 = vsel %vm614, %v1255, 0
      %1261 = vmatprep.subr.mxu0 0.0
      %1262 = vmatpush1.msra.mxu0 %v602
      %1263 = vmatprep.subr.mxu0 0.0
      %1264 = vmatpush1.msra.mxu0 %v603
      %1265 = vmatprep.subr.mxu0 0.0
      %1266 = vmatpush1.msra.mxu0 0.0
      %1267 = vmatprep.subr.mxu0 0.0
      %1268 = vmatpush1.msra.mxu0 0.0
      %1269 = vmatprep.subr.mxu0 0.0
      %1270 = vmatpush1.msra.mxu0 0.0
      %1271 = vmatprep.subr.mxu0 0.0
      %1272 = vmatpush1.msra.mxu0 0.0
      %1273 = vmatprep.subr.mxu0 0.0
      %1274 = vmatpush1.msra.mxu0 0.0
      %1275 = vmatprep.subr.mxu0 0.0
      %1276 = vmatpush1.msra.mxu0 0.0
      %1277 = vmatprep.subr.mxu0 0.0
      %1278 = vmatpush1.msra.mxu0 0.0
      %1279 = vmatprep.subr.mxu0 0.0
      %1280 = vmatpush1.msra.mxu0 0.0
      %1281 = vmatprep.subr.mxu0 0.0
      %1282 = vmatpush1.msra.mxu0 0.0
      %1283 = vmatprep.subr.mxu0 0.0
      %1284 = vmatpush1.msra.mxu0 0.0
      %1285 = vmatprep.subr.mxu0 0.0
      %1286 = vmatpush1.msra.mxu0 0.0
      %1287 = vmatprep.subr.mxu0 0.0
      %1288 = vmatpush1.msra.mxu0 0.0
      %1289 = vmatprep.subr.mxu0 0.0
      %1290 = vmatpush1.msra.mxu0 0.0
      %1291 = vmatprep.subr.mxu0 0.0
      %1292 = vmatpush1.msra.mxu0 0.0
      %1293 = vmatprep.subr.mxu0 0.0
      %1294 = vmatpush1.msra.mxu0 0.0
      %1295 = vmatprep.subr.mxu0 0.0
      %1296 = vmatpush1.msra.mxu0 0.0
      %1297 = vmatprep.subr.mxu0 0.0
      %1298 = vmatpush1.msra.mxu0 0.0
      %1299 = vmatprep.subr.mxu0 0.0
      %1300 = vmatpush1.msra.mxu0 0.0
      %1301 = vmatprep.subr.mxu0 0.0
      %1302 = vmatpush1.msra.mxu0 0.0
      %1303 = vmatprep.subr.mxu0 0.0
      %1304 = vmatpush1.msra.mxu0 0.0
      %1305 = vmatprep.subr.mxu0 0.0
      %1306 = vmatpush1.msra.mxu0 0.0
      %1307 = vmatprep.subr.mxu0 0.0
      %1308 = vmatpush1.msra.mxu0 0.0
      %1309 = vmatprep.subr.mxu0 0.0
      %1310 = vmatpush1.msra.mxu0 0.0
      %1311 = vmatprep.subr.mxu0 0.0
      %1312 = vmatpush1.msra.mxu0 0.0
      %1313 = vmatprep.subr.mxu0 0.0
      %1314 = vmatpush1.msra.mxu0 0.0
      %1315 = vmatprep.subr.mxu0 0.0
      %1316 = vmatpush1.msra.mxu0 0.0
      %1317 = vmatprep.subr.mxu0 0.0
      %1318 = vmatpush1.msra.mxu0 0.0
      %1319 = vmatprep.subr.mxu0 0.0
      %1320 = vmatpush1.msra.mxu0 0.0
      %1321 = vmatprep.subr.mxu0 0.0
      %1322 = vmatpush1.msra.mxu0 0.0
      %1323 = vmatprep.subr.mxu0 0.0
      %1324 = vmatpush1.msra.mxu0 0.0
      %1325 = vmatprep.mubr.f32.mxu0 0.0
      %1326 = vmatmul.mubr.f32.gmra.mrb[0].mxu0 %v1259
      %v1327 = vpop.f32.mrb[0].mxu0
      %v1328 = vadd.f32 0.0, %v1327
      %v1329 = vpop.f32.mrb[0].mxu0
      %1330 = vdwg.mxu0
      %v1331 = vadd.f32 %v1089, %v1328
      %1332 = vrot.lane.b32.xlu0 %v610, 80
      %v1333 = vpop.permute.xlu0 %1332
      %1334 = vrot.lane.b32.xlu0 %v594, 16
      %v1335 = vpop.permute.xlu0 %1334
      %v1336 = vsel %vm614, %v1333, 0
      %v1338 = vsel %vm614, %v1335, 0
      %1340 = vmatprep.subr.mxu0 0.0
      %1341 = vmatpush1.xpose.msra.mxu0 %v1338
      %1342 = vmatprep.subr.mxu0 0.0
      %1343 = vmatpush1.xpose.msra.mxu0 0.0
      %1344 = vmatprep.subr.mxu0 0.0
      %1345 = vmatpush1.xpose.msra.mxu0 0.0
      %1346 = vmatprep.subr.mxu0 0.0
      %1347 = vmatpush1.xpose.msra.mxu0 0.0
      %1348 = vmatprep.subr.mxu0 0.0
      %1349 = vmatpush1.xpose.msra.mxu0 0.0
      %1350 = vmatprep.subr.mxu0 0.0
      %1351 = vmatpush1.xpose.msra.mxu0 0.0
      %1352 = vmatprep.subr.mxu0 0.0
      %1353 = vmatpush1.xpose.msra.mxu0 0.0
      %1354 = vmatprep.subr.mxu0 0.0
      %1355 = vmatpush1.xpose.msra.mxu0 0.0
      %1356 = vmatprep.subr.mxu0 0.0
      %1357 = vmatpush1.xpose.msra.mxu0 0.0
      %1358 = vmatprep.subr.mxu0 0.0
      %1359 = vmatpush1.xpose.msra.mxu0 0.0
      %1360 = vmatprep.subr.mxu0 0.0
      %1361 = vmatpush1.xpose.msra.mxu0 0.0
      %1362 = vmatprep.subr.mxu0 0.0
      %1363 = vmatpush1.xpose.msra.mxu0 0.0
      %1364 = vmatprep.subr.mxu0 0.0
      %1365 = vmatpush1.xpose.msra.mxu0 0.0
      %1366 = vmatprep.subr.mxu0 0.0
      %1367 = vmatpush1.xpose.msra.mxu0 0.0
      %1368 = vmatprep.subr.mxu0 0.0
      %1369 = vmatpush1.xpose.msra.mxu0 0.0
      %1370 = vmatprep.subr.mxu0 0.0
      %1371 = vmatpush1.xpose.msra.mxu0 0.0
      %1372 = vmatprep.subr.mxu0 0.0
      %1373 = vmatpush1.xpose.msra.mxu0 0.0
      %1374 = vmatprep.subr.mxu0 0.0
      %1375 = vmatpush1.xpose.msra.mxu0 0.0
      %1376 = vmatprep.subr.mxu0 0.0
      %1377 = vmatpush1.xpose.msra.mxu0 0.0
      %1378 = vmatprep.subr.mxu0 0.0
      %1379 = vmatpush1.xpose.msra.mxu0 0.0
      %1380 = vmatprep.subr.mxu0 0.0
      %1381 = vmatpush1.xpose.msra.mxu0 0.0
      %1382 = vmatprep.subr.mxu0 0.0
      %1383 = vmatpush1.xpose.msra.mxu0 0.0
      %1384 = vmatprep.subr.mxu0 0.0
      %1385 = vmatpush1.xpose.msra.mxu0 0.0
      %1386 = vmatprep.subr.mxu0 0.0
      %1387 = vmatpush1.xpose.msra.mxu0 0.0
      %1388 = vmatprep.subr.mxu0 0.0
      %1389 = vmatpush1.xpose.msra.mxu0 0.0
      %1390 = vmatprep.subr.mxu0 0.0
      %1391 = vmatpush1.xpose.msra.mxu0 0.0
      %1392 = vmatprep.subr.mxu0 0.0
      %1393 = vmatpush1.xpose.msra.mxu0 0.0
      %1394 = vmatprep.subr.mxu0 0.0
      %1395 = vmatpush1.xpose.msra.mxu0 0.0
      %1396 = vmatprep.subr.mxu0 0.0
      %1397 = vmatpush1.xpose.msra.mxu0 0.0
      %1398 = vmatprep.subr.mxu0 0.0
      %1399 = vmatpush1.xpose.msra.mxu0 0.0
      %1400 = vmatprep.subr.mxu0 0.0
      %1401 = vmatpush1.xpose.msra.mxu0 0.0
      %1402 = vmatprep.subr.mxu0 0.0
      %1403 = vmatpush1.xpose.msra.mxu0 0.0
      %1404 = vmatprep.mubr.f32.mxu0 0.0
      %1405 = vmatmul.mubr.f32.gmra.mrb[0].mxu0 %v1336
      %v1406 = vpop.f32.mrb[0].mxu0
      %v1407 = vadd.f32 %v609, %v1406
      %v1408 = vpop.f32.mrb[0].mxu0
      %1409 = vdwg.mxu0
      %v1410 = vsel %vm690, %v1407, -inf
      %1411 = vmax.xlane.f32.xlu0 %v1410
      %v1412 = vpop.xlane.xlu0 %1411
      %v1413 = vsub.f32 %v1407, %v1412
      %v1414 = vmul.f32 %v1413, 1.442695
      %v1415 = vpow.pop %v1414
      %v1416 = vsel %vm690, %v1415, 0.0
      %1417 = vadd.xlane.f32.xlu0 %v1416
      %v1418 = vpop.xlane.xlu0 %1417
      %v1419 = vrcp.pop %v1418
      %v1420 = vmul.f32 %v1415, %v1419
      %1421 = vrot.lane.b32.xlu0 %v596, 80
      %v1422 = vpop.permute.xlu0 %1421
      %v1424 = vsel %vm702, %v1420, 0
      %v1426 = vsel %vm706, %v1422, 0
      %1428 = vmatprep.subr.mxu0 0.0
      %1429 = vmatpush1.msra.mxu0 %v1426
      %1430 = vmatprep.subr.mxu0 0.0
      %1431 = vmatpush1.msra.mxu0 0.0
      %1432 = vmatprep.subr.mxu0 0.0
      %1433 = vmatpush1.msra.mxu0 0.0
      %1434 = vmatprep.subr.mxu0 0.0
      %1435 = vmatpush1.msra.mxu0 0.0
      %1436 = vmatprep.subr.mxu0 0.0
      %1437 = vmatpush1.msra.mxu0 0.0
      %1438 = vmatprep.subr.mxu0 0.0
      %1439 = vmatpush1.msra.mxu0 0.0
      %1440 = vmatprep.subr.mxu0 0.0
      %1441 = vmatpush1.msra.mxu0 0.0
      %1442 = vmatprep.subr.mxu0 0.0
      %1443 = vmatpush1.msra.mxu0 0.0
      %1444 = vmatprep.subr.mxu0 0.0
      %1445 = vmatpush1.msra.mxu0 0.0
      %1446 = vmatprep.subr.mxu0 0.0
      %1447 = vmatpush1.msra.mxu0 0.0
      %1448 = vmatprep.subr.mxu0 0.0
      %1449 = vmatpush1.msra.mxu0 0.0
      %1450 = vmatprep.subr.mxu0 0.0
      %1451 = vmatpush1.msra.mxu0 0.0
      %1452 = vmatprep.subr.mxu0 0.0
      %1453 = vmatpush1.msra.mxu0 0.0
      %1454 = vmatprep.subr.mxu0 0.0
      %1455 = vmatpush1.msra.mxu0 0.0
      %1456 = vmatprep.subr.mxu0 0.0
      %1457 = vmatpush1.msra.mxu0 0.0
      %1458 = vmatprep.subr.mxu0 0.0
      %1459 = vmatpush1.msra.mxu0 0.0
      %1460 = vmatprep.subr.mxu0 0.0
      %1461 = vmatpush1.msra.mxu0 0.0
      %1462 = vmatprep.subr.mxu0 0.0
      %1463 = vmatpush1.msra.mxu0 0.0
      %1464 = vmatprep.subr.mxu0 0.0
      %1465 = vmatpush1.msra.mxu0 0.0
      %1466 = vmatprep.subr.mxu0 0.0
      %1467 = vmatpush1.msra.mxu0 0.0
      %1468 = vmatprep.subr.mxu0 0.0
      %1469 = vmatpush1.msra.mxu0 0.0
      %1470 = vmatprep.subr.mxu0 0.0
      %1471 = vmatpush1.msra.mxu0 0.0
      %1472 = vmatprep.subr.mxu0 0.0
      %1473 = vmatpush1.msra.mxu0 0.0
      %1474 = vmatprep.subr.mxu0 0.0
      %1475 = vmatpush1.msra.mxu0 0.0
      %1476 = vmatprep.subr.mxu0 0.0
      %1477 = vmatpush1.msra.mxu0 0.0
      %1478 = vmatprep.subr.mxu0 0.0
      %1479 = vmatpush1.msra.mxu0 0.0
      %1480 = vmatprep.subr.mxu0 0.0
      %1481 = vmatpush1.msra.mxu0 0.0
      %1482 = vmatprep.subr.mxu0 0.0
      %1483 = vmatpush1.msra.mxu0 0.0
      %1484 = vmatprep.subr.mxu0 0.0
      %1485 = vmatpush1.msra.mxu0 0.0
      %1486 = vmatprep.subr.mxu0 0.0
      %1487 = vmatpush1.msra.mxu0 0.0
      %1488 = vmatprep.subr.mxu0 0.0
      %1489 = vmatpush1.msra.mxu0 0.0
      %1490 = vmatprep.subr.mxu0 0.0
      %1491 = vmatpush1.msra.mxu0 0.0
      %1492 = vmatprep.mubr.f32.mxu0 0.0
      %1493 = vmatmul.mubr.f32.gmra.mrb[0].mxu0 %v1424
      %v1494 = vpop.f32.mrb[0].mxu0
      %v1495 = vadd.f32 0.0, %v1494
      %v1496 = vpop.f32.mrb[0].mxu0
      %1497 = vdwg.mxu0
      %v1499 = vsel %vm614, %v1495, 0
      %1501 = vmatprep.subr.mxu0 0.0
      %1502 = vmatpush1.msra.mxu0 %v604
      %1503 = vmatprep.subr.mxu0 0.0
      %1504 = vmatpush1.msra.mxu0 %v605
      %1505 = vmatprep.subr.mxu0 0.0
      %1506 = vmatpush1.msra.mxu0 0.0
      %1507 = vmatprep.subr.mxu0 0.0
      %1508 = vmatpush1.msra.mxu0 0.0
      %1509 = vmatprep.subr.mxu0 0.0
      %1510 = vmatpush1.msra.mxu0 0.0
      %1511 = vmatprep.subr.mxu0 0.0
      %1512 = vmatpush1.msra.mxu0 0.0
      %1513 = vmatprep.subr.mxu0 0.0
      %1514 = vmatpush1.msra.mxu0 0.0
      %1515 = vmatprep.subr.mxu0 0.0
      %1516 = vmatpush1.msra.mxu0 0.0
      %1517 = vmatprep.subr.mxu0 0.0
      %1518 = vmatpush1.msra.mxu0 0.0
      %1519 = vmatprep.subr.mxu0 0.0
      %1520 = vmatpush1.msra.mxu0 0.0
      %1521 = vmatprep.subr.mxu0 0.0
      %1522 = vmatpush1.msra.mxu0 0.0
      %1523 = vmatprep.subr.mxu0 0.0
      %1524 = vmatpush1.msra.mxu0 0.0
      %1525 = vmatprep.subr.mxu0 0.0
      %1526 = vmatpush1.msra.mxu0 0.0
      %1527 = vmatprep.subr.mxu0 0.0
      %1528 = vmatpush1.msra.mxu0 0.0
      %1529 = vmatprep.subr.mxu0 0.0
      %1530 = vmatpush1.msra.mxu0 0.0
      %1531 = vmatprep.subr.mxu0 0.0
      %1532 = vmatpush1.msra.mxu0 0.0
      %1533 = vmatprep.subr.mxu0 0.0
      %1534 = vmatpush1.msra.mxu0 0.0
      %1535 = vmatprep.subr.mxu0 0.0
      %1536 = vmatpush1.msra.mxu0 0.0
      %1537 = vmatprep.subr.mxu0 0.0
      %1538 = vmatpush1.msra.mxu0 0.0
      %1539 = vmatprep.subr.mxu0 0.0
      %1540 = vmatpush1.msra.mxu0 0.0
      %1541 = vmatprep.subr.mxu0 0.0
      %1542 = vmatpush1.msra.mxu0 0.0
      %1543 = vmatprep.subr.mxu0 0.0
      %1544 = vmatpush1.msra.mxu0 0.0
      %1545 = vmatprep.subr.mxu0 0.0
      %1546 = vmatpush1.msra.mxu0 0.0
      %1547 = vmatprep.subr.mxu0 0.0
      %1548 = vmatpush1.msra.mxu0 0.0
      %1549 = vmatprep.subr.mxu0 0.0
      %1550 = vmatpush1.msra.mxu0 0.0
      %1551 = vmatprep.subr.mxu0 0.0
      %1552 = vmatpush1.msra.mxu0 0.0
      %1553 = vmatprep.subr.mxu0 0.0
      %1554 = vmatpush1.msra.mxu0 0.0
      %1555 = vmatprep.subr.mxu0 0.0
      %1556 = vmatpush1.msra.mxu0 0.0
      %1557 = vmatprep.subr.mxu0 0.0
      %1558 = vmatpush1.msra.mxu0 0.0
      %1559 = vmatprep.subr.mxu0 0.0
      %1560 = vmatpush1.msra.mxu0 0.0
      %1561 = vmatprep.subr.mxu0 0.0
      %1562 = vmatpush1.msra.mxu0 0.0
      %1563 = vmatprep.subr.mxu0 0.0
      %1564 = vmatpush1.msra.mxu0 0.0
      %1565 = vmatprep.mubr.f32.mxu0 0.0
      %1566 = vmatmul.mubr.f32.gmra.mrb[0].mxu0 %v1499
      %v1567 = vpop.f32.mrb[0].mxu0
      %v1568 = vadd.f32 0.0, %v1567
      %v1569 = vpop.f32.mrb[0].mxu0
      %1570 = vdwg.mxu0
      %v1571 = vadd.f32 %v1331, %v1568
      %v1572 = vadd.f32 %v463, %v1571
      %v1573 = vld [vmem:[%s7] sm:$0x1]
      %v1575 = vlaneseq
      %v1576 = vshrl.u32 %v1575, 7
      %v1577 = vsub.s32 0, %v1576
      %v1578 = vrot.slane %v1573, %v1577
      %v1580 = vadd.f32 %v1572, %v1578
      %v1581 = vld [vmem:[%s8] sm:$0x1]
      %v1582 = vld [vmem:[%s9] sm:$0x1]
      %v1583 = vsel %vm466, %v1580, 0.0
      %1584 = vadd.xlane.f32.xlu0 %v1583
      %v1585 = vpop.xlane.xlu0 %1584
      %v1586 = vmul.f32 %v1585, %v470
      %v1587 = vsub.f32 %v1580, %v1586
      %v1588 = vmul.f32 %v1587, %v1587
      %v1589 = vsel %vm466, %v1588, 0.0
      %1590 = vadd.xlane.f32.xlu0 %v1589
      %v1591 = vpop.xlane.xlu0 %1590
      %v1592 = vmul.f32 %v1591, %v470
      %v1593 = vadd.f32 %v1592, 1e-05
      %v1594 = vrsqrt.pop %v1593
      %v1595 = vmul.f32 %v1587, %v1594
      %v1597 = vlaneseq
      %v1598 = vshrl.u32 %v1597, 7
      %v1599 = vsub.s32 0, %v1598
      %v1600 = vrot.slane %v1581, %v1599
      %v1602 = vmul.f32 %v1595, %v1600
      %v1604 = vlaneseq
      %v1605 = vshrl.u32 %v1604, 7
      %v1606 = vsub.s32 0, %v1605
      %v1607 = vrot.slane %v1582, %v1606
      %v1609 = vadd.f32 %v1602, %v1607
      %v1610 = vld [vmem:[%s10] sm:$0xff]
      %v1611 = vld [vmem:[%s10 + $0x8] sm:$0xff]
      %v1612 = vld [vmem:[%s10 + $0x10] sm:$0xff]
      %v1613 = vld [vmem:[%s10 + $0x18] sm:$0xff]
      %v1614 = vld [vmem:[%s10 + $0x20] sm:$0xff]
      %v1615 = vld [vmem:[%s10 + $0x28] sm:$0xff]
      %v1616 = vld [vmem:[%s10 + $0x30] sm:$0xff]
      %v1617 = vld [vmem:[%s10 + $0x38] sm:$0xff]
      %v1618 = vld [vmem:[%s10 + $0x40] sm:$0xff]
      %v1619 = vld [vmem:[%s10 + $0x48] sm:$0xff]
      %v1620 = vld [vmem:[%s10 + $0x50] sm:$0xff]
      %v1621 = vld [vmem:[%s10 + $0x58] sm:$0xff]
      %v1622 = vld [vmem:[%s10 + $0x60] sm:$0xff]
      %v1623 = vld [vmem:[%s10 + $0x68] sm:$0xff]
      %v1624 = vld [vmem:[%s10 + $0x70] sm:$0xff]
      %v1625 = vld [vmem:[%s10 + $0x78] sm:$0xff]
      %v1626 = vld [vmem:[%s11] sm:$0x3]
      %v1628 = vlaneseq
      %v1629 = vshrl.u32 %v1628, 7
      %v1630 = vsub.s32 0, %v1629
      %v1631 = vrot.slane %v1626, %v1630
      %v1632 = vlaneseq
      %v1633 = vshrl.u32 %v1632, 7
      %v1634 = vsub.s32 1, %v1633
      %v1635 = vrot.slane %v1626, %v1634
      %v1639 = vsel %vm523, %v1609, 0
      %1641 = vmatprep.subr.mxu0 %v1611
      %1642 = vmatpush1.msra.mxu0 %v1610
      %1643 = vmatprep.subr.mxu0 %v1613
      %1644 = vmatpush1.msra.mxu0 %v1612
      %1645 = vmatprep.subr.mxu0 %v1615
      %1646 = vmatpush1.msra.mxu0 %v1614
      %1647 = vmatprep.subr.mxu0 %v1617
      %1648 = vmatpush1.msra.mxu0 %v1616
      %1649 = vmatprep.subr.mxu0 %v1619
      %1650 = vmatpush1.msra.mxu0 %v1618
      %1651 = vmatprep.subr.mxu0 %v1621
      %1652 = vmatpush1.msra.mxu0 %v1620
      %1653 = vmatprep.subr.mxu0 %v1623
      %1654 = vmatpush1.msra.mxu0 %v1622
      %1655 = vmatprep.subr.mxu0 %v1625
      %1656 = vmatpush1.msra.mxu0 %v1624
      %1657 = vmatprep.subr.mxu0 0.0
      %1658 = vmatpush1.msra.mxu0 0.0
      %1659 = vmatprep.subr.mxu0 0.0
      %1660 = vmatpush1.msra.mxu0 0.0
      %1661 = vmatprep.subr.mxu0 0.0
      %1662 = vmatpush1.msra.mxu0 0.0
      %1663 = vmatprep.subr.mxu0 0.0
      %1664 = vmatpush1.msra.mxu0 0.0
      %1665 = vmatprep.subr.mxu0 0.0
      %1666 = vmatpush1.msra.mxu0 0.0
      %1667 = vmatprep.subr.mxu0 0.0
      %1668 = vmatpush1.msra.mxu0 0.0
      %1669 = vmatprep.subr.mxu0 0.0
      %1670 = vmatpush1.msra.mxu0 0.0
      %1671 = vmatprep.subr.mxu0 0.0
      %1672 = vmatpush1.msra.mxu0 0.0
      %1673 = vmatprep.subr.mxu0 0.0
      %1674 = vmatpush1.msra.mxu0 0.0
      %1675 = vmatprep.subr.mxu0 0.0
      %1676 = vmatpush1.msra.mxu0 0.0
      %1677 = vmatprep.subr.mxu0 0.0
      %1678 = vmatpush1.msra.mxu0 0.0
      %1679 = vmatprep.subr.mxu0 0.0
      %1680 = vmatpush1.msra.mxu0 0.0
      %1681 = vmatprep.subr.mxu0 0.0
      %1682 = vmatpush1.msra.mxu0 0.0
      %1683 = vmatprep.subr.mxu0 0.0
      %1684 = vmatpush1.msra.mxu0 0.0
      %1685 = vmatprep.subr.mxu0 0.0
      %1686 = vmatpush1.msra.mxu0 0.0
      %1687 = vmatprep.subr.mxu0 0.0
      %1688 = vmatpush1.msra.mxu0 0.0
      %1689 = vmatprep.subr.mxu0 0.0
      %1690 = vmatpush1.msra.mxu0 0.0
      %1691 = vmatprep.subr.mxu0 0.0
      %1692 = vmatpush1.msra.mxu0 0.0
      %1693 = vmatprep.subr.mxu0 0.0
      %1694 = vmatpush1.msra.mxu0 0.0
      %1695 = vmatprep.subr.mxu0 0.0
      %1696 = vmatpush1.msra.mxu0 0.0
      %1697 = vmatprep.subr.mxu0 0.0
      %1698 = vmatpush1.msra.mxu0 0.0
      %1699 = vmatprep.subr.mxu0 0.0
      %1700 = vmatpush1.msra.mxu0 0.0
      %1701 = vmatprep.subr.mxu0 0.0
      %1702 = vmatpush1.msra.mxu0 0.0
      %1703 = vmatprep.subr.mxu0 0.0
      %1704 = vmatpush1.msra.mxu0 0.0
      %1705 = vmatprep.mubr.f32.mxu0 0.0
      %1706 = vmatmul.mubr.f32.gmra.mrb[0].mxu0 %v1639
      %v1707 = vpop.f32.mrb[0].mxu0
      %v1708 = vadd.f32 %v1631, %v1707
      %v1709 = vpop.f32.mrb[0].mxu0
      %v1710 = vadd.f32 %v1635, %v1709
      %1711 = vdwg.mxu0
      %v1712 = vmul.f32 %v1708, %v1708
      %v1713 = vmul.f32 %v1710, %v1710
      %v1714 = vmul.f32 %v1708, %v1712
      %v1715 = vmul.f32 %v1710, %v1713
      %v1716 = vmul.f32 %v1714, 0.044715
      %v1717 = vmul.f32 %v1715, 0.044715
      %v1718 = vadd.f32 %v1708, %v1716
      %v1719 = vadd.f32 %v1710, %v1717
      %v1720 = vmul.f32 %v1718, 0.7978846
      %v1721 = vmul.f32 %v1719, 0.7978846
      %v1722 = vtanh.pop %v1720
      %v1723 = vtanh.pop %v1721
      %v1724 = vadd.f32 %v1722, 1.0
      %v1725 = vadd.f32 %v1723, 1.0
      %v1726 = vmul.f32 %v1724, 0.5
      %v1727 = vmul.f32 %v1725, 0.5
      %v1728 = vmul.f32 %v1708, %v1726
      %v1729 = vmul.f32 %v1710, %v1727
      %v1730 = vld [vmem:[%s12] sm:$0xff]
      %v1731 = vld [vmem:[%s12 + $0x8] sm:$0xff]
      %v1732 = vld [vmem:[%s12 + $0x10] sm:$0xff]
      %v1733 = vld [vmem:[%s12 + $0x18] sm:$0xff]
      %v1734 = vld [vmem:[%s12 + $0x20] sm:$0xff]
      %v1735 = vld [vmem:[%s12 + $0x28] sm:$0xff]
      %v1736 = vld [vmem:[%s12 + $0x30] sm:$0xff]
      %v1737 = vld [vmem:[%s12 + $0x38] sm:$0xff]
      %v1738 = vld [vmem:[%s12 + $0x40] sm:$0xff]
      %v1739 = vld [vmem:[%s12 + $0x48] sm:$0xff]
      %v1740 = vld [vmem:[%s12 + $0x50] sm:$0xff]
      %v1741 = vld [vmem:[%s12 + $0x58] sm:$0xff]
      %v1742 = vld [vmem:[%s12 + $0x60] sm:$0xff]
      %v1743 = vld [vmem:[%s12 + $0x68] sm:$0xff]
      %v1744 = vld [vmem:[%s12 + $0x70] sm:$0xff]
      %v1745 = vld [vmem:[%s12 + $0x78] sm:$0xff]
      %v1746 = vld [vmem:[%s12 + $0x80] sm:$0xff]
      %v1747 = vld [vmem:[%s12 + $0x88] sm:$0xff]
      %v1748 = vld [vmem:[%s12 + $0x90] sm:$0xff]
      %v1749 = vld [vmem:[%s12 + $0x98] sm:$0xff]
      %v1750 = vld [vmem:[%s12 + $0xa0] sm:$0xff]
      %v1751 = vld [vmem:[%s12 + $0xa8] sm:$0xff]
      %v1752 = vld [vmem:[%s12 + $0xb0] sm:$0xff]
      %v1753 = vld [vmem:[%s12 + $0xb8] sm:$0xff]
      %v1754 = vld [vmem:[%s12 + $0xc0] sm:$0xff]
      %v1755 = vld [vmem:[%s12 + $0xc8] sm:$0xff]
      %v1756 = vld [vmem:[%s12 + $0xd0] sm:$0xff]
      %v1757 = vld [vmem:[%s12 + $0xd8] sm:$0xff]
      %v1758 = vld [vmem:[%s12 + $0xe0] sm:$0xff]
      %v1759 = vld [vmem:[%s12 + $0xe8] sm:$0xff]
      %v1760 = vld [vmem:[%s12 + $0xf0] sm:$0xff]
      %v1761 = vld [vmem:[%s12 + $0xf8] sm:$0xff]
      %v1762 = vld [vmem:[%s13] sm:$0x1]
      %v1764 = vlaneseq
      %v1765 = vshrl.u32 %v1764, 7
      %v1766 = vsub.s32 0, %v1765
      %v1767 = vrot.slane %v1762, %v1766
      %1769 = vmatprep.subr.mxu0 0.0
      %1770 = vmatpush1.msra.mxu0 %v1730
      %1771 = vmatprep.subr.mxu0 0.0
      %1772 = vmatpush1.msra.mxu0 %v1731
      %1773 = vmatprep.subr.mxu0 0.0
      %1774 = vmatpush1.msra.mxu0 %v1732
      %1775 = vmatprep.subr.mxu0 0.0
      %1776 = vmatpush1.msra.mxu0 %v1733
      %1777 = vmatprep.subr.mxu0 0.0
      %1778 = vmatpush1.msra.mxu0 %v1734
      %1779 = vmatprep.subr.mxu0 0.0
      %1780 = vmatpush1.msra.mxu0 %v1735
      %1781 = vmatprep.subr.mxu0 0.0
      %1782 = vmatpush1.msra.mxu0 %v1736
      %1783 = vmatprep.subr.mxu0 0.0
      %1784 = vmatpush1.msra.mxu0 %v1737
      %1785 = vmatprep.subr.mxu0 0.0
      %1786 = vmatpush1.msra.mxu0 %v1738
      %1787 = vmatprep.subr.mxu0 0.0
      %1788 = vmatpush1.msra.mxu0 %v1739
      %1789 = vmatprep.subr.mxu0 0.0
      %1790 = vmatpush1.msra.mxu0 %v1740
      %1791 = vmatprep.subr.mxu0 0.0
      %1792 = vmatpush1.msra.mxu0 %v1741
      %1793 = vmatprep.subr.mxu0 0.0
      %1794 = vmatpush1.msra.mxu0 %v1742
      %1795 = vmatprep.subr.mxu0 0.0
      %1796 = vmatpush1.msra.mxu0 %v1743
      %1797 = vmatprep.subr.mxu0 0.0
      %1798 = vmatpush1.msra.mxu0 %v1744
      %1799 = vmatprep.subr.mxu0 0.0
      %1800 = vmatpush1.msra.mxu0 %v1745
      %1801 = vmatprep.subr.mxu0 0.0
      %1802 = vmatpush1.msra.mxu0 %v1746
      %1803 = vmatprep.subr.mxu0 0.0
      %1804 = vmatpush1.msra.mxu0 %v1747
      %1805 = vmatprep.subr.mxu0 0.0
      %1806 = vmatpush1.msra.mxu0 %v1748
      %1807 = vmatprep.subr.mxu0 0.0
      %1808 = vmatpush1.msra.mxu0 %v1749
      %1809 = vmatprep.subr.mxu0 0.0
      %1810 = vmatpush1.msra.mxu0 %v1750
      %1811 = vmatprep.subr.mxu0 0.0
      %1812 = vmatpush1.msra.mxu0 %v1751
      %1813 = vmatprep.subr.mxu0 0.0
      %1814 = vmatpush1.msra.mxu0 %v1752
      %1815 = vmatprep.subr.mxu0 0.0
      %1816 = vmatpush1.msra.mxu0 %v1753
      %1817 = vmatprep.subr.mxu0 0.0
      %1818 = vmatpush1.msra.mxu0 %v1754
      %1819 = vmatprep.subr.mxu0 0.0
      %1820 = vmatpush1.msra.mxu0 %v1755
      %1821 = vmatprep.subr.mxu0 0.0
      %1822 = vmatpush1.msra.mxu0 %v1756
      %1823 = vmatprep.subr.mxu0 0.0
      %1824 = vmatpush1.msra.mxu0 %v1757
      %1825 = vmatprep.subr.mxu0 0.0
      %1826 = vmatpush1.msra.mxu0 %v1758
      %1827 = vmatprep.subr.mxu0 0.0
      %1828 = vmatpush1.msra.mxu0 %v1759
      %1829 = vmatprep.subr.mxu0 0.0
      %1830 = vmatpush1.msra.mxu0 %v1760
      %1831 = vmatprep.subr.mxu0 0.0
      %1832 = vmatpush1.msra.mxu0 %v1761
      %1833 = vmatprep.mubr.f32.mxu0 %v1729
      %1834 = vmatmul.mubr.f32.gmra.mrb[0].mxu0 %v1728
      %v1835 = vpop.f32.mrb[0].mxu0
      %v1836 = vadd.f32 %v1767, %v1835
      %v1837 = vpop.f32.mrb[0].mxu0
      %1838 = vdwg.mxu0
      %v1839 = vadd.f32 %v1580, %v1836
      %1840 = vst.msk [vmem:[%s462] sm:$0xf] %vm466, %v1839
      %p1841 = scmp.lt.s32.totalorder %s25, 1
      %s1842 = scalar_select %p1841, %s25, 1
      %s1843 = smul.addr %s1842, 4
      %s1844 = scalar_lea.vmem %s14, %s1843
      // Predicated region
      $region77: #{swin_forward.11} parent=75 // pred_check
        %p1845 = pneg %p342
      $region78: #{swin_forward.11} parent=75 // pred_check_branch
        %1847 = sbr.rel (%p1845) target = $region80
      $region79: #{swin_forward.11} parent=75 // pred_region
        _
      $region80: #{swin_forward.11} parent=75 // pred_fallthru
        _
    $region76: #{swin_forward.11} parent=5 // pred_fallthru
      _
    %p1848 = scmp.le.s32.totalorder 2, %s20
    // Predicated region
    $region81: #{swin_forward.11} parent=5 // pred_check
      %p1849 = pneg %p1848
    $region82: #{swin_forward.11} parent=5 // pred_check_branch
      %1851 = sbr.rel (%p1849) target = $region84
    $region83: #{swin_forward.11} parent=5 // pred_region
      %s1852 = ssub.s32 %s20, 2
      // Predicated region
      $region85: #{swin_forward.11} parent=83 // pred_check
        %p1853 = pneg %p348
      $region86: #{swin_forward.11} parent=83 // pred_check_branch
        %1855 = sbr.rel (%p1853) target = $region88
      $region87: #{swin_forward.11} parent=83 // pred_region
        %p1856 = scmp.lt.s32.totalorder %s26, 1
        %s1857 = scalar_select %p1856, %s26, 1
        %s1858 = smul.addr %s1857, 4
        %s1859 = scalar_lea.vmem %s14, %s1858
      $region88: #{swin_forward.11} parent=83 // pred_fallthru
        _
    $region84: #{swin_forward.11} parent=5 // pred_fallthru
      _
  $region6: #{swin_forward.11} parent=0 // loop_footer
    %s24 = sadd.s32 1, %s20
  $region7: #{swin_forward.11} parent=0 // loop_footer_branch
    %19 = sbr.rel target = $region3
  $region8: #{swin_forward.11} parent=0 // loop_exit
    _

</llo_original>
